<compile_context>
chip_gen: v7x
topology: tpu7x:2x2x1
jax: 0.10.0
libtpu: 0.0.40
codegen_flags: <defaults>
</compile_context>

<pallas_src>
import functools

import jax
import jax.numpy as jnp
from jax.experimental import pallas as pl
from jax.experimental.pallas import tpu as pltpu

LANE = 128


# ======================================================================================
# Fused ResidualBlock kernel
# ======================================================================================

def _residual_block_kernel(x_ref, w1_ref, w2_ref, o_ref, pad_ref, *, H, W, eps, fuse_k):
    Cp = o_ref.shape[-1]
    HW = H * W

    def reflect_pad(img):
        """1-px torch-style reflect pad of an (H, W, Cp) value (edge not repeated)."""
        rows = jnp.concatenate([img[1:2], img, img[H - 2:H - 1]], axis=0)
        return jnp.concatenate([rows[:, 1:2], rows, rows[:, W - 2:W - 1]], axis=1)

    def conv3x3(w_ref):
        """3x3 conv of the padded map in `pad_ref` as MXU matmul(s), bf16 x bf16 -> f32."""
        taps = [pad_ref[kh:kh + H, kw:kw + W, :].reshape(HW, Cp)
                for kh in range(3) for kw in range(3)]
        if fuse_k:
            # one matmul per conv, K = 9*Cp (amortises MXU issue/drain; small H*W only)
            return jnp.dot(jnp.concatenate(taps, axis=-1), w_ref[...],
                           preferred_element_type=jnp.float32)
        acc = jnp.zeros((HW, Cp), jnp.float32)
        for kh in range(3):
            band = jnp.concatenate(taps[3 * kh:3 * kh + 3], axis=-1)
            acc = acc + jnp.dot(band, w_ref[3 * kh * Cp:3 * (kh + 1) * Cp, :],
                                preferred_element_type=jnp.float32)
        return acc

    def inst_norm(v, relu):
        # One traversal for the stats (sum + sum-of-squares), then one fused
        # scale/shift (+ReLU) traversal: s = rsqrt(var+eps), t = -mean*s.
        # NOTE: one-pass E[x^2]-mean^2 can lose precision when |mean| >> std;
        #       clamped at 0 (acceptable here, documented per review).
        inv_n = 1.0 / HW
        mean = jnp.sum(v, axis=0, keepdims=True) * inv_n
        var = jnp.maximum(jnp.sum(v * v, axis=0, keepdims=True) * inv_n - mean * mean, 0.0)
        s = jax.lax.rsqrt(var + eps)
        out = v * s + (-mean * s)
        return jnp.maximum(out, 0.0) if relu else out

    x = x_ref[0]                                            # (H, W, Cp) f32, resident

    # ---- ConvBlock 1: conv -> InstanceNorm -> ReLU (no bias: cancelled by IN) --------
    pad_ref[...] = reflect_pad(x).astype(pad_ref.dtype)     # reflect pad built in VMEM
    y = inst_norm(conv3x3(w1_ref), relu=True)

    # ---- ConvBlock 2: conv -> InstanceNorm + residual add -----------------------------
    # scratch reused for the padded intermediate: it never touches HBM
    pad_ref[...] = reflect_pad(y.reshape(H, W, Cp)).astype(pad_ref.dtype)
    y2 = inst_norm(conv3x3(w2_ref), relu=False)

    o_ref[...] = (x.reshape(HW, Cp) + y2).reshape(1, H, W, Cp)


# ======================================================================================
# Wrapper
# ======================================================================================

def _pad_channels(a, axis, cp):
    c = a.shape[axis]
    if c == cp:
        return a
    pads = [(0, 0)] * a.ndim
    pads[axis] = (0, cp - c)
    return jnp.pad(a, pads)


def residual_block(x_nchw, w1, b1, w2, b2, *, eps=1e-5):
    """PyTorch ResidualBlock forward.  x: NCHW f32, weights in torch Conv2d layout.

    b1/b2 are accepted for API parity but not used: a per-channel conv bias followed by
    InstanceNorm2d(affine=False) is algebraically cancelled (reference keeps them).
    """
    del b1, b2
    x = jnp.transpose(x_nchw, (0, 2, 3, 1)).astype(jnp.float32)        # NCHW -> NHWC
    B, H, W, C = x.shape
    assert H >= 2 and W >= 2, "reflect padding (and this kernel) requires H, W >= 2"
    Cp = ((C + LANE - 1) // LANE) * LANE                               # lane-dense channels
    HW = H * W

    def prep_w(w):
        w = jnp.asarray(w, jnp.float32)
        w = _pad_channels(_pad_channels(w, 0, Cp), 1, Cp)              # (Cp, Cp, 3, 3)
        w = jnp.transpose(w, (2, 3, 1, 0))                             # (kh, kw, Cin, Cout)
        return w.reshape(9 * Cp, Cp).astype(jnp.bfloat16)              # bf16 MXU operand

    xp = _pad_channels(x, 3, Cp)                                       # channel pad only

    # ---- generation-aware VMEM budget (v7x has 64 MiB per TC, v5e/v6e 128 MiB) --------
    try:
        vmem_cap = int(pltpu.get_tpu_info().vmem_capacity_bytes)
    except Exception:
        vmem_cap = 64 << 20                                            # conservative (v7x)
    f32b, bf16b = 4, 2
    blk_io = HW * Cp * f32b                                            # one in / out block
    blk_w = 9 * Cp * Cp * bf16b                                        # one weight (bf16)
    pad_buf = (H + 2) * (W + 2) * Cp * bf16b                           # reused scratch
    temps = 2 * HW * 9 * Cp * bf16b + 6 * HW * Cp * f32b + (H + 2) * (W + 2) * Cp * f32b
    vmem_est = 2 * 2 * blk_io + 2 * 2 * blk_w + pad_buf + temps        # dbl-buffered I/O
    if vmem_est > int(0.7 * vmem_cap):
        # TODO(synk): row-tiled two-pass conv+IN fallback for large feature maps.
        raise NotImplementedError(
            f"feature map too large for the fused whole-map strategy ({vmem_est} B)")
    vmem_limit = int(min(int(0.9 * vmem_cap), max(vmem_est + (8 << 20), 32 << 20)))

    # single K=9*Cp matmul per conv when the concatenated band stays small
    fuse_k = (HW * 9 * Cp * bf16b) <= (2 << 20)

    out = pl.pallas_call(
        functools.partial(_residual_block_kernel, H=H, W=W, eps=eps, fuse_k=fuse_k),
        out_shape=jax.ShapeDtypeStruct((B, H, W, Cp), jnp.float32),
        grid_spec=pltpu.PrefetchScalarGridSpec(
            num_scalar_prefetch=0,
            grid=(B,),
            in_specs=[
                pl.BlockSpec((1, H, W, Cp), lambda b: (b, 0, 0, 0)),
                pl.BlockSpec((9 * Cp, Cp), lambda b: (0, 0)),
                pl.BlockSpec((9 * Cp, Cp), lambda b: (0, 0)),
            ],
            out_specs=pl.BlockSpec((1, H, W, Cp), lambda b: (b, 0, 0, 0)),
            scratch_shapes=[pltpu.VMEM((H + 2, W + 2, Cp), jnp.bfloat16)],
        ),
        compiler_params=pltpu.CompilerParams(
            dimension_semantics=("parallel",),
            vmem_limit_bytes=vmem_limit,
        ),
    )(xp, prep_w(w1), prep_w(w2))

    out = out[..., :C]
    return jnp.transpose(out, (0, 3, 1, 2))                            # NHWC -> NCHW


# ======================================================================================
# Pure-JAX reference (correctness validation only; keeps the biases to prove they cancel)
# ======================================================================================

def _conv3x3_reflect_ref(x, w, b):
    xp = jnp.pad(x, ((0, 0), (1, 1), (1, 1), (0, 0)), mode="reflect")
    y = jax.lax.conv_general_dilated(
        xp, jnp.transpose(w, (2, 3, 1, 0)), window_strides=(1, 1), padding="VALID",
        dimension_numbers=("NHWC", "HWIO", "NHWC"),
        precision=jax.lax.Precision.HIGHEST)
    return y + b.reshape(1, 1, 1, -1)


def _inst_norm_ref(x, eps=1e-5):
    mean = jnp.mean(x, axis=(1, 2), keepdims=True)
    var = jnp.var(x, axis=(1, 2), keepdims=True)
    return (x - mean) * jax.lax.rsqrt(var + eps)


def residual_block_reference(x_nchw, w1, b1, w2, b2, eps=1e-5):
    x = jnp.transpose(x_nchw, (0, 2, 3, 1)).astype(jnp.float32)
    y = jax.nn.relu(_inst_norm_ref(_conv3x3_reflect_ref(x, w1, b1), eps))
    y = _inst_norm_ref(_conv3x3_reflect_ref(y, w2, b2), eps)
    return jnp.transpose(x + y, (0, 3, 1, 2))


# ======================================================================================
# Demo
# ======================================================================================

if __name__ == "__main__":
    key = jax.random.PRNGKey(0)
    k1, k2, k3, k4, k5 = jax.random.split(key, 5)

    B, C, H, W = 2, 64, 16, 16
    x = jax.random.normal(k1, (B, C, H, W), jnp.float32)
    w1 = jax.random.normal(k2, (C, C, 3, 3), jnp.float32) * 0.05
    b1 = jax.random.normal(k3, (C,), jnp.float32) * 0.05
    w2 = jax.random.normal(k4, (C, C, 3, 3), jnp.float32) * 0.05
    b2 = jax.random.normal(k5, (C,), jnp.float32) * 0.05

    fwd = jax.jit(residual_block)
    y = jax.block_until_ready(fwd(x, w1, b1, w2, b2))

    assert y.shape == (B, C, H, W), y.shape
    assert bool(jnp.all(jnp.isfinite(y)))

    # Tolerances account for the (review-sanctioned) bf16 matmul operands in the kernel
    # while the reference runs in full f32; a genuine bug produces O(1) errors.
    y_ref = residual_block_reference(x, w1, b1, w2, b2)
    max_err = float(jnp.max(jnp.abs(y - y_ref)))
    mean_err = float(jnp.mean(jnp.abs(y - y_ref)))
    assert max_err < 1e-1, max_err
    assert mean_err < 1.5e-2, mean_err

    print("KERNEL_OK")
</pallas_src>

<mosaic_0001>
module attributes {stable_mosaic.version = 11 : i64} {
  func.func @_residual_block_kernel(%arg0: i32, %arg1: memref<1x16x16x128xf32, #tpu.memory_space<vmem>>, %arg2: memref<1152x128xbf16, #tpu.memory_space<vmem>>, %arg3: memref<1152x128xbf16, #tpu.memory_space<vmem>>, %arg4: memref<1x16x16x128xf32, #tpu.memory_space<vmem>>, %arg5: memref<18x18x128xbf16, #tpu.memory_space<vmem>>) attributes {dimension_semantics = [#tpu.dimension_semantics<parallel>], iteration_bounds = array<i64: 2>, scalar_prefetch = 0 : i64, scratch_operands = 1 : i64, tpu.core_type = #tpu.core_type<tc>, window_params = [{transform_indices = @transform_0, window_bounds = array<i64: 1, 16, 16, 128>}, {pipeline_mode = #tpu.pipeline_mode<synchronous>, transform_indices = @transform_1, window_bounds = array<i64: 1152, 128>}, {pipeline_mode = #tpu.pipeline_mode<synchronous>, transform_indices = @transform_2, window_bounds = array<i64: 1152, 128>}, {transform_indices = @transform_3, window_bounds = array<i64: 1, 16, 16, 128>}]} {
    %c0 = arith.constant 0 : index
    %c0_0 = arith.constant 0 : index
    %c0_1 = arith.constant 0 : index
    %c0_2 = arith.constant 0 : index
    %0 = vector.load %arg1[%c0, %c0_0, %c0_1, %c0_2] : memref<1x16x16x128xf32, #tpu.memory_space<vmem>>, vector<1x16x16x128xf32>
    %1 = vector.shape_cast %0 : vector<1x16x16x128xf32> to vector<16x16x128xf32>
    %2 = vector.extract_strided_slice %1 {offsets = [1, 0, 0], sizes = [1, 16, 128], strides = [1, 1, 1]} : vector<16x16x128xf32> to vector<1x16x128xf32>
    %3 = vector.extract_strided_slice %1 {offsets = [14, 0, 0], sizes = [1, 16, 128], strides = [1, 1, 1]} : vector<16x16x128xf32> to vector<1x16x128xf32>
    %4 = tpu.concatenate %2, %1, %3 in 0 : vector<1x16x128xf32>, vector<16x16x128xf32>, vector<1x16x128xf32> -> vector<18x16x128xf32>
    %5 = vector.extract_strided_slice %4 {offsets = [0, 1, 0], sizes = [18, 1, 128], strides = [1, 1, 1]} : vector<18x16x128xf32> to vector<18x1x128xf32>
    %6 = vector.extract_strided_slice %4 {offsets = [0, 14, 0], sizes = [18, 1, 128], strides = [1, 1, 1]} : vector<18x16x128xf32> to vector<18x1x128xf32>
    %7 = tpu.concatenate %5, %4, %6 in 1 : vector<18x1x128xf32>, vector<18x16x128xf32>, vector<18x1x128xf32> -> vector<18x18x128xf32>
    %8 = arith.truncf %7 : vector<18x18x128xf32> to vector<18x18x128xbf16>
    %c0_3 = arith.constant 0 : index
    %c0_4 = arith.constant 0 : index
    %c0_5 = arith.constant 0 : index
    %9 = vector.load %arg5[%c0_3, %c0_4, %c0_5] : memref<18x18x128xbf16, #tpu.memory_space<vmem>>, vector<18x18x128xbf16>
    tpu.vector_store %arg5[%c0_3, %c0_4, %c0_5], %8 {strides = array<i32>} : memref<18x18x128xbf16, #tpu.memory_space<vmem>>, vector<18x18x128xbf16>,
    %c0_6 = arith.constant 0 : index
    %c0_7 = arith.constant 0 : index
    %c0_8 = arith.constant 0 : index
    %10 = vector.load %arg5[%c0_6, %c0_7, %c0_8] : memref<18x18x128xbf16, #tpu.memory_space<vmem>>, vector<16x16x128xbf16>
    %11 = vector.shape_cast %10 : vector<16x16x128xbf16> to vector<256x128xbf16>
    %c0_9 = arith.constant 0 : index
    %c1 = arith.constant 1 : index
    %c0_10 = arith.constant 0 : index
    %12 = vector.load %arg5[%c0_9, %c1, %c0_10] : memref<18x18x128xbf16, #tpu.memory_space<vmem>>, vector<16x16x128xbf16>
    %13 = vector.shape_cast %12 : vector<16x16x128xbf16> to vector<256x128xbf16>
    %c0_11 = arith.constant 0 : index
    %c2 = arith.constant 2 : index
    %c0_12 = arith.constant 0 : index
    %14 = vector.load %arg5[%c0_11, %c2, %c0_12] : memref<18x18x128xbf16, #tpu.memory_space<vmem>>, vector<16x16x128xbf16>
    %15 = vector.shape_cast %14 : vector<16x16x128xbf16> to vector<256x128xbf16>
    %c1_13 = arith.constant 1 : index
    %c0_14 = arith.constant 0 : index
    %c0_15 = arith.constant 0 : index
    %16 = vector.load %arg5[%c1_13, %c0_14, %c0_15] : memref<18x18x128xbf16, #tpu.memory_space<vmem>>, vector<16x16x128xbf16>
    %17 = vector.shape_cast %16 : vector<16x16x128xbf16> to vector<256x128xbf16>
    %c1_16 = arith.constant 1 : index
    %c1_17 = arith.constant 1 : index
    %c0_18 = arith.constant 0 : index
    %18 = vector.load %arg5[%c1_16, %c1_17, %c0_18] : memref<18x18x128xbf16, #tpu.memory_space<vmem>>, vector<16x16x128xbf16>
    %19 = vector.shape_cast %18 : vector<16x16x128xbf16> to vector<256x128xbf16>
    %c1_19 = arith.constant 1 : index
    %c2_20 = arith.constant 2 : index
    %c0_21 = arith.constant 0 : index
    %20 = vector.load %arg5[%c1_19, %c2_20, %c0_21] : memref<18x18x128xbf16, #tpu.memory_space<vmem>>, vector<16x16x128xbf16>
    %21 = vector.shape_cast %20 : vector<16x16x128xbf16> to vector<256x128xbf16>
    %c2_22 = arith.constant 2 : index
    %c0_23 = arith.constant 0 : index
    %c0_24 = arith.constant 0 : index
    %22 = vector.load %arg5[%c2_22, %c0_23, %c0_24] : memref<18x18x128xbf16, #tpu.memory_space<vmem>>, vector<16x16x128xbf16>
    %23 = vector.shape_cast %22 : vector<16x16x128xbf16> to vector<256x128xbf16>
    %c2_25 = arith.constant 2 : index
    %c1_26 = arith.constant 1 : index
    %c0_27 = arith.constant 0 : index
    %24 = vector.load %arg5[%c2_25, %c1_26, %c0_27] : memref<18x18x128xbf16, #tpu.memory_space<vmem>>, vector<16x16x128xbf16>
    %25 = vector.shape_cast %24 : vector<16x16x128xbf16> to vector<256x128xbf16>
    %c2_28 = arith.constant 2 : index
    %c2_29 = arith.constant 2 : index
    %c0_30 = arith.constant 0 : index
    %26 = vector.load %arg5[%c2_28, %c2_29, %c0_30] : memref<18x18x128xbf16, #tpu.memory_space<vmem>>, vector<16x16x128xbf16>
    %27 = vector.shape_cast %26 : vector<16x16x128xbf16> to vector<256x128xbf16>
    %28 = tpu.concatenate %11, %13, %15, %17, %19, %21, %23, %25, %27 in 1 : vector<256x128xbf16>, vector<256x128xbf16>, vector<256x128xbf16>, vector<256x128xbf16>, vector<256x128xbf16>, vector<256x128xbf16>, vector<256x128xbf16>, vector<256x128xbf16>, vector<256x128xbf16> -> vector<256x1152xbf16>
    %c0_31 = arith.constant 0 : index
    %c0_32 = arith.constant 0 : index
    %29 = vector.load %arg2[%c0_31, %c0_32] : memref<1152x128xbf16, #tpu.memory_space<vmem>>, vector<1152x128xbf16>
    %cst = arith.constant dense<0.000000e+00> : vector<256x128xf32>
    %30 = tpu.matmul %28, %29, %cst {dimension_numbers = #tpu.dot_dimension_numbers<[1], [0], [0], [1], [0, 0, 1, 1], [], []>} : vector<256x1152xbf16>, vector<1152x128xbf16>, vector<256x128xf32> -> vector<256x128xf32>
    %cst_33 = arith.constant dense<0.000000e+00> : vector<128xf32>
    %31 = vector.multi_reduction <add>, %30, %cst_33 [0] : vector<256x128xf32> to vector<128xf32>
    %32 = vector.shape_cast %31 : vector<128xf32> to vector<1x128xf32>
    %cst_34 = arith.constant 3.906250e-03 : f32
    %33 = vector.broadcast %cst_34 : f32 to vector<1x128xf32>
    %34 = arith.mulf %32, %33 : vector<1x128xf32>
    %35 = arith.mulf %30, %30 : vector<256x128xf32>
    %cst_35 = arith.constant dense<0.000000e+00> : vector<128xf32>
    %36 = vector.multi_reduction <add>, %35, %cst_35 [0] : vector<256x128xf32> to vector<128xf32>
    %37 = vector.shape_cast %36 : vector<128xf32> to vector<1x128xf32>
    %cst_36 = arith.constant 3.906250e-03 : f32
    %38 = vector.broadcast %cst_36 : f32 to vector<1x128xf32>
    %39 = arith.mulf %37, %38 : vector<1x128xf32>
    %40 = arith.mulf %34, %34 : vector<1x128xf32>
    %41 = arith.subf %39, %40 : vector<1x128xf32>
    %cst_37 = arith.constant 0.000000e+00 : f32
    %42 = vector.broadcast %cst_37 : f32 to vector<1x128xf32>
    %43 = arith.maximumf %41, %42 : vector<1x128xf32>
    %cst_38 = arith.constant 9.99999974E-6 : f32
    %44 = vector.broadcast %cst_38 : f32 to vector<1x128xf32>
    %45 = arith.addf %43, %44 : vector<1x128xf32>
    %46 = math.rsqrt %45 : vector<1x128xf32>
    %47 = vector.broadcast %46 : vector<1x128xf32> to vector<256x128xf32>
    %48 = arith.mulf %30, %47 : vector<256x128xf32>
    %cst_39 = arith.constant 0.000000e+00 : f32
    %49 = vector.broadcast %cst_39 : f32 to vector<1x128xf32>
    %50 = arith.subf %49, %34 : vector<1x128xf32>
    %51 = arith.mulf %50, %46 : vector<1x128xf32>
    %52 = vector.broadcast %51 : vector<1x128xf32> to vector<256x128xf32>
    %53 = arith.addf %48, %52 : vector<256x128xf32>
    %cst_40 = arith.constant 0.000000e+00 : f32
    %54 = vector.broadcast %cst_40 : f32 to vector<256x128xf32>
    %55 = arith.maximumf %53, %54 : vector<256x128xf32>
    %56 = vector.shape_cast %55 : vector<256x128xf32> to vector<16x16x128xf32>
    %57 = vector.extract_strided_slice %56 {offsets = [1, 0, 0], sizes = [1, 16, 128], strides = [1, 1, 1]} : vector<16x16x128xf32> to vector<1x16x128xf32>
    %58 = vector.extract_strided_slice %56 {offsets = [14, 0, 0], sizes = [1, 16, 128], strides = [1, 1, 1]} : vector<16x16x128xf32> to vector<1x16x128xf32>
    %59 = tpu.concatenate %57, %56, %58 in 0 : vector<1x16x128xf32>, vector<16x16x128xf32>, vector<1x16x128xf32> -> vector<18x16x128xf32>
    %60 = vector.extract_strided_slice %59 {offsets = [0, 1, 0], sizes = [18, 1, 128], strides = [1, 1, 1]} : vector<18x16x128xf32> to vector<18x1x128xf32>
    %61 = vector.extract_strided_slice %59 {offsets = [0, 14, 0], sizes = [18, 1, 128], strides = [1, 1, 1]} : vector<18x16x128xf32> to vector<18x1x128xf32>
    %62 = tpu.concatenate %60, %59, %61 in 1 : vector<18x1x128xf32>, vector<18x16x128xf32>, vector<18x1x128xf32> -> vector<18x18x128xf32>
    %63 = arith.truncf %62 : vector<18x18x128xf32> to vector<18x18x128xbf16>
    %c0_41 = arith.constant 0 : index
    %c0_42 = arith.constant 0 : index
    %c0_43 = arith.constant 0 : index
    %64 = vector.load %arg5[%c0_41, %c0_42, %c0_43] : memref<18x18x128xbf16, #tpu.memory_space<vmem>>, vector<18x18x128xbf16>
    tpu.vector_store %arg5[%c0_41, %c0_42, %c0_43], %63 {strides = array<i32>} : memref<18x18x128xbf16, #tpu.memory_space<vmem>>, vector<18x18x128xbf16>,
    %c0_44 = arith.constant 0 : index
    %c0_45 = arith.constant 0 : index
    %c0_46 = arith.constant 0 : index
    %65 = vector.load %arg5[%c0_44, %c0_45, %c0_46] : memref<18x18x128xbf16, #tpu.memory_space<vmem>>, vector<16x16x128xbf16>
    %66 = vector.shape_cast %65 : vector<16x16x128xbf16> to vector<256x128xbf16>
    %c0_47 = arith.constant 0 : index
    %c1_48 = arith.constant 1 : index
    %c0_49 = arith.constant 0 : index
    %67 = vector.load %arg5[%c0_47, %c1_48, %c0_49] : memref<18x18x128xbf16, #tpu.memory_space<vmem>>, vector<16x16x128xbf16>
    %68 = vector.shape_cast %67 : vector<16x16x128xbf16> to vector<256x128xbf16>
    %c0_50 = arith.constant 0 : index
    %c2_51 = arith.constant 2 : index
    %c0_52 = arith.constant 0 : index
    %69 = vector.load %arg5[%c0_50, %c2_51, %c0_52] : memref<18x18x128xbf16, #tpu.memory_space<vmem>>, vector<16x16x128xbf16>
    %70 = vector.shape_cast %69 : vector<16x16x128xbf16> to vector<256x128xbf16>
    %c1_53 = arith.constant 1 : index
    %c0_54 = arith.constant 0 : index
    %c0_55 = arith.constant 0 : index
    %71 = vector.load %arg5[%c1_53, %c0_54, %c0_55] : memref<18x18x128xbf16, #tpu.memory_space<vmem>>, vector<16x16x128xbf16>
    %72 = vector.shape_cast %71 : vector<16x16x128xbf16> to vector<256x128xbf16>
    %c1_56 = arith.constant 1 : index
    %c1_57 = arith.constant 1 : index
    %c0_58 = arith.constant 0 : index
    %73 = vector.load %arg5[%c1_56, %c1_57, %c0_58] : memref<18x18x128xbf16, #tpu.memory_space<vmem>>, vector<16x16x128xbf16>
    %74 = vector.shape_cast %73 : vector<16x16x128xbf16> to vector<256x128xbf16>
    %c1_59 = arith.constant 1 : index
    %c2_60 = arith.constant 2 : index
    %c0_61 = arith.constant 0 : index
    %75 = vector.load %arg5[%c1_59, %c2_60, %c0_61] : memref<18x18x128xbf16, #tpu.memory_space<vmem>>, vector<16x16x128xbf16>
    %76 = vector.shape_cast %75 : vector<16x16x128xbf16> to vector<256x128xbf16>
    %c2_62 = arith.constant 2 : index
    %c0_63 = arith.constant 0 : index
    %c0_64 = arith.constant 0 : index
    %77 = vector.load %arg5[%c2_62, %c0_63, %c0_64] : memref<18x18x128xbf16, #tpu.memory_space<vmem>>, vector<16x16x128xbf16>
    %78 = vector.shape_cast %77 : vector<16x16x128xbf16> to vector<256x128xbf16>
    %c2_65 = arith.constant 2 : index
    %c1_66 = arith.constant 1 : index
    %c0_67 = arith.constant 0 : index
    %79 = vector.load %arg5[%c2_65, %c1_66, %c0_67] : memref<18x18x128xbf16, #tpu.memory_space<vmem>>, vector<16x16x128xbf16>
    %80 = vector.shape_cast %79 : vector<16x16x128xbf16> to vector<256x128xbf16>
    %c2_68 = arith.constant 2 : index
    %c2_69 = arith.constant 2 : index
    %c0_70 = arith.constant 0 : index
    %81 = vector.load %arg5[%c2_68, %c2_69, %c0_70] : memref<18x18x128xbf16, #tpu.memory_space<vmem>>, vector<16x16x128xbf16>
    %82 = vector.shape_cast %81 : vector<16x16x128xbf16> to vector<256x128xbf16>
    %83 = tpu.concatenate %66, %68, %70, %72, %74, %76, %78, %80, %82 in 1 : vector<256x128xbf16>, vector<256x128xbf16>, vector<256x128xbf16>, vector<256x128xbf16>, vector<256x128xbf16>, vector<256x128xbf16>, vector<256x128xbf16>, vector<256x128xbf16>, vector<256x128xbf16> -> vector<256x1152xbf16>
    %c0_71 = arith.constant 0 : index
    %c0_72 = arith.constant 0 : index
    %84 = vector.load %arg3[%c0_71, %c0_72] : memref<1152x128xbf16, #tpu.memory_space<vmem>>, vector<1152x128xbf16>
    %cst_73 = arith.constant dense<0.000000e+00> : vector<256x128xf32>
    %85 = tpu.matmul %83, %84, %cst_73 {dimension_numbers = #tpu.dot_dimension_numbers<[1], [0], [0], [1], [0, 0, 1, 1], [], []>} : vector<256x1152xbf16>, vector<1152x128xbf16>, vector<256x128xf32> -> vector<256x128xf32>
    %cst_74 = arith.constant dense<0.000000e+00> : vector<128xf32>
    %86 = vector.multi_reduction <add>, %85, %cst_74 [0] : vector<256x128xf32> to vector<128xf32>
    %87 = vector.shape_cast %86 : vector<128xf32> to vector<1x128xf32>
    %cst_75 = arith.constant 3.906250e-03 : f32
    %88 = vector.broadcast %cst_75 : f32 to vector<1x128xf32>
    %89 = arith.mulf %87, %88 : vector<1x128xf32>
    %90 = arith.mulf %85, %85 : vector<256x128xf32>
    %cst_76 = arith.constant dense<0.000000e+00> : vector<128xf32>
    %91 = vector.multi_reduction <add>, %90, %cst_76 [0] : vector<256x128xf32> to vector<128xf32>
    %92 = vector.shape_cast %91 : vector<128xf32> to vector<1x128xf32>
    %cst_77 = arith.constant 3.906250e-03 : f32
    %93 = vector.broadcast %cst_77 : f32 to vector<1x128xf32>
    %94 = arith.mulf %92, %93 : vector<1x128xf32>
    %95 = arith.mulf %89, %89 : vector<1x128xf32>
    %96 = arith.subf %94, %95 : vector<1x128xf32>
    %cst_78 = arith.constant 0.000000e+00 : f32
    %97 = vector.broadcast %cst_78 : f32 to vector<1x128xf32>
    %98 = arith.maximumf %96, %97 : vector<1x128xf32>
    %cst_79 = arith.constant 9.99999974E-6 : f32
    %99 = vector.broadcast %cst_79 : f32 to vector<1x128xf32>
    %100 = arith.addf %98, %99 : vector<1x128xf32>
    %101 = math.rsqrt %100 : vector<1x128xf32>
    %102 = vector.broadcast %101 : vector<1x128xf32> to vector<256x128xf32>
    %103 = arith.mulf %85, %102 : vector<256x128xf32>
    %cst_80 = arith.constant 0.000000e+00 : f32
    %104 = vector.broadcast %cst_80 : f32 to vector<1x128xf32>
    %105 = arith.subf %104, %89 : vector<1x128xf32>
    %106 = arith.mulf %105, %101 : vector<1x128xf32>
    %107 = vector.broadcast %106 : vector<1x128xf32> to vector<256x128xf32>
    %108 = arith.addf %103, %107 : vector<256x128xf32>
    %109 = vector.shape_cast %1 : vector<16x16x128xf32> to vector<256x128xf32>
    %110 = arith.addf %109, %108 : vector<256x128xf32>
    %111 = vector.shape_cast %110 : vector<256x128xf32> to vector<1x16x16x128xf32>
    %c0_81 = arith.constant 0 : index
    %c0_82 = arith.constant 0 : index
    %c0_83 = arith.constant 0 : index
    %c0_84 = arith.constant 0 : index
    %112 = vector.load %arg4[%c0_81, %c0_82, %c0_83, %c0_84] : memref<1x16x16x128xf32, #tpu.memory_space<vmem>>, vector<1x16x16x128xf32>
    tpu.vector_store %arg4[%c0_81, %c0_82, %c0_83, %c0_84], %111 {strides = array<i32>} : memref<1x16x16x128xf32, #tpu.memory_space<vmem>>, vector<1x16x16x128xf32>,
    return
  }
  func.func @transform_0(%arg0: i32) -> (i32, i32, i32, i32) {
    %c0_i32 = arith.constant 0 : i32
    %c0_i32_0 = arith.constant 0 : i32
    %c0_i32_1 = arith.constant 0 : i32
    %c0_i32_2 = arith.constant 0 : i32
    return %arg0, %c0_i32, %c0_i32_0, %c0_i32_1 : i32, i32, i32, i32
  }
  func.func @transform_1(%arg0: i32) -> (i32, i32) {
    %c0_i32 = arith.constant 0 : i32
    %c0_i32_0 = arith.constant 0 : i32
    %c0_i32_1 = arith.constant 0 : i32
    return %c0_i32, %c0_i32_0 : i32, i32
  }
  func.func @transform_2(%arg0: i32) -> (i32, i32) {
    %c0_i32 = arith.constant 0 : i32
    %c0_i32_0 = arith.constant 0 : i32
    %c0_i32_1 = arith.constant 0 : i32
    return %c0_i32, %c0_i32_0 : i32, i32
  }
  func.func @transform_3(%arg0: i32) -> (i32, i32, i32, i32) {
    %c0_i32 = arith.constant 0 : i32
    %c0_i32_0 = arith.constant 0 : i32
    %c0_i32_1 = arith.constant 0 : i32
    %c0_i32_2 = arith.constant 0 : i32
    return %arg0, %c0_i32, %c0_i32_0, %c0_i32_1 : i32, i32, i32, i32
  }
}

</mosaic_0001>

<llo_original>
// kernel: residual_block.1
$region0: #{residual_block.1}
  #allocation0 [shape = 'u32[]', space=smem, size = 0x4, offset = 0x4, fixed_abs, tag = 'smem constant byte address 0x4 - core index']
  #allocation1 [shape = 'u32[144,128]{1,0:T(1,128)}', space=vmem, size = 0x12000, scoped, tag = 'internal scratch']
  #allocation2 [shape = 'bf16[18,18,128]{2,1,0:T(8,128)(2,1)}', space=vmem, size = 0x1b000, scoped, tag = 'scratch operand']
  %s0 = inlined_call_operand.vmem [shape: f32[2,16,16,128], index: 0, kind: input, shape index: {}]
  %s1 = inlined_call_operand.vmem [shape: bf16[1152,128], index: 1, kind: input, shape index: {}]
  %s2 = inlined_call_operand.vmem [shape: bf16[1152,128], index: 2, kind: input, shape index: {}]
  %s3 = inlined_call_operand.vmem [shape: f32[2,16,16,128], index: 3, kind: output, shape index: {}]
  %s4 = sld [smem:[#allocation0]]
  $region45: #{residual_block.1} parent=0
    _
  %s6 = ssub.s32 1, %s4
  %s7 = scalar_select 0, %s6, %s4
  loop: start=0, step=1, limit=4
  $region2: #{residual_block.1} parent=0 // loop_pre_header
    _
  $region3: #{residual_block.1} parent=0 // loop_header
    %s9 = sphi 0, %s13
    %p10 = scmp.ge.s32.totalorder %s9, 4
    %s19 = sphi 0, %s21
    %s22 = sphi 0, %s19
    %s23 = sphi 0, %s22
    %s39 = sphi 0, %s23
    %s43 = sphi 0, %s43
    %s45 = sphi 0, %s43
    %s46 = sphi 0, %s45
    %s60 = sphi 0, %s46
    %s64 = sphi 0, %s64
    %s66 = sphi 0, %s64
    %s67 = sphi 0, %s66
    %s81 = sphi 0, %s67
    %s87 = sphi 0, %s89
    %s90 = sphi 0, %s87
    %s91 = sphi 0, %s90
    %s107 = sphi 0, %s91
  $region4: #{residual_block.1} parent=0 // loop_header_branch
    %12 = sbr.rel (%p10) target = $region8
  $region5: #{residual_block.1} parent=0 // loop_body
    %s14 = ssub.s32 %s9, 1
    %s15 = ssub.s32 %s9, 2
    %s16 = sadd.s32 %s9, 1
    %s17 = ssub.s32 %s9, %s16
    %p18 = scmp.eq.s32.totalorder %s17, 0
    %s20 = sadd.s32 %s19, 1
    %s21 = scalar_select %p18, %s19, %s20
    %p24 = pneg %p18
    %p25 = scmp.eq.s32.totalorder %s9, 1
    %p26 = por %p24, %p25
    %p27 = scmp.ne.s32.totalorder %s19, %s22
    %p28 = scmp.eq.s32.totalorder %s9, 0
    %p29 = por %p27, %p28
    %p30 = scmp.ne.s32.totalorder %s19, %s22
    %p31 = scmp.eq.s32.totalorder %s14, 1
    %p32 = por %p30, %p31
    %p33 = scmp.ne.s32.totalorder %s22, %s23
    %p34 = scmp.eq.s32.totalorder %s14, 0
    %p35 = por %p33, %p34
    %p36 = scmp.ne.s32.totalorder %s22, %s23
    %p37 = scmp.eq.s32.totalorder %s15, 1
    %p38 = por %p36, %p37
    %p40 = scmp.ne.s32.totalorder %s23, %s39
    %p41 = scmp.eq.s32.totalorder %s15, 0
    %p42 = por %p40, %p41
    %s44 = sadd.s32 %s43, 1
    %p47 = scmp.eq.s32.totalorder %s9, 1
    %p48 = scmp.ne.s32.totalorder %s43, %s45
    %p49 = scmp.eq.s32.totalorder %s9, 0
    %p50 = por %p48, %p49
    %p51 = scmp.ne.s32.totalorder %s43, %s45
    %p52 = scmp.eq.s32.totalorder %s14, 1
    %p53 = por %p51, %p52
    %p54 = scmp.ne.s32.totalorder %s45, %s46
    %p55 = scmp.eq.s32.totalorder %s14, 0
    %p56 = por %p54, %p55
    %p57 = scmp.ne.s32.totalorder %s45, %s46
    %p58 = scmp.eq.s32.totalorder %s15, 1
    %p59 = por %p57, %p58
    %p61 = scmp.ne.s32.totalorder %s46, %s60
    %p62 = scmp.eq.s32.totalorder %s15, 0
    %p63 = por %p61, %p62
    %s65 = sadd.s32 %s64, 1
    %p68 = scmp.eq.s32.totalorder %s9, 1
    %p69 = scmp.ne.s32.totalorder %s64, %s66
    %p70 = scmp.eq.s32.totalorder %s9, 0
    %p71 = por %p69, %p70
    %p72 = scmp.ne.s32.totalorder %s64, %s66
    %p73 = scmp.eq.s32.totalorder %s14, 1
    %p74 = por %p72, %p73
    %p75 = scmp.ne.s32.totalorder %s66, %s67
    %p76 = scmp.eq.s32.totalorder %s14, 0
    %p77 = por %p75, %p76
    %p78 = scmp.ne.s32.totalorder %s66, %s67
    %p79 = scmp.eq.s32.totalorder %s15, 1
    %p80 = por %p78, %p79
    %p82 = scmp.ne.s32.totalorder %s67, %s81
    %p83 = scmp.eq.s32.totalorder %s15, 0
    %p84 = por %p82, %p83
    %s85 = ssub.s32 %s9, %s16
    %p86 = scmp.eq.s32.totalorder %s85, 0
    %s88 = sadd.s32 %s87, 1
    %s89 = scalar_select %p86, %s87, %s88
    %p92 = pneg %p86
    %p93 = scmp.eq.s32.totalorder %s9, 1
    %p94 = por %p92, %p93
    %p95 = scmp.ne.s32.totalorder %s87, %s90
    %p96 = scmp.eq.s32.totalorder %s9, 0
    %p97 = por %p95, %p96
    %p98 = scmp.ne.s32.totalorder %s87, %s90
    %p99 = scmp.eq.s32.totalorder %s14, 1
    %p100 = por %p98, %p99
    %p101 = scmp.ne.s32.totalorder %s90, %s91
    %p102 = scmp.eq.s32.totalorder %s14, 0
    %p103 = por %p101, %p102
    %p104 = scmp.ne.s32.totalorder %s90, %s91
    %p105 = scmp.eq.s32.totalorder %s15, 1
    %p106 = por %p104, %p105
    %p108 = scmp.ne.s32.totalorder %s91, %s107
    %p109 = scmp.eq.s32.totalorder %s15, 0
    %p110 = por %p108, %p109
    %p111 = scmp.le.s32.totalorder 1, %s9
    %p112 = scmp.lt.s32.totalorder %s9, 3
    %p113 = pnand %p111, %p112
    %p114 = pneg %p113
    // Predicated region
    $region9: #{residual_block.1} parent=5 // pred_check
      _
    $region10: #{residual_block.1} parent=5 // pred_check_branch
      %116 = sbr.rel (%p113) target = $region12
    $region11: #{residual_block.1} parent=5 // pred_region
      %s117 = ssub.s32 %s9, 1
      // Predicated region
      $region13: #{residual_block.1} parent=11 // pred_check
        %p118 = pneg %p56
      $region14: #{residual_block.1} parent=11 // pred_check_branch
        %120 = sbr.rel (%p118) target = $region16
      $region15: #{residual_block.1} parent=11 // pred_region
        _
      $region16: #{residual_block.1} parent=11 // pred_fallthru
        _
      // Predicated region
      $region17: #{residual_block.1} parent=11 // pred_check
        %p121 = pneg %p77
      $region18: #{residual_block.1} parent=11 // pred_check_branch
        %123 = sbr.rel (%p121) target = $region20
      $region19: #{residual_block.1} parent=11 // pred_region
        _
      $region20: #{residual_block.1} parent=11 // pred_fallthru
        _
    $region12: #{residual_block.1} parent=5 // pred_fallthru
      _
    %p124 = scmp.lt.s32.totalorder %s9, 2
    // Predicated region
    $region21: #{residual_block.1} parent=5 // pred_check
      %p125 = pneg %p124
    $region22: #{residual_block.1} parent=5 // pred_check_branch
      %127 = sbr.rel (%p125) target = $region24
    $region23: #{residual_block.1} parent=5 // pred_region
      // Predicated region
      $region25: #{residual_block.1} parent=23 // pred_check
        %p128 = pneg %p29
      $region26: #{residual_block.1} parent=23 // pred_check_branch
        %130 = sbr.rel (%p128) target = $region28
      $region27: #{residual_block.1} parent=23 // pred_region
        %p131 = scmp.lt.s32.totalorder %s9, 1
        %s132 = scalar_select %p131, %s9, 1
        %s133 = smul.addr %s132, 32
        %s134 = smul.addr %s133, 8
        %s135 = scalar_lea.vmem %s0, %s134
      $region28: #{residual_block.1} parent=23 // pred_fallthru
        _
    $region24: #{residual_block.1} parent=5 // pred_fallthru
      _
    %p136 = scmp.le.s32.totalorder 1, %s9
    %p137 = scmp.lt.s32.totalorder %s9, 3
    %p138 = pnand %p136, %p137
    %p139 = pneg %p138
    // Predicated region
    $region29: #{residual_block.1} parent=5 // pred_check
      _
    $region30: #{residual_block.1} parent=5 // pred_check_branch
      %141 = sbr.rel (%p138) target = $region32
    $region31: #{residual_block.1} parent=5 // pred_region
      %s142 = ssub.s32 %s9, 1
      %p143 = scmp.lt.s32.totalorder %s14, 1
      %s144 = scalar_select %p143, %s14, 1
      %s145 = smul.addr %s144, 32
      %s146 = smul.addr %s145, 8
      %s147 = scalar_lea.vmem %s0, %s146
      %p148 = pneg %p35
      %p149 = pneg %p32
      %p150 = pneg %p56
      %p151 = pneg %p53
      %p152 = pneg %p77
      %p153 = pneg %p74
      %p154 = pneg %p103
      %p155 = pneg %p100
      %p156 = scmp.lt.s32.totalorder %s14, 1
      %s157 = scalar_select %p156, %s14, 1
      %s158 = smul.addr %s157, 32
      %s159 = smul.addr %s158, 8
      %s160 = scalar_lea.vmem %s3, %s159
      %p161 = scmp.lt.s32.totalorder %s14, 1
      %s162 = scalar_select %p161, %s14, 1
      %s163 = smul.addr %s162, 32
      %s164 = smul.addr %s163, 8
      %s165 = scalar_lea.vmem %s0, %s164
      %p166 = scmp.lt.s32.totalorder %s14, 1
      %s167 = scalar_select %p166, %s14, 1
      %s168 = smul.addr %s167, 32
      %s169 = smul.addr %s168, 8
      %s170 = scalar_lea.vmem %s3, %s169
      %v172 = vld [vmem:[%s165] sm:$0xff]
      %v173 = vld [vmem:[%s165 + $0x8] sm:$0xff]
      %v174 = vld [vmem:[%s165 + $0x10] sm:$0xff]
      %v175 = vld [vmem:[%s165 + $0x18] sm:$0xff]
      %v176 = vld [vmem:[%s165 + $0x20] sm:$0xff]
      %v177 = vld [vmem:[%s165 + $0x28] sm:$0xff]
      %v178 = vld [vmem:[%s165 + $0x30] sm:$0xff]
      %v179 = vld [vmem:[%s165 + $0x38] sm:$0xff]
      %v180 = vld [vmem:[%s165 + $0x40] sm:$0xff]
      %v181 = vld [vmem:[%s165 + $0x48] sm:$0xff]
      %v182 = vld [vmem:[%s165 + $0x50] sm:$0xff]
      %v183 = vld [vmem:[%s165 + $0x58] sm:$0xff]
      %v184 = vld [vmem:[%s165 + $0x60] sm:$0xff]
      %v185 = vld [vmem:[%s165 + $0x68] sm:$0xff]
      %v186 = vld [vmem:[%s165 + $0x70] sm:$0xff]
      %v187 = vld [vmem:[%s165 + $0x78] sm:$0xff]
      %v188 = vld [vmem:[%s165 + $0x80] sm:$0xff]
      %v189 = vld [vmem:[%s165 + $0x88] sm:$0xff]
      %v190 = vld [vmem:[%s165 + $0x90] sm:$0xff]
      %v191 = vld [vmem:[%s165 + $0x98] sm:$0xff]
      %v192 = vld [vmem:[%s165 + $0xa0] sm:$0xff]
      %v193 = vld [vmem:[%s165 + $0xa8] sm:$0xff]
      %v194 = vld [vmem:[%s165 + $0xb0] sm:$0xff]
      %v195 = vld [vmem:[%s165 + $0xb8] sm:$0xff]
      %v196 = vld [vmem:[%s165 + $0xc0] sm:$0xff]
      %v197 = vld [vmem:[%s165 + $0xc8] sm:$0xff]
      %v198 = vld [vmem:[%s165 + $0xd0] sm:$0xff]
      %v199 = vld [vmem:[%s165 + $0xd8] sm:$0xff]
      %v200 = vld [vmem:[%s165 + $0xe0] sm:$0xff]
      %v201 = vld [vmem:[%s165 + $0xe8] sm:$0xff]
      %v202 = vld [vmem:[%s165 + $0xf0] sm:$0xff]
      %v203 = vld [vmem:[%s165 + $0xf8] sm:$0xff]
      %v220 = vrot.slane %v174, 1
      %v221 = vrot.slane %v172, 1
      %v222 = vrot.slane %v176, 1
      %v223 = vrot.slane %v178, 1
      %v224 = vrot.slane %v180, 1
      %v225 = vrot.slane %v182, 1
      %v226 = vrot.slane %v184, 1
      %v227 = vrot.slane %v186, 1
      %v228 = vrot.slane %v188, 1
      %v229 = vrot.slane %v190, 1
      %v230 = vrot.slane %v192, 1
      %v231 = vrot.slane %v194, 1
      %v232 = vrot.slane %v196, 1
      %v233 = vrot.slane %v198, 1
      %v234 = vrot.slane %v200, 1
      %v235 = vrot.slane %v202, 1
      %vm268 = vcmask 1040384
      %v269 = vrot.slane %v174, 7
      %v270 = vrot.slane %v175, 7
      %v271 = vsel %vm268, %v269, %v270
      %v272 = vrot.slane %v172, 7
      %v273 = vrot.slane %v173, 7
      %v274 = vsel %vm268, %v272, %v273
      %v275 = vrot.slane %v176, 7
      %v276 = vrot.slane %v177, 7
      %v277 = vsel %vm268, %v275, %v276
      %v278 = vrot.slane %v178, 7
      %v279 = vrot.slane %v179, 7
      %v280 = vsel %vm268, %v278, %v279
      %v281 = vrot.slane %v180, 7
      %v282 = vrot.slane %v181, 7
      %v283 = vsel %vm268, %v281, %v282
      %v284 = vrot.slane %v182, 7
      %v285 = vrot.slane %v183, 7
      %v286 = vsel %vm268, %v284, %v285
      %v287 = vrot.slane %v184, 7
      %v288 = vrot.slane %v185, 7
      %v289 = vsel %vm268, %v287, %v288
      %v290 = vrot.slane %v186, 7
      %v291 = vrot.slane %v187, 7
      %v292 = vsel %vm268, %v290, %v291
      %v293 = vrot.slane %v188, 7
      %v294 = vrot.slane %v189, 7
      %v295 = vsel %vm268, %v293, %v294
      %v296 = vrot.slane %v190, 7
      %v297 = vrot.slane %v191, 7
      %v298 = vsel %vm268, %v296, %v297
      %v299 = vrot.slane %v192, 7
      %v300 = vrot.slane %v193, 7
      %v301 = vsel %vm268, %v299, %v300
      %v302 = vrot.slane %v194, 7
      %v303 = vrot.slane %v195, 7
      %v304 = vsel %vm268, %v302, %v303
      %v305 = vrot.slane %v196, 7
      %v306 = vrot.slane %v197, 7
      %v307 = vsel %vm268, %v305, %v306
      %v308 = vrot.slane %v198, 7
      %v309 = vrot.slane %v199, 7
      %v310 = vsel %vm268, %v308, %v309
      %v311 = vrot.slane %v200, 7
      %v312 = vrot.slane %v201, 7
      %v313 = vsel %vm268, %v311, %v312
      %v314 = vrot.slane %v202, 7
      %v315 = vrot.slane %v203, 7
      %v316 = vsel %vm268, %v314, %v315
      %v365 = vrot.slane %v175, 5
      %v366 = vrot.slane %v173, 5
      %v367 = vrot.slane %v177, 5
      %v368 = vrot.slane %v179, 5
      %v369 = vrot.slane %v181, 5
      %v370 = vrot.slane %v183, 5
      %v371 = vrot.slane %v185, 5
      %v372 = vrot.slane %v187, 5
      %v373 = vrot.slane %v189, 5
      %v374 = vrot.slane %v191, 5
      %v375 = vrot.slane %v193, 5
      %v376 = vrot.slane %v195, 5
      %v377 = vrot.slane %v197, 5
      %v378 = vrot.slane %v199, 5
      %v379 = vrot.slane %v201, 5
      %v380 = vrot.slane %v203, 5
      %v397 = vsel %vm268, %v220, %v269
      %v398 = vsel %vm268, %v221, %v272
      %v399 = vsel %vm268, %v222, %v275
      %v400 = vsel %vm268, %v223, %v278
      %v401 = vsel %vm268, %v224, %v281
      %v402 = vsel %vm268, %v225, %v284
      %v403 = vsel %vm268, %v226, %v287
      %v404 = vsel %vm268, %v227, %v290
      %v405 = vsel %vm268, %v228, %v293
      %v406 = vsel %vm268, %v229, %v296
      %v407 = vsel %vm268, %v230, %v299
      %v408 = vsel %vm268, %v231, %v302
      %v409 = vsel %vm268, %v232, %v305
      %v410 = vsel %vm268, %v233, %v308
      %v411 = vsel %vm268, %v234, %v311
      %v412 = vsel %vm268, %v235, %v314
      %v413 = vsel %vm268, %v270, %v365
      %v414 = vsel %vm268, %v273, %v366
      %v415 = vsel %vm268, %v276, %v367
      %v416 = vsel %vm268, %v279, %v368
      %v417 = vsel %vm268, %v282, %v369
      %v418 = vsel %vm268, %v285, %v370
      %v419 = vsel %vm268, %v288, %v371
      %v420 = vsel %vm268, %v291, %v372
      %v421 = vsel %vm268, %v294, %v373
      %v422 = vsel %vm268, %v297, %v374
      %v423 = vsel %vm268, %v300, %v375
      %v424 = vsel %vm268, %v303, %v376
      %v425 = vsel %vm268, %v306, %v377
      %v426 = vsel %vm268, %v309, %v378
      %v427 = vsel %vm268, %v312, %v379
      %v428 = vsel %vm268, %v315, %v380
      %v429 = vpack.c.bf16 %v271, %v397
      %v430 = vpack.c.bf16 %v413, %v413
      %v431 = vpack.c.bf16 %v274, %v398
      %v432 = vpack.c.bf16 %v414, %v414
      %v433 = vpack.c.bf16 %v277, %v399
      %v434 = vpack.c.bf16 %v415, %v415
      %v435 = vpack.c.bf16 %v280, %v400
      %v436 = vpack.c.bf16 %v416, %v416
      %v437 = vpack.c.bf16 %v283, %v401
      %v438 = vpack.c.bf16 %v417, %v417
      %v439 = vpack.c.bf16 %v286, %v402
      %v440 = vpack.c.bf16 %v418, %v418
      %v441 = vpack.c.bf16 %v289, %v403
      %v442 = vpack.c.bf16 %v419, %v419
      %v443 = vpack.c.bf16 %v292, %v404
      %v444 = vpack.c.bf16 %v420, %v420
      %v445 = vpack.c.bf16 %v295, %v405
      %v446 = vpack.c.bf16 %v421, %v421
      %v447 = vpack.c.bf16 %v298, %v406
      %v448 = vpack.c.bf16 %v422, %v422
      %v449 = vpack.c.bf16 %v301, %v407
      %v450 = vpack.c.bf16 %v423, %v423
      %v451 = vpack.c.bf16 %v304, %v408
      %v452 = vpack.c.bf16 %v424, %v424
      %v453 = vpack.c.bf16 %v307, %v409
      %v454 = vpack.c.bf16 %v425, %v425
      %v455 = vpack.c.bf16 %v310, %v410
      %v456 = vpack.c.bf16 %v426, %v426
      %v457 = vpack.c.bf16 %v313, %v411
      %v458 = vpack.c.bf16 %v427, %v427
      %v459 = vpack.c.bf16 %v316, %v412
      %v460 = vpack.c.bf16 %v428, %v428
      %v493 = vunpack.c.l.b16 %v429
      %v494 = vunpack.c.h.b16 %v429
      %v495 = vunpack.c.l.b16 %v430
      %v496 = vunpack.c.l.b16 %v431
      %v497 = vunpack.c.h.b16 %v431
      %v498 = vunpack.c.l.b16 %v432
      %v499 = vunpack.c.l.b16 %v433
      %v500 = vunpack.c.h.b16 %v433
      %v501 = vunpack.c.l.b16 %v434
      %v502 = vunpack.c.l.b16 %v435
      %v503 = vunpack.c.h.b16 %v435
      %v504 = vunpack.c.l.b16 %v436
      %v505 = vunpack.c.l.b16 %v437
      %v506 = vunpack.c.h.b16 %v437
      %v507 = vunpack.c.l.b16 %v438
      %v508 = vunpack.c.l.b16 %v439
      %v509 = vunpack.c.h.b16 %v439
      %v510 = vunpack.c.l.b16 %v440
      %v511 = vunpack.c.l.b16 %v441
      %v512 = vunpack.c.h.b16 %v441
      %v513 = vunpack.c.l.b16 %v442
      %v514 = vunpack.c.l.b16 %v443
      %v515 = vunpack.c.h.b16 %v443
      %v516 = vunpack.c.l.b16 %v444
      %v517 = vunpack.c.l.b16 %v445
      %v518 = vunpack.c.h.b16 %v445
      %v519 = vunpack.c.l.b16 %v446
      %v520 = vunpack.c.l.b16 %v447
      %v521 = vunpack.c.h.b16 %v447
      %v522 = vunpack.c.l.b16 %v448
      %v523 = vunpack.c.l.b16 %v449
      %v524 = vunpack.c.h.b16 %v449
      %v525 = vunpack.c.l.b16 %v450
      %v526 = vunpack.c.l.b16 %v451
      %v527 = vunpack.c.h.b16 %v451
      %v528 = vunpack.c.l.b16 %v452
      %v529 = vunpack.c.l.b16 %v453
      %v530 = vunpack.c.h.b16 %v453
      %v531 = vunpack.c.l.b16 %v454
      %v532 = vunpack.c.l.b16 %v455
      %v533 = vunpack.c.h.b16 %v455
      %v534 = vunpack.c.l.b16 %v456
      %v535 = vunpack.c.l.b16 %v457
      %v536 = vunpack.c.h.b16 %v457
      %v537 = vunpack.c.l.b16 %v458
      %v538 = vunpack.c.l.b16 %v459
      %v539 = vunpack.c.h.b16 %v459
      %v540 = vunpack.c.l.b16 %v460
      %v541 = vpack.c.b16 %v493, %v493
      %v542 = vpack.c.b16 %v494, %v494
      %v543 = vpack.c.b16 %v495, %v495
      %v544 = vpack.c.b16 %v496, %v496
      %v545 = vpack.c.b16 %v497, %v497
      %v546 = vpack.c.b16 %v498, %v498
      %v547 = vpack.c.b16 %v499, %v499
      %v548 = vpack.c.b16 %v500, %v500
      %v549 = vpack.c.b16 %v501, %v501
      %v550 = vpack.c.b16 %v502, %v502
      %v551 = vpack.c.b16 %v503, %v503
      %v552 = vpack.c.b16 %v504, %v504
      %v553 = vpack.c.b16 %v505, %v505
      %v554 = vpack.c.b16 %v506, %v506
      %v555 = vpack.c.b16 %v507, %v507
      %v556 = vpack.c.b16 %v508, %v508
      %v557 = vpack.c.b16 %v509, %v509
      %v558 = vpack.c.b16 %v510, %v510
      %v559 = vpack.c.b16 %v511, %v511
      %v560 = vpack.c.b16 %v512, %v512
      %v561 = vpack.c.b16 %v513, %v513
      %v562 = vpack.c.b16 %v514, %v514
      %v563 = vpack.c.b16 %v515, %v515
      %v564 = vpack.c.b16 %v516, %v516
      %v565 = vpack.c.b16 %v517, %v517
      %v566 = vpack.c.b16 %v518, %v518
      %v567 = vpack.c.b16 %v519, %v519
      %v568 = vpack.c.b16 %v520, %v520
      %v569 = vpack.c.b16 %v521, %v521
      %v570 = vpack.c.b16 %v522, %v522
      %v571 = vpack.c.b16 %v523, %v523
      %v572 = vpack.c.b16 %v524, %v524
      %v573 = vpack.c.b16 %v525, %v525
      %v574 = vpack.c.b16 %v526, %v526
      %v575 = vpack.c.b16 %v527, %v527
      %v576 = vpack.c.b16 %v528, %v528
      %v577 = vpack.c.b16 %v529, %v529
      %v578 = vpack.c.b16 %v530, %v530
      %v579 = vpack.c.b16 %v531, %v531
      %v580 = vpack.c.b16 %v532, %v532
      %v581 = vpack.c.b16 %v533, %v533
      %v582 = vpack.c.b16 %v534, %v534
      %v583 = vpack.c.b16 %v535, %v535
      %v584 = vpack.c.b16 %v536, %v536
      %v585 = vpack.c.b16 %v537, %v537
      %v586 = vpack.c.b16 %v538, %v538
      %v587 = vpack.c.b16 %v539, %v539
      %v588 = vpack.c.b16 %v540, %v540
      %637 = vst [vmem:[#allocation2] sm:$0xf] %v541
      %638 = vst [vmem:[#allocation2 + $0x4] sm:$0xf] %v542
      %639 = vst [vmem:[#allocation2 + $0x8] sm:$0x1] %v543
      %640 = vst [vmem:[#allocation2 + $0xc] sm:$0xf] %v544
      %641 = vst [vmem:[#allocation2 + $0x10] sm:$0xf] %v545
      %642 = vst [vmem:[#allocation2 + $0x14] sm:$0x1] %v546
      %643 = vst [vmem:[#allocation2 + $0x18] sm:$0xf] %v541
      %644 = vst [vmem:[#allocation2 + $0x1c] sm:$0xf] %v542
      %645 = vst [vmem:[#allocation2 + $0x20] sm:$0x1] %v543
      %646 = vst [vmem:[#allocation2 + $0x24] sm:$0xf] %v547
      %647 = vst [vmem:[#allocation2 + $0x28] sm:$0xf] %v548
      %648 = vst [vmem:[#allocation2 + $0x2c] sm:$0x1] %v549
      %649 = vst [vmem:[#allocation2 + $0x30] sm:$0xf] %v550
      %650 = vst [vmem:[#allocation2 + $0x34] sm:$0xf] %v551
      %651 = vst [vmem:[#allocation2 + $0x38] sm:$0x1] %v552
      %652 = vst [vmem:[#allocation2 + $0x3c] sm:$0xf] %v553
      %653 = vst [vmem:[#allocation2 + $0x40] sm:$0xf] %v554
      %654 = vst [vmem:[#allocation2 + $0x44] sm:$0x1] %v555
      %655 = vst [vmem:[#allocation2 + $0x48] sm:$0xf] %v556
      %656 = vst [vmem:[#allocation2 + $0x4c] sm:$0xf] %v557
      %657 = vst [vmem:[#allocation2 + $0x50] sm:$0x1] %v558
      %658 = vst [vmem:[#allocation2 + $0x54] sm:$0xf] %v559
      %659 = vst [vmem:[#allocation2 + $0x58] sm:$0xf] %v560
      %660 = vst [vmem:[#allocation2 + $0x5c] sm:$0x1] %v561
      %661 = vst [vmem:[#allocation2 + $0x60] sm:$0xf] %v562
      %662 = vst [vmem:[#allocation2 + $0x64] sm:$0xf] %v563
      %663 = vst [vmem:[#allocation2 + $0x68] sm:$0x1] %v564
      %664 = vst [vmem:[#allocation2 + $0x6c] sm:$0xf] %v565
      %665 = vst [vmem:[#allocation2 + $0x70] sm:$0xf] %v566
      %666 = vst [vmem:[#allocation2 + $0x74] sm:$0x1] %v567
      %667 = vst [vmem:[#allocation2 + $0x78] sm:$0xf] %v568
      %668 = vst [vmem:[#allocation2 + $0x7c] sm:$0xf] %v569
      %669 = vst [vmem:[#allocation2 + $0x80] sm:$0x1] %v570
      %670 = vst [vmem:[#allocation2 + $0x84] sm:$0xf] %v571
      %671 = vst [vmem:[#allocation2 + $0x88] sm:$0xf] %v572
      %672 = vst [vmem:[#allocation2 + $0x8c] sm:$0x1] %v573
      %673 = vst [vmem:[#allocation2 + $0x90] sm:$0xf] %v574
      %674 = vst [vmem:[#allocation2 + $0x94] sm:$0xf] %v575
      %675 = vst [vmem:[#allocation2 + $0x98] sm:$0x1] %v576
      %676 = vst [vmem:[#allocation2 + $0x9c] sm:$0xf] %v577
      %677 = vst [vmem:[#allocation2 + $0xa0] sm:$0xf] %v578
      %678 = vst [vmem:[#allocation2 + $0xa4] sm:$0x1] %v579
      %679 = vst [vmem:[#allocation2 + $0xa8] sm:$0xf] %v580
      %680 = vst [vmem:[#allocation2 + $0xac] sm:$0xf] %v581
      %681 = vst [vmem:[#allocation2 + $0xb0] sm:$0x1] %v582
      %682 = vst [vmem:[#allocation2 + $0xb4] sm:$0xf] %v583
      %683 = vst [vmem:[#allocation2 + $0xb8] sm:$0xf] %v584
      %684 = vst [vmem:[#allocation2 + $0xbc] sm:$0x1] %v585
      %685 = vst [vmem:[#allocation2 + $0xc0] sm:$0xf] %v586
      %686 = vst [vmem:[#allocation2 + $0xc4] sm:$0xf] %v587
      %687 = vst [vmem:[#allocation2 + $0xc8] sm:$0x1] %v588
      %688 = vst [vmem:[#allocation2 + $0xcc] sm:$0xf] %v583
      %689 = vst [vmem:[#allocation2 + $0xd0] sm:$0xf] %v584
      %690 = vst [vmem:[#allocation2 + $0xd4] sm:$0x1] %v585
      %v691 = vld [vmem:[#allocation2] sm:$0xf]
      %v692 = vld [vmem:[#allocation2 + $0x4] sm:$0xf]
      %v693 = vld [vmem:[#allocation2 + $0xc] sm:$0xf]
      %v694 = vld [vmem:[#allocation2 + $0x10] sm:$0xf]
      %v695 = vld [vmem:[#allocation2 + $0x18] sm:$0xf]
      %v696 = vld [vmem:[#allocation2 + $0x1c] sm:$0xf]
      %v697 = vld [vmem:[#allocation2 + $0x24] sm:$0xf]
      %v698 = vld [vmem:[#allocation2 + $0x28] sm:$0xf]
      %v699 = vld [vmem:[#allocation2 + $0x30] sm:$0xf]
      %v700 = vld [vmem:[#allocation2 + $0x34] sm:$0xf]
      %v701 = vld [vmem:[#allocation2 + $0x3c] sm:$0xf]
      %v702 = vld [vmem:[#allocation2 + $0x40] sm:$0xf]
      %v703 = vld [vmem:[#allocation2 + $0x48] sm:$0xf]
      %v704 = vld [vmem:[#allocation2 + $0x4c] sm:$0xf]
      %v705 = vld [vmem:[#allocation2 + $0x54] sm:$0xf]
      %v706 = vld [vmem:[#allocation2 + $0x58] sm:$0xf]
      %v707 = vld [vmem:[#allocation2 + $0x60] sm:$0xf]
      %v708 = vld [vmem:[#allocation2 + $0x64] sm:$0xf]
      %v709 = vld [vmem:[#allocation2 + $0x6c] sm:$0xf]
      %v710 = vld [vmem:[#allocation2 + $0x70] sm:$0xf]
      %v711 = vld [vmem:[#allocation2 + $0x78] sm:$0xf]
      %v712 = vld [vmem:[#allocation2 + $0x7c] sm:$0xf]
      %v713 = vld [vmem:[#allocation2 + $0x84] sm:$0xf]
      %v714 = vld [vmem:[#allocation2 + $0x88] sm:$0xf]
      %v715 = vld [vmem:[#allocation2 + $0x90] sm:$0xf]
      %v716 = vld [vmem:[#allocation2 + $0x94] sm:$0xf]
      %v717 = vld [vmem:[#allocation2 + $0x9c] sm:$0xf]
      %v718 = vld [vmem:[#allocation2 + $0xa0] sm:$0xf]
      %v719 = vld [vmem:[#allocation2 + $0xa8] sm:$0xf]
      %v720 = vld [vmem:[#allocation2 + $0xac] sm:$0xf]
      %v721 = vld [vmem:[#allocation2 + $0xb4] sm:$0xf]
      %v722 = vld [vmem:[#allocation2 + $0xb8] sm:$0xf]
      %v723 = vld [vmem:[#allocation2 + $0x8] sm:$0x1]
      %v724 = vld [vmem:[#allocation2 + $0x14] sm:$0x1]
      %v725 = vld [vmem:[#allocation2 + $0x20] sm:$0x1]
      %v726 = vld [vmem:[#allocation2 + $0x2c] sm:$0x1]
      %v727 = vld [vmem:[#allocation2 + $0x38] sm:$0x1]
      %v728 = vld [vmem:[#allocation2 + $0x44] sm:$0x1]
      %v729 = vld [vmem:[#allocation2 + $0x50] sm:$0x1]
      %v730 = vld [vmem:[#allocation2 + $0x5c] sm:$0x1]
      %v731 = vld [vmem:[#allocation2 + $0x68] sm:$0x1]
      %v732 = vld [vmem:[#allocation2 + $0x74] sm:$0x1]
      %v733 = vld [vmem:[#allocation2 + $0x80] sm:$0x1]
      %v734 = vld [vmem:[#allocation2 + $0x8c] sm:$0x1]
      %v735 = vld [vmem:[#allocation2 + $0x98] sm:$0x1]
      %v736 = vld [vmem:[#allocation2 + $0xa4] sm:$0x1]
      %v737 = vld [vmem:[#allocation2 + $0xb0] sm:$0x1]
      %v738 = vld [vmem:[#allocation2 + $0xbc] sm:$0x1]
      %vm739 = vsmask.f32 3328
      %vm740 = vsmask.f32 7440
      %vm741 = vmor %vm739, %vm740
      %v743 = vshrl.u32 %v691, 16
      %v745 = vrot.slane %v743, 4
      %v746 = vshll.u32 %v691, 16
      %v748 = vrot.slane %v746, 5
      %v749 = vor.u32 %v745, %v748
      %v750 = vrot.slane %v749, 4
      %v752 = vshll.u32 %v692, 16
      %v754 = vrot.slane %v752, 5
      %v755 = vsel %vm741, %v750, %v754
      %v756 = vshrl.u32 %v692, 16
      %v758 = vrot.slane %v756, 4
      %v759 = vor.u32 %v758, %v754
      %v760 = vrot.slane %v759, 4
      %v762 = vshll.u32 %v723, 16
      %v764 = vrot.slane %v762, 5
      %v765 = vsel %vm741, %v760, %v764
      %v767 = vshrl.u32 %v693, 16
      %v769 = vrot.slane %v767, 4
      %v770 = vshll.u32 %v693, 16
      %v772 = vrot.slane %v770, 5
      %v773 = vor.u32 %v769, %v772
      %v774 = vrot.slane %v773, 4
      %v776 = vshll.u32 %v694, 16
      %v778 = vrot.slane %v776, 5
      %v779 = vsel %vm741, %v774, %v778
      %v780 = vshrl.u32 %v694, 16
      %v782 = vrot.slane %v780, 4
      %v783 = vor.u32 %v782, %v778
      %v784 = vrot.slane %v783, 4
      %v786 = vshll.u32 %v724, 16
      %v788 = vrot.slane %v786, 5
      %v789 = vsel %vm741, %v784, %v788
      %v791 = vshrl.u32 %v695, 16
      %v793 = vrot.slane %v791, 4
      %v794 = vshll.u32 %v695, 16
      %v796 = vrot.slane %v794, 5
      %v797 = vor.u32 %v793, %v796
      %v798 = vrot.slane %v797, 4
      %v800 = vshll.u32 %v696, 16
      %v802 = vrot.slane %v800, 5
      %v803 = vsel %vm741, %v798, %v802
      %v804 = vshrl.u32 %v696, 16
      %v806 = vrot.slane %v804, 4
      %v807 = vor.u32 %v806, %v802
      %v808 = vrot.slane %v807, 4
      %v810 = vshll.u32 %v725, 16
      %v812 = vrot.slane %v810, 5
      %v813 = vsel %vm741, %v808, %v812
      %v815 = vshrl.u32 %v697, 16
      %v817 = vrot.slane %v815, 4
      %v818 = vshll.u32 %v697, 16
      %v820 = vrot.slane %v818, 5
      %v821 = vor.u32 %v817, %v820
      %v822 = vrot.slane %v821, 4
      %v824 = vshll.u32 %v698, 16
      %v826 = vrot.slane %v824, 5
      %v827 = vsel %vm741, %v822, %v826
      %v828 = vshrl.u32 %v698, 16
      %v830 = vrot.slane %v828, 4
      %v831 = vor.u32 %v830, %v826
      %v832 = vrot.slane %v831, 4
      %v834 = vshll.u32 %v726, 16
      %v836 = vrot.slane %v834, 5
      %v837 = vsel %vm741, %v832, %v836
      %v839 = vshrl.u32 %v699, 16
      %v841 = vrot.slane %v839, 4
      %v842 = vshll.u32 %v699, 16
      %v844 = vrot.slane %v842, 5
      %v845 = vor.u32 %v841, %v844
      %v846 = vrot.slane %v845, 4
      %v848 = vshll.u32 %v700, 16
      %v850 = vrot.slane %v848, 5
      %v851 = vsel %vm741, %v846, %v850
      %v852 = vshrl.u32 %v700, 16
      %v854 = vrot.slane %v852, 4
      %v855 = vor.u32 %v854, %v850
      %v856 = vrot.slane %v855, 4
      %v858 = vshll.u32 %v727, 16
      %v860 = vrot.slane %v858, 5
      %v861 = vsel %vm741, %v856, %v860
      %v863 = vshrl.u32 %v701, 16
      %v865 = vrot.slane %v863, 4
      %v866 = vshll.u32 %v701, 16
      %v868 = vrot.slane %v866, 5
      %v869 = vor.u32 %v865, %v868
      %v870 = vrot.slane %v869, 4
      %v872 = vshll.u32 %v702, 16
      %v874 = vrot.slane %v872, 5
      %v875 = vsel %vm741, %v870, %v874
      %v876 = vshrl.u32 %v702, 16
      %v878 = vrot.slane %v876, 4
      %v879 = vor.u32 %v878, %v874
      %v880 = vrot.slane %v879, 4
      %v882 = vshll.u32 %v728, 16
      %v884 = vrot.slane %v882, 5
      %v885 = vsel %vm741, %v880, %v884
      %v887 = vshrl.u32 %v703, 16
      %v889 = vrot.slane %v887, 4
      %v890 = vshll.u32 %v703, 16
      %v892 = vrot.slane %v890, 5
      %v893 = vor.u32 %v889, %v892
      %v894 = vrot.slane %v893, 4
      %v896 = vshll.u32 %v704, 16
      %v898 = vrot.slane %v896, 5
      %v899 = vsel %vm741, %v894, %v898
      %v900 = vshrl.u32 %v704, 16
      %v902 = vrot.slane %v900, 4
      %v903 = vor.u32 %v902, %v898
      %v904 = vrot.slane %v903, 4
      %v906 = vshll.u32 %v729, 16
      %v908 = vrot.slane %v906, 5
      %v909 = vsel %vm741, %v904, %v908
      %v911 = vshrl.u32 %v705, 16
      %v913 = vrot.slane %v911, 4
      %v914 = vshll.u32 %v705, 16
      %v916 = vrot.slane %v914, 5
      %v917 = vor.u32 %v913, %v916
      %v918 = vrot.slane %v917, 4
      %v920 = vshll.u32 %v706, 16
      %v922 = vrot.slane %v920, 5
      %v923 = vsel %vm741, %v918, %v922
      %v924 = vshrl.u32 %v706, 16
      %v926 = vrot.slane %v924, 4
      %v927 = vor.u32 %v926, %v922
      %v928 = vrot.slane %v927, 4
      %v930 = vshll.u32 %v730, 16
      %v932 = vrot.slane %v930, 5
      %v933 = vsel %vm741, %v928, %v932
      %v935 = vshrl.u32 %v707, 16
      %v937 = vrot.slane %v935, 4
      %v938 = vshll.u32 %v707, 16
      %v940 = vrot.slane %v938, 5
      %v941 = vor.u32 %v937, %v940
      %v942 = vrot.slane %v941, 4
      %v944 = vshll.u32 %v708, 16
      %v946 = vrot.slane %v944, 5
      %v947 = vsel %vm741, %v942, %v946
      %v948 = vshrl.u32 %v708, 16
      %v950 = vrot.slane %v948, 4
      %v951 = vor.u32 %v950, %v946
      %v952 = vrot.slane %v951, 4
      %v954 = vshll.u32 %v731, 16
      %v956 = vrot.slane %v954, 5
      %v957 = vsel %vm741, %v952, %v956
      %v959 = vshrl.u32 %v709, 16
      %v961 = vrot.slane %v959, 4
      %v962 = vshll.u32 %v709, 16
      %v964 = vrot.slane %v962, 5
      %v965 = vor.u32 %v961, %v964
      %v966 = vrot.slane %v965, 4
      %v968 = vshll.u32 %v710, 16
      %v970 = vrot.slane %v968, 5
      %v971 = vsel %vm741, %v966, %v970
      %v972 = vshrl.u32 %v710, 16
      %v974 = vrot.slane %v972, 4
      %v975 = vor.u32 %v974, %v970
      %v976 = vrot.slane %v975, 4
      %v978 = vshll.u32 %v732, 16
      %v980 = vrot.slane %v978, 5
      %v981 = vsel %vm741, %v976, %v980
      %v983 = vshrl.u32 %v711, 16
      %v985 = vrot.slane %v983, 4
      %v986 = vshll.u32 %v711, 16
      %v988 = vrot.slane %v986, 5
      %v989 = vor.u32 %v985, %v988
      %v990 = vrot.slane %v989, 4
      %v992 = vshll.u32 %v712, 16
      %v994 = vrot.slane %v992, 5
      %v995 = vsel %vm741, %v990, %v994
      %v996 = vshrl.u32 %v712, 16
      %v998 = vrot.slane %v996, 4
      %v999 = vor.u32 %v998, %v994
      %v1000 = vrot.slane %v999, 4
      %v1002 = vshll.u32 %v733, 16
      %v1004 = vrot.slane %v1002, 5
      %v1005 = vsel %vm741, %v1000, %v1004
      %v1007 = vshrl.u32 %v713, 16
      %v1009 = vrot.slane %v1007, 4
      %v1010 = vshll.u32 %v713, 16
      %v1012 = vrot.slane %v1010, 5
      %v1013 = vor.u32 %v1009, %v1012
      %v1014 = vrot.slane %v1013, 4
      %v1016 = vshll.u32 %v714, 16
      %v1018 = vrot.slane %v1016, 5
      %v1019 = vsel %vm741, %v1014, %v1018
      %v1020 = vshrl.u32 %v714, 16
      %v1022 = vrot.slane %v1020, 4
      %v1023 = vor.u32 %v1022, %v1018
      %v1024 = vrot.slane %v1023, 4
      %v1026 = vshll.u32 %v734, 16
      %v1028 = vrot.slane %v1026, 5
      %v1029 = vsel %vm741, %v1024, %v1028
      %v1031 = vshrl.u32 %v715, 16
      %v1033 = vrot.slane %v1031, 4
      %v1034 = vshll.u32 %v715, 16
      %v1036 = vrot.slane %v1034, 5
      %v1037 = vor.u32 %v1033, %v1036
      %v1038 = vrot.slane %v1037, 4
      %v1040 = vshll.u32 %v716, 16
      %v1042 = vrot.slane %v1040, 5
      %v1043 = vsel %vm741, %v1038, %v1042
      %v1044 = vshrl.u32 %v716, 16
      %v1046 = vrot.slane %v1044, 4
      %v1047 = vor.u32 %v1046, %v1042
      %v1048 = vrot.slane %v1047, 4
      %v1050 = vshll.u32 %v735, 16
      %v1052 = vrot.slane %v1050, 5
      %v1053 = vsel %vm741, %v1048, %v1052
      %v1055 = vshrl.u32 %v717, 16
      %v1057 = vrot.slane %v1055, 4
      %v1058 = vshll.u32 %v717, 16
      %v1060 = vrot.slane %v1058, 5
      %v1061 = vor.u32 %v1057, %v1060
      %v1062 = vrot.slane %v1061, 4
      %v1064 = vshll.u32 %v718, 16
      %v1066 = vrot.slane %v1064, 5
      %v1067 = vsel %vm741, %v1062, %v1066
      %v1068 = vshrl.u32 %v718, 16
      %v1070 = vrot.slane %v1068, 4
      %v1071 = vor.u32 %v1070, %v1066
      %v1072 = vrot.slane %v1071, 4
      %v1074 = vshll.u32 %v736, 16
      %v1076 = vrot.slane %v1074, 5
      %v1077 = vsel %vm741, %v1072, %v1076
      %v1079 = vshrl.u32 %v719, 16
      %v1081 = vrot.slane %v1079, 4
      %v1082 = vshll.u32 %v719, 16
      %v1084 = vrot.slane %v1082, 5
      %v1085 = vor.u32 %v1081, %v1084
      %v1086 = vrot.slane %v1085, 4
      %v1088 = vshll.u32 %v720, 16
      %v1090 = vrot.slane %v1088, 5
      %v1091 = vsel %vm741, %v1086, %v1090
      %v1092 = vshrl.u32 %v720, 16
      %v1094 = vrot.slane %v1092, 4
      %v1095 = vor.u32 %v1094, %v1090
      %v1096 = vrot.slane %v1095, 4
      %v1098 = vshll.u32 %v737, 16
      %v1100 = vrot.slane %v1098, 5
      %v1101 = vsel %vm741, %v1096, %v1100
      %v1103 = vshrl.u32 %v721, 16
      %v1105 = vrot.slane %v1103, 4
      %v1106 = vshll.u32 %v721, 16
      %v1108 = vrot.slane %v1106, 5
      %v1109 = vor.u32 %v1105, %v1108
      %v1110 = vrot.slane %v1109, 4
      %v1112 = vshll.u32 %v722, 16
      %v1114 = vrot.slane %v1112, 5
      %v1115 = vsel %vm741, %v1110, %v1114
      %v1116 = vshrl.u32 %v722, 16
      %v1118 = vrot.slane %v1116, 4
      %v1119 = vor.u32 %v1118, %v1114
      %v1120 = vrot.slane %v1119, 4
      %v1122 = vshll.u32 %v738, 16
      %v1124 = vrot.slane %v1122, 5
      %v1125 = vsel %vm741, %v1120, %v1124
      %v1126 = vld [vmem:[#allocation2] sm:$0xe]
      %v1127 = vld [vmem:[#allocation2 + $0xc] sm:$0xe]
      %v1128 = vld [vmem:[#allocation2 + $0x18] sm:$0xe]
      %v1129 = vld [vmem:[#allocation2 + $0x24] sm:$0xe]
      %v1130 = vld [vmem:[#allocation2 + $0x30] sm:$0xe]
      %v1131 = vld [vmem:[#allocation2 + $0x3c] sm:$0xe]
      %v1132 = vld [vmem:[#allocation2 + $0x48] sm:$0xe]
      %v1133 = vld [vmem:[#allocation2 + $0x54] sm:$0xe]
      %v1134 = vld [vmem:[#allocation2 + $0x60] sm:$0xe]
      %v1135 = vld [vmem:[#allocation2 + $0x6c] sm:$0xe]
      %v1136 = vld [vmem:[#allocation2 + $0x78] sm:$0xe]
      %v1137 = vld [vmem:[#allocation2 + $0x84] sm:$0xe]
      %v1138 = vld [vmem:[#allocation2 + $0x90] sm:$0xe]
      %v1139 = vld [vmem:[#allocation2 + $0x9c] sm:$0xe]
      %v1140 = vld [vmem:[#allocation2 + $0xa8] sm:$0xe]
      %v1141 = vld [vmem:[#allocation2 + $0xb4] sm:$0xe]
      %vm1190 = vcmask 1042432
      %vm1191 = vcmask 1046532
      %vm1192 = vmor %vm1190, %vm1191
      %v1193 = vrot.slane %v1126, 5
      %v1194 = vrot.slane %v1193, 4
      %v1195 = vrot.slane %v692, 5
      %v1196 = vsel %vm1192, %v1194, %v1195
      %v1197 = vrot.slane %v1195, 4
      %v1198 = vrot.slane %v723, 5
      %v1199 = vsel %vm1192, %v1197, %v1198
      %v1200 = vrot.slane %v1127, 5
      %v1201 = vrot.slane %v1200, 4
      %v1202 = vrot.slane %v694, 5
      %v1203 = vsel %vm1192, %v1201, %v1202
      %v1204 = vrot.slane %v1202, 4
      %v1205 = vrot.slane %v724, 5
      %v1206 = vsel %vm1192, %v1204, %v1205
      %v1207 = vrot.slane %v1128, 5
      %v1208 = vrot.slane %v1207, 4
      %v1209 = vrot.slane %v696, 5
      %v1210 = vsel %vm1192, %v1208, %v1209
      %v1211 = vrot.slane %v1209, 4
      %v1212 = vrot.slane %v725, 5
      %v1213 = vsel %vm1192, %v1211, %v1212
      %v1214 = vrot.slane %v1129, 5
      %v1215 = vrot.slane %v1214, 4
      %v1216 = vrot.slane %v698, 5
      %v1217 = vsel %vm1192, %v1215, %v1216
      %v1218 = vrot.slane %v1216, 4
      %v1219 = vrot.slane %v726, 5
      %v1220 = vsel %vm1192, %v1218, %v1219
      %v1221 = vrot.slane %v1130, 5
      %v1222 = vrot.slane %v1221, 4
      %v1223 = vrot.slane %v700, 5
      %v1224 = vsel %vm1192, %v1222, %v1223
      %v1225 = vrot.slane %v1223, 4
      %v1226 = vrot.slane %v727, 5
      %v1227 = vsel %vm1192, %v1225, %v1226
      %v1228 = vrot.slane %v1131, 5
      %v1229 = vrot.slane %v1228, 4
      %v1230 = vrot.slane %v702, 5
      %v1231 = vsel %vm1192, %v1229, %v1230
      %v1232 = vrot.slane %v1230, 4
      %v1233 = vrot.slane %v728, 5
      %v1234 = vsel %vm1192, %v1232, %v1233
      %v1235 = vrot.slane %v1132, 5
      %v1236 = vrot.slane %v1235, 4
      %v1237 = vrot.slane %v704, 5
      %v1238 = vsel %vm1192, %v1236, %v1237
      %v1239 = vrot.slane %v1237, 4
      %v1240 = vrot.slane %v729, 5
      %v1241 = vsel %vm1192, %v1239, %v1240
      %v1242 = vrot.slane %v1133, 5
      %v1243 = vrot.slane %v1242, 4
      %v1244 = vrot.slane %v706, 5
      %v1245 = vsel %vm1192, %v1243, %v1244
      %v1246 = vrot.slane %v1244, 4
      %v1247 = vrot.slane %v730, 5
      %v1248 = vsel %vm1192, %v1246, %v1247
      %v1249 = vrot.slane %v1134, 5
      %v1250 = vrot.slane %v1249, 4
      %v1251 = vrot.slane %v708, 5
      %v1252 = vsel %vm1192, %v1250, %v1251
      %v1253 = vrot.slane %v1251, 4
      %v1254 = vrot.slane %v731, 5
      %v1255 = vsel %vm1192, %v1253, %v1254
      %v1256 = vrot.slane %v1135, 5
      %v1257 = vrot.slane %v1256, 4
      %v1258 = vrot.slane %v710, 5
      %v1259 = vsel %vm1192, %v1257, %v1258
      %v1260 = vrot.slane %v1258, 4
      %v1261 = vrot.slane %v732, 5
      %v1262 = vsel %vm1192, %v1260, %v1261
      %v1263 = vrot.slane %v1136, 5
      %v1264 = vrot.slane %v1263, 4
      %v1265 = vrot.slane %v712, 5
      %v1266 = vsel %vm1192, %v1264, %v1265
      %v1267 = vrot.slane %v1265, 4
      %v1268 = vrot.slane %v733, 5
      %v1269 = vsel %vm1192, %v1267, %v1268
      %v1270 = vrot.slane %v1137, 5
      %v1271 = vrot.slane %v1270, 4
      %v1272 = vrot.slane %v714, 5
      %v1273 = vsel %vm1192, %v1271, %v1272
      %v1274 = vrot.slane %v1272, 4
      %v1275 = vrot.slane %v734, 5
      %v1276 = vsel %vm1192, %v1274, %v1275
      %v1277 = vrot.slane %v1138, 5
      %v1278 = vrot.slane %v1277, 4
      %v1279 = vrot.slane %v716, 5
      %v1280 = vsel %vm1192, %v1278, %v1279
      %v1281 = vrot.slane %v1279, 4
      %v1282 = vrot.slane %v735, 5
      %v1283 = vsel %vm1192, %v1281, %v1282
      %v1284 = vrot.slane %v1139, 5
      %v1285 = vrot.slane %v1284, 4
      %v1286 = vrot.slane %v718, 5
      %v1287 = vsel %vm1192, %v1285, %v1286
      %v1288 = vrot.slane %v1286, 4
      %v1289 = vrot.slane %v736, 5
      %v1290 = vsel %vm1192, %v1288, %v1289
      %v1291 = vrot.slane %v1140, 5
      %v1292 = vrot.slane %v1291, 4
      %v1293 = vrot.slane %v720, 5
      %v1294 = vsel %vm1192, %v1292, %v1293
      %v1295 = vrot.slane %v1293, 4
      %v1296 = vrot.slane %v737, 5
      %v1297 = vsel %vm1192, %v1295, %v1296
      %v1298 = vrot.slane %v1141, 5
      %v1299 = vrot.slane %v1298, 4
      %v1300 = vrot.slane %v722, 5
      %v1301 = vsel %vm1192, %v1299, %v1300
      %v1302 = vrot.slane %v1300, 4
      %v1303 = vrot.slane %v738, 5
      %v1304 = vsel %vm1192, %v1302, %v1303
      %s1305 = scalar_lea.vmem [#allocation2], 12
      %v1306 = vld [vmem:[%s1305] sm:$0xf]
      %v1307 = vld [vmem:[%s1305 + $0x4] sm:$0xf]
      %v1308 = vld [vmem:[%s1305 + $0xc] sm:$0xf]
      %v1309 = vld [vmem:[%s1305 + $0x10] sm:$0xf]
      %v1310 = vld [vmem:[%s1305 + $0x18] sm:$0xf]
      %v1311 = vld [vmem:[%s1305 + $0x1c] sm:$0xf]
      %v1312 = vld [vmem:[%s1305 + $0x24] sm:$0xf]
      %v1313 = vld [vmem:[%s1305 + $0x28] sm:$0xf]
      %v1314 = vld [vmem:[%s1305 + $0x30] sm:$0xf]
      %v1315 = vld [vmem:[%s1305 + $0x34] sm:$0xf]
      %v1316 = vld [vmem:[%s1305 + $0x3c] sm:$0xf]
      %v1317 = vld [vmem:[%s1305 + $0x40] sm:$0xf]
      %v1318 = vld [vmem:[%s1305 + $0x48] sm:$0xf]
      %v1319 = vld [vmem:[%s1305 + $0x4c] sm:$0xf]
      %v1320 = vld [vmem:[%s1305 + $0x54] sm:$0xf]
      %v1321 = vld [vmem:[%s1305 + $0x58] sm:$0xf]
      %v1322 = vld [vmem:[%s1305 + $0x60] sm:$0xf]
      %v1323 = vld [vmem:[%s1305 + $0x64] sm:$0xf]
      %v1324 = vld [vmem:[%s1305 + $0x6c] sm:$0xf]
      %v1325 = vld [vmem:[%s1305 + $0x70] sm:$0xf]
      %v1326 = vld [vmem:[%s1305 + $0x78] sm:$0xf]
      %v1327 = vld [vmem:[%s1305 + $0x7c] sm:$0xf]
      %v1328 = vld [vmem:[%s1305 + $0x84] sm:$0xf]
      %v1329 = vld [vmem:[%s1305 + $0x88] sm:$0xf]
      %v1330 = vld [vmem:[%s1305 + $0x90] sm:$0xf]
      %v1331 = vld [vmem:[%s1305 + $0x94] sm:$0xf]
      %v1332 = vld [vmem:[%s1305 + $0x9c] sm:$0xf]
      %v1333 = vld [vmem:[%s1305 + $0xa0] sm:$0xf]
      %v1334 = vld [vmem:[%s1305 + $0xa8] sm:$0xf]
      %v1335 = vld [vmem:[%s1305 + $0xac] sm:$0xf]
      %v1336 = vld [vmem:[%s1305 + $0xb4] sm:$0xf]
      %v1337 = vld [vmem:[%s1305 + $0xb8] sm:$0xf]
      %v1338 = vld [vmem:[%s1305 + $0x8] sm:$0x1]
      %v1339 = vld [vmem:[%s1305 + $0x14] sm:$0x1]
      %v1340 = vld [vmem:[%s1305 + $0x20] sm:$0x1]
      %v1341 = vld [vmem:[%s1305 + $0x2c] sm:$0x1]
      %v1342 = vld [vmem:[%s1305 + $0x38] sm:$0x1]
      %v1343 = vld [vmem:[%s1305 + $0x44] sm:$0x1]
      %v1344 = vld [vmem:[%s1305 + $0x50] sm:$0x1]
      %v1345 = vld [vmem:[%s1305 + $0x5c] sm:$0x1]
      %v1346 = vld [vmem:[%s1305 + $0x68] sm:$0x1]
      %v1347 = vld [vmem:[%s1305 + $0x74] sm:$0x1]
      %v1348 = vld [vmem:[%s1305 + $0x80] sm:$0x1]
      %v1349 = vld [vmem:[%s1305 + $0x8c] sm:$0x1]
      %v1350 = vld [vmem:[%s1305 + $0x98] sm:$0x1]
      %v1351 = vld [vmem:[%s1305 + $0xa4] sm:$0x1]
      %v1352 = vld [vmem:[%s1305 + $0xb0] sm:$0x1]
      %v1353 = vld [vmem:[%s1305 + $0xbc] sm:$0x1]
      %v1355 = vshrl.u32 %v1306, 16
      %v1357 = vrot.slane %v1355, 4
      %v1358 = vshll.u32 %v1306, 16
      %v1360 = vrot.slane %v1358, 5
      %v1361 = vor.u32 %v1357, %v1360
      %v1362 = vrot.slane %v1361, 4
      %v1364 = vshll.u32 %v1307, 16
      %v1366 = vrot.slane %v1364, 5
      %v1367 = vsel %vm741, %v1362, %v1366
      %v1368 = vshrl.u32 %v1307, 16
      %v1370 = vrot.slane %v1368, 4
      %v1371 = vor.u32 %v1370, %v1366
      %v1372 = vrot.slane %v1371, 4
      %v1374 = vshll.u32 %v1338, 16
      %v1376 = vrot.slane %v1374, 5
      %v1377 = vsel %vm741, %v1372, %v1376
      %v1379 = vshrl.u32 %v1308, 16
      %v1381 = vrot.slane %v1379, 4
      %v1382 = vshll.u32 %v1308, 16
      %v1384 = vrot.slane %v1382, 5
      %v1385 = vor.u32 %v1381, %v1384
      %v1386 = vrot.slane %v1385, 4
      %v1388 = vshll.u32 %v1309, 16
      %v1390 = vrot.slane %v1388, 5
      %v1391 = vsel %vm741, %v1386, %v1390
      %v1392 = vshrl.u32 %v1309, 16
      %v1394 = vrot.slane %v1392, 4
      %v1395 = vor.u32 %v1394, %v1390
      %v1396 = vrot.slane %v1395, 4
      %v1398 = vshll.u32 %v1339, 16
      %v1400 = vrot.slane %v1398, 5
      %v1401 = vsel %vm741, %v1396, %v1400
      %v1403 = vshrl.u32 %v1310, 16
      %v1405 = vrot.slane %v1403, 4
      %v1406 = vshll.u32 %v1310, 16
      %v1408 = vrot.slane %v1406, 5
      %v1409 = vor.u32 %v1405, %v1408
      %v1410 = vrot.slane %v1409, 4
      %v1412 = vshll.u32 %v1311, 16
      %v1414 = vrot.slane %v1412, 5
      %v1415 = vsel %vm741, %v1410, %v1414
      %v1416 = vshrl.u32 %v1311, 16
      %v1418 = vrot.slane %v1416, 4
      %v1419 = vor.u32 %v1418, %v1414
      %v1420 = vrot.slane %v1419, 4
      %v1422 = vshll.u32 %v1340, 16
      %v1424 = vrot.slane %v1422, 5
      %v1425 = vsel %vm741, %v1420, %v1424
      %v1427 = vshrl.u32 %v1312, 16
      %v1429 = vrot.slane %v1427, 4
      %v1430 = vshll.u32 %v1312, 16
      %v1432 = vrot.slane %v1430, 5
      %v1433 = vor.u32 %v1429, %v1432
      %v1434 = vrot.slane %v1433, 4
      %v1436 = vshll.u32 %v1313, 16
      %v1438 = vrot.slane %v1436, 5
      %v1439 = vsel %vm741, %v1434, %v1438
      %v1440 = vshrl.u32 %v1313, 16
      %v1442 = vrot.slane %v1440, 4
      %v1443 = vor.u32 %v1442, %v1438
      %v1444 = vrot.slane %v1443, 4
      %v1446 = vshll.u32 %v1341, 16
      %v1448 = vrot.slane %v1446, 5
      %v1449 = vsel %vm741, %v1444, %v1448
      %v1451 = vshrl.u32 %v1314, 16
      %v1453 = vrot.slane %v1451, 4
      %v1454 = vshll.u32 %v1314, 16
      %v1456 = vrot.slane %v1454, 5
      %v1457 = vor.u32 %v1453, %v1456
      %v1458 = vrot.slane %v1457, 4
      %v1460 = vshll.u32 %v1315, 16
      %v1462 = vrot.slane %v1460, 5
      %v1463 = vsel %vm741, %v1458, %v1462
      %v1464 = vshrl.u32 %v1315, 16
      %v1466 = vrot.slane %v1464, 4
      %v1467 = vor.u32 %v1466, %v1462
      %v1468 = vrot.slane %v1467, 4
      %v1470 = vshll.u32 %v1342, 16
      %v1472 = vrot.slane %v1470, 5
      %v1473 = vsel %vm741, %v1468, %v1472
      %v1475 = vshrl.u32 %v1316, 16
      %v1477 = vrot.slane %v1475, 4
      %v1478 = vshll.u32 %v1316, 16
      %v1480 = vrot.slane %v1478, 5
      %v1481 = vor.u32 %v1477, %v1480
      %v1482 = vrot.slane %v1481, 4
      %v1484 = vshll.u32 %v1317, 16
      %v1486 = vrot.slane %v1484, 5
      %v1487 = vsel %vm741, %v1482, %v1486
      %v1488 = vshrl.u32 %v1317, 16
      %v1490 = vrot.slane %v1488, 4
      %v1491 = vor.u32 %v1490, %v1486
      %v1492 = vrot.slane %v1491, 4
      %v1494 = vshll.u32 %v1343, 16
      %v1496 = vrot.slane %v1494, 5
      %v1497 = vsel %vm741, %v1492, %v1496
      %v1499 = vshrl.u32 %v1318, 16
      %v1501 = vrot.slane %v1499, 4
      %v1502 = vshll.u32 %v1318, 16
      %v1504 = vrot.slane %v1502, 5
      %v1505 = vor.u32 %v1501, %v1504
      %v1506 = vrot.slane %v1505, 4
      %v1508 = vshll.u32 %v1319, 16
      %v1510 = vrot.slane %v1508, 5
      %v1511 = vsel %vm741, %v1506, %v1510
      %v1512 = vshrl.u32 %v1319, 16
      %v1514 = vrot.slane %v1512, 4
      %v1515 = vor.u32 %v1514, %v1510
      %v1516 = vrot.slane %v1515, 4
      %v1518 = vshll.u32 %v1344, 16
      %v1520 = vrot.slane %v1518, 5
      %v1521 = vsel %vm741, %v1516, %v1520
      %v1523 = vshrl.u32 %v1320, 16
      %v1525 = vrot.slane %v1523, 4
      %v1526 = vshll.u32 %v1320, 16
      %v1528 = vrot.slane %v1526, 5
      %v1529 = vor.u32 %v1525, %v1528
      %v1530 = vrot.slane %v1529, 4
      %v1532 = vshll.u32 %v1321, 16
      %v1534 = vrot.slane %v1532, 5
      %v1535 = vsel %vm741, %v1530, %v1534
      %v1536 = vshrl.u32 %v1321, 16
      %v1538 = vrot.slane %v1536, 4
      %v1539 = vor.u32 %v1538, %v1534
      %v1540 = vrot.slane %v1539, 4
      %v1542 = vshll.u32 %v1345, 16
      %v1544 = vrot.slane %v1542, 5
      %v1545 = vsel %vm741, %v1540, %v1544
      %v1547 = vshrl.u32 %v1322, 16
      %v1549 = vrot.slane %v1547, 4
      %v1550 = vshll.u32 %v1322, 16
      %v1552 = vrot.slane %v1550, 5
      %v1553 = vor.u32 %v1549, %v1552
      %v1554 = vrot.slane %v1553, 4
      %v1556 = vshll.u32 %v1323, 16
      %v1558 = vrot.slane %v1556, 5
      %v1559 = vsel %vm741, %v1554, %v1558
      %v1560 = vshrl.u32 %v1323, 16
      %v1562 = vrot.slane %v1560, 4
      %v1563 = vor.u32 %v1562, %v1558
      %v1564 = vrot.slane %v1563, 4
      %v1566 = vshll.u32 %v1346, 16
      %v1568 = vrot.slane %v1566, 5
      %v1569 = vsel %vm741, %v1564, %v1568
      %v1571 = vshrl.u32 %v1324, 16
      %v1573 = vrot.slane %v1571, 4
      %v1574 = vshll.u32 %v1324, 16
      %v1576 = vrot.slane %v1574, 5
      %v1577 = vor.u32 %v1573, %v1576
      %v1578 = vrot.slane %v1577, 4
      %v1580 = vshll.u32 %v1325, 16
      %v1582 = vrot.slane %v1580, 5
      %v1583 = vsel %vm741, %v1578, %v1582
      %v1584 = vshrl.u32 %v1325, 16
      %v1586 = vrot.slane %v1584, 4
      %v1587 = vor.u32 %v1586, %v1582
      %v1588 = vrot.slane %v1587, 4
      %v1590 = vshll.u32 %v1347, 16
      %v1592 = vrot.slane %v1590, 5
      %v1593 = vsel %vm741, %v1588, %v1592
      %v1595 = vshrl.u32 %v1326, 16
      %v1597 = vrot.slane %v1595, 4
      %v1598 = vshll.u32 %v1326, 16
      %v1600 = vrot.slane %v1598, 5
      %v1601 = vor.u32 %v1597, %v1600
      %v1602 = vrot.slane %v1601, 4
      %v1604 = vshll.u32 %v1327, 16
      %v1606 = vrot.slane %v1604, 5
      %v1607 = vsel %vm741, %v1602, %v1606
      %v1608 = vshrl.u32 %v1327, 16
      %v1610 = vrot.slane %v1608, 4
      %v1611 = vor.u32 %v1610, %v1606
      %v1612 = vrot.slane %v1611, 4
      %v1614 = vshll.u32 %v1348, 16
      %v1616 = vrot.slane %v1614, 5
      %v1617 = vsel %vm741, %v1612, %v1616
      %v1619 = vshrl.u32 %v1328, 16
      %v1621 = vrot.slane %v1619, 4
      %v1622 = vshll.u32 %v1328, 16
      %v1624 = vrot.slane %v1622, 5
      %v1625 = vor.u32 %v1621, %v1624
      %v1626 = vrot.slane %v1625, 4
      %v1628 = vshll.u32 %v1329, 16
      %v1630 = vrot.slane %v1628, 5
      %v1631 = vsel %vm741, %v1626, %v1630
      %v1632 = vshrl.u32 %v1329, 16
      %v1634 = vrot.slane %v1632, 4
      %v1635 = vor.u32 %v1634, %v1630
      %v1636 = vrot.slane %v1635, 4
      %v1638 = vshll.u32 %v1349, 16
      %v1640 = vrot.slane %v1638, 5
      %v1641 = vsel %vm741, %v1636, %v1640
      %v1643 = vshrl.u32 %v1330, 16
      %v1645 = vrot.slane %v1643, 4
      %v1646 = vshll.u32 %v1330, 16
      %v1648 = vrot.slane %v1646, 5
      %v1649 = vor.u32 %v1645, %v1648
      %v1650 = vrot.slane %v1649, 4
      %v1652 = vshll.u32 %v1331, 16
      %v1654 = vrot.slane %v1652, 5
      %v1655 = vsel %vm741, %v1650, %v1654
      %v1656 = vshrl.u32 %v1331, 16
      %v1658 = vrot.slane %v1656, 4
      %v1659 = vor.u32 %v1658, %v1654
      %v1660 = vrot.slane %v1659, 4
      %v1662 = vshll.u32 %v1350, 16
      %v1664 = vrot.slane %v1662, 5
      %v1665 = vsel %vm741, %v1660, %v1664
      %v1667 = vshrl.u32 %v1332, 16
      %v1669 = vrot.slane %v1667, 4
      %v1670 = vshll.u32 %v1332, 16
      %v1672 = vrot.slane %v1670, 5
      %v1673 = vor.u32 %v1669, %v1672
      %v1674 = vrot.slane %v1673, 4
      %v1676 = vshll.u32 %v1333, 16
      %v1678 = vrot.slane %v1676, 5
      %v1679 = vsel %vm741, %v1674, %v1678
      %v1680 = vshrl.u32 %v1333, 16
      %v1682 = vrot.slane %v1680, 4
      %v1683 = vor.u32 %v1682, %v1678
      %v1684 = vrot.slane %v1683, 4
      %v1686 = vshll.u32 %v1351, 16
      %v1688 = vrot.slane %v1686, 5
      %v1689 = vsel %vm741, %v1684, %v1688
      %v1691 = vshrl.u32 %v1334, 16
      %v1693 = vrot.slane %v1691, 4
      %v1694 = vshll.u32 %v1334, 16
      %v1696 = vrot.slane %v1694, 5
      %v1697 = vor.u32 %v1693, %v1696
      %v1698 = vrot.slane %v1697, 4
      %v1700 = vshll.u32 %v1335, 16
      %v1702 = vrot.slane %v1700, 5
      %v1703 = vsel %vm741, %v1698, %v1702
      %v1704 = vshrl.u32 %v1335, 16
      %v1706 = vrot.slane %v1704, 4
      %v1707 = vor.u32 %v1706, %v1702
      %v1708 = vrot.slane %v1707, 4
      %v1710 = vshll.u32 %v1352, 16
      %v1712 = vrot.slane %v1710, 5
      %v1713 = vsel %vm741, %v1708, %v1712
      %v1715 = vshrl.u32 %v1336, 16
      %v1717 = vrot.slane %v1715, 4
      %v1718 = vshll.u32 %v1336, 16
      %v1720 = vrot.slane %v1718, 5
      %v1721 = vor.u32 %v1717, %v1720
      %v1722 = vrot.slane %v1721, 4
      %v1724 = vshll.u32 %v1337, 16
      %v1726 = vrot.slane %v1724, 5
      %v1727 = vsel %vm741, %v1722, %v1726
      %v1728 = vshrl.u32 %v1337, 16
      %v1730 = vrot.slane %v1728, 4
      %v1731 = vor.u32 %v1730, %v1726
      %v1732 = vrot.slane %v1731, 4
      %v1734 = vshll.u32 %v1353, 16
      %v1736 = vrot.slane %v1734, 5
      %v1737 = vsel %vm741, %v1732, %v1736
      %v1738 = vld [vmem:[%s1305] sm:$0xe]
      %v1739 = vld [vmem:[%s1305 + $0xc] sm:$0xe]
      %v1740 = vld [vmem:[%s1305 + $0x18] sm:$0xe]
      %v1741 = vld [vmem:[%s1305 + $0x24] sm:$0xe]
      %v1742 = vld [vmem:[%s1305 + $0x30] sm:$0xe]
      %v1743 = vld [vmem:[%s1305 + $0x3c] sm:$0xe]
      %v1744 = vld [vmem:[%s1305 + $0x48] sm:$0xe]
      %v1745 = vld [vmem:[%s1305 + $0x54] sm:$0xe]
      %v1746 = vld [vmem:[%s1305 + $0x60] sm:$0xe]
      %v1747 = vld [vmem:[%s1305 + $0x6c] sm:$0xe]
      %v1748 = vld [vmem:[%s1305 + $0x78] sm:$0xe]
      %v1749 = vld [vmem:[%s1305 + $0x84] sm:$0xe]
      %v1750 = vld [vmem:[%s1305 + $0x90] sm:$0xe]
      %v1751 = vld [vmem:[%s1305 + $0x9c] sm:$0xe]
      %v1752 = vld [vmem:[%s1305 + $0xa8] sm:$0xe]
      %v1753 = vld [vmem:[%s1305 + $0xb4] sm:$0xe]
      %v1802 = vrot.slane %v1738, 5
      %v1803 = vrot.slane %v1802, 4
      %v1804 = vrot.slane %v1307, 5
      %v1805 = vsel %vm1192, %v1803, %v1804
      %v1806 = vrot.slane %v1804, 4
      %v1807 = vrot.slane %v1338, 5
      %v1808 = vsel %vm1192, %v1806, %v1807
      %v1809 = vrot.slane %v1739, 5
      %v1810 = vrot.slane %v1809, 4
      %v1811 = vrot.slane %v1309, 5
      %v1812 = vsel %vm1192, %v1810, %v1811
      %v1813 = vrot.slane %v1811, 4
      %v1814 = vrot.slane %v1339, 5
      %v1815 = vsel %vm1192, %v1813, %v1814
      %v1816 = vrot.slane %v1740, 5
      %v1817 = vrot.slane %v1816, 4
      %v1818 = vrot.slane %v1311, 5
      %v1819 = vsel %vm1192, %v1817, %v1818
      %v1820 = vrot.slane %v1818, 4
      %v1821 = vrot.slane %v1340, 5
      %v1822 = vsel %vm1192, %v1820, %v1821
      %v1823 = vrot.slane %v1741, 5
      %v1824 = vrot.slane %v1823, 4
      %v1825 = vrot.slane %v1313, 5
      %v1826 = vsel %vm1192, %v1824, %v1825
      %v1827 = vrot.slane %v1825, 4
      %v1828 = vrot.slane %v1341, 5
      %v1829 = vsel %vm1192, %v1827, %v1828
      %v1830 = vrot.slane %v1742, 5
      %v1831 = vrot.slane %v1830, 4
      %v1832 = vrot.slane %v1315, 5
      %v1833 = vsel %vm1192, %v1831, %v1832
      %v1834 = vrot.slane %v1832, 4
      %v1835 = vrot.slane %v1342, 5
      %v1836 = vsel %vm1192, %v1834, %v1835
      %v1837 = vrot.slane %v1743, 5
      %v1838 = vrot.slane %v1837, 4
      %v1839 = vrot.slane %v1317, 5
      %v1840 = vsel %vm1192, %v1838, %v1839
      %v1841 = vrot.slane %v1839, 4
      %v1842 = vrot.slane %v1343, 5
      %v1843 = vsel %vm1192, %v1841, %v1842
      %v1844 = vrot.slane %v1744, 5
      %v1845 = vrot.slane %v1844, 4
      %v1846 = vrot.slane %v1319, 5
      %v1847 = vsel %vm1192, %v1845, %v1846
      %v1848 = vrot.slane %v1846, 4
      %v1849 = vrot.slane %v1344, 5
      %v1850 = vsel %vm1192, %v1848, %v1849
      %v1851 = vrot.slane %v1745, 5
      %v1852 = vrot.slane %v1851, 4
      %v1853 = vrot.slane %v1321, 5
      %v1854 = vsel %vm1192, %v1852, %v1853
      %v1855 = vrot.slane %v1853, 4
      %v1856 = vrot.slane %v1345, 5
      %v1857 = vsel %vm1192, %v1855, %v1856
      %v1858 = vrot.slane %v1746, 5
      %v1859 = vrot.slane %v1858, 4
      %v1860 = vrot.slane %v1323, 5
      %v1861 = vsel %vm1192, %v1859, %v1860
      %v1862 = vrot.slane %v1860, 4
      %v1863 = vrot.slane %v1346, 5
      %v1864 = vsel %vm1192, %v1862, %v1863
      %v1865 = vrot.slane %v1747, 5
      %v1866 = vrot.slane %v1865, 4
      %v1867 = vrot.slane %v1325, 5
      %v1868 = vsel %vm1192, %v1866, %v1867
      %v1869 = vrot.slane %v1867, 4
      %v1870 = vrot.slane %v1347, 5
      %v1871 = vsel %vm1192, %v1869, %v1870
      %v1872 = vrot.slane %v1748, 5
      %v1873 = vrot.slane %v1872, 4
      %v1874 = vrot.slane %v1327, 5
      %v1875 = vsel %vm1192, %v1873, %v1874
      %v1876 = vrot.slane %v1874, 4
      %v1877 = vrot.slane %v1348, 5
      %v1878 = vsel %vm1192, %v1876, %v1877
      %v1879 = vrot.slane %v1749, 5
      %v1880 = vrot.slane %v1879, 4
      %v1881 = vrot.slane %v1329, 5
      %v1882 = vsel %vm1192, %v1880, %v1881
      %v1883 = vrot.slane %v1881, 4
      %v1884 = vrot.slane %v1349, 5
      %v1885 = vsel %vm1192, %v1883, %v1884
      %v1886 = vrot.slane %v1750, 5
      %v1887 = vrot.slane %v1886, 4
      %v1888 = vrot.slane %v1331, 5
      %v1889 = vsel %vm1192, %v1887, %v1888
      %v1890 = vrot.slane %v1888, 4
      %v1891 = vrot.slane %v1350, 5
      %v1892 = vsel %vm1192, %v1890, %v1891
      %v1893 = vrot.slane %v1751, 5
      %v1894 = vrot.slane %v1893, 4
      %v1895 = vrot.slane %v1333, 5
      %v1896 = vsel %vm1192, %v1894, %v1895
      %v1897 = vrot.slane %v1895, 4
      %v1898 = vrot.slane %v1351, 5
      %v1899 = vsel %vm1192, %v1897, %v1898
      %v1900 = vrot.slane %v1752, 5
      %v1901 = vrot.slane %v1900, 4
      %v1902 = vrot.slane %v1335, 5
      %v1903 = vsel %vm1192, %v1901, %v1902
      %v1904 = vrot.slane %v1902, 4
      %v1905 = vrot.slane %v1352, 5
      %v1906 = vsel %vm1192, %v1904, %v1905
      %v1907 = vrot.slane %v1753, 5
      %v1908 = vrot.slane %v1907, 4
      %v1909 = vrot.slane %v1337, 5
      %v1910 = vsel %vm1192, %v1908, %v1909
      %v1911 = vrot.slane %v1909, 4
      %v1912 = vrot.slane %v1353, 5
      %v1913 = vsel %vm1192, %v1911, %v1912
      %s1914 = scalar_lea.vmem [#allocation2], 24
      %v1915 = vld [vmem:[%s1914] sm:$0xf]
      %v1916 = vld [vmem:[%s1914 + $0x4] sm:$0xf]
      %v1917 = vld [vmem:[%s1914 + $0xc] sm:$0xf]
      %v1918 = vld [vmem:[%s1914 + $0x10] sm:$0xf]
      %v1919 = vld [vmem:[%s1914 + $0x18] sm:$0xf]
      %v1920 = vld [vmem:[%s1914 + $0x1c] sm:$0xf]
      %v1921 = vld [vmem:[%s1914 + $0x24] sm:$0xf]
      %v1922 = vld [vmem:[%s1914 + $0x28] sm:$0xf]
      %v1923 = vld [vmem:[%s1914 + $0x30] sm:$0xf]
      %v1924 = vld [vmem:[%s1914 + $0x34] sm:$0xf]
      %v1925 = vld [vmem:[%s1914 + $0x3c] sm:$0xf]
      %v1926 = vld [vmem:[%s1914 + $0x40] sm:$0xf]
      %v1927 = vld [vmem:[%s1914 + $0x48] sm:$0xf]
      %v1928 = vld [vmem:[%s1914 + $0x4c] sm:$0xf]
      %v1929 = vld [vmem:[%s1914 + $0x54] sm:$0xf]
      %v1930 = vld [vmem:[%s1914 + $0x58] sm:$0xf]
      %v1931 = vld [vmem:[%s1914 + $0x60] sm:$0xf]
      %v1932 = vld [vmem:[%s1914 + $0x64] sm:$0xf]
      %v1933 = vld [vmem:[%s1914 + $0x6c] sm:$0xf]
      %v1934 = vld [vmem:[%s1914 + $0x70] sm:$0xf]
      %v1935 = vld [vmem:[%s1914 + $0x78] sm:$0xf]
      %v1936 = vld [vmem:[%s1914 + $0x7c] sm:$0xf]
      %v1937 = vld [vmem:[%s1914 + $0x84] sm:$0xf]
      %v1938 = vld [vmem:[%s1914 + $0x88] sm:$0xf]
      %v1939 = vld [vmem:[%s1914 + $0x90] sm:$0xf]
      %v1940 = vld [vmem:[%s1914 + $0x94] sm:$0xf]
      %v1941 = vld [vmem:[%s1914 + $0x9c] sm:$0xf]
      %v1942 = vld [vmem:[%s1914 + $0xa0] sm:$0xf]
      %v1943 = vld [vmem:[%s1914 + $0xa8] sm:$0xf]
      %v1944 = vld [vmem:[%s1914 + $0xac] sm:$0xf]
      %v1945 = vld [vmem:[%s1914 + $0xb4] sm:$0xf]
      %v1946 = vld [vmem:[%s1914 + $0xb8] sm:$0xf]
      %v1947 = vld [vmem:[%s1914 + $0x8] sm:$0x1]
      %v1948 = vld [vmem:[%s1914 + $0x14] sm:$0x1]
      %v1949 = vld [vmem:[%s1914 + $0x20] sm:$0x1]
      %v1950 = vld [vmem:[%s1914 + $0x2c] sm:$0x1]
      %v1951 = vld [vmem:[%s1914 + $0x38] sm:$0x1]
      %v1952 = vld [vmem:[%s1914 + $0x44] sm:$0x1]
      %v1953 = vld [vmem:[%s1914 + $0x50] sm:$0x1]
      %v1954 = vld [vmem:[%s1914 + $0x5c] sm:$0x1]
      %v1955 = vld [vmem:[%s1914 + $0x68] sm:$0x1]
      %v1956 = vld [vmem:[%s1914 + $0x74] sm:$0x1]
      %v1957 = vld [vmem:[%s1914 + $0x80] sm:$0x1]
      %v1958 = vld [vmem:[%s1914 + $0x8c] sm:$0x1]
      %v1959 = vld [vmem:[%s1914 + $0x98] sm:$0x1]
      %v1960 = vld [vmem:[%s1914 + $0xa4] sm:$0x1]
      %v1961 = vld [vmem:[%s1914 + $0xb0] sm:$0x1]
      %v1962 = vld [vmem:[%s1914 + $0xbc] sm:$0x1]
      %v1964 = vshrl.u32 %v1915, 16
      %v1966 = vrot.slane %v1964, 4
      %v1967 = vshll.u32 %v1915, 16
      %v1969 = vrot.slane %v1967, 5
      %v1970 = vor.u32 %v1966, %v1969
      %v1971 = vrot.slane %v1970, 4
      %v1973 = vshll.u32 %v1916, 16
      %v1975 = vrot.slane %v1973, 5
      %v1976 = vsel %vm741, %v1971, %v1975
      %v1977 = vshrl.u32 %v1916, 16
      %v1979 = vrot.slane %v1977, 4
      %v1980 = vor.u32 %v1979, %v1975
      %v1981 = vrot.slane %v1980, 4
      %v1983 = vshll.u32 %v1947, 16
      %v1985 = vrot.slane %v1983, 5
      %v1986 = vsel %vm741, %v1981, %v1985
      %v1988 = vshrl.u32 %v1917, 16
      %v1990 = vrot.slane %v1988, 4
      %v1991 = vshll.u32 %v1917, 16
      %v1993 = vrot.slane %v1991, 5
      %v1994 = vor.u32 %v1990, %v1993
      %v1995 = vrot.slane %v1994, 4
      %v1997 = vshll.u32 %v1918, 16
      %v1999 = vrot.slane %v1997, 5
      %v2000 = vsel %vm741, %v1995, %v1999
      %v2001 = vshrl.u32 %v1918, 16
      %v2003 = vrot.slane %v2001, 4
      %v2004 = vor.u32 %v2003, %v1999
      %v2005 = vrot.slane %v2004, 4
      %v2007 = vshll.u32 %v1948, 16
      %v2009 = vrot.slane %v2007, 5
      %v2010 = vsel %vm741, %v2005, %v2009
      %v2012 = vshrl.u32 %v1919, 16
      %v2014 = vrot.slane %v2012, 4
      %v2015 = vshll.u32 %v1919, 16
      %v2017 = vrot.slane %v2015, 5
      %v2018 = vor.u32 %v2014, %v2017
      %v2019 = vrot.slane %v2018, 4
      %v2021 = vshll.u32 %v1920, 16
      %v2023 = vrot.slane %v2021, 5
      %v2024 = vsel %vm741, %v2019, %v2023
      %v2025 = vshrl.u32 %v1920, 16
      %v2027 = vrot.slane %v2025, 4
      %v2028 = vor.u32 %v2027, %v2023
      %v2029 = vrot.slane %v2028, 4
      %v2031 = vshll.u32 %v1949, 16
      %v2033 = vrot.slane %v2031, 5
      %v2034 = vsel %vm741, %v2029, %v2033
      %v2036 = vshrl.u32 %v1921, 16
      %v2038 = vrot.slane %v2036, 4
      %v2039 = vshll.u32 %v1921, 16
      %v2041 = vrot.slane %v2039, 5
      %v2042 = vor.u32 %v2038, %v2041
      %v2043 = vrot.slane %v2042, 4
      %v2045 = vshll.u32 %v1922, 16
      %v2047 = vrot.slane %v2045, 5
      %v2048 = vsel %vm741, %v2043, %v2047
      %v2049 = vshrl.u32 %v1922, 16
      %v2051 = vrot.slane %v2049, 4
      %v2052 = vor.u32 %v2051, %v2047
      %v2053 = vrot.slane %v2052, 4
      %v2055 = vshll.u32 %v1950, 16
      %v2057 = vrot.slane %v2055, 5
      %v2058 = vsel %vm741, %v2053, %v2057
      %v2060 = vshrl.u32 %v1923, 16
      %v2062 = vrot.slane %v2060, 4
      %v2063 = vshll.u32 %v1923, 16
      %v2065 = vrot.slane %v2063, 5
      %v2066 = vor.u32 %v2062, %v2065
      %v2067 = vrot.slane %v2066, 4
      %v2069 = vshll.u32 %v1924, 16
      %v2071 = vrot.slane %v2069, 5
      %v2072 = vsel %vm741, %v2067, %v2071
      %v2073 = vshrl.u32 %v1924, 16
      %v2075 = vrot.slane %v2073, 4
      %v2076 = vor.u32 %v2075, %v2071
      %v2077 = vrot.slane %v2076, 4
      %v2079 = vshll.u32 %v1951, 16
      %v2081 = vrot.slane %v2079, 5
      %v2082 = vsel %vm741, %v2077, %v2081
      %v2084 = vshrl.u32 %v1925, 16
      %v2086 = vrot.slane %v2084, 4
      %v2087 = vshll.u32 %v1925, 16
      %v2089 = vrot.slane %v2087, 5
      %v2090 = vor.u32 %v2086, %v2089
      %v2091 = vrot.slane %v2090, 4
      %v2093 = vshll.u32 %v1926, 16
      %v2095 = vrot.slane %v2093, 5
      %v2096 = vsel %vm741, %v2091, %v2095
      %v2097 = vshrl.u32 %v1926, 16
      %v2099 = vrot.slane %v2097, 4
      %v2100 = vor.u32 %v2099, %v2095
      %v2101 = vrot.slane %v2100, 4
      %v2103 = vshll.u32 %v1952, 16
      %v2105 = vrot.slane %v2103, 5
      %v2106 = vsel %vm741, %v2101, %v2105
      %v2108 = vshrl.u32 %v1927, 16
      %v2110 = vrot.slane %v2108, 4
      %v2111 = vshll.u32 %v1927, 16
      %v2113 = vrot.slane %v2111, 5
      %v2114 = vor.u32 %v2110, %v2113
      %v2115 = vrot.slane %v2114, 4
      %v2117 = vshll.u32 %v1928, 16
      %v2119 = vrot.slane %v2117, 5
      %v2120 = vsel %vm741, %v2115, %v2119
      %v2121 = vshrl.u32 %v1928, 16
      %v2123 = vrot.slane %v2121, 4
      %v2124 = vor.u32 %v2123, %v2119
      %v2125 = vrot.slane %v2124, 4
      %v2127 = vshll.u32 %v1953, 16
      %v2129 = vrot.slane %v2127, 5
      %v2130 = vsel %vm741, %v2125, %v2129
      %v2132 = vshrl.u32 %v1929, 16
      %v2134 = vrot.slane %v2132, 4
      %v2135 = vshll.u32 %v1929, 16
      %v2137 = vrot.slane %v2135, 5
      %v2138 = vor.u32 %v2134, %v2137
      %v2139 = vrot.slane %v2138, 4
      %v2141 = vshll.u32 %v1930, 16
      %v2143 = vrot.slane %v2141, 5
      %v2144 = vsel %vm741, %v2139, %v2143
      %v2145 = vshrl.u32 %v1930, 16
      %v2147 = vrot.slane %v2145, 4
      %v2148 = vor.u32 %v2147, %v2143
      %v2149 = vrot.slane %v2148, 4
      %v2151 = vshll.u32 %v1954, 16
      %v2153 = vrot.slane %v2151, 5
      %v2154 = vsel %vm741, %v2149, %v2153
      %v2156 = vshrl.u32 %v1931, 16
      %v2158 = vrot.slane %v2156, 4
      %v2159 = vshll.u32 %v1931, 16
      %v2161 = vrot.slane %v2159, 5
      %v2162 = vor.u32 %v2158, %v2161
      %v2163 = vrot.slane %v2162, 4
      %v2165 = vshll.u32 %v1932, 16
      %v2167 = vrot.slane %v2165, 5
      %v2168 = vsel %vm741, %v2163, %v2167
      %v2169 = vshrl.u32 %v1932, 16
      %v2171 = vrot.slane %v2169, 4
      %v2172 = vor.u32 %v2171, %v2167
      %v2173 = vrot.slane %v2172, 4
      %v2175 = vshll.u32 %v1955, 16
      %v2177 = vrot.slane %v2175, 5
      %v2178 = vsel %vm741, %v2173, %v2177
      %v2180 = vshrl.u32 %v1933, 16
      %v2182 = vrot.slane %v2180, 4
      %v2183 = vshll.u32 %v1933, 16
      %v2185 = vrot.slane %v2183, 5
      %v2186 = vor.u32 %v2182, %v2185
      %v2187 = vrot.slane %v2186, 4
      %v2189 = vshll.u32 %v1934, 16
      %v2191 = vrot.slane %v2189, 5
      %v2192 = vsel %vm741, %v2187, %v2191
      %v2193 = vshrl.u32 %v1934, 16
      %v2195 = vrot.slane %v2193, 4
      %v2196 = vor.u32 %v2195, %v2191
      %v2197 = vrot.slane %v2196, 4
      %v2199 = vshll.u32 %v1956, 16
      %v2201 = vrot.slane %v2199, 5
      %v2202 = vsel %vm741, %v2197, %v2201
      %v2204 = vshrl.u32 %v1935, 16
      %v2206 = vrot.slane %v2204, 4
      %v2207 = vshll.u32 %v1935, 16
      %v2209 = vrot.slane %v2207, 5
      %v2210 = vor.u32 %v2206, %v2209
      %v2211 = vrot.slane %v2210, 4
      %v2213 = vshll.u32 %v1936, 16
      %v2215 = vrot.slane %v2213, 5
      %v2216 = vsel %vm741, %v2211, %v2215
      %v2217 = vshrl.u32 %v1936, 16
      %v2219 = vrot.slane %v2217, 4
      %v2220 = vor.u32 %v2219, %v2215
      %v2221 = vrot.slane %v2220, 4
      %v2223 = vshll.u32 %v1957, 16
      %v2225 = vrot.slane %v2223, 5
      %v2226 = vsel %vm741, %v2221, %v2225
      %v2228 = vshrl.u32 %v1937, 16
      %v2230 = vrot.slane %v2228, 4
      %v2231 = vshll.u32 %v1937, 16
      %v2233 = vrot.slane %v2231, 5
      %v2234 = vor.u32 %v2230, %v2233
      %v2235 = vrot.slane %v2234, 4
      %v2237 = vshll.u32 %v1938, 16
      %v2239 = vrot.slane %v2237, 5
      %v2240 = vsel %vm741, %v2235, %v2239
      %v2241 = vshrl.u32 %v1938, 16
      %v2243 = vrot.slane %v2241, 4
      %v2244 = vor.u32 %v2243, %v2239
      %v2245 = vrot.slane %v2244, 4
      %v2247 = vshll.u32 %v1958, 16
      %v2249 = vrot.slane %v2247, 5
      %v2250 = vsel %vm741, %v2245, %v2249
      %v2252 = vshrl.u32 %v1939, 16
      %v2254 = vrot.slane %v2252, 4
      %v2255 = vshll.u32 %v1939, 16
      %v2257 = vrot.slane %v2255, 5
      %v2258 = vor.u32 %v2254, %v2257
      %v2259 = vrot.slane %v2258, 4
      %v2261 = vshll.u32 %v1940, 16
      %v2263 = vrot.slane %v2261, 5
      %v2264 = vsel %vm741, %v2259, %v2263
      %v2265 = vshrl.u32 %v1940, 16
      %v2267 = vrot.slane %v2265, 4
      %v2268 = vor.u32 %v2267, %v2263
      %v2269 = vrot.slane %v2268, 4
      %v2271 = vshll.u32 %v1959, 16
      %v2273 = vrot.slane %v2271, 5
      %v2274 = vsel %vm741, %v2269, %v2273
      %v2276 = vshrl.u32 %v1941, 16
      %v2278 = vrot.slane %v2276, 4
      %v2279 = vshll.u32 %v1941, 16
      %v2281 = vrot.slane %v2279, 5
      %v2282 = vor.u32 %v2278, %v2281
      %v2283 = vrot.slane %v2282, 4
      %v2285 = vshll.u32 %v1942, 16
      %v2287 = vrot.slane %v2285, 5
      %v2288 = vsel %vm741, %v2283, %v2287
      %v2289 = vshrl.u32 %v1942, 16
      %v2291 = vrot.slane %v2289, 4
      %v2292 = vor.u32 %v2291, %v2287
      %v2293 = vrot.slane %v2292, 4
      %v2295 = vshll.u32 %v1960, 16
      %v2297 = vrot.slane %v2295, 5
      %v2298 = vsel %vm741, %v2293, %v2297
      %v2300 = vshrl.u32 %v1943, 16
      %v2302 = vrot.slane %v2300, 4
      %v2303 = vshll.u32 %v1943, 16
      %v2305 = vrot.slane %v2303, 5
      %v2306 = vor.u32 %v2302, %v2305
      %v2307 = vrot.slane %v2306, 4
      %v2309 = vshll.u32 %v1944, 16
      %v2311 = vrot.slane %v2309, 5
      %v2312 = vsel %vm741, %v2307, %v2311
      %v2313 = vshrl.u32 %v1944, 16
      %v2315 = vrot.slane %v2313, 4
      %v2316 = vor.u32 %v2315, %v2311
      %v2317 = vrot.slane %v2316, 4
      %v2319 = vshll.u32 %v1961, 16
      %v2321 = vrot.slane %v2319, 5
      %v2322 = vsel %vm741, %v2317, %v2321
      %v2324 = vshrl.u32 %v1945, 16
      %v2326 = vrot.slane %v2324, 4
      %v2327 = vshll.u32 %v1945, 16
      %v2329 = vrot.slane %v2327, 5
      %v2330 = vor.u32 %v2326, %v2329
      %v2331 = vrot.slane %v2330, 4
      %v2333 = vshll.u32 %v1946, 16
      %v2335 = vrot.slane %v2333, 5
      %v2336 = vsel %vm741, %v2331, %v2335
      %v2337 = vshrl.u32 %v1946, 16
      %v2339 = vrot.slane %v2337, 4
      %v2340 = vor.u32 %v2339, %v2335
      %v2341 = vrot.slane %v2340, 4
      %v2343 = vshll.u32 %v1962, 16
      %v2345 = vrot.slane %v2343, 5
      %v2346 = vsel %vm741, %v2341, %v2345
      %v2347 = vld [vmem:[%s1914] sm:$0xe]
      %v2348 = vld [vmem:[%s1914 + $0xc] sm:$0xe]
      %v2349 = vld [vmem:[%s1914 + $0x18] sm:$0xe]
      %v2350 = vld [vmem:[%s1914 + $0x24] sm:$0xe]
      %v2351 = vld [vmem:[%s1914 + $0x30] sm:$0xe]
      %v2352 = vld [vmem:[%s1914 + $0x3c] sm:$0xe]
      %v2353 = vld [vmem:[%s1914 + $0x48] sm:$0xe]
      %v2354 = vld [vmem:[%s1914 + $0x54] sm:$0xe]
      %v2355 = vld [vmem:[%s1914 + $0x60] sm:$0xe]
      %v2356 = vld [vmem:[%s1914 + $0x6c] sm:$0xe]
      %v2357 = vld [vmem:[%s1914 + $0x78] sm:$0xe]
      %v2358 = vld [vmem:[%s1914 + $0x84] sm:$0xe]
      %v2359 = vld [vmem:[%s1914 + $0x90] sm:$0xe]
      %v2360 = vld [vmem:[%s1914 + $0x9c] sm:$0xe]
      %v2361 = vld [vmem:[%s1914 + $0xa8] sm:$0xe]
      %v2362 = vld [vmem:[%s1914 + $0xb4] sm:$0xe]
      %v2411 = vrot.slane %v2347, 5
      %v2412 = vrot.slane %v2411, 4
      %v2413 = vrot.slane %v1916, 5
      %v2414 = vsel %vm1192, %v2412, %v2413
      %v2415 = vrot.slane %v2413, 4
      %v2416 = vrot.slane %v1947, 5
      %v2417 = vsel %vm1192, %v2415, %v2416
      %v2418 = vrot.slane %v2348, 5
      %v2419 = vrot.slane %v2418, 4
      %v2420 = vrot.slane %v1918, 5
      %v2421 = vsel %vm1192, %v2419, %v2420
      %v2422 = vrot.slane %v2420, 4
      %v2423 = vrot.slane %v1948, 5
      %v2424 = vsel %vm1192, %v2422, %v2423
      %v2425 = vrot.slane %v2349, 5
      %v2426 = vrot.slane %v2425, 4
      %v2427 = vrot.slane %v1920, 5
      %v2428 = vsel %vm1192, %v2426, %v2427
      %v2429 = vrot.slane %v2427, 4
      %v2430 = vrot.slane %v1949, 5
      %v2431 = vsel %vm1192, %v2429, %v2430
      %v2432 = vrot.slane %v2350, 5
      %v2433 = vrot.slane %v2432, 4
      %v2434 = vrot.slane %v1922, 5
      %v2435 = vsel %vm1192, %v2433, %v2434
      %v2436 = vrot.slane %v2434, 4
      %v2437 = vrot.slane %v1950, 5
      %v2438 = vsel %vm1192, %v2436, %v2437
      %v2439 = vrot.slane %v2351, 5
      %v2440 = vrot.slane %v2439, 4
      %v2441 = vrot.slane %v1924, 5
      %v2442 = vsel %vm1192, %v2440, %v2441
      %v2443 = vrot.slane %v2441, 4
      %v2444 = vrot.slane %v1951, 5
      %v2445 = vsel %vm1192, %v2443, %v2444
      %v2446 = vrot.slane %v2352, 5
      %v2447 = vrot.slane %v2446, 4
      %v2448 = vrot.slane %v1926, 5
      %v2449 = vsel %vm1192, %v2447, %v2448
      %v2450 = vrot.slane %v2448, 4
      %v2451 = vrot.slane %v1952, 5
      %v2452 = vsel %vm1192, %v2450, %v2451
      %v2453 = vrot.slane %v2353, 5
      %v2454 = vrot.slane %v2453, 4
      %v2455 = vrot.slane %v1928, 5
      %v2456 = vsel %vm1192, %v2454, %v2455
      %v2457 = vrot.slane %v2455, 4
      %v2458 = vrot.slane %v1953, 5
      %v2459 = vsel %vm1192, %v2457, %v2458
      %v2460 = vrot.slane %v2354, 5
      %v2461 = vrot.slane %v2460, 4
      %v2462 = vrot.slane %v1930, 5
      %v2463 = vsel %vm1192, %v2461, %v2462
      %v2464 = vrot.slane %v2462, 4
      %v2465 = vrot.slane %v1954, 5
      %v2466 = vsel %vm1192, %v2464, %v2465
      %v2467 = vrot.slane %v2355, 5
      %v2468 = vrot.slane %v2467, 4
      %v2469 = vrot.slane %v1932, 5
      %v2470 = vsel %vm1192, %v2468, %v2469
      %v2471 = vrot.slane %v2469, 4
      %v2472 = vrot.slane %v1955, 5
      %v2473 = vsel %vm1192, %v2471, %v2472
      %v2474 = vrot.slane %v2356, 5
      %v2475 = vrot.slane %v2474, 4
      %v2476 = vrot.slane %v1934, 5
      %v2477 = vsel %vm1192, %v2475, %v2476
      %v2478 = vrot.slane %v2476, 4
      %v2479 = vrot.slane %v1956, 5
      %v2480 = vsel %vm1192, %v2478, %v2479
      %v2481 = vrot.slane %v2357, 5
      %v2482 = vrot.slane %v2481, 4
      %v2483 = vrot.slane %v1936, 5
      %v2484 = vsel %vm1192, %v2482, %v2483
      %v2485 = vrot.slane %v2483, 4
      %v2486 = vrot.slane %v1957, 5
      %v2487 = vsel %vm1192, %v2485, %v2486
      %v2488 = vrot.slane %v2358, 5
      %v2489 = vrot.slane %v2488, 4
      %v2490 = vrot.slane %v1938, 5
      %v2491 = vsel %vm1192, %v2489, %v2490
      %v2492 = vrot.slane %v2490, 4
      %v2493 = vrot.slane %v1958, 5
      %v2494 = vsel %vm1192, %v2492, %v2493
      %v2495 = vrot.slane %v2359, 5
      %v2496 = vrot.slane %v2495, 4
      %v2497 = vrot.slane %v1940, 5
      %v2498 = vsel %vm1192, %v2496, %v2497
      %v2499 = vrot.slane %v2497, 4
      %v2500 = vrot.slane %v1959, 5
      %v2501 = vsel %vm1192, %v2499, %v2500
      %v2502 = vrot.slane %v2360, 5
      %v2503 = vrot.slane %v2502, 4
      %v2504 = vrot.slane %v1942, 5
      %v2505 = vsel %vm1192, %v2503, %v2504
      %v2506 = vrot.slane %v2504, 4
      %v2507 = vrot.slane %v1960, 5
      %v2508 = vsel %vm1192, %v2506, %v2507
      %v2509 = vrot.slane %v2361, 5
      %v2510 = vrot.slane %v2509, 4
      %v2511 = vrot.slane %v1944, 5
      %v2512 = vsel %vm1192, %v2510, %v2511
      %v2513 = vrot.slane %v2511, 4
      %v2514 = vrot.slane %v1961, 5
      %v2515 = vsel %vm1192, %v2513, %v2514
      %v2516 = vrot.slane %v2362, 5
      %v2517 = vrot.slane %v2516, 4
      %v2518 = vrot.slane %v1946, 5
      %v2519 = vsel %vm1192, %v2517, %v2518
      %v2520 = vrot.slane %v2518, 4
      %v2521 = vrot.slane %v1962, 5
      %v2522 = vsel %vm1192, %v2520, %v2521
      %v2539 = vunpack.c.l.b16 %v691
      %v2540 = vunpack.c.l.b16 %v692
      %v2541 = vunpack.c.l.b16 %v693
      %v2542 = vunpack.c.l.b16 %v694
      %v2543 = vunpack.c.l.b16 %v695
      %v2544 = vunpack.c.l.b16 %v696
      %v2545 = vunpack.c.l.b16 %v697
      %v2546 = vunpack.c.l.b16 %v698
      %v2547 = vunpack.c.l.b16 %v699
      %v2548 = vunpack.c.l.b16 %v700
      %v2549 = vunpack.c.l.b16 %v701
      %v2550 = vunpack.c.l.b16 %v702
      %v2551 = vunpack.c.l.b16 %v703
      %v2552 = vunpack.c.l.b16 %v704
      %v2553 = vunpack.c.l.b16 %v705
      %v2554 = vunpack.c.l.b16 %v706
      %v2555 = vunpack.c.l.b16 %v707
      %v2556 = vunpack.c.l.b16 %v708
      %v2557 = vunpack.c.l.b16 %v709
      %v2558 = vunpack.c.l.b16 %v710
      %v2559 = vunpack.c.l.b16 %v711
      %v2560 = vunpack.c.l.b16 %v712
      %v2561 = vunpack.c.l.b16 %v713
      %v2562 = vunpack.c.l.b16 %v714
      %v2563 = vunpack.c.l.b16 %v715
      %v2564 = vunpack.c.l.b16 %v716
      %v2565 = vunpack.c.l.b16 %v717
      %v2566 = vunpack.c.l.b16 %v718
      %v2567 = vunpack.c.l.b16 %v719
      %v2568 = vunpack.c.l.b16 %v720
      %v2569 = vunpack.c.l.b16 %v721
      %v2570 = vunpack.c.l.b16 %v722
      %v2571 = vpack.c.b16 %v2540, %v2539
      %v2572 = vpack.c.b16 %v2542, %v2541
      %v2573 = vpack.c.b16 %v2544, %v2543
      %v2574 = vpack.c.b16 %v2546, %v2545
      %v2575 = vpack.c.b16 %v2548, %v2547
      %v2576 = vpack.c.b16 %v2550, %v2549
      %v2577 = vpack.c.b16 %v2552, %v2551
      %v2578 = vpack.c.b16 %v2554, %v2553
      %v2579 = vpack.c.b16 %v2556, %v2555
      %v2580 = vpack.c.b16 %v2558, %v2557
      %v2581 = vpack.c.b16 %v2560, %v2559
      %v2582 = vpack.c.b16 %v2562, %v2561
      %v2583 = vpack.c.b16 %v2564, %v2563
      %v2584 = vpack.c.b16 %v2566, %v2565
      %v2585 = vpack.c.b16 %v2568, %v2567
      %v2586 = vpack.c.b16 %v2570, %v2569
      %v2603 = vunpack.c.l.b16 %v755
      %v2604 = vunpack.c.l.b16 %v765
      %v2605 = vunpack.c.l.b16 %v779
      %v2606 = vunpack.c.l.b16 %v789
      %v2607 = vunpack.c.l.b16 %v803
      %v2608 = vunpack.c.l.b16 %v813
      %v2609 = vunpack.c.l.b16 %v827
      %v2610 = vunpack.c.l.b16 %v837
      %v2611 = vunpack.c.l.b16 %v851
      %v2612 = vunpack.c.l.b16 %v861
      %v2613 = vunpack.c.l.b16 %v875
      %v2614 = vunpack.c.l.b16 %v885
      %v2615 = vunpack.c.l.b16 %v899
      %v2616 = vunpack.c.l.b16 %v909
      %v2617 = vunpack.c.l.b16 %v923
      %v2618 = vunpack.c.l.b16 %v933
      %v2619 = vunpack.c.l.b16 %v947
      %v2620 = vunpack.c.l.b16 %v957
      %v2621 = vunpack.c.l.b16 %v971
      %v2622 = vunpack.c.l.b16 %v981
      %v2623 = vunpack.c.l.b16 %v995
      %v2624 = vunpack.c.l.b16 %v1005
      %v2625 = vunpack.c.l.b16 %v1019
      %v2626 = vunpack.c.l.b16 %v1029
      %v2627 = vunpack.c.l.b16 %v1043
      %v2628 = vunpack.c.l.b16 %v1053
      %v2629 = vunpack.c.l.b16 %v1067
      %v2630 = vunpack.c.l.b16 %v1077
      %v2631 = vunpack.c.l.b16 %v1091
      %v2632 = vunpack.c.l.b16 %v1101
      %v2633 = vunpack.c.l.b16 %v1115
      %v2634 = vunpack.c.l.b16 %v1125
      %v2635 = vpack.c.b16 %v2604, %v2603
      %v2636 = vpack.c.b16 %v2606, %v2605
      %v2637 = vpack.c.b16 %v2608, %v2607
      %v2638 = vpack.c.b16 %v2610, %v2609
      %v2639 = vpack.c.b16 %v2612, %v2611
      %v2640 = vpack.c.b16 %v2614, %v2613
      %v2641 = vpack.c.b16 %v2616, %v2615
      %v2642 = vpack.c.b16 %v2618, %v2617
      %v2643 = vpack.c.b16 %v2620, %v2619
      %v2644 = vpack.c.b16 %v2622, %v2621
      %v2645 = vpack.c.b16 %v2624, %v2623
      %v2646 = vpack.c.b16 %v2626, %v2625
      %v2647 = vpack.c.b16 %v2628, %v2627
      %v2648 = vpack.c.b16 %v2630, %v2629
      %v2649 = vpack.c.b16 %v2632, %v2631
      %v2650 = vpack.c.b16 %v2634, %v2633
      %v2667 = vunpack.c.l.b16 %v1196
      %v2668 = vunpack.c.l.b16 %v1199
      %v2669 = vunpack.c.l.b16 %v1203
      %v2670 = vunpack.c.l.b16 %v1206
      %v2671 = vunpack.c.l.b16 %v1210
      %v2672 = vunpack.c.l.b16 %v1213
      %v2673 = vunpack.c.l.b16 %v1217
      %v2674 = vunpack.c.l.b16 %v1220
      %v2675 = vunpack.c.l.b16 %v1224
      %v2676 = vunpack.c.l.b16 %v1227
      %v2677 = vunpack.c.l.b16 %v1231
      %v2678 = vunpack.c.l.b16 %v1234
      %v2679 = vunpack.c.l.b16 %v1238
      %v2680 = vunpack.c.l.b16 %v1241
      %v2681 = vunpack.c.l.b16 %v1245
      %v2682 = vunpack.c.l.b16 %v1248
      %v2683 = vunpack.c.l.b16 %v1252
      %v2684 = vunpack.c.l.b16 %v1255
      %v2685 = vunpack.c.l.b16 %v1259
      %v2686 = vunpack.c.l.b16 %v1262
      %v2687 = vunpack.c.l.b16 %v1266
      %v2688 = vunpack.c.l.b16 %v1269
      %v2689 = vunpack.c.l.b16 %v1273
      %v2690 = vunpack.c.l.b16 %v1276
      %v2691 = vunpack.c.l.b16 %v1280
      %v2692 = vunpack.c.l.b16 %v1283
      %v2693 = vunpack.c.l.b16 %v1287
      %v2694 = vunpack.c.l.b16 %v1290
      %v2695 = vunpack.c.l.b16 %v1294
      %v2696 = vunpack.c.l.b16 %v1297
      %v2697 = vunpack.c.l.b16 %v1301
      %v2698 = vunpack.c.l.b16 %v1304
      %v2699 = vpack.c.b16 %v2668, %v2667
      %v2700 = vpack.c.b16 %v2670, %v2669
      %v2701 = vpack.c.b16 %v2672, %v2671
      %v2702 = vpack.c.b16 %v2674, %v2673
      %v2703 = vpack.c.b16 %v2676, %v2675
      %v2704 = vpack.c.b16 %v2678, %v2677
      %v2705 = vpack.c.b16 %v2680, %v2679
      %v2706 = vpack.c.b16 %v2682, %v2681
      %v2707 = vpack.c.b16 %v2684, %v2683
      %v2708 = vpack.c.b16 %v2686, %v2685
      %v2709 = vpack.c.b16 %v2688, %v2687
      %v2710 = vpack.c.b16 %v2690, %v2689
      %v2711 = vpack.c.b16 %v2692, %v2691
      %v2712 = vpack.c.b16 %v2694, %v2693
      %v2713 = vpack.c.b16 %v2696, %v2695
      %v2714 = vpack.c.b16 %v2698, %v2697
      %v2747 = vunpack.c.l.b16 %v1306
      %v2748 = vunpack.c.l.b16 %v1307
      %v2749 = vunpack.c.l.b16 %v1308
      %v2750 = vunpack.c.l.b16 %v1309
      %v2751 = vunpack.c.l.b16 %v1310
      %v2752 = vunpack.c.l.b16 %v1311
      %v2753 = vunpack.c.l.b16 %v1312
      %v2754 = vunpack.c.l.b16 %v1313
      %v2755 = vunpack.c.l.b16 %v1314
      %v2756 = vunpack.c.l.b16 %v1315
      %v2757 = vunpack.c.l.b16 %v1316
      %v2758 = vunpack.c.l.b16 %v1317
      %v2759 = vunpack.c.l.b16 %v1318
      %v2760 = vunpack.c.l.b16 %v1319
      %v2761 = vunpack.c.l.b16 %v1320
      %v2762 = vunpack.c.l.b16 %v1321
      %v2763 = vunpack.c.l.b16 %v1322
      %v2764 = vunpack.c.l.b16 %v1323
      %v2765 = vunpack.c.l.b16 %v1324
      %v2766 = vunpack.c.l.b16 %v1325
      %v2767 = vunpack.c.l.b16 %v1326
      %v2768 = vunpack.c.l.b16 %v1327
      %v2769 = vunpack.c.l.b16 %v1328
      %v2770 = vunpack.c.l.b16 %v1329
      %v2771 = vunpack.c.l.b16 %v1330
      %v2772 = vunpack.c.l.b16 %v1331
      %v2773 = vunpack.c.l.b16 %v1332
      %v2774 = vunpack.c.l.b16 %v1333
      %v2775 = vunpack.c.l.b16 %v1334
      %v2776 = vunpack.c.l.b16 %v1335
      %v2777 = vunpack.c.l.b16 %v1336
      %v2778 = vunpack.c.l.b16 %v1337
      %v2779 = vpack.c.b16 %v2748, %v2747
      %v2780 = vpack.c.b16 %v2750, %v2749
      %v2781 = vpack.c.b16 %v2752, %v2751
      %v2782 = vpack.c.b16 %v2754, %v2753
      %v2783 = vpack.c.b16 %v2756, %v2755
      %v2784 = vpack.c.b16 %v2758, %v2757
      %v2785 = vpack.c.b16 %v2760, %v2759
      %v2786 = vpack.c.b16 %v2762, %v2761
      %v2787 = vpack.c.b16 %v2764, %v2763
      %v2788 = vpack.c.b16 %v2766, %v2765
      %v2789 = vpack.c.b16 %v2768, %v2767
      %v2790 = vpack.c.b16 %v2770, %v2769
      %v2791 = vpack.c.b16 %v2772, %v2771
      %v2792 = vpack.c.b16 %v2774, %v2773
      %v2793 = vpack.c.b16 %v2776, %v2775
      %v2794 = vpack.c.b16 %v2778, %v2777
      %v2811 = vunpack.c.l.b16 %v1367
      %v2812 = vunpack.c.l.b16 %v1377
      %v2813 = vunpack.c.l.b16 %v1391
      %v2814 = vunpack.c.l.b16 %v1401
      %v2815 = vunpack.c.l.b16 %v1415
      %v2816 = vunpack.c.l.b16 %v1425
      %v2817 = vunpack.c.l.b16 %v1439
      %v2818 = vunpack.c.l.b16 %v1449
      %v2819 = vunpack.c.l.b16 %v1463
      %v2820 = vunpack.c.l.b16 %v1473
      %v2821 = vunpack.c.l.b16 %v1487
      %v2822 = vunpack.c.l.b16 %v1497
      %v2823 = vunpack.c.l.b16 %v1511
      %v2824 = vunpack.c.l.b16 %v1521
      %v2825 = vunpack.c.l.b16 %v1535
      %v2826 = vunpack.c.l.b16 %v1545
      %v2827 = vunpack.c.l.b16 %v1559
      %v2828 = vunpack.c.l.b16 %v1569
      %v2829 = vunpack.c.l.b16 %v1583
      %v2830 = vunpack.c.l.b16 %v1593
      %v2831 = vunpack.c.l.b16 %v1607
      %v2832 = vunpack.c.l.b16 %v1617
      %v2833 = vunpack.c.l.b16 %v1631
      %v2834 = vunpack.c.l.b16 %v1641
      %v2835 = vunpack.c.l.b16 %v1655
      %v2836 = vunpack.c.l.b16 %v1665
      %v2837 = vunpack.c.l.b16 %v1679
      %v2838 = vunpack.c.l.b16 %v1689
      %v2839 = vunpack.c.l.b16 %v1703
      %v2840 = vunpack.c.l.b16 %v1713
      %v2841 = vunpack.c.l.b16 %v1727
      %v2842 = vunpack.c.l.b16 %v1737
      %v2843 = vpack.c.b16 %v2812, %v2811
      %v2844 = vpack.c.b16 %v2814, %v2813
      %v2845 = vpack.c.b16 %v2816, %v2815
      %v2846 = vpack.c.b16 %v2818, %v2817
      %v2847 = vpack.c.b16 %v2820, %v2819
      %v2848 = vpack.c.b16 %v2822, %v2821
      %v2849 = vpack.c.b16 %v2824, %v2823
      %v2850 = vpack.c.b16 %v2826, %v2825
      %v2851 = vpack.c.b16 %v2828, %v2827
      %v2852 = vpack.c.b16 %v2830, %v2829
      %v2853 = vpack.c.b16 %v2832, %v2831
      %v2854 = vpack.c.b16 %v2834, %v2833
      %v2855 = vpack.c.b16 %v2836, %v2835
      %v2856 = vpack.c.b16 %v2838, %v2837
      %v2857 = vpack.c.b16 %v2840, %v2839
      %v2858 = vpack.c.b16 %v2842, %v2841
      %v2875 = vunpack.c.l.b16 %v1805
      %v2876 = vunpack.c.l.b16 %v1808
      %v2877 = vunpack.c.l.b16 %v1812
      %v2878 = vunpack.c.l.b16 %v1815
      %v2879 = vunpack.c.l.b16 %v1819
      %v2880 = vunpack.c.l.b16 %v1822
      %v2881 = vunpack.c.l.b16 %v1826
      %v2882 = vunpack.c.l.b16 %v1829
      %v2883 = vunpack.c.l.b16 %v1833
      %v2884 = vunpack.c.l.b16 %v1836
      %v2885 = vunpack.c.l.b16 %v1840
      %v2886 = vunpack.c.l.b16 %v1843
      %v2887 = vunpack.c.l.b16 %v1847
      %v2888 = vunpack.c.l.b16 %v1850
      %v2889 = vunpack.c.l.b16 %v1854
      %v2890 = vunpack.c.l.b16 %v1857
      %v2891 = vunpack.c.l.b16 %v1861
      %v2892 = vunpack.c.l.b16 %v1864
      %v2893 = vunpack.c.l.b16 %v1868
      %v2894 = vunpack.c.l.b16 %v1871
      %v2895 = vunpack.c.l.b16 %v1875
      %v2896 = vunpack.c.l.b16 %v1878
      %v2897 = vunpack.c.l.b16 %v1882
      %v2898 = vunpack.c.l.b16 %v1885
      %v2899 = vunpack.c.l.b16 %v1889
      %v2900 = vunpack.c.l.b16 %v1892
      %v2901 = vunpack.c.l.b16 %v1896
      %v2902 = vunpack.c.l.b16 %v1899
      %v2903 = vunpack.c.l.b16 %v1903
      %v2904 = vunpack.c.l.b16 %v1906
      %v2905 = vunpack.c.l.b16 %v1910
      %v2906 = vunpack.c.l.b16 %v1913
      %v2907 = vpack.c.b16 %v2876, %v2875
      %v2908 = vpack.c.b16 %v2878, %v2877
      %v2909 = vpack.c.b16 %v2880, %v2879
      %v2910 = vpack.c.b16 %v2882, %v2881
      %v2911 = vpack.c.b16 %v2884, %v2883
      %v2912 = vpack.c.b16 %v2886, %v2885
      %v2913 = vpack.c.b16 %v2888, %v2887
      %v2914 = vpack.c.b16 %v2890, %v2889
      %v2915 = vpack.c.b16 %v2892, %v2891
      %v2916 = vpack.c.b16 %v2894, %v2893
      %v2917 = vpack.c.b16 %v2896, %v2895
      %v2918 = vpack.c.b16 %v2898, %v2897
      %v2919 = vpack.c.b16 %v2900, %v2899
      %v2920 = vpack.c.b16 %v2902, %v2901
      %v2921 = vpack.c.b16 %v2904, %v2903
      %v2922 = vpack.c.b16 %v2906, %v2905
      %v2955 = vunpack.c.l.b16 %v1915
      %v2956 = vunpack.c.l.b16 %v1916
      %v2957 = vunpack.c.l.b16 %v1917
      %v2958 = vunpack.c.l.b16 %v1918
      %v2959 = vunpack.c.l.b16 %v1919
      %v2960 = vunpack.c.l.b16 %v1920
      %v2961 = vunpack.c.l.b16 %v1921
      %v2962 = vunpack.c.l.b16 %v1922
      %v2963 = vunpack.c.l.b16 %v1923
      %v2964 = vunpack.c.l.b16 %v1924
      %v2965 = vunpack.c.l.b16 %v1925
      %v2966 = vunpack.c.l.b16 %v1926
      %v2967 = vunpack.c.l.b16 %v1927
      %v2968 = vunpack.c.l.b16 %v1928
      %v2969 = vunpack.c.l.b16 %v1929
      %v2970 = vunpack.c.l.b16 %v1930
      %v2971 = vunpack.c.l.b16 %v1931
      %v2972 = vunpack.c.l.b16 %v1932
      %v2973 = vunpack.c.l.b16 %v1933
      %v2974 = vunpack.c.l.b16 %v1934
      %v2975 = vunpack.c.l.b16 %v1935
      %v2976 = vunpack.c.l.b16 %v1936
      %v2977 = vunpack.c.l.b16 %v1937
      %v2978 = vunpack.c.l.b16 %v1938
      %v2979 = vunpack.c.l.b16 %v1939
      %v2980 = vunpack.c.l.b16 %v1940
      %v2981 = vunpack.c.l.b16 %v1941
      %v2982 = vunpack.c.l.b16 %v1942
      %v2983 = vunpack.c.l.b16 %v1943
      %v2984 = vunpack.c.l.b16 %v1944
      %v2985 = vunpack.c.l.b16 %v1945
      %v2986 = vunpack.c.l.b16 %v1946
      %v2987 = vpack.c.b16 %v2956, %v2955
      %v2988 = vpack.c.b16 %v2958, %v2957
      %v2989 = vpack.c.b16 %v2960, %v2959
      %v2990 = vpack.c.b16 %v2962, %v2961
      %v2991 = vpack.c.b16 %v2964, %v2963
      %v2992 = vpack.c.b16 %v2966, %v2965
      %v2993 = vpack.c.b16 %v2968, %v2967
      %v2994 = vpack.c.b16 %v2970, %v2969
      %v2995 = vpack.c.b16 %v2972, %v2971
      %v2996 = vpack.c.b16 %v2974, %v2973
      %v2997 = vpack.c.b16 %v2976, %v2975
      %v2998 = vpack.c.b16 %v2978, %v2977
      %v2999 = vpack.c.b16 %v2980, %v2979
      %v3000 = vpack.c.b16 %v2982, %v2981
      %v3001 = vpack.c.b16 %v2984, %v2983
      %v3002 = vpack.c.b16 %v2986, %v2985
      %v3019 = vunpack.c.l.b16 %v1976
      %v3020 = vunpack.c.l.b16 %v1986
      %v3021 = vunpack.c.l.b16 %v2000
      %v3022 = vunpack.c.l.b16 %v2010
      %v3023 = vunpack.c.l.b16 %v2024
      %v3024 = vunpack.c.l.b16 %v2034
      %v3025 = vunpack.c.l.b16 %v2048
      %v3026 = vunpack.c.l.b16 %v2058
      %v3027 = vunpack.c.l.b16 %v2072
      %v3028 = vunpack.c.l.b16 %v2082
      %v3029 = vunpack.c.l.b16 %v2096
      %v3030 = vunpack.c.l.b16 %v2106
      %v3031 = vunpack.c.l.b16 %v2120
      %v3032 = vunpack.c.l.b16 %v2130
      %v3033 = vunpack.c.l.b16 %v2144
      %v3034 = vunpack.c.l.b16 %v2154
      %v3035 = vunpack.c.l.b16 %v2168
      %v3036 = vunpack.c.l.b16 %v2178
      %v3037 = vunpack.c.l.b16 %v2192
      %v3038 = vunpack.c.l.b16 %v2202
      %v3039 = vunpack.c.l.b16 %v2216
      %v3040 = vunpack.c.l.b16 %v2226
      %v3041 = vunpack.c.l.b16 %v2240
      %v3042 = vunpack.c.l.b16 %v2250
      %v3043 = vunpack.c.l.b16 %v2264
      %v3044 = vunpack.c.l.b16 %v2274
      %v3045 = vunpack.c.l.b16 %v2288
      %v3046 = vunpack.c.l.b16 %v2298
      %v3047 = vunpack.c.l.b16 %v2312
      %v3048 = vunpack.c.l.b16 %v2322
      %v3049 = vunpack.c.l.b16 %v2336
      %v3050 = vunpack.c.l.b16 %v2346
      %v3051 = vpack.c.b16 %v3020, %v3019
      %v3052 = vpack.c.b16 %v3022, %v3021
      %v3053 = vpack.c.b16 %v3024, %v3023
      %v3054 = vpack.c.b16 %v3026, %v3025
      %v3055 = vpack.c.b16 %v3028, %v3027
      %v3056 = vpack.c.b16 %v3030, %v3029
      %v3057 = vpack.c.b16 %v3032, %v3031
      %v3058 = vpack.c.b16 %v3034, %v3033
      %v3059 = vpack.c.b16 %v3036, %v3035
      %v3060 = vpack.c.b16 %v3038, %v3037
      %v3061 = vpack.c.b16 %v3040, %v3039
      %v3062 = vpack.c.b16 %v3042, %v3041
      %v3063 = vpack.c.b16 %v3044, %v3043
      %v3064 = vpack.c.b16 %v3046, %v3045
      %v3065 = vpack.c.b16 %v3048, %v3047
      %v3066 = vpack.c.b16 %v3050, %v3049
      %v3083 = vunpack.c.l.b16 %v2414
      %v3084 = vunpack.c.l.b16 %v2417
      %v3085 = vunpack.c.l.b16 %v2421
      %v3086 = vunpack.c.l.b16 %v2424
      %v3087 = vunpack.c.l.b16 %v2428
      %v3088 = vunpack.c.l.b16 %v2431
      %v3089 = vunpack.c.l.b16 %v2435
      %v3090 = vunpack.c.l.b16 %v2438
      %v3091 = vunpack.c.l.b16 %v2442
      %v3092 = vunpack.c.l.b16 %v2445
      %v3093 = vunpack.c.l.b16 %v2449
      %v3094 = vunpack.c.l.b16 %v2452
      %v3095 = vunpack.c.l.b16 %v2456
      %v3096 = vunpack.c.l.b16 %v2459
      %v3097 = vunpack.c.l.b16 %v2463
      %v3098 = vunpack.c.l.b16 %v2466
      %v3099 = vunpack.c.l.b16 %v2470
      %v3100 = vunpack.c.l.b16 %v2473
      %v3101 = vunpack.c.l.b16 %v2477
      %v3102 = vunpack.c.l.b16 %v2480
      %v3103 = vunpack.c.l.b16 %v2484
      %v3104 = vunpack.c.l.b16 %v2487
      %v3105 = vunpack.c.l.b16 %v2491
      %v3106 = vunpack.c.l.b16 %v2494
      %v3107 = vunpack.c.l.b16 %v2498
      %v3108 = vunpack.c.l.b16 %v2501
      %v3109 = vunpack.c.l.b16 %v2505
      %v3110 = vunpack.c.l.b16 %v2508
      %v3111 = vunpack.c.l.b16 %v2512
      %v3112 = vunpack.c.l.b16 %v2515
      %v3113 = vunpack.c.l.b16 %v2519
      %v3114 = vunpack.c.l.b16 %v2522
      %v3115 = vpack.c.b16 %v3084, %v3083
      %v3116 = vpack.c.b16 %v3086, %v3085
      %v3117 = vpack.c.b16 %v3088, %v3087
      %v3118 = vpack.c.b16 %v3090, %v3089
      %v3119 = vpack.c.b16 %v3092, %v3091
      %v3120 = vpack.c.b16 %v3094, %v3093
      %v3121 = vpack.c.b16 %v3096, %v3095
      %v3122 = vpack.c.b16 %v3098, %v3097
      %v3123 = vpack.c.b16 %v3100, %v3099
      %v3124 = vpack.c.b16 %v3102, %v3101
      %v3125 = vpack.c.b16 %v3104, %v3103
      %v3126 = vpack.c.b16 %v3106, %v3105
      %v3127 = vpack.c.b16 %v3108, %v3107
      %v3128 = vpack.c.b16 %v3110, %v3109
      %v3129 = vpack.c.b16 %v3112, %v3111
      %v3130 = vpack.c.b16 %v3114, %v3113
      %v3147 = vld [vmem:[%s1] sm:$0xf]
      %v3148 = vld [vmem:[%s1 + $0x4] sm:$0xf]
      %v3149 = vld [vmem:[%s1 + $0x8] sm:$0xf]
      %v3150 = vld [vmem:[%s1 + $0xc] sm:$0xf]
      %v3151 = vld [vmem:[%s1 + $0x10] sm:$0xf]
      %v3152 = vld [vmem:[%s1 + $0x14] sm:$0xf]
      %v3153 = vld [vmem:[%s1 + $0x18] sm:$0xf]
      %v3154 = vld [vmem:[%s1 + $0x1c] sm:$0xf]
      %v3155 = vld [vmem:[%s1 + $0x20] sm:$0xf]
      %v3156 = vld [vmem:[%s1 + $0x24] sm:$0xf]
      %v3157 = vld [vmem:[%s1 + $0x28] sm:$0xf]
      %v3158 = vld [vmem:[%s1 + $0x2c] sm:$0xf]
      %v3159 = vld [vmem:[%s1 + $0x30] sm:$0xf]
      %v3160 = vld [vmem:[%s1 + $0x34] sm:$0xf]
      %v3161 = vld [vmem:[%s1 + $0x38] sm:$0xf]
      %v3162 = vld [vmem:[%s1 + $0x3c] sm:$0xf]
      %v3163 = vld [vmem:[%s1 + $0x40] sm:$0xf]
      %v3164 = vld [vmem:[%s1 + $0x44] sm:$0xf]
      %v3165 = vld [vmem:[%s1 + $0x48] sm:$0xf]
      %v3166 = vld [vmem:[%s1 + $0x4c] sm:$0xf]
      %v3167 = vld [vmem:[%s1 + $0x50] sm:$0xf]
      %v3168 = vld [vmem:[%s1 + $0x54] sm:$0xf]
      %v3169 = vld [vmem:[%s1 + $0x58] sm:$0xf]
      %v3170 = vld [vmem:[%s1 + $0x5c] sm:$0xf]
      %v3171 = vld [vmem:[%s1 + $0x60] sm:$0xf]
      %v3172 = vld [vmem:[%s1 + $0x64] sm:$0xf]
      %v3173 = vld [vmem:[%s1 + $0x68] sm:$0xf]
      %v3174 = vld [vmem:[%s1 + $0x6c] sm:$0xf]
      %v3175 = vld [vmem:[%s1 + $0x70] sm:$0xf]
      %v3176 = vld [vmem:[%s1 + $0x74] sm:$0xf]
      %v3177 = vld [vmem:[%s1 + $0x78] sm:$0xf]
      %v3178 = vld [vmem:[%s1 + $0x7c] sm:$0xf]
      %v3179 = vld [vmem:[%s1 + $0x80] sm:$0xf]
      %v3180 = vld [vmem:[%s1 + $0x84] sm:$0xf]
      %v3181 = vld [vmem:[%s1 + $0x88] sm:$0xf]
      %v3182 = vld [vmem:[%s1 + $0x8c] sm:$0xf]
      %v3183 = vld [vmem:[%s1 + $0x90] sm:$0xf]
      %v3184 = vld [vmem:[%s1 + $0x94] sm:$0xf]
      %v3185 = vld [vmem:[%s1 + $0x98] sm:$0xf]
      %v3186 = vld [vmem:[%s1 + $0x9c] sm:$0xf]
      %v3187 = vld [vmem:[%s1 + $0xa0] sm:$0xf]
      %v3188 = vld [vmem:[%s1 + $0xa4] sm:$0xf]
      %v3189 = vld [vmem:[%s1 + $0xa8] sm:$0xf]
      %v3190 = vld [vmem:[%s1 + $0xac] sm:$0xf]
      %v3191 = vld [vmem:[%s1 + $0xb0] sm:$0xf]
      %v3192 = vld [vmem:[%s1 + $0xb4] sm:$0xf]
      %v3193 = vld [vmem:[%s1 + $0xb8] sm:$0xf]
      %v3194 = vld [vmem:[%s1 + $0xbc] sm:$0xf]
      %v3195 = vld [vmem:[%s1 + $0xc0] sm:$0xf]
      %v3196 = vld [vmem:[%s1 + $0xc4] sm:$0xf]
      %v3197 = vld [vmem:[%s1 + $0xc8] sm:$0xf]
      %v3198 = vld [vmem:[%s1 + $0xcc] sm:$0xf]
      %v3199 = vld [vmem:[%s1 + $0xd0] sm:$0xf]
      %v3200 = vld [vmem:[%s1 + $0xd4] sm:$0xf]
      %v3201 = vld [vmem:[%s1 + $0xd8] sm:$0xf]
      %v3202 = vld [vmem:[%s1 + $0xdc] sm:$0xf]
      %v3203 = vld [vmem:[%s1 + $0xe0] sm:$0xf]
      %v3204 = vld [vmem:[%s1 + $0xe4] sm:$0xf]
      %v3205 = vld [vmem:[%s1 + $0xe8] sm:$0xf]
      %v3206 = vld [vmem:[%s1 + $0xec] sm:$0xf]
      %v3207 = vld [vmem:[%s1 + $0xf0] sm:$0xf]
      %v3208 = vld [vmem:[%s1 + $0xf4] sm:$0xf]
      %v3209 = vld [vmem:[%s1 + $0xf8] sm:$0xf]
      %v3210 = vld [vmem:[%s1 + $0xfc] sm:$0xf]
      %v3211 = vld [vmem:[%s1 + $0x100] sm:$0xf]
      %v3212 = vld [vmem:[%s1 + $0x104] sm:$0xf]
      %v3213 = vld [vmem:[%s1 + $0x108] sm:$0xf]
      %v3214 = vld [vmem:[%s1 + $0x10c] sm:$0xf]
      %v3215 = vld [vmem:[%s1 + $0x110] sm:$0xf]
      %v3216 = vld [vmem:[%s1 + $0x114] sm:$0xf]
      %v3217 = vld [vmem:[%s1 + $0x118] sm:$0xf]
      %v3218 = vld [vmem:[%s1 + $0x11c] sm:$0xf]
      %v3219 = vld [vmem:[%s1 + $0x120] sm:$0xf]
      %v3220 = vld [vmem:[%s1 + $0x124] sm:$0xf]
      %v3221 = vld [vmem:[%s1 + $0x128] sm:$0xf]
      %v3222 = vld [vmem:[%s1 + $0x12c] sm:$0xf]
      %v3223 = vld [vmem:[%s1 + $0x130] sm:$0xf]
      %v3224 = vld [vmem:[%s1 + $0x134] sm:$0xf]
      %v3225 = vld [vmem:[%s1 + $0x138] sm:$0xf]
      %v3226 = vld [vmem:[%s1 + $0x13c] sm:$0xf]
      %v3227 = vld [vmem:[%s1 + $0x140] sm:$0xf]
      %v3228 = vld [vmem:[%s1 + $0x144] sm:$0xf]
      %v3229 = vld [vmem:[%s1 + $0x148] sm:$0xf]
      %v3230 = vld [vmem:[%s1 + $0x14c] sm:$0xf]
      %v3231 = vld [vmem:[%s1 + $0x150] sm:$0xf]
      %v3232 = vld [vmem:[%s1 + $0x154] sm:$0xf]
      %v3233 = vld [vmem:[%s1 + $0x158] sm:$0xf]
      %v3234 = vld [vmem:[%s1 + $0x15c] sm:$0xf]
      %v3235 = vld [vmem:[%s1 + $0x160] sm:$0xf]
      %v3236 = vld [vmem:[%s1 + $0x164] sm:$0xf]
      %v3237 = vld [vmem:[%s1 + $0x168] sm:$0xf]
      %v3238 = vld [vmem:[%s1 + $0x16c] sm:$0xf]
      %v3239 = vld [vmem:[%s1 + $0x170] sm:$0xf]
      %v3240 = vld [vmem:[%s1 + $0x174] sm:$0xf]
      %v3241 = vld [vmem:[%s1 + $0x178] sm:$0xf]
      %v3242 = vld [vmem:[%s1 + $0x17c] sm:$0xf]
      %v3243 = vld [vmem:[%s1 + $0x180] sm:$0xf]
      %v3244 = vld [vmem:[%s1 + $0x184] sm:$0xf]
      %v3245 = vld [vmem:[%s1 + $0x188] sm:$0xf]
      %v3246 = vld [vmem:[%s1 + $0x18c] sm:$0xf]
      %v3247 = vld [vmem:[%s1 + $0x190] sm:$0xf]
      %v3248 = vld [vmem:[%s1 + $0x194] sm:$0xf]
      %v3249 = vld [vmem:[%s1 + $0x198] sm:$0xf]
      %v3250 = vld [vmem:[%s1 + $0x19c] sm:$0xf]
      %v3251 = vld [vmem:[%s1 + $0x1a0] sm:$0xf]
      %v3252 = vld [vmem:[%s1 + $0x1a4] sm:$0xf]
      %v3253 = vld [vmem:[%s1 + $0x1a8] sm:$0xf]
      %v3254 = vld [vmem:[%s1 + $0x1ac] sm:$0xf]
      %v3255 = vld [vmem:[%s1 + $0x1b0] sm:$0xf]
      %v3256 = vld [vmem:[%s1 + $0x1b4] sm:$0xf]
      %v3257 = vld [vmem:[%s1 + $0x1b8] sm:$0xf]
      %v3258 = vld [vmem:[%s1 + $0x1bc] sm:$0xf]
      %v3259 = vld [vmem:[%s1 + $0x1c0] sm:$0xf]
      %v3260 = vld [vmem:[%s1 + $0x1c4] sm:$0xf]
      %v3261 = vld [vmem:[%s1 + $0x1c8] sm:$0xf]
      %v3262 = vld [vmem:[%s1 + $0x1cc] sm:$0xf]
      %v3263 = vld [vmem:[%s1 + $0x1d0] sm:$0xf]
      %v3264 = vld [vmem:[%s1 + $0x1d4] sm:$0xf]
      %v3265 = vld [vmem:[%s1 + $0x1d8] sm:$0xf]
      %v3266 = vld [vmem:[%s1 + $0x1dc] sm:$0xf]
      %v3267 = vld [vmem:[%s1 + $0x1e0] sm:$0xf]
      %v3268 = vld [vmem:[%s1 + $0x1e4] sm:$0xf]
      %v3269 = vld [vmem:[%s1 + $0x1e8] sm:$0xf]
      %v3270 = vld [vmem:[%s1 + $0x1ec] sm:$0xf]
      %v3271 = vld [vmem:[%s1 + $0x1f0] sm:$0xf]
      %v3272 = vld [vmem:[%s1 + $0x1f4] sm:$0xf]
      %v3273 = vld [vmem:[%s1 + $0x1f8] sm:$0xf]
      %v3274 = vld [vmem:[%s1 + $0x1fc] sm:$0xf]
      %v3275 = vld [vmem:[%s1 + $0x200] sm:$0xf]
      %v3276 = vld [vmem:[%s1 + $0x204] sm:$0xf]
      %v3277 = vld [vmem:[%s1 + $0x208] sm:$0xf]
      %v3278 = vld [vmem:[%s1 + $0x20c] sm:$0xf]
      %v3279 = vld [vmem:[%s1 + $0x210] sm:$0xf]
      %v3280 = vld [vmem:[%s1 + $0x214] sm:$0xf]
      %v3281 = vld [vmem:[%s1 + $0x218] sm:$0xf]
      %v3282 = vld [vmem:[%s1 + $0x21c] sm:$0xf]
      %v3283 = vld [vmem:[%s1 + $0x220] sm:$0xf]
      %v3284 = vld [vmem:[%s1 + $0x224] sm:$0xf]
      %v3285 = vld [vmem:[%s1 + $0x228] sm:$0xf]
      %v3286 = vld [vmem:[%s1 + $0x22c] sm:$0xf]
      %v3287 = vld [vmem:[%s1 + $0x230] sm:$0xf]
      %v3288 = vld [vmem:[%s1 + $0x234] sm:$0xf]
      %v3289 = vld [vmem:[%s1 + $0x238] sm:$0xf]
      %v3290 = vld [vmem:[%s1 + $0x23c] sm:$0xf]
      %v3435 = vunpack.c.l.b16 %v3147
      %v3436 = vunpack.c.l.b16 %v3148
      %v3437 = vunpack.c.l.b16 %v3149
      %v3438 = vunpack.c.l.b16 %v3150
      %v3439 = vunpack.c.l.b16 %v3151
      %v3440 = vunpack.c.l.b16 %v3152
      %v3441 = vunpack.c.l.b16 %v3153
      %v3442 = vunpack.c.l.b16 %v3154
      %v3443 = vunpack.c.l.b16 %v3155
      %v3444 = vunpack.c.l.b16 %v3156
      %v3445 = vunpack.c.l.b16 %v3157
      %v3446 = vunpack.c.l.b16 %v3158
      %v3447 = vunpack.c.l.b16 %v3159
      %v3448 = vunpack.c.l.b16 %v3160
      %v3449 = vunpack.c.l.b16 %v3161
      %v3450 = vunpack.c.l.b16 %v3162
      %v3451 = vunpack.c.l.b16 %v3163
      %v3452 = vunpack.c.l.b16 %v3164
      %v3453 = vunpack.c.l.b16 %v3165
      %v3454 = vunpack.c.l.b16 %v3166
      %v3455 = vunpack.c.l.b16 %v3167
      %v3456 = vunpack.c.l.b16 %v3168
      %v3457 = vunpack.c.l.b16 %v3169
      %v3458 = vunpack.c.l.b16 %v3170
      %v3459 = vunpack.c.l.b16 %v3171
      %v3460 = vunpack.c.l.b16 %v3172
      %v3461 = vunpack.c.l.b16 %v3173
      %v3462 = vunpack.c.l.b16 %v3174
      %v3463 = vunpack.c.l.b16 %v3175
      %v3464 = vunpack.c.l.b16 %v3176
      %v3465 = vunpack.c.l.b16 %v3177
      %v3466 = vunpack.c.l.b16 %v3178
      %v3467 = vunpack.c.l.b16 %v3179
      %v3468 = vunpack.c.l.b16 %v3180
      %v3469 = vunpack.c.l.b16 %v3181
      %v3470 = vunpack.c.l.b16 %v3182
      %v3471 = vunpack.c.l.b16 %v3183
      %v3472 = vunpack.c.l.b16 %v3184
      %v3473 = vunpack.c.l.b16 %v3185
      %v3474 = vunpack.c.l.b16 %v3186
      %v3475 = vunpack.c.l.b16 %v3187
      %v3476 = vunpack.c.l.b16 %v3188
      %v3477 = vunpack.c.l.b16 %v3189
      %v3478 = vunpack.c.l.b16 %v3190
      %v3479 = vunpack.c.l.b16 %v3191
      %v3480 = vunpack.c.l.b16 %v3192
      %v3481 = vunpack.c.l.b16 %v3193
      %v3482 = vunpack.c.l.b16 %v3194
      %v3483 = vunpack.c.l.b16 %v3195
      %v3484 = vunpack.c.l.b16 %v3196
      %v3485 = vunpack.c.l.b16 %v3197
      %v3486 = vunpack.c.l.b16 %v3198
      %v3487 = vunpack.c.l.b16 %v3199
      %v3488 = vunpack.c.l.b16 %v3200
      %v3489 = vunpack.c.l.b16 %v3201
      %v3490 = vunpack.c.l.b16 %v3202
      %v3491 = vunpack.c.l.b16 %v3203
      %v3492 = vunpack.c.l.b16 %v3204
      %v3493 = vunpack.c.l.b16 %v3205
      %v3494 = vunpack.c.l.b16 %v3206
      %v3495 = vunpack.c.l.b16 %v3207
      %v3496 = vunpack.c.l.b16 %v3208
      %v3497 = vunpack.c.l.b16 %v3209
      %v3498 = vunpack.c.l.b16 %v3210
      %v3499 = vunpack.c.l.b16 %v3211
      %v3500 = vunpack.c.l.b16 %v3212
      %v3501 = vunpack.c.l.b16 %v3213
      %v3502 = vunpack.c.l.b16 %v3214
      %v3503 = vunpack.c.l.b16 %v3215
      %v3504 = vunpack.c.l.b16 %v3216
      %v3505 = vunpack.c.l.b16 %v3217
      %v3506 = vunpack.c.l.b16 %v3218
      %v3507 = vunpack.c.l.b16 %v3219
      %v3508 = vunpack.c.l.b16 %v3220
      %v3509 = vunpack.c.l.b16 %v3221
      %v3510 = vunpack.c.l.b16 %v3222
      %v3511 = vunpack.c.l.b16 %v3223
      %v3512 = vunpack.c.l.b16 %v3224
      %v3513 = vunpack.c.l.b16 %v3225
      %v3514 = vunpack.c.l.b16 %v3226
      %v3515 = vunpack.c.l.b16 %v3227
      %v3516 = vunpack.c.l.b16 %v3228
      %v3517 = vunpack.c.l.b16 %v3229
      %v3518 = vunpack.c.l.b16 %v3230
      %v3519 = vunpack.c.l.b16 %v3231
      %v3520 = vunpack.c.l.b16 %v3232
      %v3521 = vunpack.c.l.b16 %v3233
      %v3522 = vunpack.c.l.b16 %v3234
      %v3523 = vunpack.c.l.b16 %v3235
      %v3524 = vunpack.c.l.b16 %v3236
      %v3525 = vunpack.c.l.b16 %v3237
      %v3526 = vunpack.c.l.b16 %v3238
      %v3527 = vunpack.c.l.b16 %v3239
      %v3528 = vunpack.c.l.b16 %v3240
      %v3529 = vunpack.c.l.b16 %v3241
      %v3530 = vunpack.c.l.b16 %v3242
      %v3531 = vunpack.c.l.b16 %v3243
      %v3532 = vunpack.c.l.b16 %v3244
      %v3533 = vunpack.c.l.b16 %v3245
      %v3534 = vunpack.c.l.b16 %v3246
      %v3535 = vunpack.c.l.b16 %v3247
      %v3536 = vunpack.c.l.b16 %v3248
      %v3537 = vunpack.c.l.b16 %v3249
      %v3538 = vunpack.c.l.b16 %v3250
      %v3539 = vunpack.c.l.b16 %v3251
      %v3540 = vunpack.c.l.b16 %v3252
      %v3541 = vunpack.c.l.b16 %v3253
      %v3542 = vunpack.c.l.b16 %v3254
      %v3543 = vunpack.c.l.b16 %v3255
      %v3544 = vunpack.c.l.b16 %v3256
      %v3545 = vunpack.c.l.b16 %v3257
      %v3546 = vunpack.c.l.b16 %v3258
      %v3547 = vunpack.c.l.b16 %v3259
      %v3548 = vunpack.c.l.b16 %v3260
      %v3549 = vunpack.c.l.b16 %v3261
      %v3550 = vunpack.c.l.b16 %v3262
      %v3551 = vunpack.c.l.b16 %v3263
      %v3552 = vunpack.c.l.b16 %v3264
      %v3553 = vunpack.c.l.b16 %v3265
      %v3554 = vunpack.c.l.b16 %v3266
      %v3555 = vunpack.c.l.b16 %v3267
      %v3556 = vunpack.c.l.b16 %v3268
      %v3557 = vunpack.c.l.b16 %v3269
      %v3558 = vunpack.c.l.b16 %v3270
      %v3559 = vunpack.c.l.b16 %v3271
      %v3560 = vunpack.c.l.b16 %v3272
      %v3561 = vunpack.c.l.b16 %v3273
      %v3562 = vunpack.c.l.b16 %v3274
      %v3563 = vunpack.c.l.b16 %v3275
      %v3564 = vunpack.c.l.b16 %v3276
      %v3565 = vunpack.c.l.b16 %v3277
      %v3566 = vunpack.c.l.b16 %v3278
      %v3567 = vunpack.c.l.b16 %v3279
      %v3568 = vunpack.c.l.b16 %v3280
      %v3569 = vunpack.c.l.b16 %v3281
      %v3570 = vunpack.c.l.b16 %v3282
      %v3571 = vunpack.c.l.b16 %v3283
      %v3572 = vunpack.c.l.b16 %v3284
      %v3573 = vunpack.c.l.b16 %v3285
      %v3574 = vunpack.c.l.b16 %v3286
      %v3575 = vunpack.c.l.b16 %v3287
      %v3576 = vunpack.c.l.b16 %v3288
      %v3577 = vunpack.c.l.b16 %v3289
      %v3578 = vunpack.c.l.b16 %v3290
      %v3579 = vpack.c.b16 %v3436, %v3435
      %v3580 = vpack.c.b16 %v3438, %v3437
      %v3581 = vpack.c.b16 %v3440, %v3439
      %v3582 = vpack.c.b16 %v3442, %v3441
      %v3583 = vpack.c.b16 %v3444, %v3443
      %v3584 = vpack.c.b16 %v3446, %v3445
      %v3585 = vpack.c.b16 %v3448, %v3447
      %v3586 = vpack.c.b16 %v3450, %v3449
      %v3587 = vpack.c.b16 %v3452, %v3451
      %v3588 = vpack.c.b16 %v3454, %v3453
      %v3589 = vpack.c.b16 %v3456, %v3455
      %v3590 = vpack.c.b16 %v3458, %v3457
      %v3591 = vpack.c.b16 %v3460, %v3459
      %v3592 = vpack.c.b16 %v3462, %v3461
      %v3593 = vpack.c.b16 %v3464, %v3463
      %v3594 = vpack.c.b16 %v3466, %v3465
      %v3595 = vpack.c.b16 %v3468, %v3467
      %v3596 = vpack.c.b16 %v3470, %v3469
      %v3597 = vpack.c.b16 %v3472, %v3471
      %v3598 = vpack.c.b16 %v3474, %v3473
      %v3599 = vpack.c.b16 %v3476, %v3475
      %v3600 = vpack.c.b16 %v3478, %v3477
      %v3601 = vpack.c.b16 %v3480, %v3479
      %v3602 = vpack.c.b16 %v3482, %v3481
      %v3603 = vpack.c.b16 %v3484, %v3483
      %v3604 = vpack.c.b16 %v3486, %v3485
      %v3605 = vpack.c.b16 %v3488, %v3487
      %v3606 = vpack.c.b16 %v3490, %v3489
      %v3607 = vpack.c.b16 %v3492, %v3491
      %v3608 = vpack.c.b16 %v3494, %v3493
      %v3609 = vpack.c.b16 %v3496, %v3495
      %v3610 = vpack.c.b16 %v3498, %v3497
      %v3611 = vpack.c.b16 %v3500, %v3499
      %v3612 = vpack.c.b16 %v3502, %v3501
      %v3613 = vpack.c.b16 %v3504, %v3503
      %v3614 = vpack.c.b16 %v3506, %v3505
      %v3615 = vpack.c.b16 %v3508, %v3507
      %v3616 = vpack.c.b16 %v3510, %v3509
      %v3617 = vpack.c.b16 %v3512, %v3511
      %v3618 = vpack.c.b16 %v3514, %v3513
      %v3619 = vpack.c.b16 %v3516, %v3515
      %v3620 = vpack.c.b16 %v3518, %v3517
      %v3621 = vpack.c.b16 %v3520, %v3519
      %v3622 = vpack.c.b16 %v3522, %v3521
      %v3623 = vpack.c.b16 %v3524, %v3523
      %v3624 = vpack.c.b16 %v3526, %v3525
      %v3625 = vpack.c.b16 %v3528, %v3527
      %v3626 = vpack.c.b16 %v3530, %v3529
      %v3627 = vpack.c.b16 %v3532, %v3531
      %v3628 = vpack.c.b16 %v3534, %v3533
      %v3629 = vpack.c.b16 %v3536, %v3535
      %v3630 = vpack.c.b16 %v3538, %v3537
      %v3631 = vpack.c.b16 %v3540, %v3539
      %v3632 = vpack.c.b16 %v3542, %v3541
      %v3633 = vpack.c.b16 %v3544, %v3543
      %v3634 = vpack.c.b16 %v3546, %v3545
      %v3635 = vpack.c.b16 %v3548, %v3547
      %v3636 = vpack.c.b16 %v3550, %v3549
      %v3637 = vpack.c.b16 %v3552, %v3551
      %v3638 = vpack.c.b16 %v3554, %v3553
      %v3639 = vpack.c.b16 %v3556, %v3555
      %v3640 = vpack.c.b16 %v3558, %v3557
      %v3641 = vpack.c.b16 %v3560, %v3559
      %v3642 = vpack.c.b16 %v3562, %v3561
      %v3643 = vpack.c.b16 %v3564, %v3563
      %v3644 = vpack.c.b16 %v3566, %v3565
      %v3645 = vpack.c.b16 %v3568, %v3567
      %v3646 = vpack.c.b16 %v3570, %v3569
      %v3647 = vpack.c.b16 %v3572, %v3571
      %v3648 = vpack.c.b16 %v3574, %v3573
      %v3649 = vpack.c.b16 %v3576, %v3575
      %v3650 = vpack.c.b16 %v3578, %v3577
      %3723 = vmatprep.subr.bf16.mxu0 0
      %3724 = vmatpush1.bf16.msra.mxu0 %v3579
      %3725 = vmatprep.subr.bf16.mxu0 0
      %3726 = vmatpush1.bf16.msra.mxu0 %v3580
      %3727 = vmatprep.subr.bf16.mxu0 0
      %3728 = vmatpush1.bf16.msra.mxu0 %v3581
      %3729 = vmatprep.subr.bf16.mxu0 0
      %3730 = vmatpush1.bf16.msra.mxu0 %v3582
      %3731 = vmatprep.subr.bf16.mxu0 0
      %3732 = vmatpush1.bf16.msra.mxu0 %v3583
      %3733 = vmatprep.subr.bf16.mxu0 0
      %3734 = vmatpush1.bf16.msra.mxu0 %v3584
      %3735 = vmatprep.subr.bf16.mxu0 0
      %3736 = vmatpush1.bf16.msra.mxu0 %v3585
      %3737 = vmatprep.subr.bf16.mxu0 0
      %3738 = vmatpush1.bf16.msra.mxu0 %v3586
      %3739 = vmatprep.subr.bf16.mxu0 0
      %3740 = vmatpush1.bf16.msra.mxu0 %v3587
      %3741 = vmatprep.subr.bf16.mxu0 0
      %3742 = vmatpush1.bf16.msra.mxu0 %v3588
      %3743 = vmatprep.subr.bf16.mxu0 0
      %3744 = vmatpush1.bf16.msra.mxu0 %v3589
      %3745 = vmatprep.subr.bf16.mxu0 0
      %3746 = vmatpush1.bf16.msra.mxu0 %v3590
      %3747 = vmatprep.subr.bf16.mxu0 0
      %3748 = vmatpush1.bf16.msra.mxu0 %v3591
      %3749 = vmatprep.subr.bf16.mxu0 0
      %3750 = vmatpush1.bf16.msra.mxu0 %v3592
      %3751 = vmatprep.subr.bf16.mxu0 0
      %3752 = vmatpush1.bf16.msra.mxu0 %v3593
      %3753 = vmatprep.subr.bf16.mxu0 0
      %3754 = vmatpush1.bf16.msra.mxu0 %v3594
      %3755 = vmatprep.mubr.bf16.mxu0 %v2635
      %3756 = vmatmul.mubr.bf16.gmra.mrb[0].mxu0 %v2571
      %v3757 = vpop.f32.mrb[0].mxu0
      %v3758 = vadd.f32 0.0, %v3757
      %v3759 = vpop.f32.mrb[0].mxu0
      %v3760 = vpop.f32.mrb[0].mxu0
      %v3761 = vadd.f32 0.0, %v3760
      %v3762 = vpop.f32.mrb[0].mxu0
      %3763 = vmatprep.mubr.bf16.mxu0 %v2636
      %3764 = vmatmul.mubr.bf16.gmra.mrb[0].mxu0 %v2572
      %v3765 = vpop.f32.mrb[0].mxu0
      %v3766 = vadd.f32 0.0, %v3765
      %v3767 = vpop.f32.mrb[0].mxu0
      %v3768 = vpop.f32.mrb[0].mxu0
      %v3769 = vadd.f32 0.0, %v3768
      %v3770 = vpop.f32.mrb[0].mxu0
      %3771 = vmatprep.mubr.bf16.mxu0 %v2637
      %3772 = vmatmul.mubr.bf16.gmra.mrb[0].mxu0 %v2573
      %v3773 = vpop.f32.mrb[0].mxu0
      %v3774 = vadd.f32 0.0, %v3773
      %v3775 = vpop.f32.mrb[0].mxu0
      %v3776 = vpop.f32.mrb[0].mxu0
      %v3777 = vadd.f32 0.0, %v3776
      %v3778 = vpop.f32.mrb[0].mxu0
      %3779 = vmatprep.mubr.bf16.mxu0 %v2638
      %3780 = vmatmul.mubr.bf16.gmra.mrb[0].mxu0 %v2574
      %v3781 = vpop.f32.mrb[0].mxu0
      %v3782 = vadd.f32 0.0, %v3781
      %v3783 = vpop.f32.mrb[0].mxu0
      %v3784 = vpop.f32.mrb[0].mxu0
      %v3785 = vadd.f32 0.0, %v3784
      %v3786 = vpop.f32.mrb[0].mxu0
      %3787 = vmatprep.mubr.bf16.mxu0 %v2639
      %3788 = vmatmul.mubr.bf16.gmra.mrb[0].mxu0 %v2575
      %v3789 = vpop.f32.mrb[0].mxu0
      %v3790 = vadd.f32 0.0, %v3789
      %v3791 = vpop.f32.mrb[0].mxu0
      %v3792 = vpop.f32.mrb[0].mxu0
      %v3793 = vadd.f32 0.0, %v3792
      %v3794 = vpop.f32.mrb[0].mxu0
      %3795 = vmatprep.mubr.bf16.mxu0 %v2640
      %3796 = vmatmul.mubr.bf16.gmra.mrb[0].mxu0 %v2576
      %v3797 = vpop.f32.mrb[0].mxu0
      %v3798 = vadd.f32 0.0, %v3797
      %v3799 = vpop.f32.mrb[0].mxu0
      %v3800 = vpop.f32.mrb[0].mxu0
      %v3801 = vadd.f32 0.0, %v3800
      %v3802 = vpop.f32.mrb[0].mxu0
      %3803 = vmatprep.mubr.bf16.mxu0 %v2641
      %3804 = vmatmul.mubr.bf16.gmra.mrb[0].mxu0 %v2577
      %v3805 = vpop.f32.mrb[0].mxu0
      %v3806 = vadd.f32 0.0, %v3805
      %v3807 = vpop.f32.mrb[0].mxu0
      %v3808 = vpop.f32.mrb[0].mxu0
      %v3809 = vadd.f32 0.0, %v3808
      %v3810 = vpop.f32.mrb[0].mxu0
      %3811 = vmatprep.mubr.bf16.mxu0 %v2642
      %3812 = vmatmul.mubr.bf16.gmra.mrb[0].mxu0 %v2578
      %v3813 = vpop.f32.mrb[0].mxu0
      %v3814 = vadd.f32 0.0, %v3813
      %v3815 = vpop.f32.mrb[0].mxu0
      %v3816 = vpop.f32.mrb[0].mxu0
      %v3817 = vadd.f32 0.0, %v3816
      %v3818 = vpop.f32.mrb[0].mxu0
      %3819 = vmatprep.mubr.bf16.mxu0 %v2643
      %3820 = vmatmul.mubr.bf16.gmra.mrb[0].mxu0 %v2579
      %v3821 = vpop.f32.mrb[0].mxu0
      %v3822 = vadd.f32 0.0, %v3821
      %v3823 = vpop.f32.mrb[0].mxu0
      %v3824 = vpop.f32.mrb[0].mxu0
      %v3825 = vadd.f32 0.0, %v3824
      %v3826 = vpop.f32.mrb[0].mxu0
      %3827 = vmatprep.mubr.bf16.mxu0 %v2644
      %3828 = vmatmul.mubr.bf16.gmra.mrb[0].mxu0 %v2580
      %v3829 = vpop.f32.mrb[0].mxu0
      %v3830 = vadd.f32 0.0, %v3829
      %v3831 = vpop.f32.mrb[0].mxu0
      %v3832 = vpop.f32.mrb[0].mxu0
      %v3833 = vadd.f32 0.0, %v3832
      %v3834 = vpop.f32.mrb[0].mxu0
      %3835 = vmatprep.mubr.bf16.mxu0 %v2645
      %3836 = vmatmul.mubr.bf16.gmra.mrb[0].mxu0 %v2581
      %v3837 = vpop.f32.mrb[0].mxu0
      %v3838 = vadd.f32 0.0, %v3837
      %v3839 = vpop.f32.mrb[0].mxu0
      %v3840 = vpop.f32.mrb[0].mxu0
      %v3841 = vadd.f32 0.0, %v3840
      %v3842 = vpop.f32.mrb[0].mxu0
      %3843 = vmatprep.mubr.bf16.mxu0 %v2646
      %3844 = vmatmul.mubr.bf16.gmra.mrb[0].mxu0 %v2582
      %v3845 = vpop.f32.mrb[0].mxu0
      %v3846 = vadd.f32 0.0, %v3845
      %v3847 = vpop.f32.mrb[0].mxu0
      %v3848 = vpop.f32.mrb[0].mxu0
      %v3849 = vadd.f32 0.0, %v3848
      %v3850 = vpop.f32.mrb[0].mxu0
      %3851 = vmatprep.mubr.bf16.mxu0 %v2647
      %3852 = vmatmul.mubr.bf16.gmra.mrb[0].mxu0 %v2583
      %v3853 = vpop.f32.mrb[0].mxu0
      %v3854 = vadd.f32 0.0, %v3853
      %v3855 = vpop.f32.mrb[0].mxu0
      %v3856 = vpop.f32.mrb[0].mxu0
      %v3857 = vadd.f32 0.0, %v3856
      %v3858 = vpop.f32.mrb[0].mxu0
      %3859 = vmatprep.mubr.bf16.mxu0 %v2648
      %3860 = vmatmul.mubr.bf16.gmra.mrb[0].mxu0 %v2584
      %v3861 = vpop.f32.mrb[0].mxu0
      %v3862 = vadd.f32 0.0, %v3861
      %v3863 = vpop.f32.mrb[0].mxu0
      %v3864 = vpop.f32.mrb[0].mxu0
      %v3865 = vadd.f32 0.0, %v3864
      %v3866 = vpop.f32.mrb[0].mxu0
      %3867 = vmatprep.mubr.bf16.mxu0 %v2649
      %3868 = vmatmul.mubr.bf16.gmra.mrb[0].mxu0 %v2585
      %v3869 = vpop.f32.mrb[0].mxu0
      %v3870 = vadd.f32 0.0, %v3869
      %v3871 = vpop.f32.mrb[0].mxu0
      %v3872 = vpop.f32.mrb[0].mxu0
      %v3873 = vadd.f32 0.0, %v3872
      %v3874 = vpop.f32.mrb[0].mxu0
      %3875 = vmatprep.mubr.bf16.mxu0 %v2650
      %3876 = vmatmul.mubr.bf16.gmra.mrb[0].mxu0 %v2586
      %v3877 = vpop.f32.mrb[0].mxu0
      %v3878 = vadd.f32 0.0, %v3877
      %v3879 = vpop.f32.mrb[0].mxu0
      %v3880 = vpop.f32.mrb[0].mxu0
      %v3881 = vadd.f32 0.0, %v3880
      %v3882 = vpop.f32.mrb[0].mxu0
      %3883 = vdwg.mxu0
      %3884 = vmatprep.subr.bf16.mxu0 0
      %3885 = vmatpush1.bf16.msra.mxu0 %v3595
      %3886 = vmatprep.subr.bf16.mxu0 0
      %3887 = vmatpush1.bf16.msra.mxu0 %v3596
      %3888 = vmatprep.subr.bf16.mxu0 0
      %3889 = vmatpush1.bf16.msra.mxu0 %v3597
      %3890 = vmatprep.subr.bf16.mxu0 0
      %3891 = vmatpush1.bf16.msra.mxu0 %v3598
      %3892 = vmatprep.subr.bf16.mxu0 0
      %3893 = vmatpush1.bf16.msra.mxu0 %v3599
      %3894 = vmatprep.subr.bf16.mxu0 0
      %3895 = vmatpush1.bf16.msra.mxu0 %v3600
      %3896 = vmatprep.subr.bf16.mxu0 0
      %3897 = vmatpush1.bf16.msra.mxu0 %v3601
      %3898 = vmatprep.subr.bf16.mxu0 0
      %3899 = vmatpush1.bf16.msra.mxu0 %v3602
      %3900 = vmatprep.subr.bf16.mxu0 0
      %3901 = vmatpush1.bf16.msra.mxu0 %v3603
      %3902 = vmatprep.subr.bf16.mxu0 0
      %3903 = vmatpush1.bf16.msra.mxu0 %v3604
      %3904 = vmatprep.subr.bf16.mxu0 0
      %3905 = vmatpush1.bf16.msra.mxu0 %v3605
      %3906 = vmatprep.subr.bf16.mxu0 0
      %3907 = vmatpush1.bf16.msra.mxu0 %v3606
      %3908 = vmatprep.subr.bf16.mxu0 0
      %3909 = vmatpush1.bf16.msra.mxu0 %v3607
      %3910 = vmatprep.subr.bf16.mxu0 0
      %3911 = vmatpush1.bf16.msra.mxu0 %v3608
      %3912 = vmatprep.subr.bf16.mxu0 0
      %3913 = vmatpush1.bf16.msra.mxu0 %v3609
      %3914 = vmatprep.subr.bf16.mxu0 0
      %3915 = vmatpush1.bf16.msra.mxu0 %v3610
      %3916 = vmatprep.mubr.bf16.mxu0 %v2779
      %3917 = vmatmul.mubr.bf16.gmra.mrb[0].mxu0 %v2699
      %v3918 = vpop.f32.mrb[0].mxu0
      %v3919 = vadd.f32 %v3758, %v3918
      %v3920 = vpop.f32.mrb[0].mxu0
      %v3921 = vpop.f32.mrb[0].mxu0
      %v3922 = vadd.f32 %v3761, %v3921
      %v3923 = vpop.f32.mrb[0].mxu0
      %3924 = vmatprep.mubr.bf16.mxu0 %v2780
      %3925 = vmatmul.mubr.bf16.gmra.mrb[0].mxu0 %v2700
      %v3926 = vpop.f32.mrb[0].mxu0
      %v3927 = vadd.f32 %v3766, %v3926
      %v3928 = vpop.f32.mrb[0].mxu0
      %v3929 = vpop.f32.mrb[0].mxu0
      %v3930 = vadd.f32 %v3769, %v3929
      %v3931 = vpop.f32.mrb[0].mxu0
      %3932 = vmatprep.mubr.bf16.mxu0 %v2781
      %3933 = vmatmul.mubr.bf16.gmra.mrb[0].mxu0 %v2701
      %v3934 = vpop.f32.mrb[0].mxu0
      %v3935 = vadd.f32 %v3774, %v3934
      %v3936 = vpop.f32.mrb[0].mxu0
      %v3937 = vpop.f32.mrb[0].mxu0
      %v3938 = vadd.f32 %v3777, %v3937
      %v3939 = vpop.f32.mrb[0].mxu0
      %3940 = vmatprep.mubr.bf16.mxu0 %v2782
      %3941 = vmatmul.mubr.bf16.gmra.mrb[0].mxu0 %v2702
      %v3942 = vpop.f32.mrb[0].mxu0
      %v3943 = vadd.f32 %v3782, %v3942
      %v3944 = vpop.f32.mrb[0].mxu0
      %v3945 = vpop.f32.mrb[0].mxu0
      %v3946 = vadd.f32 %v3785, %v3945
      %v3947 = vpop.f32.mrb[0].mxu0
      %3948 = vmatprep.mubr.bf16.mxu0 %v2783
      %3949 = vmatmul.mubr.bf16.gmra.mrb[0].mxu0 %v2703
      %v3950 = vpop.f32.mrb[0].mxu0
      %v3951 = vadd.f32 %v3790, %v3950
      %v3952 = vpop.f32.mrb[0].mxu0
      %v3953 = vpop.f32.mrb[0].mxu0
      %v3954 = vadd.f32 %v3793, %v3953
      %v3955 = vpop.f32.mrb[0].mxu0
      %3956 = vmatprep.mubr.bf16.mxu0 %v2784
      %3957 = vmatmul.mubr.bf16.gmra.mrb[0].mxu0 %v2704
      %v3958 = vpop.f32.mrb[0].mxu0
      %v3959 = vadd.f32 %v3798, %v3958
      %v3960 = vpop.f32.mrb[0].mxu0
      %v3961 = vpop.f32.mrb[0].mxu0
      %v3962 = vadd.f32 %v3801, %v3961
      %v3963 = vpop.f32.mrb[0].mxu0
      %3964 = vmatprep.mubr.bf16.mxu0 %v2785
      %3965 = vmatmul.mubr.bf16.gmra.mrb[0].mxu0 %v2705
      %v3966 = vpop.f32.mrb[0].mxu0
      %v3967 = vadd.f32 %v3806, %v3966
      %v3968 = vpop.f32.mrb[0].mxu0
      %v3969 = vpop.f32.mrb[0].mxu0
      %v3970 = vadd.f32 %v3809, %v3969
      %v3971 = vpop.f32.mrb[0].mxu0
      %3972 = vmatprep.mubr.bf16.mxu0 %v2786
      %3973 = vmatmul.mubr.bf16.gmra.mrb[0].mxu0 %v2706
      %v3974 = vpop.f32.mrb[0].mxu0
      %v3975 = vadd.f32 %v3814, %v3974
      %v3976 = vpop.f32.mrb[0].mxu0
      %v3977 = vpop.f32.mrb[0].mxu0
      %v3978 = vadd.f32 %v3817, %v3977
      %v3979 = vpop.f32.mrb[0].mxu0
      %3980 = vmatprep.mubr.bf16.mxu0 %v2787
      %3981 = vmatmul.mubr.bf16.gmra.mrb[0].mxu0 %v2707
      %v3982 = vpop.f32.mrb[0].mxu0
      %v3983 = vadd.f32 %v3822, %v3982
      %v3984 = vpop.f32.mrb[0].mxu0
      %v3985 = vpop.f32.mrb[0].mxu0
      %v3986 = vadd.f32 %v3825, %v3985
      %v3987 = vpop.f32.mrb[0].mxu0
      %3988 = vmatprep.mubr.bf16.mxu0 %v2788
      %3989 = vmatmul.mubr.bf16.gmra.mrb[0].mxu0 %v2708
      %v3990 = vpop.f32.mrb[0].mxu0
      %v3991 = vadd.f32 %v3830, %v3990
      %v3992 = vpop.f32.mrb[0].mxu0
      %v3993 = vpop.f32.mrb[0].mxu0
      %v3994 = vadd.f32 %v3833, %v3993
      %v3995 = vpop.f32.mrb[0].mxu0
      %3996 = vmatprep.mubr.bf16.mxu0 %v2789
      %3997 = vmatmul.mubr.bf16.gmra.mrb[0].mxu0 %v2709
      %v3998 = vpop.f32.mrb[0].mxu0
      %v3999 = vadd.f32 %v3838, %v3998
      %v4000 = vpop.f32.mrb[0].mxu0
      %v4001 = vpop.f32.mrb[0].mxu0
      %v4002 = vadd.f32 %v3841, %v4001
      %v4003 = vpop.f32.mrb[0].mxu0
      %4004 = vmatprep.mubr.bf16.mxu0 %v2790
      %4005 = vmatmul.mubr.bf16.gmra.mrb[0].mxu0 %v2710
      %v4006 = vpop.f32.mrb[0].mxu0
      %v4007 = vadd.f32 %v3846, %v4006
      %v4008 = vpop.f32.mrb[0].mxu0
      %v4009 = vpop.f32.mrb[0].mxu0
      %v4010 = vadd.f32 %v3849, %v4009
      %v4011 = vpop.f32.mrb[0].mxu0
      %4012 = vmatprep.mubr.bf16.mxu0 %v2791
      %4013 = vmatmul.mubr.bf16.gmra.mrb[0].mxu0 %v2711
      %v4014 = vpop.f32.mrb[0].mxu0
      %v4015 = vadd.f32 %v3854, %v4014
      %v4016 = vpop.f32.mrb[0].mxu0
      %v4017 = vpop.f32.mrb[0].mxu0
      %v4018 = vadd.f32 %v3857, %v4017
      %v4019 = vpop.f32.mrb[0].mxu0
      %4020 = vmatprep.mubr.bf16.mxu0 %v2792
      %4021 = vmatmul.mubr.bf16.gmra.mrb[0].mxu0 %v2712
      %v4022 = vpop.f32.mrb[0].mxu0
      %v4023 = vadd.f32 %v3862, %v4022
      %v4024 = vpop.f32.mrb[0].mxu0
      %v4025 = vpop.f32.mrb[0].mxu0
      %v4026 = vadd.f32 %v3865, %v4025
      %v4027 = vpop.f32.mrb[0].mxu0
      %4028 = vmatprep.mubr.bf16.mxu0 %v2793
      %4029 = vmatmul.mubr.bf16.gmra.mrb[0].mxu0 %v2713
      %v4030 = vpop.f32.mrb[0].mxu0
      %v4031 = vadd.f32 %v3870, %v4030
      %v4032 = vpop.f32.mrb[0].mxu0
      %v4033 = vpop.f32.mrb[0].mxu0
      %v4034 = vadd.f32 %v3873, %v4033
      %v4035 = vpop.f32.mrb[0].mxu0
      %4036 = vmatprep.mubr.bf16.mxu0 %v2794
      %4037 = vmatmul.mubr.bf16.gmra.mrb[0].mxu0 %v2714
      %v4038 = vpop.f32.mrb[0].mxu0
      %v4039 = vadd.f32 %v3878, %v4038
      %v4040 = vpop.f32.mrb[0].mxu0
      %v4041 = vpop.f32.mrb[0].mxu0
      %v4042 = vadd.f32 %v3881, %v4041
      %v4043 = vpop.f32.mrb[0].mxu0
      %4044 = vdwg.mxu0
      %4045 = vmatprep.subr.bf16.mxu0 0
      %4046 = vmatpush1.bf16.msra.mxu0 %v3611
      %4047 = vmatprep.subr.bf16.mxu0 0
      %4048 = vmatpush1.bf16.msra.mxu0 %v3612
      %4049 = vmatprep.subr.bf16.mxu0 0
      %4050 = vmatpush1.bf16.msra.mxu0 %v3613
      %4051 = vmatprep.subr.bf16.mxu0 0
      %4052 = vmatpush1.bf16.msra.mxu0 %v3614
      %4053 = vmatprep.subr.bf16.mxu0 0
      %4054 = vmatpush1.bf16.msra.mxu0 %v3615
      %4055 = vmatprep.subr.bf16.mxu0 0
      %4056 = vmatpush1.bf16.msra.mxu0 %v3616
      %4057 = vmatprep.subr.bf16.mxu0 0
      %4058 = vmatpush1.bf16.msra.mxu0 %v3617
      %4059 = vmatprep.subr.bf16.mxu0 0
      %4060 = vmatpush1.bf16.msra.mxu0 %v3618
      %4061 = vmatprep.subr.bf16.mxu0 0
      %4062 = vmatpush1.bf16.msra.mxu0 %v3619
      %4063 = vmatprep.subr.bf16.mxu0 0
      %4064 = vmatpush1.bf16.msra.mxu0 %v3620
      %4065 = vmatprep.subr.bf16.mxu0 0
      %4066 = vmatpush1.bf16.msra.mxu0 %v3621
      %4067 = vmatprep.subr.bf16.mxu0 0
      %4068 = vmatpush1.bf16.msra.mxu0 %v3622
      %4069 = vmatprep.subr.bf16.mxu0 0
      %4070 = vmatpush1.bf16.msra.mxu0 %v3623
      %4071 = vmatprep.subr.bf16.mxu0 0
      %4072 = vmatpush1.bf16.msra.mxu0 %v3624
      %4073 = vmatprep.subr.bf16.mxu0 0
      %4074 = vmatpush1.bf16.msra.mxu0 %v3625
      %4075 = vmatprep.subr.bf16.mxu0 0
      %4076 = vmatpush1.bf16.msra.mxu0 %v3626
      %4077 = vmatprep.mubr.bf16.mxu0 %v2907
      %4078 = vmatmul.mubr.bf16.gmra.mrb[0].mxu0 %v2843
      %v4079 = vpop.f32.mrb[0].mxu0
      %v4080 = vadd.f32 %v3919, %v4079
      %v4081 = vpop.f32.mrb[0].mxu0
      %v4082 = vpop.f32.mrb[0].mxu0
      %v4083 = vadd.f32 %v3922, %v4082
      %v4084 = vpop.f32.mrb[0].mxu0
      %4085 = vmatprep.mubr.bf16.mxu0 %v2908
      %4086 = vmatmul.mubr.bf16.gmra.mrb[0].mxu0 %v2844
      %v4087 = vpop.f32.mrb[0].mxu0
      %v4088 = vadd.f32 %v3927, %v4087
      %v4089 = vpop.f32.mrb[0].mxu0
      %v4090 = vpop.f32.mrb[0].mxu0
      %v4091 = vadd.f32 %v3930, %v4090
      %v4092 = vpop.f32.mrb[0].mxu0
      %4093 = vmatprep.mubr.bf16.mxu0 %v2909
      %4094 = vmatmul.mubr.bf16.gmra.mrb[0].mxu0 %v2845
      %v4095 = vpop.f32.mrb[0].mxu0
      %v4096 = vadd.f32 %v3935, %v4095
      %v4097 = vpop.f32.mrb[0].mxu0
      %v4098 = vpop.f32.mrb[0].mxu0
      %v4099 = vadd.f32 %v3938, %v4098
      %v4100 = vpop.f32.mrb[0].mxu0
      %4101 = vmatprep.mubr.bf16.mxu0 %v2910
      %4102 = vmatmul.mubr.bf16.gmra.mrb[0].mxu0 %v2846
      %v4103 = vpop.f32.mrb[0].mxu0
      %v4104 = vadd.f32 %v3943, %v4103
      %v4105 = vpop.f32.mrb[0].mxu0
      %v4106 = vpop.f32.mrb[0].mxu0
      %v4107 = vadd.f32 %v3946, %v4106
      %v4108 = vpop.f32.mrb[0].mxu0
      %4109 = vmatprep.mubr.bf16.mxu0 %v2911
      %4110 = vmatmul.mubr.bf16.gmra.mrb[0].mxu0 %v2847
      %v4111 = vpop.f32.mrb[0].mxu0
      %v4112 = vadd.f32 %v3951, %v4111
      %v4113 = vpop.f32.mrb[0].mxu0
      %v4114 = vpop.f32.mrb[0].mxu0
      %v4115 = vadd.f32 %v3954, %v4114
      %v4116 = vpop.f32.mrb[0].mxu0
      %4117 = vmatprep.mubr.bf16.mxu0 %v2912
      %4118 = vmatmul.mubr.bf16.gmra.mrb[0].mxu0 %v2848
      %v4119 = vpop.f32.mrb[0].mxu0
      %v4120 = vadd.f32 %v3959, %v4119
      %v4121 = vpop.f32.mrb[0].mxu0
      %v4122 = vpop.f32.mrb[0].mxu0
      %v4123 = vadd.f32 %v3962, %v4122
      %v4124 = vpop.f32.mrb[0].mxu0
      %4125 = vmatprep.mubr.bf16.mxu0 %v2913
      %4126 = vmatmul.mubr.bf16.gmra.mrb[0].mxu0 %v2849
      %v4127 = vpop.f32.mrb[0].mxu0
      %v4128 = vadd.f32 %v3967, %v4127
      %v4129 = vpop.f32.mrb[0].mxu0
      %v4130 = vpop.f32.mrb[0].mxu0
      %v4131 = vadd.f32 %v3970, %v4130
      %v4132 = vpop.f32.mrb[0].mxu0
      %4133 = vmatprep.mubr.bf16.mxu0 %v2914
      %4134 = vmatmul.mubr.bf16.gmra.mrb[0].mxu0 %v2850
      %v4135 = vpop.f32.mrb[0].mxu0
      %v4136 = vadd.f32 %v3975, %v4135
      %v4137 = vpop.f32.mrb[0].mxu0
      %v4138 = vpop.f32.mrb[0].mxu0
      %v4139 = vadd.f32 %v3978, %v4138
      %v4140 = vpop.f32.mrb[0].mxu0
      %4141 = vmatprep.mubr.bf16.mxu0 %v2915
      %4142 = vmatmul.mubr.bf16.gmra.mrb[0].mxu0 %v2851
      %v4143 = vpop.f32.mrb[0].mxu0
      %v4144 = vadd.f32 %v3983, %v4143
      %v4145 = vpop.f32.mrb[0].mxu0
      %v4146 = vpop.f32.mrb[0].mxu0
      %v4147 = vadd.f32 %v3986, %v4146
      %v4148 = vpop.f32.mrb[0].mxu0
      %4149 = vmatprep.mubr.bf16.mxu0 %v2916
      %4150 = vmatmul.mubr.bf16.gmra.mrb[0].mxu0 %v2852
      %v4151 = vpop.f32.mrb[0].mxu0
      %v4152 = vadd.f32 %v3991, %v4151
      %v4153 = vpop.f32.mrb[0].mxu0
      %v4154 = vpop.f32.mrb[0].mxu0
      %v4155 = vadd.f32 %v3994, %v4154
      %v4156 = vpop.f32.mrb[0].mxu0
      %4157 = vmatprep.mubr.bf16.mxu0 %v2917
      %4158 = vmatmul.mubr.bf16.gmra.mrb[0].mxu0 %v2853
      %v4159 = vpop.f32.mrb[0].mxu0
      %v4160 = vadd.f32 %v3999, %v4159
      %v4161 = vpop.f32.mrb[0].mxu0
      %v4162 = vpop.f32.mrb[0].mxu0
      %v4163 = vadd.f32 %v4002, %v4162
      %v4164 = vpop.f32.mrb[0].mxu0
      %4165 = vmatprep.mubr.bf16.mxu0 %v2918
      %4166 = vmatmul.mubr.bf16.gmra.mrb[0].mxu0 %v2854
      %v4167 = vpop.f32.mrb[0].mxu0
      %v4168 = vadd.f32 %v4007, %v4167
      %v4169 = vpop.f32.mrb[0].mxu0
      %v4170 = vpop.f32.mrb[0].mxu0
      %v4171 = vadd.f32 %v4010, %v4170
      %v4172 = vpop.f32.mrb[0].mxu0
      %4173 = vmatprep.mubr.bf16.mxu0 %v2919
      %4174 = vmatmul.mubr.bf16.gmra.mrb[0].mxu0 %v2855
      %v4175 = vpop.f32.mrb[0].mxu0
      %v4176 = vadd.f32 %v4015, %v4175
      %v4177 = vpop.f32.mrb[0].mxu0
      %v4178 = vpop.f32.mrb[0].mxu0
      %v4179 = vadd.f32 %v4018, %v4178
      %v4180 = vpop.f32.mrb[0].mxu0
      %4181 = vmatprep.mubr.bf16.mxu0 %v2920
      %4182 = vmatmul.mubr.bf16.gmra.mrb[0].mxu0 %v2856
      %v4183 = vpop.f32.mrb[0].mxu0
      %v4184 = vadd.f32 %v4023, %v4183
      %v4185 = vpop.f32.mrb[0].mxu0
      %v4186 = vpop.f32.mrb[0].mxu0
      %v4187 = vadd.f32 %v4026, %v4186
      %v4188 = vpop.f32.mrb[0].mxu0
      %4189 = vmatprep.mubr.bf16.mxu0 %v2921
      %4190 = vmatmul.mubr.bf16.gmra.mrb[0].mxu0 %v2857
      %v4191 = vpop.f32.mrb[0].mxu0
      %v4192 = vadd.f32 %v4031, %v4191
      %v4193 = vpop.f32.mrb[0].mxu0
      %v4194 = vpop.f32.mrb[0].mxu0
      %v4195 = vadd.f32 %v4034, %v4194
      %v4196 = vpop.f32.mrb[0].mxu0
      %4197 = vmatprep.mubr.bf16.mxu0 %v2922
      %4198 = vmatmul.mubr.bf16.gmra.mrb[0].mxu0 %v2858
      %v4199 = vpop.f32.mrb[0].mxu0
      %v4200 = vadd.f32 %v4039, %v4199
      %v4201 = vpop.f32.mrb[0].mxu0
      %v4202 = vpop.f32.mrb[0].mxu0
      %v4203 = vadd.f32 %v4042, %v4202
      %v4204 = vpop.f32.mrb[0].mxu0
      %4205 = vdwg.mxu0
      %4206 = vmatprep.subr.bf16.mxu0 0
      %4207 = vmatpush1.bf16.msra.mxu0 %v3627
      %4208 = vmatprep.subr.bf16.mxu0 0
      %4209 = vmatpush1.bf16.msra.mxu0 %v3628
      %4210 = vmatprep.subr.bf16.mxu0 0
      %4211 = vmatpush1.bf16.msra.mxu0 %v3629
      %4212 = vmatprep.subr.bf16.mxu0 0
      %4213 = vmatpush1.bf16.msra.mxu0 %v3630
      %4214 = vmatprep.subr.bf16.mxu0 0
      %4215 = vmatpush1.bf16.msra.mxu0 %v3631
      %4216 = vmatprep.subr.bf16.mxu0 0
      %4217 = vmatpush1.bf16.msra.mxu0 %v3632
      %4218 = vmatprep.subr.bf16.mxu0 0
      %4219 = vmatpush1.bf16.msra.mxu0 %v3633
      %4220 = vmatprep.subr.bf16.mxu0 0
      %4221 = vmatpush1.bf16.msra.mxu0 %v3634
      %4222 = vmatprep.subr.bf16.mxu0 0
      %4223 = vmatpush1.bf16.msra.mxu0 %v3635
      %4224 = vmatprep.subr.bf16.mxu0 0
      %4225 = vmatpush1.bf16.msra.mxu0 %v3636
      %4226 = vmatprep.subr.bf16.mxu0 0
      %4227 = vmatpush1.bf16.msra.mxu0 %v3637
      %4228 = vmatprep.subr.bf16.mxu0 0
      %4229 = vmatpush1.bf16.msra.mxu0 %v3638
      %4230 = vmatprep.subr.bf16.mxu0 0
      %4231 = vmatpush1.bf16.msra.mxu0 %v3639
      %4232 = vmatprep.subr.bf16.mxu0 0
      %4233 = vmatpush1.bf16.msra.mxu0 %v3640
      %4234 = vmatprep.subr.bf16.mxu0 0
      %4235 = vmatpush1.bf16.msra.mxu0 %v3641
      %4236 = vmatprep.subr.bf16.mxu0 0
      %4237 = vmatpush1.bf16.msra.mxu0 %v3642
      %4238 = vmatprep.mubr.bf16.mxu0 %v3051
      %4239 = vmatmul.mubr.bf16.gmra.mrb[0].mxu0 %v2987
      %v4240 = vpop.f32.mrb[0].mxu0
      %v4241 = vadd.f32 %v4080, %v4240
      %v4242 = vpop.f32.mrb[0].mxu0
      %v4243 = vpop.f32.mrb[0].mxu0
      %v4244 = vadd.f32 %v4083, %v4243
      %v4245 = vpop.f32.mrb[0].mxu0
      %4246 = vmatprep.mubr.bf16.mxu0 %v3052
      %4247 = vmatmul.mubr.bf16.gmra.mrb[0].mxu0 %v2988
      %v4248 = vpop.f32.mrb[0].mxu0
      %v4249 = vadd.f32 %v4088, %v4248
      %v4250 = vpop.f32.mrb[0].mxu0
      %v4251 = vpop.f32.mrb[0].mxu0
      %v4252 = vadd.f32 %v4091, %v4251
      %v4253 = vpop.f32.mrb[0].mxu0
      %4254 = vmatprep.mubr.bf16.mxu0 %v3053
      %4255 = vmatmul.mubr.bf16.gmra.mrb[0].mxu0 %v2989
      %v4256 = vpop.f32.mrb[0].mxu0
      %v4257 = vadd.f32 %v4096, %v4256
      %v4258 = vpop.f32.mrb[0].mxu0
      %v4259 = vpop.f32.mrb[0].mxu0
      %v4260 = vadd.f32 %v4099, %v4259
      %v4261 = vpop.f32.mrb[0].mxu0
      %4262 = vmatprep.mubr.bf16.mxu0 %v3054
      %4263 = vmatmul.mubr.bf16.gmra.mrb[0].mxu0 %v2990
      %v4264 = vpop.f32.mrb[0].mxu0
      %v4265 = vadd.f32 %v4104, %v4264
      %v4266 = vpop.f32.mrb[0].mxu0
      %v4267 = vpop.f32.mrb[0].mxu0
      %v4268 = vadd.f32 %v4107, %v4267
      %v4269 = vpop.f32.mrb[0].mxu0
      %4270 = vmatprep.mubr.bf16.mxu0 %v3055
      %4271 = vmatmul.mubr.bf16.gmra.mrb[0].mxu0 %v2991
      %v4272 = vpop.f32.mrb[0].mxu0
      %v4273 = vadd.f32 %v4112, %v4272
      %v4274 = vpop.f32.mrb[0].mxu0
      %v4275 = vpop.f32.mrb[0].mxu0
      %v4276 = vadd.f32 %v4115, %v4275
      %v4277 = vpop.f32.mrb[0].mxu0
      %4278 = vmatprep.mubr.bf16.mxu0 %v3056
      %4279 = vmatmul.mubr.bf16.gmra.mrb[0].mxu0 %v2992
      %v4280 = vpop.f32.mrb[0].mxu0
      %v4281 = vadd.f32 %v4120, %v4280
      %v4282 = vpop.f32.mrb[0].mxu0
      %v4283 = vpop.f32.mrb[0].mxu0
      %v4284 = vadd.f32 %v4123, %v4283
      %v4285 = vpop.f32.mrb[0].mxu0
      %4286 = vmatprep.mubr.bf16.mxu0 %v3057
      %4287 = vmatmul.mubr.bf16.gmra.mrb[0].mxu0 %v2993
      %v4288 = vpop.f32.mrb[0].mxu0
      %v4289 = vadd.f32 %v4128, %v4288
      %v4290 = vpop.f32.mrb[0].mxu0
      %v4291 = vpop.f32.mrb[0].mxu0
      %v4292 = vadd.f32 %v4131, %v4291
      %v4293 = vpop.f32.mrb[0].mxu0
      %4294 = vmatprep.mubr.bf16.mxu0 %v3058
      %4295 = vmatmul.mubr.bf16.gmra.mrb[0].mxu0 %v2994
      %v4296 = vpop.f32.mrb[0].mxu0
      %v4297 = vadd.f32 %v4136, %v4296
      %v4298 = vpop.f32.mrb[0].mxu0
      %v4299 = vpop.f32.mrb[0].mxu0
      %v4300 = vadd.f32 %v4139, %v4299
      %v4301 = vpop.f32.mrb[0].mxu0
      %4302 = vmatprep.mubr.bf16.mxu0 %v3059
      %4303 = vmatmul.mubr.bf16.gmra.mrb[0].mxu0 %v2995
      %v4304 = vpop.f32.mrb[0].mxu0
      %v4305 = vadd.f32 %v4144, %v4304
      %v4306 = vpop.f32.mrb[0].mxu0
      %v4307 = vpop.f32.mrb[0].mxu0
      %v4308 = vadd.f32 %v4147, %v4307
      %v4309 = vpop.f32.mrb[0].mxu0
      %4310 = vmatprep.mubr.bf16.mxu0 %v3060
      %4311 = vmatmul.mubr.bf16.gmra.mrb[0].mxu0 %v2996
      %v4312 = vpop.f32.mrb[0].mxu0
      %v4313 = vadd.f32 %v4152, %v4312
      %v4314 = vpop.f32.mrb[0].mxu0
      %v4315 = vpop.f32.mrb[0].mxu0
      %v4316 = vadd.f32 %v4155, %v4315
      %v4317 = vpop.f32.mrb[0].mxu0
      %4318 = vmatprep.mubr.bf16.mxu0 %v3061
      %4319 = vmatmul.mubr.bf16.gmra.mrb[0].mxu0 %v2997
      %v4320 = vpop.f32.mrb[0].mxu0
      %v4321 = vadd.f32 %v4160, %v4320
      %v4322 = vpop.f32.mrb[0].mxu0
      %v4323 = vpop.f32.mrb[0].mxu0
      %v4324 = vadd.f32 %v4163, %v4323
      %v4325 = vpop.f32.mrb[0].mxu0
      %4326 = vmatprep.mubr.bf16.mxu0 %v3062
      %4327 = vmatmul.mubr.bf16.gmra.mrb[0].mxu0 %v2998
      %v4328 = vpop.f32.mrb[0].mxu0
      %v4329 = vadd.f32 %v4168, %v4328
      %v4330 = vpop.f32.mrb[0].mxu0
      %v4331 = vpop.f32.mrb[0].mxu0
      %v4332 = vadd.f32 %v4171, %v4331
      %v4333 = vpop.f32.mrb[0].mxu0
      %4334 = vmatprep.mubr.bf16.mxu0 %v3063
      %4335 = vmatmul.mubr.bf16.gmra.mrb[0].mxu0 %v2999
      %v4336 = vpop.f32.mrb[0].mxu0
      %v4337 = vadd.f32 %v4176, %v4336
      %v4338 = vpop.f32.mrb[0].mxu0
      %v4339 = vpop.f32.mrb[0].mxu0
      %v4340 = vadd.f32 %v4179, %v4339
      %v4341 = vpop.f32.mrb[0].mxu0
      %4342 = vmatprep.mubr.bf16.mxu0 %v3064
      %4343 = vmatmul.mubr.bf16.gmra.mrb[0].mxu0 %v3000
      %v4344 = vpop.f32.mrb[0].mxu0
      %v4345 = vadd.f32 %v4184, %v4344
      %v4346 = vpop.f32.mrb[0].mxu0
      %v4347 = vpop.f32.mrb[0].mxu0
      %v4348 = vadd.f32 %v4187, %v4347
      %v4349 = vpop.f32.mrb[0].mxu0
      %4350 = vmatprep.mubr.bf16.mxu0 %v3065
      %4351 = vmatmul.mubr.bf16.gmra.mrb[0].mxu0 %v3001
      %v4352 = vpop.f32.mrb[0].mxu0
      %v4353 = vadd.f32 %v4192, %v4352
      %v4354 = vpop.f32.mrb[0].mxu0
      %v4355 = vpop.f32.mrb[0].mxu0
      %v4356 = vadd.f32 %v4195, %v4355
      %v4357 = vpop.f32.mrb[0].mxu0
      %4358 = vmatprep.mubr.bf16.mxu0 %v3066
      %4359 = vmatmul.mubr.bf16.gmra.mrb[0].mxu0 %v3002
      %v4360 = vpop.f32.mrb[0].mxu0
      %v4361 = vadd.f32 %v4200, %v4360
      %v4362 = vpop.f32.mrb[0].mxu0
      %v4363 = vpop.f32.mrb[0].mxu0
      %v4364 = vadd.f32 %v4203, %v4363
      %v4365 = vpop.f32.mrb[0].mxu0
      %4366 = vdwg.mxu0
      %4367 = vmatprep.subr.bf16.mxu0 0
      %4368 = vmatpush1.bf16.msra.mxu0 %v3643
      %4369 = vmatprep.subr.bf16.mxu0 0
      %4370 = vmatpush1.bf16.msra.mxu0 %v3644
      %4371 = vmatprep.subr.bf16.mxu0 0
      %4372 = vmatpush1.bf16.msra.mxu0 %v3645
      %4373 = vmatprep.subr.bf16.mxu0 0
      %4374 = vmatpush1.bf16.msra.mxu0 %v3646
      %4375 = vmatprep.subr.bf16.mxu0 0
      %4376 = vmatpush1.bf16.msra.mxu0 %v3647
      %4377 = vmatprep.subr.bf16.mxu0 0
      %4378 = vmatpush1.bf16.msra.mxu0 %v3648
      %4379 = vmatprep.subr.bf16.mxu0 0
      %4380 = vmatpush1.bf16.msra.mxu0 %v3649
      %4381 = vmatprep.subr.bf16.mxu0 0
      %4382 = vmatpush1.bf16.msra.mxu0 %v3650
      %4383 = vmatprep.subr.bf16.mxu0 0
      %4384 = vmatpush1.bf16.msra.mxu0 0
      %4385 = vmatprep.subr.bf16.mxu0 0
      %4386 = vmatpush1.bf16.msra.mxu0 0
      %4387 = vmatprep.subr.bf16.mxu0 0
      %4388 = vmatpush1.bf16.msra.mxu0 0
      %4389 = vmatprep.subr.bf16.mxu0 0
      %4390 = vmatpush1.bf16.msra.mxu0 0
      %4391 = vmatprep.subr.bf16.mxu0 0
      %4392 = vmatpush1.bf16.msra.mxu0 0
      %4393 = vmatprep.subr.bf16.mxu0 0
      %4394 = vmatpush1.bf16.msra.mxu0 0
      %4395 = vmatprep.subr.bf16.mxu0 0
      %4396 = vmatpush1.bf16.msra.mxu0 0
      %4397 = vmatprep.subr.bf16.mxu0 0
      %4398 = vmatpush1.bf16.msra.mxu0 0
      %4399 = vmatprep.mubr.bf16.mxu0 0
      %4400 = vmatmul.mubr.bf16.gmra.mrb[0].mxu0 %v3115
      %v4401 = vpop.f32.mrb[0].mxu0
      %v4402 = vadd.f32 %v4241, %v4401
      %v4403 = vpop.f32.mrb[0].mxu0
      %v4404 = vpop.f32.mrb[0].mxu0
      %v4405 = vadd.f32 %v4244, %v4404
      %v4406 = vpop.f32.mrb[0].mxu0
      %4407 = vmatprep.mubr.bf16.mxu0 0
      %4408 = vmatmul.mubr.bf16.gmra.mrb[0].mxu0 %v3116
      %v4409 = vpop.f32.mrb[0].mxu0
      %v4410 = vadd.f32 %v4249, %v4409
      %v4411 = vpop.f32.mrb[0].mxu0
      %v4412 = vpop.f32.mrb[0].mxu0
      %v4413 = vadd.f32 %v4252, %v4412
      %v4414 = vpop.f32.mrb[0].mxu0
      %4415 = vmatprep.mubr.bf16.mxu0 0
      %4416 = vmatmul.mubr.bf16.gmra.mrb[0].mxu0 %v3117
      %v4417 = vpop.f32.mrb[0].mxu0
      %v4418 = vadd.f32 %v4257, %v4417
      %v4419 = vpop.f32.mrb[0].mxu0
      %v4420 = vpop.f32.mrb[0].mxu0
      %v4421 = vadd.f32 %v4260, %v4420
      %v4422 = vpop.f32.mrb[0].mxu0
      %4423 = vmatprep.mubr.bf16.mxu0 0
      %4424 = vmatmul.mubr.bf16.gmra.mrb[0].mxu0 %v3118
      %v4425 = vpop.f32.mrb[0].mxu0
      %v4426 = vadd.f32 %v4265, %v4425
      %v4427 = vpop.f32.mrb[0].mxu0
      %v4428 = vpop.f32.mrb[0].mxu0
      %v4429 = vadd.f32 %v4268, %v4428
      %v4430 = vpop.f32.mrb[0].mxu0
      %4431 = vmatprep.mubr.bf16.mxu0 0
      %4432 = vmatmul.mubr.bf16.gmra.mrb[0].mxu0 %v3119
      %v4433 = vpop.f32.mrb[0].mxu0
      %v4434 = vadd.f32 %v4273, %v4433
      %v4435 = vpop.f32.mrb[0].mxu0
      %v4436 = vpop.f32.mrb[0].mxu0
      %v4437 = vadd.f32 %v4276, %v4436
      %v4438 = vpop.f32.mrb[0].mxu0
      %4439 = vmatprep.mubr.bf16.mxu0 0
      %4440 = vmatmul.mubr.bf16.gmra.mrb[0].mxu0 %v3120
      %v4441 = vpop.f32.mrb[0].mxu0
      %v4442 = vadd.f32 %v4281, %v4441
      %v4443 = vpop.f32.mrb[0].mxu0
      %v4444 = vpop.f32.mrb[0].mxu0
      %v4445 = vadd.f32 %v4284, %v4444
      %v4446 = vpop.f32.mrb[0].mxu0
      %4447 = vmatprep.mubr.bf16.mxu0 0
      %4448 = vmatmul.mubr.bf16.gmra.mrb[0].mxu0 %v3121
      %v4449 = vpop.f32.mrb[0].mxu0
      %v4450 = vadd.f32 %v4289, %v4449
      %v4451 = vpop.f32.mrb[0].mxu0
      %v4452 = vpop.f32.mrb[0].mxu0
      %v4453 = vadd.f32 %v4292, %v4452
      %v4454 = vpop.f32.mrb[0].mxu0
      %4455 = vmatprep.mubr.bf16.mxu0 0
      %4456 = vmatmul.mubr.bf16.gmra.mrb[0].mxu0 %v3122
      %v4457 = vpop.f32.mrb[0].mxu0
      %v4458 = vadd.f32 %v4297, %v4457
      %v4459 = vpop.f32.mrb[0].mxu0
      %v4460 = vpop.f32.mrb[0].mxu0
      %v4461 = vadd.f32 %v4300, %v4460
      %v4462 = vpop.f32.mrb[0].mxu0
      %4463 = vmatprep.mubr.bf16.mxu0 0
      %4464 = vmatmul.mubr.bf16.gmra.mrb[0].mxu0 %v3123
      %v4465 = vpop.f32.mrb[0].mxu0
      %v4466 = vadd.f32 %v4305, %v4465
      %v4467 = vpop.f32.mrb[0].mxu0
      %v4468 = vpop.f32.mrb[0].mxu0
      %v4469 = vadd.f32 %v4308, %v4468
      %v4470 = vpop.f32.mrb[0].mxu0
      %4471 = vmatprep.mubr.bf16.mxu0 0
      %4472 = vmatmul.mubr.bf16.gmra.mrb[0].mxu0 %v3124
      %v4473 = vpop.f32.mrb[0].mxu0
      %v4474 = vadd.f32 %v4313, %v4473
      %v4475 = vpop.f32.mrb[0].mxu0
      %v4476 = vpop.f32.mrb[0].mxu0
      %v4477 = vadd.f32 %v4316, %v4476
      %v4478 = vpop.f32.mrb[0].mxu0
      %4479 = vmatprep.mubr.bf16.mxu0 0
      %4480 = vmatmul.mubr.bf16.gmra.mrb[0].mxu0 %v3125
      %v4481 = vpop.f32.mrb[0].mxu0
      %v4482 = vadd.f32 %v4321, %v4481
      %v4483 = vpop.f32.mrb[0].mxu0
      %v4484 = vpop.f32.mrb[0].mxu0
      %v4485 = vadd.f32 %v4324, %v4484
      %v4486 = vpop.f32.mrb[0].mxu0
      %4487 = vmatprep.mubr.bf16.mxu0 0
      %4488 = vmatmul.mubr.bf16.gmra.mrb[0].mxu0 %v3126
      %v4489 = vpop.f32.mrb[0].mxu0
      %v4490 = vadd.f32 %v4329, %v4489
      %v4491 = vpop.f32.mrb[0].mxu0
      %v4492 = vpop.f32.mrb[0].mxu0
      %v4493 = vadd.f32 %v4332, %v4492
      %v4494 = vpop.f32.mrb[0].mxu0
      %4495 = vmatprep.mubr.bf16.mxu0 0
      %4496 = vmatmul.mubr.bf16.gmra.mrb[0].mxu0 %v3127
      %v4497 = vpop.f32.mrb[0].mxu0
      %v4498 = vadd.f32 %v4337, %v4497
      %v4499 = vpop.f32.mrb[0].mxu0
      %v4500 = vpop.f32.mrb[0].mxu0
      %v4501 = vadd.f32 %v4340, %v4500
      %v4502 = vpop.f32.mrb[0].mxu0
      %4503 = vmatprep.mubr.bf16.mxu0 0
      %4504 = vmatmul.mubr.bf16.gmra.mrb[0].mxu0 %v3128
      %v4505 = vpop.f32.mrb[0].mxu0
      %v4506 = vadd.f32 %v4345, %v4505
      %v4507 = vpop.f32.mrb[0].mxu0
      %v4508 = vpop.f32.mrb[0].mxu0
      %v4509 = vadd.f32 %v4348, %v4508
      %v4510 = vpop.f32.mrb[0].mxu0
      %4511 = vmatprep.mubr.bf16.mxu0 0
      %4512 = vmatmul.mubr.bf16.gmra.mrb[0].mxu0 %v3129
      %v4513 = vpop.f32.mrb[0].mxu0
      %v4514 = vadd.f32 %v4353, %v4513
      %v4515 = vpop.f32.mrb[0].mxu0
      %v4516 = vpop.f32.mrb[0].mxu0
      %v4517 = vadd.f32 %v4356, %v4516
      %v4518 = vpop.f32.mrb[0].mxu0
      %4519 = vmatprep.mubr.bf16.mxu0 0
      %4520 = vmatmul.mubr.bf16.gmra.mrb[0].mxu0 %v3130
      %v4521 = vpop.f32.mrb[0].mxu0
      %v4522 = vadd.f32 %v4361, %v4521
      %v4523 = vpop.f32.mrb[0].mxu0
      %v4524 = vpop.f32.mrb[0].mxu0
      %v4525 = vadd.f32 %v4364, %v4524
      %v4526 = vpop.f32.mrb[0].mxu0
      %4527 = vdwg.mxu0
      %v4528 = vadd.f32 %v4402, %v4405
      %v4529 = vadd.f32 %v4528, %v4410
      %v4530 = vadd.f32 %v4529, %v4413
      %v4531 = vadd.f32 %v4530, %v4418
      %v4532 = vadd.f32 %v4531, %v4421
      %v4533 = vadd.f32 %v4532, %v4426
      %v4534 = vadd.f32 %v4533, %v4429
      %v4535 = vadd.f32 %v4534, %v4434
      %v4536 = vadd.f32 %v4535, %v4437
      %v4537 = vadd.f32 %v4536, %v4442
      %v4538 = vadd.f32 %v4537, %v4445
      %v4539 = vadd.f32 %v4538, %v4450
      %v4540 = vadd.f32 %v4539, %v4453
      %v4541 = vadd.f32 %v4540, %v4458
      %v4542 = vadd.f32 %v4541, %v4461
      %v4543 = vadd.f32 %v4542, %v4466
      %v4544 = vadd.f32 %v4543, %v4469
      %v4545 = vadd.f32 %v4544, %v4474
      %v4546 = vadd.f32 %v4545, %v4477
      %v4547 = vadd.f32 %v4546, %v4482
      %v4548 = vadd.f32 %v4547, %v4485
      %v4549 = vadd.f32 %v4548, %v4490
      %v4550 = vadd.f32 %v4549, %v4493
      %v4551 = vadd.f32 %v4550, %v4498
      %v4552 = vadd.f32 %v4551, %v4501
      %v4553 = vadd.f32 %v4552, %v4506
      %v4554 = vadd.f32 %v4553, %v4509
      %v4555 = vadd.f32 %v4554, %v4514
      %v4556 = vadd.f32 %v4555, %v4517
      %v4557 = vadd.f32 %v4556, %v4522
      %v4558 = vadd.f32 %v4557, %v4525
      %v4559 = vrot.slane %v4558, 4
      %v4560 = vadd.f32 %v4558, %v4559
      %v4561 = vrot.slane %v4560, 2
      %v4562 = vadd.f32 %v4560, %v4561
      %v4563 = vrot.slane %v4562, 1
      %v4564 = vadd.f32 %v4562, %v4563
      %v4565 = vmul.f32 %v4564, 0.00390625
      %v4566 = vmul.f32 %v4402, %v4402
      %v4567 = vmul.f32 %v4405, %v4405
      %v4568 = vmul.f32 %v4410, %v4410
      %v4569 = vmul.f32 %v4413, %v4413
      %v4570 = vmul.f32 %v4418, %v4418
      %v4571 = vmul.f32 %v4421, %v4421
      %v4572 = vmul.f32 %v4426, %v4426
      %v4573 = vmul.f32 %v4429, %v4429
      %v4574 = vmul.f32 %v4434, %v4434
      %v4575 = vmul.f32 %v4437, %v4437
      %v4576 = vmul.f32 %v4442, %v4442
      %v4577 = vmul.f32 %v4445, %v4445
      %v4578 = vmul.f32 %v4450, %v4450
      %v4579 = vmul.f32 %v4453, %v4453
      %v4580 = vmul.f32 %v4458, %v4458
      %v4581 = vmul.f32 %v4461, %v4461
      %v4582 = vmul.f32 %v4466, %v4466
      %v4583 = vmul.f32 %v4469, %v4469
      %v4584 = vmul.f32 %v4474, %v4474
      %v4585 = vmul.f32 %v4477, %v4477
      %v4586 = vmul.f32 %v4482, %v4482
      %v4587 = vmul.f32 %v4485, %v4485
      %v4588 = vmul.f32 %v4490, %v4490
      %v4589 = vmul.f32 %v4493, %v4493
      %v4590 = vmul.f32 %v4498, %v4498
      %v4591 = vmul.f32 %v4501, %v4501
      %v4592 = vmul.f32 %v4506, %v4506
      %v4593 = vmul.f32 %v4509, %v4509
      %v4594 = vmul.f32 %v4514, %v4514
      %v4595 = vmul.f32 %v4517, %v4517
      %v4596 = vmul.f32 %v4522, %v4522
      %v4597 = vmul.f32 %v4525, %v4525
      %v4598 = vadd.f32 %v4566, %v4567
      %v4599 = vadd.f32 %v4598, %v4568
      %v4600 = vadd.f32 %v4599, %v4569
      %v4601 = vadd.f32 %v4600, %v4570
      %v4602 = vadd.f32 %v4601, %v4571
      %v4603 = vadd.f32 %v4602, %v4572
      %v4604 = vadd.f32 %v4603, %v4573
      %v4605 = vadd.f32 %v4604, %v4574
      %v4606 = vadd.f32 %v4605, %v4575
      %v4607 = vadd.f32 %v4606, %v4576
      %v4608 = vadd.f32 %v4607, %v4577
      %v4609 = vadd.f32 %v4608, %v4578
      %v4610 = vadd.f32 %v4609, %v4579
      %v4611 = vadd.f32 %v4610, %v4580
      %v4612 = vadd.f32 %v4611, %v4581
      %v4613 = vadd.f32 %v4612, %v4582
      %v4614 = vadd.f32 %v4613, %v4583
      %v4615 = vadd.f32 %v4614, %v4584
      %v4616 = vadd.f32 %v4615, %v4585
      %v4617 = vadd.f32 %v4616, %v4586
      %v4618 = vadd.f32 %v4617, %v4587
      %v4619 = vadd.f32 %v4618, %v4588
      %v4620 = vadd.f32 %v4619, %v4589
      %v4621 = vadd.f32 %v4620, %v4590
      %v4622 = vadd.f32 %v4621, %v4591
      %v4623 = vadd.f32 %v4622, %v4592
      %v4624 = vadd.f32 %v4623, %v4593
      %v4625 = vadd.f32 %v4624, %v4594
      %v4626 = vadd.f32 %v4625, %v4595
      %v4627 = vadd.f32 %v4626, %v4596
      %v4628 = vadd.f32 %v4627, %v4597
      %v4629 = vrot.slane %v4628, 4
      %v4630 = vadd.f32 %v4628, %v4629
      %v4631 = vrot.slane %v4630, 2
      %v4632 = vadd.f32 %v4630, %v4631
      %v4633 = vrot.slane %v4632, 1
      %v4634 = vadd.f32 %v4632, %v4633
      %v4635 = vmul.f32 %v4634, 0.00390625
      %v4636 = vmul.f32 %v4565, %v4565
      %v4637 = vsub.f32 %v4635, %v4636
      %v4638 = vmax.f32 %v4637, 0.0
      %v4639 = vadd.f32 %v4638, 1e-05
      %v4640 = vrsqrt.pop %v4639
      %v4641 = vmul.f32 %v4402, %v4640
      %v4642 = vmul.f32 %v4405, %v4640
      %v4643 = vmul.f32 %v4410, %v4640
      %v4644 = vmul.f32 %v4413, %v4640
      %v4645 = vmul.f32 %v4418, %v4640
      %v4646 = vmul.f32 %v4421, %v4640
      %v4647 = vmul.f32 %v4426, %v4640
      %v4648 = vmul.f32 %v4429, %v4640
      %v4649 = vmul.f32 %v4434, %v4640
      %v4650 = vmul.f32 %v4437, %v4640
      %v4651 = vmul.f32 %v4442, %v4640
      %v4652 = vmul.f32 %v4445, %v4640
      %v4653 = vmul.f32 %v4450, %v4640
      %v4654 = vmul.f32 %v4453, %v4640
      %v4655 = vmul.f32 %v4458, %v4640
      %v4656 = vmul.f32 %v4461, %v4640
      %v4657 = vmul.f32 %v4466, %v4640
      %v4658 = vmul.f32 %v4469, %v4640
      %v4659 = vmul.f32 %v4474, %v4640
      %v4660 = vmul.f32 %v4477, %v4640
      %v4661 = vmul.f32 %v4482, %v4640
      %v4662 = vmul.f32 %v4485, %v4640
      %v4663 = vmul.f32 %v4490, %v4640
      %v4664 = vmul.f32 %v4493, %v4640
      %v4665 = vmul.f32 %v4498, %v4640
      %v4666 = vmul.f32 %v4501, %v4640
      %v4667 = vmul.f32 %v4506, %v4640
      %v4668 = vmul.f32 %v4509, %v4640
      %v4669 = vmul.f32 %v4514, %v4640
      %v4670 = vmul.f32 %v4517, %v4640
      %v4671 = vmul.f32 %v4522, %v4640
      %v4672 = vmul.f32 %v4525, %v4640
      %v4673 = vsub.f32 0.0, %v4565
      %v4674 = vmul.f32 %v4673, %v4640
      %v4675 = vadd.f32 %v4641, %v4674
      %v4676 = vadd.f32 %v4642, %v4674
      %v4677 = vadd.f32 %v4643, %v4674
      %v4678 = vadd.f32 %v4644, %v4674
      %v4679 = vadd.f32 %v4645, %v4674
      %v4680 = vadd.f32 %v4646, %v4674
      %v4681 = vadd.f32 %v4647, %v4674
      %v4682 = vadd.f32 %v4648, %v4674
      %v4683 = vadd.f32 %v4649, %v4674
      %v4684 = vadd.f32 %v4650, %v4674
      %v4685 = vadd.f32 %v4651, %v4674
      %v4686 = vadd.f32 %v4652, %v4674
      %v4687 = vadd.f32 %v4653, %v4674
      %v4688 = vadd.f32 %v4654, %v4674
      %v4689 = vadd.f32 %v4655, %v4674
      %v4690 = vadd.f32 %v4656, %v4674
      %v4691 = vadd.f32 %v4657, %v4674
      %v4692 = vadd.f32 %v4658, %v4674
      %v4693 = vadd.f32 %v4659, %v4674
      %v4694 = vadd.f32 %v4660, %v4674
      %v4695 = vadd.f32 %v4661, %v4674
      %v4696 = vadd.f32 %v4662, %v4674
      %v4697 = vadd.f32 %v4663, %v4674
      %v4698 = vadd.f32 %v4664, %v4674
      %v4699 = vadd.f32 %v4665, %v4674
      %v4700 = vadd.f32 %v4666, %v4674
      %v4701 = vadd.f32 %v4667, %v4674
      %v4702 = vadd.f32 %v4668, %v4674
      %v4703 = vadd.f32 %v4669, %v4674
      %v4704 = vadd.f32 %v4670, %v4674
      %v4705 = vadd.f32 %v4671, %v4674
      %v4706 = vadd.f32 %v4672, %v4674
      %v4707 = vmax.f32 %v4675, 0.0
      %v4708 = vmax.f32 %v4676, 0.0
      %v4709 = vmax.f32 %v4677, 0.0
      %v4710 = vmax.f32 %v4678, 0.0
      %v4711 = vmax.f32 %v4679, 0.0
      %v4712 = vmax.f32 %v4680, 0.0
      %v4713 = vmax.f32 %v4681, 0.0
      %v4714 = vmax.f32 %v4682, 0.0
      %v4715 = vmax.f32 %v4683, 0.0
      %v4716 = vmax.f32 %v4684, 0.0
      %v4717 = vmax.f32 %v4685, 0.0
      %v4718 = vmax.f32 %v4686, 0.0
      %v4719 = vmax.f32 %v4687, 0.0
      %v4720 = vmax.f32 %v4688, 0.0
      %v4721 = vmax.f32 %v4689, 0.0
      %v4722 = vmax.f32 %v4690, 0.0
      %v4723 = vmax.f32 %v4691, 0.0
      %v4724 = vmax.f32 %v4692, 0.0
      %v4725 = vmax.f32 %v4693, 0.0
      %v4726 = vmax.f32 %v4694, 0.0
      %v4727 = vmax.f32 %v4695, 0.0
      %v4728 = vmax.f32 %v4696, 0.0
      %v4729 = vmax.f32 %v4697, 0.0
      %v4730 = vmax.f32 %v4698, 0.0
      %v4731 = vmax.f32 %v4699, 0.0
      %v4732 = vmax.f32 %v4700, 0.0
      %v4733 = vmax.f32 %v4701, 0.0
      %v4734 = vmax.f32 %v4702, 0.0
      %v4735 = vmax.f32 %v4703, 0.0
      %v4736 = vmax.f32 %v4704, 0.0
      %v4737 = vmax.f32 %v4705, 0.0
      %v4738 = vmax.f32 %v4706, 0.0
      %v4755 = vrot.slane %v4709, 1
      %v4756 = vrot.slane %v4707, 1
      %v4757 = vrot.slane %v4711, 1
      %v4758 = vrot.slane %v4713, 1
      %v4759 = vrot.slane %v4715, 1
      %v4760 = vrot.slane %v4717, 1
      %v4761 = vrot.slane %v4719, 1
      %v4762 = vrot.slane %v4721, 1
      %v4763 = vrot.slane %v4723, 1
      %v4764 = vrot.slane %v4725, 1
      %v4765 = vrot.slane %v4727, 1
      %v4766 = vrot.slane %v4729, 1
      %v4767 = vrot.slane %v4731, 1
      %v4768 = vrot.slane %v4733, 1
      %v4769 = vrot.slane %v4735, 1
      %v4770 = vrot.slane %v4737, 1
      %v4803 = vrot.slane %v4709, 7
      %v4804 = vrot.slane %v4710, 7
      %v4805 = vsel %vm268, %v4803, %v4804
      %v4806 = vrot.slane %v4707, 7
      %v4807 = vrot.slane %v4708, 7
      %v4808 = vsel %vm268, %v4806, %v4807
      %v4809 = vrot.slane %v4711, 7
      %v4810 = vrot.slane %v4712, 7
      %v4811 = vsel %vm268, %v4809, %v4810
      %v4812 = vrot.slane %v4713, 7
      %v4813 = vrot.slane %v4714, 7
      %v4814 = vsel %vm268, %v4812, %v4813
      %v4815 = vrot.slane %v4715, 7
      %v4816 = vrot.slane %v4716, 7
      %v4817 = vsel %vm268, %v4815, %v4816
      %v4818 = vrot.slane %v4717, 7
      %v4819 = vrot.slane %v4718, 7
      %v4820 = vsel %vm268, %v4818, %v4819
      %v4821 = vrot.slane %v4719, 7
      %v4822 = vrot.slane %v4720, 7
      %v4823 = vsel %vm268, %v4821, %v4822
      %v4824 = vrot.slane %v4721, 7
      %v4825 = vrot.slane %v4722, 7
      %v4826 = vsel %vm268, %v4824, %v4825
      %v4827 = vrot.slane %v4723, 7
      %v4828 = vrot.slane %v4724, 7
      %v4829 = vsel %vm268, %v4827, %v4828
      %v4830 = vrot.slane %v4725, 7
      %v4831 = vrot.slane %v4726, 7
      %v4832 = vsel %vm268, %v4830, %v4831
      %v4833 = vrot.slane %v4727, 7
      %v4834 = vrot.slane %v4728, 7
      %v4835 = vsel %vm268, %v4833, %v4834
      %v4836 = vrot.slane %v4729, 7
      %v4837 = vrot.slane %v4730, 7
      %v4838 = vsel %vm268, %v4836, %v4837
      %v4839 = vrot.slane %v4731, 7
      %v4840 = vrot.slane %v4732, 7
      %v4841 = vsel %vm268, %v4839, %v4840
      %v4842 = vrot.slane %v4733, 7
      %v4843 = vrot.slane %v4734, 7
      %v4844 = vsel %vm268, %v4842, %v4843
      %v4845 = vrot.slane %v4735, 7
      %v4846 = vrot.slane %v4736, 7
      %v4847 = vsel %vm268, %v4845, %v4846
      %v4848 = vrot.slane %v4737, 7
      %v4849 = vrot.slane %v4738, 7
      %v4850 = vsel %vm268, %v4848, %v4849
      %v4899 = vrot.slane %v4710, 5
      %v4900 = vrot.slane %v4708, 5
      %v4901 = vrot.slane %v4712, 5
      %v4902 = vrot.slane %v4714, 5
      %v4903 = vrot.slane %v4716, 5
      %v4904 = vrot.slane %v4718, 5
      %v4905 = vrot.slane %v4720, 5
      %v4906 = vrot.slane %v4722, 5
      %v4907 = vrot.slane %v4724, 5
      %v4908 = vrot.slane %v4726, 5
      %v4909 = vrot.slane %v4728, 5
      %v4910 = vrot.slane %v4730, 5
      %v4911 = vrot.slane %v4732, 5
      %v4912 = vrot.slane %v4734, 5
      %v4913 = vrot.slane %v4736, 5
      %v4914 = vrot.slane %v4738, 5
      %v4931 = vsel %vm268, %v4755, %v4803
      %v4932 = vsel %vm268, %v4756, %v4806
      %v4933 = vsel %vm268, %v4757, %v4809
      %v4934 = vsel %vm268, %v4758, %v4812
      %v4935 = vsel %vm268, %v4759, %v4815
      %v4936 = vsel %vm268, %v4760, %v4818
      %v4937 = vsel %vm268, %v4761, %v4821
      %v4938 = vsel %vm268, %v4762, %v4824
      %v4939 = vsel %vm268, %v4763, %v4827
      %v4940 = vsel %vm268, %v4764, %v4830
      %v4941 = vsel %vm268, %v4765, %v4833
      %v4942 = vsel %vm268, %v4766, %v4836
      %v4943 = vsel %vm268, %v4767, %v4839
      %v4944 = vsel %vm268, %v4768, %v4842
      %v4945 = vsel %vm268, %v4769, %v4845
      %v4946 = vsel %vm268, %v4770, %v4848
      %v4947 = vsel %vm268, %v4804, %v4899
      %v4948 = vsel %vm268, %v4807, %v4900
      %v4949 = vsel %vm268, %v4810, %v4901
      %v4950 = vsel %vm268, %v4813, %v4902
      %v4951 = vsel %vm268, %v4816, %v4903
      %v4952 = vsel %vm268, %v4819, %v4904
      %v4953 = vsel %vm268, %v4822, %v4905
      %v4954 = vsel %vm268, %v4825, %v4906
      %v4955 = vsel %vm268, %v4828, %v4907
      %v4956 = vsel %vm268, %v4831, %v4908
      %v4957 = vsel %vm268, %v4834, %v4909
      %v4958 = vsel %vm268, %v4837, %v4910
      %v4959 = vsel %vm268, %v4840, %v4911
      %v4960 = vsel %vm268, %v4843, %v4912
      %v4961 = vsel %vm268, %v4846, %v4913
      %v4962 = vsel %vm268, %v4849, %v4914
      %v4963 = vpack.c.bf16 %v4805, %v4931
      %v4964 = vpack.c.bf16 %v4947, %v4947
      %v4965 = vpack.c.bf16 %v4808, %v4932
      %v4966 = vpack.c.bf16 %v4948, %v4948
      %v4967 = vpack.c.bf16 %v4811, %v4933
      %v4968 = vpack.c.bf16 %v4949, %v4949
      %v4969 = vpack.c.bf16 %v4814, %v4934
      %v4970 = vpack.c.bf16 %v4950, %v4950
      %v4971 = vpack.c.bf16 %v4817, %v4935
      %v4972 = vpack.c.bf16 %v4951, %v4951
      %v4973 = vpack.c.bf16 %v4820, %v4936
      %v4974 = vpack.c.bf16 %v4952, %v4952
      %v4975 = vpack.c.bf16 %v4823, %v4937
      %v4976 = vpack.c.bf16 %v4953, %v4953
      %v4977 = vpack.c.bf16 %v4826, %v4938
      %v4978 = vpack.c.bf16 %v4954, %v4954
      %v4979 = vpack.c.bf16 %v4829, %v4939
      %v4980 = vpack.c.bf16 %v4955, %v4955
      %v4981 = vpack.c.bf16 %v4832, %v4940
      %v4982 = vpack.c.bf16 %v4956, %v4956
      %v4983 = vpack.c.bf16 %v4835, %v4941
      %v4984 = vpack.c.bf16 %v4957, %v4957
      %v4985 = vpack.c.bf16 %v4838, %v4942
      %v4986 = vpack.c.bf16 %v4958, %v4958
      %v4987 = vpack.c.bf16 %v4841, %v4943
      %v4988 = vpack.c.bf16 %v4959, %v4959
      %v4989 = vpack.c.bf16 %v4844, %v4944
      %v4990 = vpack.c.bf16 %v4960, %v4960
      %v4991 = vpack.c.bf16 %v4847, %v4945
      %v4992 = vpack.c.bf16 %v4961, %v4961
      %v4993 = vpack.c.bf16 %v4850, %v4946
      %v4994 = vpack.c.bf16 %v4962, %v4962
      %v5027 = vunpack.c.l.b16 %v4963
      %v5028 = vunpack.c.h.b16 %v4963
      %v5029 = vunpack.c.l.b16 %v4964
      %v5030 = vunpack.c.l.b16 %v4965
      %v5031 = vunpack.c.h.b16 %v4965
      %v5032 = vunpack.c.l.b16 %v4966
      %v5033 = vunpack.c.l.b16 %v4967
      %v5034 = vunpack.c.h.b16 %v4967
      %v5035 = vunpack.c.l.b16 %v4968
      %v5036 = vunpack.c.l.b16 %v4969
      %v5037 = vunpack.c.h.b16 %v4969
      %v5038 = vunpack.c.l.b16 %v4970
      %v5039 = vunpack.c.l.b16 %v4971
      %v5040 = vunpack.c.h.b16 %v4971
      %v5041 = vunpack.c.l.b16 %v4972
      %v5042 = vunpack.c.l.b16 %v4973
      %v5043 = vunpack.c.h.b16 %v4973
      %v5044 = vunpack.c.l.b16 %v4974
      %v5045 = vunpack.c.l.b16 %v4975
      %v5046 = vunpack.c.h.b16 %v4975
      %v5047 = vunpack.c.l.b16 %v4976
      %v5048 = vunpack.c.l.b16 %v4977
      %v5049 = vunpack.c.h.b16 %v4977
      %v5050 = vunpack.c.l.b16 %v4978
      %v5051 = vunpack.c.l.b16 %v4979
      %v5052 = vunpack.c.h.b16 %v4979
      %v5053 = vunpack.c.l.b16 %v4980
      %v5054 = vunpack.c.l.b16 %v4981
      %v5055 = vunpack.c.h.b16 %v4981
      %v5056 = vunpack.c.l.b16 %v4982
      %v5057 = vunpack.c.l.b16 %v4983
      %v5058 = vunpack.c.h.b16 %v4983
      %v5059 = vunpack.c.l.b16 %v4984
      %v5060 = vunpack.c.l.b16 %v4985
      %v5061 = vunpack.c.h.b16 %v4985
      %v5062 = vunpack.c.l.b16 %v4986
      %v5063 = vunpack.c.l.b16 %v4987
      %v5064 = vunpack.c.h.b16 %v4987
      %v5065 = vunpack.c.l.b16 %v4988
      %v5066 = vunpack.c.l.b16 %v4989
      %v5067 = vunpack.c.h.b16 %v4989
      %v5068 = vunpack.c.l.b16 %v4990
      %v5069 = vunpack.c.l.b16 %v4991
      %v5070 = vunpack.c.h.b16 %v4991
      %v5071 = vunpack.c.l.b16 %v4992
      %v5072 = vunpack.c.l.b16 %v4993
      %v5073 = vunpack.c.h.b16 %v4993
      %v5074 = vunpack.c.l.b16 %v4994
      %v5075 = vpack.c.b16 %v5027, %v5027
      %v5076 = vpack.c.b16 %v5028, %v5028
      %v5077 = vpack.c.b16 %v5029, %v5029
      %v5078 = vpack.c.b16 %v5030, %v5030
      %v5079 = vpack.c.b16 %v5031, %v5031
      %v5080 = vpack.c.b16 %v5032, %v5032
      %v5081 = vpack.c.b16 %v5033, %v5033
      %v5082 = vpack.c.b16 %v5034, %v5034
      %v5083 = vpack.c.b16 %v5035, %v5035
      %v5084 = vpack.c.b16 %v5036, %v5036
      %v5085 = vpack.c.b16 %v5037, %v5037
      %v5086 = vpack.c.b16 %v5038, %v5038
      %v5087 = vpack.c.b16 %v5039, %v5039
      %v5088 = vpack.c.b16 %v5040, %v5040
      %v5089 = vpack.c.b16 %v5041, %v5041
      %v5090 = vpack.c.b16 %v5042, %v5042
      %v5091 = vpack.c.b16 %v5043, %v5043
      %v5092 = vpack.c.b16 %v5044, %v5044
      %v5093 = vpack.c.b16 %v5045, %v5045
      %v5094 = vpack.c.b16 %v5046, %v5046
      %v5095 = vpack.c.b16 %v5047, %v5047
      %v5096 = vpack.c.b16 %v5048, %v5048
      %v5097 = vpack.c.b16 %v5049, %v5049
      %v5098 = vpack.c.b16 %v5050, %v5050
      %v5099 = vpack.c.b16 %v5051, %v5051
      %v5100 = vpack.c.b16 %v5052, %v5052
      %v5101 = vpack.c.b16 %v5053, %v5053
      %v5102 = vpack.c.b16 %v5054, %v5054
      %v5103 = vpack.c.b16 %v5055, %v5055
      %v5104 = vpack.c.b16 %v5056, %v5056
      %v5105 = vpack.c.b16 %v5057, %v5057
      %v5106 = vpack.c.b16 %v5058, %v5058
      %v5107 = vpack.c.b16 %v5059, %v5059
      %v5108 = vpack.c.b16 %v5060, %v5060
      %v5109 = vpack.c.b16 %v5061, %v5061
      %v5110 = vpack.c.b16 %v5062, %v5062
      %v5111 = vpack.c.b16 %v5063, %v5063
      %v5112 = vpack.c.b16 %v5064, %v5064
      %v5113 = vpack.c.b16 %v5065, %v5065
      %v5114 = vpack.c.b16 %v5066, %v5066
      %v5115 = vpack.c.b16 %v5067, %v5067
      %v5116 = vpack.c.b16 %v5068, %v5068
      %v5117 = vpack.c.b16 %v5069, %v5069
      %v5118 = vpack.c.b16 %v5070, %v5070
      %v5119 = vpack.c.b16 %v5071, %v5071
      %v5120 = vpack.c.b16 %v5072, %v5072
      %v5121 = vpack.c.b16 %v5073, %v5073
      %v5122 = vpack.c.b16 %v5074, %v5074
      %5171 = vst [vmem:[#allocation2] sm:$0xf] %v5075
      %5172 = vst [vmem:[#allocation2 + $0x4] sm:$0xf] %v5076
      %5173 = vst [vmem:[#allocation2 + $0x8] sm:$0x1] %v5077
      %5174 = vst [vmem:[#allocation2 + $0xc] sm:$0xf] %v5078
      %5175 = vst [vmem:[#allocation2 + $0x10] sm:$0xf] %v5079
      %5176 = vst [vmem:[#allocation2 + $0x14] sm:$0x1] %v5080
      %5177 = vst [vmem:[#allocation2 + $0x18] sm:$0xf] %v5075
      %5178 = vst [vmem:[#allocation2 + $0x1c] sm:$0xf] %v5076
      %5179 = vst [vmem:[#allocation2 + $0x20] sm:$0x1] %v5077
      %5180 = vst [vmem:[#allocation2 + $0x24] sm:$0xf] %v5081
      %5181 = vst [vmem:[#allocation2 + $0x28] sm:$0xf] %v5082
      %5182 = vst [vmem:[#allocation2 + $0x2c] sm:$0x1] %v5083
      %5183 = vst [vmem:[#allocation2 + $0x30] sm:$0xf] %v5084
      %5184 = vst [vmem:[#allocation2 + $0x34] sm:$0xf] %v5085
      %5185 = vst [vmem:[#allocation2 + $0x38] sm:$0x1] %v5086
      %5186 = vst [vmem:[#allocation2 + $0x3c] sm:$0xf] %v5087
      %5187 = vst [vmem:[#allocation2 + $0x40] sm:$0xf] %v5088
      %5188 = vst [vmem:[#allocation2 + $0x44] sm:$0x1] %v5089
      %5189 = vst [vmem:[#allocation2 + $0x48] sm:$0xf] %v5090
      %5190 = vst [vmem:[#allocation2 + $0x4c] sm:$0xf] %v5091
      %5191 = vst [vmem:[#allocation2 + $0x50] sm:$0x1] %v5092
      %5192 = vst [vmem:[#allocation2 + $0x54] sm:$0xf] %v5093
      %5193 = vst [vmem:[#allocation2 + $0x58] sm:$0xf] %v5094
      %5194 = vst [vmem:[#allocation2 + $0x5c] sm:$0x1] %v5095
      %5195 = vst [vmem:[#allocation2 + $0x60] sm:$0xf] %v5096
      %5196 = vst [vmem:[#allocation2 + $0x64] sm:$0xf] %v5097
      %5197 = vst [vmem:[#allocation2 + $0x68] sm:$0x1] %v5098
      %5198 = vst [vmem:[#allocation2 + $0x6c] sm:$0xf] %v5099
      %5199 = vst [vmem:[#allocation2 + $0x70] sm:$0xf] %v5100
      %5200 = vst [vmem:[#allocation2 + $0x74] sm:$0x1] %v5101
      %5201 = vst [vmem:[#allocation2 + $0x78] sm:$0xf] %v5102
      %5202 = vst [vmem:[#allocation2 + $0x7c] sm:$0xf] %v5103
      %5203 = vst [vmem:[#allocation2 + $0x80] sm:$0x1] %v5104
      %5204 = vst [vmem:[#allocation2 + $0x84] sm:$0xf] %v5105
      %5205 = vst [vmem:[#allocation2 + $0x88] sm:$0xf] %v5106
      %5206 = vst [vmem:[#allocation2 + $0x8c] sm:$0x1] %v5107
      %5207 = vst [vmem:[#allocation2 + $0x90] sm:$0xf] %v5108
      %5208 = vst [vmem:[#allocation2 + $0x94] sm:$0xf] %v5109
      %5209 = vst [vmem:[#allocation2 + $0x98] sm:$0x1] %v5110
      %5210 = vst [vmem:[#allocation2 + $0x9c] sm:$0xf] %v5111
      %5211 = vst [vmem:[#allocation2 + $0xa0] sm:$0xf] %v5112
      %5212 = vst [vmem:[#allocation2 + $0xa4] sm:$0x1] %v5113
      %5213 = vst [vmem:[#allocation2 + $0xa8] sm:$0xf] %v5114
      %5214 = vst [vmem:[#allocation2 + $0xac] sm:$0xf] %v5115
      %5215 = vst [vmem:[#allocation2 + $0xb0] sm:$0x1] %v5116
      %5216 = vst [vmem:[#allocation2 + $0xb4] sm:$0xf] %v5117
      %5217 = vst [vmem:[#allocation2 + $0xb8] sm:$0xf] %v5118
      %5218 = vst [vmem:[#allocation2 + $0xbc] sm:$0x1] %v5119
      %5219 = vst [vmem:[#allocation2 + $0xc0] sm:$0xf] %v5120
      %5220 = vst [vmem:[#allocation2 + $0xc4] sm:$0xf] %v5121
      %5221 = vst [vmem:[#allocation2 + $0xc8] sm:$0x1] %v5122
      %5222 = vst [vmem:[#allocation2 + $0xcc] sm:$0xf] %v5117
      %5223 = vst [vmem:[#allocation2 + $0xd0] sm:$0xf] %v5118
      %5224 = vst [vmem:[#allocation2 + $0xd4] sm:$0x1] %v5119
      %v5225 = vld [vmem:[#allocation2] sm:$0xf]
      %v5226 = vld [vmem:[#allocation2 + $0x4] sm:$0xf]
      %v5227 = vld [vmem:[#allocation2 + $0xc] sm:$0xf]
      %v5228 = vld [vmem:[#allocation2 + $0x10] sm:$0xf]
      %v5229 = vld [vmem:[#allocation2 + $0x18] sm:$0xf]
      %v5230 = vld [vmem:[#allocation2 + $0x1c] sm:$0xf]
      %v5231 = vld [vmem:[#allocation2 + $0x24] sm:$0xf]
      %v5232 = vld [vmem:[#allocation2 + $0x28] sm:$0xf]
      %v5233 = vld [vmem:[#allocation2 + $0x30] sm:$0xf]
      %v5234 = vld [vmem:[#allocation2 + $0x34] sm:$0xf]
      %v5235 = vld [vmem:[#allocation2 + $0x3c] sm:$0xf]
      %v5236 = vld [vmem:[#allocation2 + $0x40] sm:$0xf]
      %v5237 = vld [vmem:[#allocation2 + $0x48] sm:$0xf]
      %v5238 = vld [vmem:[#allocation2 + $0x4c] sm:$0xf]
      %v5239 = vld [vmem:[#allocation2 + $0x54] sm:$0xf]
      %v5240 = vld [vmem:[#allocation2 + $0x58] sm:$0xf]
      %v5241 = vld [vmem:[#allocation2 + $0x60] sm:$0xf]
      %v5242 = vld [vmem:[#allocation2 + $0x64] sm:$0xf]
      %v5243 = vld [vmem:[#allocation2 + $0x6c] sm:$0xf]
      %v5244 = vld [vmem:[#allocation2 + $0x70] sm:$0xf]
      %v5245 = vld [vmem:[#allocation2 + $0x78] sm:$0xf]
      %v5246 = vld [vmem:[#allocation2 + $0x7c] sm:$0xf]
      %v5247 = vld [vmem:[#allocation2 + $0x84] sm:$0xf]
      %v5248 = vld [vmem:[#allocation2 + $0x88] sm:$0xf]
      %v5249 = vld [vmem:[#allocation2 + $0x90] sm:$0xf]
      %v5250 = vld [vmem:[#allocation2 + $0x94] sm:$0xf]
      %v5251 = vld [vmem:[#allocation2 + $0x9c] sm:$0xf]
      %v5252 = vld [vmem:[#allocation2 + $0xa0] sm:$0xf]
      %v5253 = vld [vmem:[#allocation2 + $0xa8] sm:$0xf]
      %v5254 = vld [vmem:[#allocation2 + $0xac] sm:$0xf]
      %v5255 = vld [vmem:[#allocation2 + $0xb4] sm:$0xf]
      %v5256 = vld [vmem:[#allocation2 + $0xb8] sm:$0xf]
      %v5257 = vld [vmem:[#allocation2 + $0x8] sm:$0x1]
      %v5258 = vld [vmem:[#allocation2 + $0x14] sm:$0x1]
      %v5259 = vld [vmem:[#allocation2 + $0x20] sm:$0x1]
      %v5260 = vld [vmem:[#allocation2 + $0x2c] sm:$0x1]
      %v5261 = vld [vmem:[#allocation2 + $0x38] sm:$0x1]
      %v5262 = vld [vmem:[#allocation2 + $0x44] sm:$0x1]
      %v5263 = vld [vmem:[#allocation2 + $0x50] sm:$0x1]
      %v5264 = vld [vmem:[#allocation2 + $0x5c] sm:$0x1]
      %v5265 = vld [vmem:[#allocation2 + $0x68] sm:$0x1]
      %v5266 = vld [vmem:[#allocation2 + $0x74] sm:$0x1]
      %v5267 = vld [vmem:[#allocation2 + $0x80] sm:$0x1]
      %v5268 = vld [vmem:[#allocation2 + $0x8c] sm:$0x1]
      %v5269 = vld [vmem:[#allocation2 + $0x98] sm:$0x1]
      %v5270 = vld [vmem:[#allocation2 + $0xa4] sm:$0x1]
      %v5271 = vld [vmem:[#allocation2 + $0xb0] sm:$0x1]
      %v5272 = vld [vmem:[#allocation2 + $0xbc] sm:$0x1]
      %v5274 = vshrl.u32 %v5225, 16
      %v5276 = vrot.slane %v5274, 4
      %v5277 = vshll.u32 %v5225, 16
      %v5279 = vrot.slane %v5277, 5
      %v5280 = vor.u32 %v5276, %v5279
      %v5281 = vrot.slane %v5280, 4
      %v5283 = vshll.u32 %v5226, 16
      %v5285 = vrot.slane %v5283, 5
      %v5286 = vsel %vm741, %v5281, %v5285
      %v5287 = vshrl.u32 %v5226, 16
      %v5289 = vrot.slane %v5287, 4
      %v5290 = vor.u32 %v5289, %v5285
      %v5291 = vrot.slane %v5290, 4
      %v5293 = vshll.u32 %v5257, 16
      %v5295 = vrot.slane %v5293, 5
      %v5296 = vsel %vm741, %v5291, %v5295
      %v5298 = vshrl.u32 %v5227, 16
      %v5300 = vrot.slane %v5298, 4
      %v5301 = vshll.u32 %v5227, 16
      %v5303 = vrot.slane %v5301, 5
      %v5304 = vor.u32 %v5300, %v5303
      %v5305 = vrot.slane %v5304, 4
      %v5307 = vshll.u32 %v5228, 16
      %v5309 = vrot.slane %v5307, 5
      %v5310 = vsel %vm741, %v5305, %v5309
      %v5311 = vshrl.u32 %v5228, 16
      %v5313 = vrot.slane %v5311, 4
      %v5314 = vor.u32 %v5313, %v5309
      %v5315 = vrot.slane %v5314, 4
      %v5317 = vshll.u32 %v5258, 16
      %v5319 = vrot.slane %v5317, 5
      %v5320 = vsel %vm741, %v5315, %v5319
      %v5322 = vshrl.u32 %v5229, 16
      %v5324 = vrot.slane %v5322, 4
      %v5325 = vshll.u32 %v5229, 16
      %v5327 = vrot.slane %v5325, 5
      %v5328 = vor.u32 %v5324, %v5327
      %v5329 = vrot.slane %v5328, 4
      %v5331 = vshll.u32 %v5230, 16
      %v5333 = vrot.slane %v5331, 5
      %v5334 = vsel %vm741, %v5329, %v5333
      %v5335 = vshrl.u32 %v5230, 16
      %v5337 = vrot.slane %v5335, 4
      %v5338 = vor.u32 %v5337, %v5333
      %v5339 = vrot.slane %v5338, 4
      %v5341 = vshll.u32 %v5259, 16
      %v5343 = vrot.slane %v5341, 5
      %v5344 = vsel %vm741, %v5339, %v5343
      %v5346 = vshrl.u32 %v5231, 16
      %v5348 = vrot.slane %v5346, 4
      %v5349 = vshll.u32 %v5231, 16
      %v5351 = vrot.slane %v5349, 5
      %v5352 = vor.u32 %v5348, %v5351
      %v5353 = vrot.slane %v5352, 4
      %v5355 = vshll.u32 %v5232, 16
      %v5357 = vrot.slane %v5355, 5
      %v5358 = vsel %vm741, %v5353, %v5357
      %v5359 = vshrl.u32 %v5232, 16
      %v5361 = vrot.slane %v5359, 4
      %v5362 = vor.u32 %v5361, %v5357
      %v5363 = vrot.slane %v5362, 4
      %v5365 = vshll.u32 %v5260, 16
      %v5367 = vrot.slane %v5365, 5
      %v5368 = vsel %vm741, %v5363, %v5367
      %v5370 = vshrl.u32 %v5233, 16
      %v5372 = vrot.slane %v5370, 4
      %v5373 = vshll.u32 %v5233, 16
      %v5375 = vrot.slane %v5373, 5
      %v5376 = vor.u32 %v5372, %v5375
      %v5377 = vrot.slane %v5376, 4
      %v5379 = vshll.u32 %v5234, 16
      %v5381 = vrot.slane %v5379, 5
      %v5382 = vsel %vm741, %v5377, %v5381
      %v5383 = vshrl.u32 %v5234, 16
      %v5385 = vrot.slane %v5383, 4
      %v5386 = vor.u32 %v5385, %v5381
      %v5387 = vrot.slane %v5386, 4
      %v5389 = vshll.u32 %v5261, 16
      %v5391 = vrot.slane %v5389, 5
      %v5392 = vsel %vm741, %v5387, %v5391
      %v5394 = vshrl.u32 %v5235, 16
      %v5396 = vrot.slane %v5394, 4
      %v5397 = vshll.u32 %v5235, 16
      %v5399 = vrot.slane %v5397, 5
      %v5400 = vor.u32 %v5396, %v5399
      %v5401 = vrot.slane %v5400, 4
      %v5403 = vshll.u32 %v5236, 16
      %v5405 = vrot.slane %v5403, 5
      %v5406 = vsel %vm741, %v5401, %v5405
      %v5407 = vshrl.u32 %v5236, 16
      %v5409 = vrot.slane %v5407, 4
      %v5410 = vor.u32 %v5409, %v5405
      %v5411 = vrot.slane %v5410, 4
      %v5413 = vshll.u32 %v5262, 16
      %v5415 = vrot.slane %v5413, 5
      %v5416 = vsel %vm741, %v5411, %v5415
      %v5418 = vshrl.u32 %v5237, 16
      %v5420 = vrot.slane %v5418, 4
      %v5421 = vshll.u32 %v5237, 16
      %v5423 = vrot.slane %v5421, 5
      %v5424 = vor.u32 %v5420, %v5423
      %v5425 = vrot.slane %v5424, 4
      %v5427 = vshll.u32 %v5238, 16
      %v5429 = vrot.slane %v5427, 5
      %v5430 = vsel %vm741, %v5425, %v5429
      %v5431 = vshrl.u32 %v5238, 16
      %v5433 = vrot.slane %v5431, 4
      %v5434 = vor.u32 %v5433, %v5429
      %v5435 = vrot.slane %v5434, 4
      %v5437 = vshll.u32 %v5263, 16
      %v5439 = vrot.slane %v5437, 5
      %v5440 = vsel %vm741, %v5435, %v5439
      %v5442 = vshrl.u32 %v5239, 16
      %v5444 = vrot.slane %v5442, 4
      %v5445 = vshll.u32 %v5239, 16
      %v5447 = vrot.slane %v5445, 5
      %v5448 = vor.u32 %v5444, %v5447
      %v5449 = vrot.slane %v5448, 4
      %v5451 = vshll.u32 %v5240, 16
      %v5453 = vrot.slane %v5451, 5
      %v5454 = vsel %vm741, %v5449, %v5453
      %v5455 = vshrl.u32 %v5240, 16
      %v5457 = vrot.slane %v5455, 4
      %v5458 = vor.u32 %v5457, %v5453
      %v5459 = vrot.slane %v5458, 4
      %v5461 = vshll.u32 %v5264, 16
      %v5463 = vrot.slane %v5461, 5
      %v5464 = vsel %vm741, %v5459, %v5463
      %v5466 = vshrl.u32 %v5241, 16
      %v5468 = vrot.slane %v5466, 4
      %v5469 = vshll.u32 %v5241, 16
      %v5471 = vrot.slane %v5469, 5
      %v5472 = vor.u32 %v5468, %v5471
      %v5473 = vrot.slane %v5472, 4
      %v5475 = vshll.u32 %v5242, 16
      %v5477 = vrot.slane %v5475, 5
      %v5478 = vsel %vm741, %v5473, %v5477
      %v5479 = vshrl.u32 %v5242, 16
      %v5481 = vrot.slane %v5479, 4
      %v5482 = vor.u32 %v5481, %v5477
      %v5483 = vrot.slane %v5482, 4
      %v5485 = vshll.u32 %v5265, 16
      %v5487 = vrot.slane %v5485, 5
      %v5488 = vsel %vm741, %v5483, %v5487
      %v5490 = vshrl.u32 %v5243, 16
      %v5492 = vrot.slane %v5490, 4
      %v5493 = vshll.u32 %v5243, 16
      %v5495 = vrot.slane %v5493, 5
      %v5496 = vor.u32 %v5492, %v5495
      %v5497 = vrot.slane %v5496, 4
      %v5499 = vshll.u32 %v5244, 16
      %v5501 = vrot.slane %v5499, 5
      %v5502 = vsel %vm741, %v5497, %v5501
      %v5503 = vshrl.u32 %v5244, 16
      %v5505 = vrot.slane %v5503, 4
      %v5506 = vor.u32 %v5505, %v5501
      %v5507 = vrot.slane %v5506, 4
      %v5509 = vshll.u32 %v5266, 16
      %v5511 = vrot.slane %v5509, 5
      %v5512 = vsel %vm741, %v5507, %v5511
      %v5514 = vshrl.u32 %v5245, 16
      %v5516 = vrot.slane %v5514, 4
      %v5517 = vshll.u32 %v5245, 16
      %v5519 = vrot.slane %v5517, 5
      %v5520 = vor.u32 %v5516, %v5519
      %v5521 = vrot.slane %v5520, 4
      %v5523 = vshll.u32 %v5246, 16
      %v5525 = vrot.slane %v5523, 5
      %v5526 = vsel %vm741, %v5521, %v5525
      %v5527 = vshrl.u32 %v5246, 16
      %v5529 = vrot.slane %v5527, 4
      %v5530 = vor.u32 %v5529, %v5525
      %v5531 = vrot.slane %v5530, 4
      %v5533 = vshll.u32 %v5267, 16
      %v5535 = vrot.slane %v5533, 5
      %v5536 = vsel %vm741, %v5531, %v5535
      %v5538 = vshrl.u32 %v5247, 16
      %v5540 = vrot.slane %v5538, 4
      %v5541 = vshll.u32 %v5247, 16
      %v5543 = vrot.slane %v5541, 5
      %v5544 = vor.u32 %v5540, %v5543
      %v5545 = vrot.slane %v5544, 4
      %v5547 = vshll.u32 %v5248, 16
      %v5549 = vrot.slane %v5547, 5
      %v5550 = vsel %vm741, %v5545, %v5549
      %v5551 = vshrl.u32 %v5248, 16
      %v5553 = vrot.slane %v5551, 4
      %v5554 = vor.u32 %v5553, %v5549
      %v5555 = vrot.slane %v5554, 4
      %v5557 = vshll.u32 %v5268, 16
      %v5559 = vrot.slane %v5557, 5
      %v5560 = vsel %vm741, %v5555, %v5559
      %v5562 = vshrl.u32 %v5249, 16
      %v5564 = vrot.slane %v5562, 4
      %v5565 = vshll.u32 %v5249, 16
      %v5567 = vrot.slane %v5565, 5
      %v5568 = vor.u32 %v5564, %v5567
      %v5569 = vrot.slane %v5568, 4
      %v5571 = vshll.u32 %v5250, 16
      %v5573 = vrot.slane %v5571, 5
      %v5574 = vsel %vm741, %v5569, %v5573
      %v5575 = vshrl.u32 %v5250, 16
      %v5577 = vrot.slane %v5575, 4
      %v5578 = vor.u32 %v5577, %v5573
      %v5579 = vrot.slane %v5578, 4
      %v5581 = vshll.u32 %v5269, 16
      %v5583 = vrot.slane %v5581, 5
      %v5584 = vsel %vm741, %v5579, %v5583
      %v5586 = vshrl.u32 %v5251, 16
      %v5588 = vrot.slane %v5586, 4
      %v5589 = vshll.u32 %v5251, 16
      %v5591 = vrot.slane %v5589, 5
      %v5592 = vor.u32 %v5588, %v5591
      %v5593 = vrot.slane %v5592, 4
      %v5595 = vshll.u32 %v5252, 16
      %v5597 = vrot.slane %v5595, 5
      %v5598 = vsel %vm741, %v5593, %v5597
      %v5599 = vshrl.u32 %v5252, 16
      %v5601 = vrot.slane %v5599, 4
      %v5602 = vor.u32 %v5601, %v5597
      %v5603 = vrot.slane %v5602, 4
      %v5605 = vshll.u32 %v5270, 16
      %v5607 = vrot.slane %v5605, 5
      %v5608 = vsel %vm741, %v5603, %v5607
      %v5610 = vshrl.u32 %v5253, 16
      %v5612 = vrot.slane %v5610, 4
      %v5613 = vshll.u32 %v5253, 16
      %v5615 = vrot.slane %v5613, 5
      %v5616 = vor.u32 %v5612, %v5615
      %v5617 = vrot.slane %v5616, 4
      %v5619 = vshll.u32 %v5254, 16
      %v5621 = vrot.slane %v5619, 5
      %v5622 = vsel %vm741, %v5617, %v5621
      %v5623 = vshrl.u32 %v5254, 16
      %v5625 = vrot.slane %v5623, 4
      %v5626 = vor.u32 %v5625, %v5621
      %v5627 = vrot.slane %v5626, 4
      %v5629 = vshll.u32 %v5271, 16
      %v5631 = vrot.slane %v5629, 5
      %v5632 = vsel %vm741, %v5627, %v5631
      %v5634 = vshrl.u32 %v5255, 16
      %v5636 = vrot.slane %v5634, 4
      %v5637 = vshll.u32 %v5255, 16
      %v5639 = vrot.slane %v5637, 5
      %v5640 = vor.u32 %v5636, %v5639
      %v5641 = vrot.slane %v5640, 4
      %v5643 = vshll.u32 %v5256, 16
      %v5645 = vrot.slane %v5643, 5
      %v5646 = vsel %vm741, %v5641, %v5645
      %v5647 = vshrl.u32 %v5256, 16
      %v5649 = vrot.slane %v5647, 4
      %v5650 = vor.u32 %v5649, %v5645
      %v5651 = vrot.slane %v5650, 4
      %v5653 = vshll.u32 %v5272, 16
      %v5655 = vrot.slane %v5653, 5
      %v5656 = vsel %vm741, %v5651, %v5655
      %v5657 = vld [vmem:[#allocation2] sm:$0xe]
      %v5658 = vld [vmem:[#allocation2 + $0xc] sm:$0xe]
      %v5659 = vld [vmem:[#allocation2 + $0x18] sm:$0xe]
      %v5660 = vld [vmem:[#allocation2 + $0x24] sm:$0xe]
      %v5661 = vld [vmem:[#allocation2 + $0x30] sm:$0xe]
      %v5662 = vld [vmem:[#allocation2 + $0x3c] sm:$0xe]
      %v5663 = vld [vmem:[#allocation2 + $0x48] sm:$0xe]
      %v5664 = vld [vmem:[#allocation2 + $0x54] sm:$0xe]
      %v5665 = vld [vmem:[#allocation2 + $0x60] sm:$0xe]
      %v5666 = vld [vmem:[#allocation2 + $0x6c] sm:$0xe]
      %v5667 = vld [vmem:[#allocation2 + $0x78] sm:$0xe]
      %v5668 = vld [vmem:[#allocation2 + $0x84] sm:$0xe]
      %v5669 = vld [vmem:[#allocation2 + $0x90] sm:$0xe]
      %v5670 = vld [vmem:[#allocation2 + $0x9c] sm:$0xe]
      %v5671 = vld [vmem:[#allocation2 + $0xa8] sm:$0xe]
      %v5672 = vld [vmem:[#allocation2 + $0xb4] sm:$0xe]
      %v5721 = vrot.slane %v5657, 5
      %v5722 = vrot.slane %v5721, 4
      %v5723 = vrot.slane %v5226, 5
      %v5724 = vsel %vm1192, %v5722, %v5723
      %v5725 = vrot.slane %v5723, 4
      %v5726 = vrot.slane %v5257, 5
      %v5727 = vsel %vm1192, %v5725, %v5726
      %v5728 = vrot.slane %v5658, 5
      %v5729 = vrot.slane %v5728, 4
      %v5730 = vrot.slane %v5228, 5
      %v5731 = vsel %vm1192, %v5729, %v5730
      %v5732 = vrot.slane %v5730, 4
      %v5733 = vrot.slane %v5258, 5
      %v5734 = vsel %vm1192, %v5732, %v5733
      %v5735 = vrot.slane %v5659, 5
      %v5736 = vrot.slane %v5735, 4
      %v5737 = vrot.slane %v5230, 5
      %v5738 = vsel %vm1192, %v5736, %v5737
      %v5739 = vrot.slane %v5737, 4
      %v5740 = vrot.slane %v5259, 5
      %v5741 = vsel %vm1192, %v5739, %v5740
      %v5742 = vrot.slane %v5660, 5
      %v5743 = vrot.slane %v5742, 4
      %v5744 = vrot.slane %v5232, 5
      %v5745 = vsel %vm1192, %v5743, %v5744
      %v5746 = vrot.slane %v5744, 4
      %v5747 = vrot.slane %v5260, 5
      %v5748 = vsel %vm1192, %v5746, %v5747
      %v5749 = vrot.slane %v5661, 5
      %v5750 = vrot.slane %v5749, 4
      %v5751 = vrot.slane %v5234, 5
      %v5752 = vsel %vm1192, %v5750, %v5751
      %v5753 = vrot.slane %v5751, 4
      %v5754 = vrot.slane %v5261, 5
      %v5755 = vsel %vm1192, %v5753, %v5754
      %v5756 = vrot.slane %v5662, 5
      %v5757 = vrot.slane %v5756, 4
      %v5758 = vrot.slane %v5236, 5
      %v5759 = vsel %vm1192, %v5757, %v5758
      %v5760 = vrot.slane %v5758, 4
      %v5761 = vrot.slane %v5262, 5
      %v5762 = vsel %vm1192, %v5760, %v5761
      %v5763 = vrot.slane %v5663, 5
      %v5764 = vrot.slane %v5763, 4
      %v5765 = vrot.slane %v5238, 5
      %v5766 = vsel %vm1192, %v5764, %v5765
      %v5767 = vrot.slane %v5765, 4
      %v5768 = vrot.slane %v5263, 5
      %v5769 = vsel %vm1192, %v5767, %v5768
      %v5770 = vrot.slane %v5664, 5
      %v5771 = vrot.slane %v5770, 4
      %v5772 = vrot.slane %v5240, 5
      %v5773 = vsel %vm1192, %v5771, %v5772
      %v5774 = vrot.slane %v5772, 4
      %v5775 = vrot.slane %v5264, 5
      %v5776 = vsel %vm1192, %v5774, %v5775
      %v5777 = vrot.slane %v5665, 5
      %v5778 = vrot.slane %v5777, 4
      %v5779 = vrot.slane %v5242, 5
      %v5780 = vsel %vm1192, %v5778, %v5779
      %v5781 = vrot.slane %v5779, 4
      %v5782 = vrot.slane %v5265, 5
      %v5783 = vsel %vm1192, %v5781, %v5782
      %v5784 = vrot.slane %v5666, 5
      %v5785 = vrot.slane %v5784, 4
      %v5786 = vrot.slane %v5244, 5
      %v5787 = vsel %vm1192, %v5785, %v5786
      %v5788 = vrot.slane %v5786, 4
      %v5789 = vrot.slane %v5266, 5
      %v5790 = vsel %vm1192, %v5788, %v5789
      %v5791 = vrot.slane %v5667, 5
      %v5792 = vrot.slane %v5791, 4
      %v5793 = vrot.slane %v5246, 5
      %v5794 = vsel %vm1192, %v5792, %v5793
      %v5795 = vrot.slane %v5793, 4
      %v5796 = vrot.slane %v5267, 5
      %v5797 = vsel %vm1192, %v5795, %v5796
      %v5798 = vrot.slane %v5668, 5
      %v5799 = vrot.slane %v5798, 4
      %v5800 = vrot.slane %v5248, 5
      %v5801 = vsel %vm1192, %v5799, %v5800
      %v5802 = vrot.slane %v5800, 4
      %v5803 = vrot.slane %v5268, 5
      %v5804 = vsel %vm1192, %v5802, %v5803
      %v5805 = vrot.slane %v5669, 5
      %v5806 = vrot.slane %v5805, 4
      %v5807 = vrot.slane %v5250, 5
      %v5808 = vsel %vm1192, %v5806, %v5807
      %v5809 = vrot.slane %v5807, 4
      %v5810 = vrot.slane %v5269, 5
      %v5811 = vsel %vm1192, %v5809, %v5810
      %v5812 = vrot.slane %v5670, 5
      %v5813 = vrot.slane %v5812, 4
      %v5814 = vrot.slane %v5252, 5
      %v5815 = vsel %vm1192, %v5813, %v5814
      %v5816 = vrot.slane %v5814, 4
      %v5817 = vrot.slane %v5270, 5
      %v5818 = vsel %vm1192, %v5816, %v5817
      %v5819 = vrot.slane %v5671, 5
      %v5820 = vrot.slane %v5819, 4
      %v5821 = vrot.slane %v5254, 5
      %v5822 = vsel %vm1192, %v5820, %v5821
      %v5823 = vrot.slane %v5821, 4
      %v5824 = vrot.slane %v5271, 5
      %v5825 = vsel %vm1192, %v5823, %v5824
      %v5826 = vrot.slane %v5672, 5
      %v5827 = vrot.slane %v5826, 4
      %v5828 = vrot.slane %v5256, 5
      %v5829 = vsel %vm1192, %v5827, %v5828
      %v5830 = vrot.slane %v5828, 4
      %v5831 = vrot.slane %v5272, 5
      %v5832 = vsel %vm1192, %v5830, %v5831
      %v5833 = vld [vmem:[%s1305] sm:$0xf]
      %v5834 = vld [vmem:[%s1305 + $0x4] sm:$0xf]
      %v5835 = vld [vmem:[%s1305 + $0xc] sm:$0xf]
      %v5836 = vld [vmem:[%s1305 + $0x10] sm:$0xf]
      %v5837 = vld [vmem:[%s1305 + $0x18] sm:$0xf]
      %v5838 = vld [vmem:[%s1305 + $0x1c] sm:$0xf]
      %v5839 = vld [vmem:[%s1305 + $0x24] sm:$0xf]
      %v5840 = vld [vmem:[%s1305 + $0x28] sm:$0xf]
      %v5841 = vld [vmem:[%s1305 + $0x30] sm:$0xf]
      %v5842 = vld [vmem:[%s1305 + $0x34] sm:$0xf]
      %v5843 = vld [vmem:[%s1305 + $0x3c] sm:$0xf]
      %v5844 = vld [vmem:[%s1305 + $0x40] sm:$0xf]
      %v5845 = vld [vmem:[%s1305 + $0x48] sm:$0xf]
      %v5846 = vld [vmem:[%s1305 + $0x4c] sm:$0xf]
      %v5847 = vld [vmem:[%s1305 + $0x54] sm:$0xf]
      %v5848 = vld [vmem:[%s1305 + $0x58] sm:$0xf]
      %v5849 = vld [vmem:[%s1305 + $0x60] sm:$0xf]
      %v5850 = vld [vmem:[%s1305 + $0x64] sm:$0xf]
      %v5851 = vld [vmem:[%s1305 + $0x6c] sm:$0xf]
      %v5852 = vld [vmem:[%s1305 + $0x70] sm:$0xf]
      %v5853 = vld [vmem:[%s1305 + $0x78] sm:$0xf]
      %v5854 = vld [vmem:[%s1305 + $0x7c] sm:$0xf]
      %v5855 = vld [vmem:[%s1305 + $0x84] sm:$0xf]
      %v5856 = vld [vmem:[%s1305 + $0x88] sm:$0xf]
      %v5857 = vld [vmem:[%s1305 + $0x90] sm:$0xf]
      %v5858 = vld [vmem:[%s1305 + $0x94] sm:$0xf]
      %v5859 = vld [vmem:[%s1305 + $0x9c] sm:$0xf]
      %v5860 = vld [vmem:[%s1305 + $0xa0] sm:$0xf]
      %v5861 = vld [vmem:[%s1305 + $0xa8] sm:$0xf]
      %v5862 = vld [vmem:[%s1305 + $0xac] sm:$0xf]
      %v5863 = vld [vmem:[%s1305 + $0xb4] sm:$0xf]
      %v5864 = vld [vmem:[%s1305 + $0xb8] sm:$0xf]
      %v5865 = vld [vmem:[%s1305 + $0x8] sm:$0x1]
      %v5866 = vld [vmem:[%s1305 + $0x14] sm:$0x1]
      %v5867 = vld [vmem:[%s1305 + $0x20] sm:$0x1]
      %v5868 = vld [vmem:[%s1305 + $0x2c] sm:$0x1]
      %v5869 = vld [vmem:[%s1305 + $0x38] sm:$0x1]
      %v5870 = vld [vmem:[%s1305 + $0x44] sm:$0x1]
      %v5871 = vld [vmem:[%s1305 + $0x50] sm:$0x1]
      %v5872 = vld [vmem:[%s1305 + $0x5c] sm:$0x1]
      %v5873 = vld [vmem:[%s1305 + $0x68] sm:$0x1]
      %v5874 = vld [vmem:[%s1305 + $0x74] sm:$0x1]
      %v5875 = vld [vmem:[%s1305 + $0x80] sm:$0x1]
      %v5876 = vld [vmem:[%s1305 + $0x8c] sm:$0x1]
      %v5877 = vld [vmem:[%s1305 + $0x98] sm:$0x1]
      %v5878 = vld [vmem:[%s1305 + $0xa4] sm:$0x1]
      %v5879 = vld [vmem:[%s1305 + $0xb0] sm:$0x1]
      %v5880 = vld [vmem:[%s1305 + $0xbc] sm:$0x1]
      %v5882 = vshrl.u32 %v5833, 16
      %v5884 = vrot.slane %v5882, 4
      %v5885 = vshll.u32 %v5833, 16
      %v5887 = vrot.slane %v5885, 5
      %v5888 = vor.u32 %v5884, %v5887
      %v5889 = vrot.slane %v5888, 4
      %v5891 = vshll.u32 %v5834, 16
      %v5893 = vrot.slane %v5891, 5
      %v5894 = vsel %vm741, %v5889, %v5893
      %v5895 = vshrl.u32 %v5834, 16
      %v5897 = vrot.slane %v5895, 4
      %v5898 = vor.u32 %v5897, %v5893
      %v5899 = vrot.slane %v5898, 4
      %v5901 = vshll.u32 %v5865, 16
      %v5903 = vrot.slane %v5901, 5
      %v5904 = vsel %vm741, %v5899, %v5903
      %v5906 = vshrl.u32 %v5835, 16
      %v5908 = vrot.slane %v5906, 4
      %v5909 = vshll.u32 %v5835, 16
      %v5911 = vrot.slane %v5909, 5
      %v5912 = vor.u32 %v5908, %v5911
      %v5913 = vrot.slane %v5912, 4
      %v5915 = vshll.u32 %v5836, 16
      %v5917 = vrot.slane %v5915, 5
      %v5918 = vsel %vm741, %v5913, %v5917
      %v5919 = vshrl.u32 %v5836, 16
      %v5921 = vrot.slane %v5919, 4
      %v5922 = vor.u32 %v5921, %v5917
      %v5923 = vrot.slane %v5922, 4
      %v5925 = vshll.u32 %v5866, 16
      %v5927 = vrot.slane %v5925, 5
      %v5928 = vsel %vm741, %v5923, %v5927
      %v5930 = vshrl.u32 %v5837, 16
      %v5932 = vrot.slane %v5930, 4
      %v5933 = vshll.u32 %v5837, 16
      %v5935 = vrot.slane %v5933, 5
      %v5936 = vor.u32 %v5932, %v5935
      %v5937 = vrot.slane %v5936, 4
      %v5939 = vshll.u32 %v5838, 16
      %v5941 = vrot.slane %v5939, 5
      %v5942 = vsel %vm741, %v5937, %v5941
      %v5943 = vshrl.u32 %v5838, 16
      %v5945 = vrot.slane %v5943, 4
      %v5946 = vor.u32 %v5945, %v5941
      %v5947 = vrot.slane %v5946, 4
      %v5949 = vshll.u32 %v5867, 16
      %v5951 = vrot.slane %v5949, 5
      %v5952 = vsel %vm741, %v5947, %v5951
      %v5954 = vshrl.u32 %v5839, 16
      %v5956 = vrot.slane %v5954, 4
      %v5957 = vshll.u32 %v5839, 16
      %v5959 = vrot.slane %v5957, 5
      %v5960 = vor.u32 %v5956, %v5959
      %v5961 = vrot.slane %v5960, 4
      %v5963 = vshll.u32 %v5840, 16
      %v5965 = vrot.slane %v5963, 5
      %v5966 = vsel %vm741, %v5961, %v5965
      %v5967 = vshrl.u32 %v5840, 16
      %v5969 = vrot.slane %v5967, 4
      %v5970 = vor.u32 %v5969, %v5965
      %v5971 = vrot.slane %v5970, 4
      %v5973 = vshll.u32 %v5868, 16
      %v5975 = vrot.slane %v5973, 5
      %v5976 = vsel %vm741, %v5971, %v5975
      %v5978 = vshrl.u32 %v5841, 16
      %v5980 = vrot.slane %v5978, 4
      %v5981 = vshll.u32 %v5841, 16
      %v5983 = vrot.slane %v5981, 5
      %v5984 = vor.u32 %v5980, %v5983
      %v5985 = vrot.slane %v5984, 4
      %v5987 = vshll.u32 %v5842, 16
      %v5989 = vrot.slane %v5987, 5
      %v5990 = vsel %vm741, %v5985, %v5989
      %v5991 = vshrl.u32 %v5842, 16
      %v5993 = vrot.slane %v5991, 4
      %v5994 = vor.u32 %v5993, %v5989
      %v5995 = vrot.slane %v5994, 4
      %v5997 = vshll.u32 %v5869, 16
      %v5999 = vrot.slane %v5997, 5
      %v6000 = vsel %vm741, %v5995, %v5999
      %v6002 = vshrl.u32 %v5843, 16
      %v6004 = vrot.slane %v6002, 4
      %v6005 = vshll.u32 %v5843, 16
      %v6007 = vrot.slane %v6005, 5
      %v6008 = vor.u32 %v6004, %v6007
      %v6009 = vrot.slane %v6008, 4
      %v6011 = vshll.u32 %v5844, 16
      %v6013 = vrot.slane %v6011, 5
      %v6014 = vsel %vm741, %v6009, %v6013
      %v6015 = vshrl.u32 %v5844, 16
      %v6017 = vrot.slane %v6015, 4
      %v6018 = vor.u32 %v6017, %v6013
      %v6019 = vrot.slane %v6018, 4
      %v6021 = vshll.u32 %v5870, 16
      %v6023 = vrot.slane %v6021, 5
      %v6024 = vsel %vm741, %v6019, %v6023
      %v6026 = vshrl.u32 %v5845, 16
      %v6028 = vrot.slane %v6026, 4
      %v6029 = vshll.u32 %v5845, 16
      %v6031 = vrot.slane %v6029, 5
      %v6032 = vor.u32 %v6028, %v6031
      %v6033 = vrot.slane %v6032, 4
      %v6035 = vshll.u32 %v5846, 16
      %v6037 = vrot.slane %v6035, 5
      %v6038 = vsel %vm741, %v6033, %v6037
      %v6039 = vshrl.u32 %v5846, 16
      %v6041 = vrot.slane %v6039, 4
      %v6042 = vor.u32 %v6041, %v6037
      %v6043 = vrot.slane %v6042, 4
      %v6045 = vshll.u32 %v5871, 16
      %v6047 = vrot.slane %v6045, 5
      %v6048 = vsel %vm741, %v6043, %v6047
      %v6050 = vshrl.u32 %v5847, 16
      %v6052 = vrot.slane %v6050, 4
      %v6053 = vshll.u32 %v5847, 16
      %v6055 = vrot.slane %v6053, 5
      %v6056 = vor.u32 %v6052, %v6055
      %v6057 = vrot.slane %v6056, 4
      %v6059 = vshll.u32 %v5848, 16
      %v6061 = vrot.slane %v6059, 5
      %v6062 = vsel %vm741, %v6057, %v6061
      %v6063 = vshrl.u32 %v5848, 16
      %v6065 = vrot.slane %v6063, 4
      %v6066 = vor.u32 %v6065, %v6061
      %v6067 = vrot.slane %v6066, 4
      %v6069 = vshll.u32 %v5872, 16
      %v6071 = vrot.slane %v6069, 5
      %v6072 = vsel %vm741, %v6067, %v6071
      %v6074 = vshrl.u32 %v5849, 16
      %v6076 = vrot.slane %v6074, 4
      %v6077 = vshll.u32 %v5849, 16
      %v6079 = vrot.slane %v6077, 5
      %v6080 = vor.u32 %v6076, %v6079
      %v6081 = vrot.slane %v6080, 4
      %v6083 = vshll.u32 %v5850, 16
      %v6085 = vrot.slane %v6083, 5
      %v6086 = vsel %vm741, %v6081, %v6085
      %v6087 = vshrl.u32 %v5850, 16
      %v6089 = vrot.slane %v6087, 4
      %v6090 = vor.u32 %v6089, %v6085
      %v6091 = vrot.slane %v6090, 4
      %v6093 = vshll.u32 %v5873, 16
      %v6095 = vrot.slane %v6093, 5
      %v6096 = vsel %vm741, %v6091, %v6095
      %v6098 = vshrl.u32 %v5851, 16
      %v6100 = vrot.slane %v6098, 4
      %v6101 = vshll.u32 %v5851, 16
      %v6103 = vrot.slane %v6101, 5
      %v6104 = vor.u32 %v6100, %v6103
      %v6105 = vrot.slane %v6104, 4
      %v6107 = vshll.u32 %v5852, 16
      %v6109 = vrot.slane %v6107, 5
      %v6110 = vsel %vm741, %v6105, %v6109
      %v6111 = vshrl.u32 %v5852, 16
      %v6113 = vrot.slane %v6111, 4
      %v6114 = vor.u32 %v6113, %v6109
      %v6115 = vrot.slane %v6114, 4
      %v6117 = vshll.u32 %v5874, 16
      %v6119 = vrot.slane %v6117, 5
      %v6120 = vsel %vm741, %v6115, %v6119
      %v6122 = vshrl.u32 %v5853, 16
      %v6124 = vrot.slane %v6122, 4
      %v6125 = vshll.u32 %v5853, 16
      %v6127 = vrot.slane %v6125, 5
      %v6128 = vor.u32 %v6124, %v6127
      %v6129 = vrot.slane %v6128, 4
      %v6131 = vshll.u32 %v5854, 16
      %v6133 = vrot.slane %v6131, 5
      %v6134 = vsel %vm741, %v6129, %v6133
      %v6135 = vshrl.u32 %v5854, 16
      %v6137 = vrot.slane %v6135, 4
      %v6138 = vor.u32 %v6137, %v6133
      %v6139 = vrot.slane %v6138, 4
      %v6141 = vshll.u32 %v5875, 16
      %v6143 = vrot.slane %v6141, 5
      %v6144 = vsel %vm741, %v6139, %v6143
      %v6146 = vshrl.u32 %v5855, 16
      %v6148 = vrot.slane %v6146, 4
      %v6149 = vshll.u32 %v5855, 16
      %v6151 = vrot.slane %v6149, 5
      %v6152 = vor.u32 %v6148, %v6151
      %v6153 = vrot.slane %v6152, 4
      %v6155 = vshll.u32 %v5856, 16
      %v6157 = vrot.slane %v6155, 5
      %v6158 = vsel %vm741, %v6153, %v6157
      %v6159 = vshrl.u32 %v5856, 16
      %v6161 = vrot.slane %v6159, 4
      %v6162 = vor.u32 %v6161, %v6157
      %v6163 = vrot.slane %v6162, 4
      %v6165 = vshll.u32 %v5876, 16
      %v6167 = vrot.slane %v6165, 5
      %v6168 = vsel %vm741, %v6163, %v6167
      %v6170 = vshrl.u32 %v5857, 16
      %v6172 = vrot.slane %v6170, 4
      %v6173 = vshll.u32 %v5857, 16
      %v6175 = vrot.slane %v6173, 5
      %v6176 = vor.u32 %v6172, %v6175
      %v6177 = vrot.slane %v6176, 4
      %v6179 = vshll.u32 %v5858, 16
      %v6181 = vrot.slane %v6179, 5
      %v6182 = vsel %vm741, %v6177, %v6181
      %v6183 = vshrl.u32 %v5858, 16
      %v6185 = vrot.slane %v6183, 4
      %v6186 = vor.u32 %v6185, %v6181
      %v6187 = vrot.slane %v6186, 4
      %v6189 = vshll.u32 %v5877, 16
      %v6191 = vrot.slane %v6189, 5
      %v6192 = vsel %vm741, %v6187, %v6191
      %v6194 = vshrl.u32 %v5859, 16
      %v6196 = vrot.slane %v6194, 4
      %v6197 = vshll.u32 %v5859, 16
      %v6199 = vrot.slane %v6197, 5
      %v6200 = vor.u32 %v6196, %v6199
      %v6201 = vrot.slane %v6200, 4
      %v6203 = vshll.u32 %v5860, 16
      %v6205 = vrot.slane %v6203, 5
      %v6206 = vsel %vm741, %v6201, %v6205
      %v6207 = vshrl.u32 %v5860, 16
      %v6209 = vrot.slane %v6207, 4
      %v6210 = vor.u32 %v6209, %v6205
      %v6211 = vrot.slane %v6210, 4
      %v6213 = vshll.u32 %v5878, 16
      %v6215 = vrot.slane %v6213, 5
      %v6216 = vsel %vm741, %v6211, %v6215
      %v6218 = vshrl.u32 %v5861, 16
      %v6220 = vrot.slane %v6218, 4
      %v6221 = vshll.u32 %v5861, 16
      %v6223 = vrot.slane %v6221, 5
      %v6224 = vor.u32 %v6220, %v6223
      %v6225 = vrot.slane %v6224, 4
      %v6227 = vshll.u32 %v5862, 16
      %v6229 = vrot.slane %v6227, 5
      %v6230 = vsel %vm741, %v6225, %v6229
      %v6231 = vshrl.u32 %v5862, 16
      %v6233 = vrot.slane %v6231, 4
      %v6234 = vor.u32 %v6233, %v6229
      %v6235 = vrot.slane %v6234, 4
      %v6237 = vshll.u32 %v5879, 16
      %v6239 = vrot.slane %v6237, 5
      %v6240 = vsel %vm741, %v6235, %v6239
      %v6242 = vshrl.u32 %v5863, 16
      %v6244 = vrot.slane %v6242, 4
      %v6245 = vshll.u32 %v5863, 16
      %v6247 = vrot.slane %v6245, 5
      %v6248 = vor.u32 %v6244, %v6247
      %v6249 = vrot.slane %v6248, 4
      %v6251 = vshll.u32 %v5864, 16
      %v6253 = vrot.slane %v6251, 5
      %v6254 = vsel %vm741, %v6249, %v6253
      %v6255 = vshrl.u32 %v5864, 16
      %v6257 = vrot.slane %v6255, 4
      %v6258 = vor.u32 %v6257, %v6253
      %v6259 = vrot.slane %v6258, 4
      %v6261 = vshll.u32 %v5880, 16
      %v6263 = vrot.slane %v6261, 5
      %v6264 = vsel %vm741, %v6259, %v6263
      %v6265 = vld [vmem:[%s1305] sm:$0xe]
      %v6266 = vld [vmem:[%s1305 + $0xc] sm:$0xe]
      %v6267 = vld [vmem:[%s1305 + $0x18] sm:$0xe]
      %v6268 = vld [vmem:[%s1305 + $0x24] sm:$0xe]
      %v6269 = vld [vmem:[%s1305 + $0x30] sm:$0xe]
      %v6270 = vld [vmem:[%s1305 + $0x3c] sm:$0xe]
      %v6271 = vld [vmem:[%s1305 + $0x48] sm:$0xe]
      %v6272 = vld [vmem:[%s1305 + $0x54] sm:$0xe]
      %v6273 = vld [vmem:[%s1305 + $0x60] sm:$0xe]
      %v6274 = vld [vmem:[%s1305 + $0x6c] sm:$0xe]
      %v6275 = vld [vmem:[%s1305 + $0x78] sm:$0xe]
      %v6276 = vld [vmem:[%s1305 + $0x84] sm:$0xe]
      %v6277 = vld [vmem:[%s1305 + $0x90] sm:$0xe]
      %v6278 = vld [vmem:[%s1305 + $0x9c] sm:$0xe]
      %v6279 = vld [vmem:[%s1305 + $0xa8] sm:$0xe]
      %v6280 = vld [vmem:[%s1305 + $0xb4] sm:$0xe]
      %v6329 = vrot.slane %v6265, 5
      %v6330 = vrot.slane %v6329, 4
      %v6331 = vrot.slane %v5834, 5
      %v6332 = vsel %vm1192, %v6330, %v6331
      %v6333 = vrot.slane %v6331, 4
      %v6334 = vrot.slane %v5865, 5
      %v6335 = vsel %vm1192, %v6333, %v6334
      %v6336 = vrot.slane %v6266, 5
      %v6337 = vrot.slane %v6336, 4
      %v6338 = vrot.slane %v5836, 5
      %v6339 = vsel %vm1192, %v6337, %v6338
      %v6340 = vrot.slane %v6338, 4
      %v6341 = vrot.slane %v5866, 5
      %v6342 = vsel %vm1192, %v6340, %v6341
      %v6343 = vrot.slane %v6267, 5
      %v6344 = vrot.slane %v6343, 4
      %v6345 = vrot.slane %v5838, 5
      %v6346 = vsel %vm1192, %v6344, %v6345
      %v6347 = vrot.slane %v6345, 4
      %v6348 = vrot.slane %v5867, 5
      %v6349 = vsel %vm1192, %v6347, %v6348
      %v6350 = vrot.slane %v6268, 5
      %v6351 = vrot.slane %v6350, 4
      %v6352 = vrot.slane %v5840, 5
      %v6353 = vsel %vm1192, %v6351, %v6352
      %v6354 = vrot.slane %v6352, 4
      %v6355 = vrot.slane %v5868, 5
      %v6356 = vsel %vm1192, %v6354, %v6355
      %v6357 = vrot.slane %v6269, 5
      %v6358 = vrot.slane %v6357, 4
      %v6359 = vrot.slane %v5842, 5
      %v6360 = vsel %vm1192, %v6358, %v6359
      %v6361 = vrot.slane %v6359, 4
      %v6362 = vrot.slane %v5869, 5
      %v6363 = vsel %vm1192, %v6361, %v6362
      %v6364 = vrot.slane %v6270, 5
      %v6365 = vrot.slane %v6364, 4
      %v6366 = vrot.slane %v5844, 5
      %v6367 = vsel %vm1192, %v6365, %v6366
      %v6368 = vrot.slane %v6366, 4
      %v6369 = vrot.slane %v5870, 5
      %v6370 = vsel %vm1192, %v6368, %v6369
      %v6371 = vrot.slane %v6271, 5
      %v6372 = vrot.slane %v6371, 4
      %v6373 = vrot.slane %v5846, 5
      %v6374 = vsel %vm1192, %v6372, %v6373
      %v6375 = vrot.slane %v6373, 4
      %v6376 = vrot.slane %v5871, 5
      %v6377 = vsel %vm1192, %v6375, %v6376
      %v6378 = vrot.slane %v6272, 5
      %v6379 = vrot.slane %v6378, 4
      %v6380 = vrot.slane %v5848, 5
      %v6381 = vsel %vm1192, %v6379, %v6380
      %v6382 = vrot.slane %v6380, 4
      %v6383 = vrot.slane %v5872, 5
      %v6384 = vsel %vm1192, %v6382, %v6383
      %v6385 = vrot.slane %v6273, 5
      %v6386 = vrot.slane %v6385, 4
      %v6387 = vrot.slane %v5850, 5
      %v6388 = vsel %vm1192, %v6386, %v6387
      %v6389 = vrot.slane %v6387, 4
      %v6390 = vrot.slane %v5873, 5
      %v6391 = vsel %vm1192, %v6389, %v6390
      %v6392 = vrot.slane %v6274, 5
      %v6393 = vrot.slane %v6392, 4
      %v6394 = vrot.slane %v5852, 5
      %v6395 = vsel %vm1192, %v6393, %v6394
      %v6396 = vrot.slane %v6394, 4
      %v6397 = vrot.slane %v5874, 5
      %v6398 = vsel %vm1192, %v6396, %v6397
      %v6399 = vrot.slane %v6275, 5
      %v6400 = vrot.slane %v6399, 4
      %v6401 = vrot.slane %v5854, 5
      %v6402 = vsel %vm1192, %v6400, %v6401
      %v6403 = vrot.slane %v6401, 4
      %v6404 = vrot.slane %v5875, 5
      %v6405 = vsel %vm1192, %v6403, %v6404
      %v6406 = vrot.slane %v6276, 5
      %v6407 = vrot.slane %v6406, 4
      %v6408 = vrot.slane %v5856, 5
      %v6409 = vsel %vm1192, %v6407, %v6408
      %v6410 = vrot.slane %v6408, 4
      %v6411 = vrot.slane %v5876, 5
      %v6412 = vsel %vm1192, %v6410, %v6411
      %v6413 = vrot.slane %v6277, 5
      %v6414 = vrot.slane %v6413, 4
      %v6415 = vrot.slane %v5858, 5
      %v6416 = vsel %vm1192, %v6414, %v6415
      %v6417 = vrot.slane %v6415, 4
      %v6418 = vrot.slane %v5877, 5
      %v6419 = vsel %vm1192, %v6417, %v6418
      %v6420 = vrot.slane %v6278, 5
      %v6421 = vrot.slane %v6420, 4
      %v6422 = vrot.slane %v5860, 5
      %v6423 = vsel %vm1192, %v6421, %v6422
      %v6424 = vrot.slane %v6422, 4
      %v6425 = vrot.slane %v5878, 5
      %v6426 = vsel %vm1192, %v6424, %v6425
      %v6427 = vrot.slane %v6279, 5
      %v6428 = vrot.slane %v6427, 4
      %v6429 = vrot.slane %v5862, 5
      %v6430 = vsel %vm1192, %v6428, %v6429
      %v6431 = vrot.slane %v6429, 4
      %v6432 = vrot.slane %v5879, 5
      %v6433 = vsel %vm1192, %v6431, %v6432
      %v6434 = vrot.slane %v6280, 5
      %v6435 = vrot.slane %v6434, 4
      %v6436 = vrot.slane %v5864, 5
      %v6437 = vsel %vm1192, %v6435, %v6436
      %v6438 = vrot.slane %v6436, 4
      %v6439 = vrot.slane %v5880, 5
      %v6440 = vsel %vm1192, %v6438, %v6439
      %v6441 = vld [vmem:[%s1914] sm:$0xf]
      %v6442 = vld [vmem:[%s1914 + $0x4] sm:$0xf]
      %v6443 = vld [vmem:[%s1914 + $0xc] sm:$0xf]
      %v6444 = vld [vmem:[%s1914 + $0x10] sm:$0xf]
      %v6445 = vld [vmem:[%s1914 + $0x18] sm:$0xf]
      %v6446 = vld [vmem:[%s1914 + $0x1c] sm:$0xf]
      %v6447 = vld [vmem:[%s1914 + $0x24] sm:$0xf]
      %v6448 = vld [vmem:[%s1914 + $0x28] sm:$0xf]
      %v6449 = vld [vmem:[%s1914 + $0x30] sm:$0xf]
      %v6450 = vld [vmem:[%s1914 + $0x34] sm:$0xf]
      %v6451 = vld [vmem:[%s1914 + $0x3c] sm:$0xf]
      %v6452 = vld [vmem:[%s1914 + $0x40] sm:$0xf]
      %v6453 = vld [vmem:[%s1914 + $0x48] sm:$0xf]
      %v6454 = vld [vmem:[%s1914 + $0x4c] sm:$0xf]
      %v6455 = vld [vmem:[%s1914 + $0x54] sm:$0xf]
      %v6456 = vld [vmem:[%s1914 + $0x58] sm:$0xf]
      %v6457 = vld [vmem:[%s1914 + $0x60] sm:$0xf]
      %v6458 = vld [vmem:[%s1914 + $0x64] sm:$0xf]
      %v6459 = vld [vmem:[%s1914 + $0x6c] sm:$0xf]
      %v6460 = vld [vmem:[%s1914 + $0x70] sm:$0xf]
      %v6461 = vld [vmem:[%s1914 + $0x78] sm:$0xf]
      %v6462 = vld [vmem:[%s1914 + $0x7c] sm:$0xf]
      %v6463 = vld [vmem:[%s1914 + $0x84] sm:$0xf]
      %v6464 = vld [vmem:[%s1914 + $0x88] sm:$0xf]
      %v6465 = vld [vmem:[%s1914 + $0x90] sm:$0xf]
      %v6466 = vld [vmem:[%s1914 + $0x94] sm:$0xf]
      %v6467 = vld [vmem:[%s1914 + $0x9c] sm:$0xf]
      %v6468 = vld [vmem:[%s1914 + $0xa0] sm:$0xf]
      %v6469 = vld [vmem:[%s1914 + $0xa8] sm:$0xf]
      %v6470 = vld [vmem:[%s1914 + $0xac] sm:$0xf]
      %v6471 = vld [vmem:[%s1914 + $0xb4] sm:$0xf]
      %v6472 = vld [vmem:[%s1914 + $0xb8] sm:$0xf]
      %v6473 = vld [vmem:[%s1914 + $0x8] sm:$0x1]
      %v6474 = vld [vmem:[%s1914 + $0x14] sm:$0x1]
      %v6475 = vld [vmem:[%s1914 + $0x20] sm:$0x1]
      %v6476 = vld [vmem:[%s1914 + $0x2c] sm:$0x1]
      %v6477 = vld [vmem:[%s1914 + $0x38] sm:$0x1]
      %v6478 = vld [vmem:[%s1914 + $0x44] sm:$0x1]
      %v6479 = vld [vmem:[%s1914 + $0x50] sm:$0x1]
      %v6480 = vld [vmem:[%s1914 + $0x5c] sm:$0x1]
      %v6481 = vld [vmem:[%s1914 + $0x68] sm:$0x1]
      %v6482 = vld [vmem:[%s1914 + $0x74] sm:$0x1]
      %v6483 = vld [vmem:[%s1914 + $0x80] sm:$0x1]
      %v6484 = vld [vmem:[%s1914 + $0x8c] sm:$0x1]
      %v6485 = vld [vmem:[%s1914 + $0x98] sm:$0x1]
      %v6486 = vld [vmem:[%s1914 + $0xa4] sm:$0x1]
      %v6487 = vld [vmem:[%s1914 + $0xb0] sm:$0x1]
      %v6488 = vld [vmem:[%s1914 + $0xbc] sm:$0x1]
      %v6490 = vshrl.u32 %v6441, 16
      %v6492 = vrot.slane %v6490, 4
      %v6493 = vshll.u32 %v6441, 16
      %v6495 = vrot.slane %v6493, 5
      %v6496 = vor.u32 %v6492, %v6495
      %v6497 = vrot.slane %v6496, 4
      %v6499 = vshll.u32 %v6442, 16
      %v6501 = vrot.slane %v6499, 5
      %v6502 = vsel %vm741, %v6497, %v6501
      %v6503 = vshrl.u32 %v6442, 16
      %v6505 = vrot.slane %v6503, 4
      %v6506 = vor.u32 %v6505, %v6501
      %v6507 = vrot.slane %v6506, 4
      %v6509 = vshll.u32 %v6473, 16
      %v6511 = vrot.slane %v6509, 5
      %v6512 = vsel %vm741, %v6507, %v6511
      %v6514 = vshrl.u32 %v6443, 16
      %v6516 = vrot.slane %v6514, 4
      %v6517 = vshll.u32 %v6443, 16
      %v6519 = vrot.slane %v6517, 5
      %v6520 = vor.u32 %v6516, %v6519
      %v6521 = vrot.slane %v6520, 4
      %v6523 = vshll.u32 %v6444, 16
      %v6525 = vrot.slane %v6523, 5
      %v6526 = vsel %vm741, %v6521, %v6525
      %v6527 = vshrl.u32 %v6444, 16
      %v6529 = vrot.slane %v6527, 4
      %v6530 = vor.u32 %v6529, %v6525
      %v6531 = vrot.slane %v6530, 4
      %v6533 = vshll.u32 %v6474, 16
      %v6535 = vrot.slane %v6533, 5
      %v6536 = vsel %vm741, %v6531, %v6535
      %v6538 = vshrl.u32 %v6445, 16
      %v6540 = vrot.slane %v6538, 4
      %v6541 = vshll.u32 %v6445, 16
      %v6543 = vrot.slane %v6541, 5
      %v6544 = vor.u32 %v6540, %v6543
      %v6545 = vrot.slane %v6544, 4
      %v6547 = vshll.u32 %v6446, 16
      %v6549 = vrot.slane %v6547, 5
      %v6550 = vsel %vm741, %v6545, %v6549
      %v6551 = vshrl.u32 %v6446, 16
      %v6553 = vrot.slane %v6551, 4
      %v6554 = vor.u32 %v6553, %v6549
      %v6555 = vrot.slane %v6554, 4
      %v6557 = vshll.u32 %v6475, 16
      %v6559 = vrot.slane %v6557, 5
      %v6560 = vsel %vm741, %v6555, %v6559
      %v6562 = vshrl.u32 %v6447, 16
      %v6564 = vrot.slane %v6562, 4
      %v6565 = vshll.u32 %v6447, 16
      %v6567 = vrot.slane %v6565, 5
      %v6568 = vor.u32 %v6564, %v6567
      %v6569 = vrot.slane %v6568, 4
      %v6571 = vshll.u32 %v6448, 16
      %v6573 = vrot.slane %v6571, 5
      %v6574 = vsel %vm741, %v6569, %v6573
      %v6575 = vshrl.u32 %v6448, 16
      %v6577 = vrot.slane %v6575, 4
      %v6578 = vor.u32 %v6577, %v6573
      %v6579 = vrot.slane %v6578, 4
      %v6581 = vshll.u32 %v6476, 16
      %v6583 = vrot.slane %v6581, 5
      %v6584 = vsel %vm741, %v6579, %v6583
      %v6586 = vshrl.u32 %v6449, 16
      %v6588 = vrot.slane %v6586, 4
      %v6589 = vshll.u32 %v6449, 16
      %v6591 = vrot.slane %v6589, 5
      %v6592 = vor.u32 %v6588, %v6591
      %v6593 = vrot.slane %v6592, 4
      %v6595 = vshll.u32 %v6450, 16
      %v6597 = vrot.slane %v6595, 5
      %v6598 = vsel %vm741, %v6593, %v6597
      %v6599 = vshrl.u32 %v6450, 16
      %v6601 = vrot.slane %v6599, 4
      %v6602 = vor.u32 %v6601, %v6597
      %v6603 = vrot.slane %v6602, 4
      %v6605 = vshll.u32 %v6477, 16
      %v6607 = vrot.slane %v6605, 5
      %v6608 = vsel %vm741, %v6603, %v6607
      %v6610 = vshrl.u32 %v6451, 16
      %v6612 = vrot.slane %v6610, 4
      %v6613 = vshll.u32 %v6451, 16
      %v6615 = vrot.slane %v6613, 5
      %v6616 = vor.u32 %v6612, %v6615
      %v6617 = vrot.slane %v6616, 4
      %v6619 = vshll.u32 %v6452, 16
      %v6621 = vrot.slane %v6619, 5
      %v6622 = vsel %vm741, %v6617, %v6621
      %v6623 = vshrl.u32 %v6452, 16
      %v6625 = vrot.slane %v6623, 4
      %v6626 = vor.u32 %v6625, %v6621
      %v6627 = vrot.slane %v6626, 4
      %v6629 = vshll.u32 %v6478, 16
      %v6631 = vrot.slane %v6629, 5
      %v6632 = vsel %vm741, %v6627, %v6631
      %v6634 = vshrl.u32 %v6453, 16
      %v6636 = vrot.slane %v6634, 4
      %v6637 = vshll.u32 %v6453, 16
      %v6639 = vrot.slane %v6637, 5
      %v6640 = vor.u32 %v6636, %v6639
      %v6641 = vrot.slane %v6640, 4
      %v6643 = vshll.u32 %v6454, 16
      %v6645 = vrot.slane %v6643, 5
      %v6646 = vsel %vm741, %v6641, %v6645
      %v6647 = vshrl.u32 %v6454, 16
      %v6649 = vrot.slane %v6647, 4
      %v6650 = vor.u32 %v6649, %v6645
      %v6651 = vrot.slane %v6650, 4
      %v6653 = vshll.u32 %v6479, 16
      %v6655 = vrot.slane %v6653, 5
      %v6656 = vsel %vm741, %v6651, %v6655
      %v6658 = vshrl.u32 %v6455, 16
      %v6660 = vrot.slane %v6658, 4
      %v6661 = vshll.u32 %v6455, 16
      %v6663 = vrot.slane %v6661, 5
      %v6664 = vor.u32 %v6660, %v6663
      %v6665 = vrot.slane %v6664, 4
      %v6667 = vshll.u32 %v6456, 16
      %v6669 = vrot.slane %v6667, 5
      %v6670 = vsel %vm741, %v6665, %v6669
      %v6671 = vshrl.u32 %v6456, 16
      %v6673 = vrot.slane %v6671, 4
      %v6674 = vor.u32 %v6673, %v6669
      %v6675 = vrot.slane %v6674, 4
      %v6677 = vshll.u32 %v6480, 16
      %v6679 = vrot.slane %v6677, 5
      %v6680 = vsel %vm741, %v6675, %v6679
      %v6682 = vshrl.u32 %v6457, 16
      %v6684 = vrot.slane %v6682, 4
      %v6685 = vshll.u32 %v6457, 16
      %v6687 = vrot.slane %v6685, 5
      %v6688 = vor.u32 %v6684, %v6687
      %v6689 = vrot.slane %v6688, 4
      %v6691 = vshll.u32 %v6458, 16
      %v6693 = vrot.slane %v6691, 5
      %v6694 = vsel %vm741, %v6689, %v6693
      %v6695 = vshrl.u32 %v6458, 16
      %v6697 = vrot.slane %v6695, 4
      %v6698 = vor.u32 %v6697, %v6693
      %v6699 = vrot.slane %v6698, 4
      %v6701 = vshll.u32 %v6481, 16
      %v6703 = vrot.slane %v6701, 5
      %v6704 = vsel %vm741, %v6699, %v6703
      %v6706 = vshrl.u32 %v6459, 16
      %v6708 = vrot.slane %v6706, 4
      %v6709 = vshll.u32 %v6459, 16
      %v6711 = vrot.slane %v6709, 5
      %v6712 = vor.u32 %v6708, %v6711
      %v6713 = vrot.slane %v6712, 4
      %v6715 = vshll.u32 %v6460, 16
      %v6717 = vrot.slane %v6715, 5
      %v6718 = vsel %vm741, %v6713, %v6717
      %v6719 = vshrl.u32 %v6460, 16
      %v6721 = vrot.slane %v6719, 4
      %v6722 = vor.u32 %v6721, %v6717
      %v6723 = vrot.slane %v6722, 4
      %v6725 = vshll.u32 %v6482, 16
      %v6727 = vrot.slane %v6725, 5
      %v6728 = vsel %vm741, %v6723, %v6727
      %v6730 = vshrl.u32 %v6461, 16
      %v6732 = vrot.slane %v6730, 4
      %v6733 = vshll.u32 %v6461, 16
      %v6735 = vrot.slane %v6733, 5
      %v6736 = vor.u32 %v6732, %v6735
      %v6737 = vrot.slane %v6736, 4
      %v6739 = vshll.u32 %v6462, 16
      %v6741 = vrot.slane %v6739, 5
      %v6742 = vsel %vm741, %v6737, %v6741
      %v6743 = vshrl.u32 %v6462, 16
      %v6745 = vrot.slane %v6743, 4
      %v6746 = vor.u32 %v6745, %v6741
      %v6747 = vrot.slane %v6746, 4
      %v6749 = vshll.u32 %v6483, 16
      %v6751 = vrot.slane %v6749, 5
      %v6752 = vsel %vm741, %v6747, %v6751
      %v6754 = vshrl.u32 %v6463, 16
      %v6756 = vrot.slane %v6754, 4
      %v6757 = vshll.u32 %v6463, 16
      %v6759 = vrot.slane %v6757, 5
      %v6760 = vor.u32 %v6756, %v6759
      %v6761 = vrot.slane %v6760, 4
      %v6763 = vshll.u32 %v6464, 16
      %v6765 = vrot.slane %v6763, 5
      %v6766 = vsel %vm741, %v6761, %v6765
      %v6767 = vshrl.u32 %v6464, 16
      %v6769 = vrot.slane %v6767, 4
      %v6770 = vor.u32 %v6769, %v6765
      %v6771 = vrot.slane %v6770, 4
      %v6773 = vshll.u32 %v6484, 16
      %v6775 = vrot.slane %v6773, 5
      %v6776 = vsel %vm741, %v6771, %v6775
      %v6778 = vshrl.u32 %v6465, 16
      %v6780 = vrot.slane %v6778, 4
      %v6781 = vshll.u32 %v6465, 16
      %v6783 = vrot.slane %v6781, 5
      %v6784 = vor.u32 %v6780, %v6783
      %v6785 = vrot.slane %v6784, 4
      %v6787 = vshll.u32 %v6466, 16
      %v6789 = vrot.slane %v6787, 5
      %v6790 = vsel %vm741, %v6785, %v6789
      %v6791 = vshrl.u32 %v6466, 16
      %v6793 = vrot.slane %v6791, 4
      %v6794 = vor.u32 %v6793, %v6789
      %v6795 = vrot.slane %v6794, 4
      %v6797 = vshll.u32 %v6485, 16
      %v6799 = vrot.slane %v6797, 5
      %v6800 = vsel %vm741, %v6795, %v6799
      %v6802 = vshrl.u32 %v6467, 16
      %v6804 = vrot.slane %v6802, 4
      %v6805 = vshll.u32 %v6467, 16
      %v6807 = vrot.slane %v6805, 5
      %v6808 = vor.u32 %v6804, %v6807
      %v6809 = vrot.slane %v6808, 4
      %v6811 = vshll.u32 %v6468, 16
      %v6813 = vrot.slane %v6811, 5
      %v6814 = vsel %vm741, %v6809, %v6813
      %v6815 = vshrl.u32 %v6468, 16
      %v6817 = vrot.slane %v6815, 4
      %v6818 = vor.u32 %v6817, %v6813
      %v6819 = vrot.slane %v6818, 4
      %v6821 = vshll.u32 %v6486, 16
      %v6823 = vrot.slane %v6821, 5
      %v6824 = vsel %vm741, %v6819, %v6823
      %v6826 = vshrl.u32 %v6469, 16
      %v6828 = vrot.slane %v6826, 4
      %v6829 = vshll.u32 %v6469, 16
      %v6831 = vrot.slane %v6829, 5
      %v6832 = vor.u32 %v6828, %v6831
      %v6833 = vrot.slane %v6832, 4
      %v6835 = vshll.u32 %v6470, 16
      %v6837 = vrot.slane %v6835, 5
      %v6838 = vsel %vm741, %v6833, %v6837
      %v6839 = vshrl.u32 %v6470, 16
      %v6841 = vrot.slane %v6839, 4
      %v6842 = vor.u32 %v6841, %v6837
      %v6843 = vrot.slane %v6842, 4
      %v6845 = vshll.u32 %v6487, 16
      %v6847 = vrot.slane %v6845, 5
      %v6848 = vsel %vm741, %v6843, %v6847
      %v6850 = vshrl.u32 %v6471, 16
      %v6852 = vrot.slane %v6850, 4
      %v6853 = vshll.u32 %v6471, 16
      %v6855 = vrot.slane %v6853, 5
      %v6856 = vor.u32 %v6852, %v6855
      %v6857 = vrot.slane %v6856, 4
      %v6859 = vshll.u32 %v6472, 16
      %v6861 = vrot.slane %v6859, 5
      %v6862 = vsel %vm741, %v6857, %v6861
      %v6863 = vshrl.u32 %v6472, 16
      %v6865 = vrot.slane %v6863, 4
      %v6866 = vor.u32 %v6865, %v6861
      %v6867 = vrot.slane %v6866, 4
      %v6869 = vshll.u32 %v6488, 16
      %v6871 = vrot.slane %v6869, 5
      %v6872 = vsel %vm741, %v6867, %v6871
      %v6873 = vld [vmem:[%s1914] sm:$0xe]
      %v6874 = vld [vmem:[%s1914 + $0xc] sm:$0xe]
      %v6875 = vld [vmem:[%s1914 + $0x18] sm:$0xe]
      %v6876 = vld [vmem:[%s1914 + $0x24] sm:$0xe]
      %v6877 = vld [vmem:[%s1914 + $0x30] sm:$0xe]
      %v6878 = vld [vmem:[%s1914 + $0x3c] sm:$0xe]
      %v6879 = vld [vmem:[%s1914 + $0x48] sm:$0xe]
      %v6880 = vld [vmem:[%s1914 + $0x54] sm:$0xe]
      %v6881 = vld [vmem:[%s1914 + $0x60] sm:$0xe]
      %v6882 = vld [vmem:[%s1914 + $0x6c] sm:$0xe]
      %v6883 = vld [vmem:[%s1914 + $0x78] sm:$0xe]
      %v6884 = vld [vmem:[%s1914 + $0x84] sm:$0xe]
      %v6885 = vld [vmem:[%s1914 + $0x90] sm:$0xe]
      %v6886 = vld [vmem:[%s1914 + $0x9c] sm:$0xe]
      %v6887 = vld [vmem:[%s1914 + $0xa8] sm:$0xe]
      %v6888 = vld [vmem:[%s1914 + $0xb4] sm:$0xe]
      %v6937 = vrot.slane %v6873, 5
      %v6938 = vrot.slane %v6937, 4
      %v6939 = vrot.slane %v6442, 5
      %v6940 = vsel %vm1192, %v6938, %v6939
      %v6941 = vrot.slane %v6939, 4
      %v6942 = vrot.slane %v6473, 5
      %v6943 = vsel %vm1192, %v6941, %v6942
      %v6944 = vrot.slane %v6874, 5
      %v6945 = vrot.slane %v6944, 4
      %v6946 = vrot.slane %v6444, 5
      %v6947 = vsel %vm1192, %v6945, %v6946
      %v6948 = vrot.slane %v6946, 4
      %v6949 = vrot.slane %v6474, 5
      %v6950 = vsel %vm1192, %v6948, %v6949
      %v6951 = vrot.slane %v6875, 5
      %v6952 = vrot.slane %v6951, 4
      %v6953 = vrot.slane %v6446, 5
      %v6954 = vsel %vm1192, %v6952, %v6953
      %v6955 = vrot.slane %v6953, 4
      %v6956 = vrot.slane %v6475, 5
      %v6957 = vsel %vm1192, %v6955, %v6956
      %v6958 = vrot.slane %v6876, 5
      %v6959 = vrot.slane %v6958, 4
      %v6960 = vrot.slane %v6448, 5
      %v6961 = vsel %vm1192, %v6959, %v6960
      %v6962 = vrot.slane %v6960, 4
      %v6963 = vrot.slane %v6476, 5
      %v6964 = vsel %vm1192, %v6962, %v6963
      %v6965 = vrot.slane %v6877, 5
      %v6966 = vrot.slane %v6965, 4
      %v6967 = vrot.slane %v6450, 5
      %v6968 = vsel %vm1192, %v6966, %v6967
      %v6969 = vrot.slane %v6967, 4
      %v6970 = vrot.slane %v6477, 5
      %v6971 = vsel %vm1192, %v6969, %v6970
      %v6972 = vrot.slane %v6878, 5
      %v6973 = vrot.slane %v6972, 4
      %v6974 = vrot.slane %v6452, 5
      %v6975 = vsel %vm1192, %v6973, %v6974
      %v6976 = vrot.slane %v6974, 4
      %v6977 = vrot.slane %v6478, 5
      %v6978 = vsel %vm1192, %v6976, %v6977
      %v6979 = vrot.slane %v6879, 5
      %v6980 = vrot.slane %v6979, 4
      %v6981 = vrot.slane %v6454, 5
      %v6982 = vsel %vm1192, %v6980, %v6981
      %v6983 = vrot.slane %v6981, 4
      %v6984 = vrot.slane %v6479, 5
      %v6985 = vsel %vm1192, %v6983, %v6984
      %v6986 = vrot.slane %v6880, 5
      %v6987 = vrot.slane %v6986, 4
      %v6988 = vrot.slane %v6456, 5
      %v6989 = vsel %vm1192, %v6987, %v6988
      %v6990 = vrot.slane %v6988, 4
      %v6991 = vrot.slane %v6480, 5
      %v6992 = vsel %vm1192, %v6990, %v6991
      %v6993 = vrot.slane %v6881, 5
      %v6994 = vrot.slane %v6993, 4
      %v6995 = vrot.slane %v6458, 5
      %v6996 = vsel %vm1192, %v6994, %v6995
      %v6997 = vrot.slane %v6995, 4
      %v6998 = vrot.slane %v6481, 5
      %v6999 = vsel %vm1192, %v6997, %v6998
      %v7000 = vrot.slane %v6882, 5
      %v7001 = vrot.slane %v7000, 4
      %v7002 = vrot.slane %v6460, 5
      %v7003 = vsel %vm1192, %v7001, %v7002
      %v7004 = vrot.slane %v7002, 4
      %v7005 = vrot.slane %v6482, 5
      %v7006 = vsel %vm1192, %v7004, %v7005
      %v7007 = vrot.slane %v6883, 5
      %v7008 = vrot.slane %v7007, 4
      %v7009 = vrot.slane %v6462, 5
      %v7010 = vsel %vm1192, %v7008, %v7009
      %v7011 = vrot.slane %v7009, 4
      %v7012 = vrot.slane %v6483, 5
      %v7013 = vsel %vm1192, %v7011, %v7012
      %v7014 = vrot.slane %v6884, 5
      %v7015 = vrot.slane %v7014, 4
      %v7016 = vrot.slane %v6464, 5
      %v7017 = vsel %vm1192, %v7015, %v7016
      %v7018 = vrot.slane %v7016, 4
      %v7019 = vrot.slane %v6484, 5
      %v7020 = vsel %vm1192, %v7018, %v7019
      %v7021 = vrot.slane %v6885, 5
      %v7022 = vrot.slane %v7021, 4
      %v7023 = vrot.slane %v6466, 5
      %v7024 = vsel %vm1192, %v7022, %v7023
      %v7025 = vrot.slane %v7023, 4
      %v7026 = vrot.slane %v6485, 5
      %v7027 = vsel %vm1192, %v7025, %v7026
      %v7028 = vrot.slane %v6886, 5
      %v7029 = vrot.slane %v7028, 4
      %v7030 = vrot.slane %v6468, 5
      %v7031 = vsel %vm1192, %v7029, %v7030
      %v7032 = vrot.slane %v7030, 4
      %v7033 = vrot.slane %v6486, 5
      %v7034 = vsel %vm1192, %v7032, %v7033
      %v7035 = vrot.slane %v6887, 5
      %v7036 = vrot.slane %v7035, 4
      %v7037 = vrot.slane %v6470, 5
      %v7038 = vsel %vm1192, %v7036, %v7037
      %v7039 = vrot.slane %v7037, 4
      %v7040 = vrot.slane %v6487, 5
      %v7041 = vsel %vm1192, %v7039, %v7040
      %v7042 = vrot.slane %v6888, 5
      %v7043 = vrot.slane %v7042, 4
      %v7044 = vrot.slane %v6472, 5
      %v7045 = vsel %vm1192, %v7043, %v7044
      %v7046 = vrot.slane %v7044, 4
      %v7047 = vrot.slane %v6488, 5
      %v7048 = vsel %vm1192, %v7046, %v7047
      %v7065 = vunpack.c.l.b16 %v5225
      %v7066 = vunpack.c.l.b16 %v5226
      %v7067 = vunpack.c.l.b16 %v5227
      %v7068 = vunpack.c.l.b16 %v5228
      %v7069 = vunpack.c.l.b16 %v5229
      %v7070 = vunpack.c.l.b16 %v5230
      %v7071 = vunpack.c.l.b16 %v5231
      %v7072 = vunpack.c.l.b16 %v5232
      %v7073 = vunpack.c.l.b16 %v5233
      %v7074 = vunpack.c.l.b16 %v5234
      %v7075 = vunpack.c.l.b16 %v5235
      %v7076 = vunpack.c.l.b16 %v5236
      %v7077 = vunpack.c.l.b16 %v5237
      %v7078 = vunpack.c.l.b16 %v5238
      %v7079 = vunpack.c.l.b16 %v5239
      %v7080 = vunpack.c.l.b16 %v5240
      %v7081 = vunpack.c.l.b16 %v5241
      %v7082 = vunpack.c.l.b16 %v5242
      %v7083 = vunpack.c.l.b16 %v5243
      %v7084 = vunpack.c.l.b16 %v5244
      %v7085 = vunpack.c.l.b16 %v5245
      %v7086 = vunpack.c.l.b16 %v5246
      %v7087 = vunpack.c.l.b16 %v5247
      %v7088 = vunpack.c.l.b16 %v5248
      %v7089 = vunpack.c.l.b16 %v5249
      %v7090 = vunpack.c.l.b16 %v5250
      %v7091 = vunpack.c.l.b16 %v5251
      %v7092 = vunpack.c.l.b16 %v5252
      %v7093 = vunpack.c.l.b16 %v5253
      %v7094 = vunpack.c.l.b16 %v5254
      %v7095 = vunpack.c.l.b16 %v5255
      %v7096 = vunpack.c.l.b16 %v5256
      %v7097 = vpack.c.b16 %v7066, %v7065
      %v7098 = vpack.c.b16 %v7068, %v7067
      %v7099 = vpack.c.b16 %v7070, %v7069
      %v7100 = vpack.c.b16 %v7072, %v7071
      %v7101 = vpack.c.b16 %v7074, %v7073
      %v7102 = vpack.c.b16 %v7076, %v7075
      %v7103 = vpack.c.b16 %v7078, %v7077
      %v7104 = vpack.c.b16 %v7080, %v7079
      %v7105 = vpack.c.b16 %v7082, %v7081
      %v7106 = vpack.c.b16 %v7084, %v7083
      %v7107 = vpack.c.b16 %v7086, %v7085
      %v7108 = vpack.c.b16 %v7088, %v7087
      %v7109 = vpack.c.b16 %v7090, %v7089
      %v7110 = vpack.c.b16 %v7092, %v7091
      %v7111 = vpack.c.b16 %v7094, %v7093
      %v7112 = vpack.c.b16 %v7096, %v7095
      %v7129 = vunpack.c.l.b16 %v5286
      %v7130 = vunpack.c.l.b16 %v5296
      %v7131 = vunpack.c.l.b16 %v5310
      %v7132 = vunpack.c.l.b16 %v5320
      %v7133 = vunpack.c.l.b16 %v5334
      %v7134 = vunpack.c.l.b16 %v5344
      %v7135 = vunpack.c.l.b16 %v5358
      %v7136 = vunpack.c.l.b16 %v5368
      %v7137 = vunpack.c.l.b16 %v5382
      %v7138 = vunpack.c.l.b16 %v5392
      %v7139 = vunpack.c.l.b16 %v5406
      %v7140 = vunpack.c.l.b16 %v5416
      %v7141 = vunpack.c.l.b16 %v5430
      %v7142 = vunpack.c.l.b16 %v5440
      %v7143 = vunpack.c.l.b16 %v5454
      %v7144 = vunpack.c.l.b16 %v5464
      %v7145 = vunpack.c.l.b16 %v5478
      %v7146 = vunpack.c.l.b16 %v5488
      %v7147 = vunpack.c.l.b16 %v5502
      %v7148 = vunpack.c.l.b16 %v5512
      %v7149 = vunpack.c.l.b16 %v5526
      %v7150 = vunpack.c.l.b16 %v5536
      %v7151 = vunpack.c.l.b16 %v5550
      %v7152 = vunpack.c.l.b16 %v5560
      %v7153 = vunpack.c.l.b16 %v5574
      %v7154 = vunpack.c.l.b16 %v5584
      %v7155 = vunpack.c.l.b16 %v5598
      %v7156 = vunpack.c.l.b16 %v5608
      %v7157 = vunpack.c.l.b16 %v5622
      %v7158 = vunpack.c.l.b16 %v5632
      %v7159 = vunpack.c.l.b16 %v5646
      %v7160 = vunpack.c.l.b16 %v5656
      %v7161 = vpack.c.b16 %v7130, %v7129
      %v7162 = vpack.c.b16 %v7132, %v7131
      %v7163 = vpack.c.b16 %v7134, %v7133
      %v7164 = vpack.c.b16 %v7136, %v7135
      %v7165 = vpack.c.b16 %v7138, %v7137
      %v7166 = vpack.c.b16 %v7140, %v7139
      %v7167 = vpack.c.b16 %v7142, %v7141
      %v7168 = vpack.c.b16 %v7144, %v7143
      %v7169 = vpack.c.b16 %v7146, %v7145
      %v7170 = vpack.c.b16 %v7148, %v7147
      %v7171 = vpack.c.b16 %v7150, %v7149
      %v7172 = vpack.c.b16 %v7152, %v7151
      %v7173 = vpack.c.b16 %v7154, %v7153
      %v7174 = vpack.c.b16 %v7156, %v7155
      %v7175 = vpack.c.b16 %v7158, %v7157
      %v7176 = vpack.c.b16 %v7160, %v7159
      %v7193 = vunpack.c.l.b16 %v5724
      %v7194 = vunpack.c.l.b16 %v5727
      %v7195 = vunpack.c.l.b16 %v5731
      %v7196 = vunpack.c.l.b16 %v5734
      %v7197 = vunpack.c.l.b16 %v5738
      %v7198 = vunpack.c.l.b16 %v5741
      %v7199 = vunpack.c.l.b16 %v5745
      %v7200 = vunpack.c.l.b16 %v5748
      %v7201 = vunpack.c.l.b16 %v5752
      %v7202 = vunpack.c.l.b16 %v5755
      %v7203 = vunpack.c.l.b16 %v5759
      %v7204 = vunpack.c.l.b16 %v5762
      %v7205 = vunpack.c.l.b16 %v5766
      %v7206 = vunpack.c.l.b16 %v5769
      %v7207 = vunpack.c.l.b16 %v5773
      %v7208 = vunpack.c.l.b16 %v5776
      %v7209 = vunpack.c.l.b16 %v5780
      %v7210 = vunpack.c.l.b16 %v5783
      %v7211 = vunpack.c.l.b16 %v5787
      %v7212 = vunpack.c.l.b16 %v5790
      %v7213 = vunpack.c.l.b16 %v5794
      %v7214 = vunpack.c.l.b16 %v5797
      %v7215 = vunpack.c.l.b16 %v5801
      %v7216 = vunpack.c.l.b16 %v5804
      %v7217 = vunpack.c.l.b16 %v5808
      %v7218 = vunpack.c.l.b16 %v5811
      %v7219 = vunpack.c.l.b16 %v5815
      %v7220 = vunpack.c.l.b16 %v5818
      %v7221 = vunpack.c.l.b16 %v5822
      %v7222 = vunpack.c.l.b16 %v5825
      %v7223 = vunpack.c.l.b16 %v5829
      %v7224 = vunpack.c.l.b16 %v5832
      %v7225 = vpack.c.b16 %v7194, %v7193
      %v7226 = vpack.c.b16 %v7196, %v7195
      %v7227 = vpack.c.b16 %v7198, %v7197
      %v7228 = vpack.c.b16 %v7200, %v7199
      %v7229 = vpack.c.b16 %v7202, %v7201
      %v7230 = vpack.c.b16 %v7204, %v7203
      %v7231 = vpack.c.b16 %v7206, %v7205
      %v7232 = vpack.c.b16 %v7208, %v7207
      %v7233 = vpack.c.b16 %v7210, %v7209
      %v7234 = vpack.c.b16 %v7212, %v7211
      %v7235 = vpack.c.b16 %v7214, %v7213
      %v7236 = vpack.c.b16 %v7216, %v7215
      %v7237 = vpack.c.b16 %v7218, %v7217
      %v7238 = vpack.c.b16 %v7220, %v7219
      %v7239 = vpack.c.b16 %v7222, %v7221
      %v7240 = vpack.c.b16 %v7224, %v7223
      %v7273 = vunpack.c.l.b16 %v5833
      %v7274 = vunpack.c.l.b16 %v5834
      %v7275 = vunpack.c.l.b16 %v5835
      %v7276 = vunpack.c.l.b16 %v5836
      %v7277 = vunpack.c.l.b16 %v5837
      %v7278 = vunpack.c.l.b16 %v5838
      %v7279 = vunpack.c.l.b16 %v5839
      %v7280 = vunpack.c.l.b16 %v5840
      %v7281 = vunpack.c.l.b16 %v5841
      %v7282 = vunpack.c.l.b16 %v5842
      %v7283 = vunpack.c.l.b16 %v5843
      %v7284 = vunpack.c.l.b16 %v5844
      %v7285 = vunpack.c.l.b16 %v5845
      %v7286 = vunpack.c.l.b16 %v5846
      %v7287 = vunpack.c.l.b16 %v5847
      %v7288 = vunpack.c.l.b16 %v5848
      %v7289 = vunpack.c.l.b16 %v5849
      %v7290 = vunpack.c.l.b16 %v5850
      %v7291 = vunpack.c.l.b16 %v5851
      %v7292 = vunpack.c.l.b16 %v5852
      %v7293 = vunpack.c.l.b16 %v5853
      %v7294 = vunpack.c.l.b16 %v5854
      %v7295 = vunpack.c.l.b16 %v5855
      %v7296 = vunpack.c.l.b16 %v5856
      %v7297 = vunpack.c.l.b16 %v5857
      %v7298 = vunpack.c.l.b16 %v5858
      %v7299 = vunpack.c.l.b16 %v5859
      %v7300 = vunpack.c.l.b16 %v5860
      %v7301 = vunpack.c.l.b16 %v5861
      %v7302 = vunpack.c.l.b16 %v5862
      %v7303 = vunpack.c.l.b16 %v5863
      %v7304 = vunpack.c.l.b16 %v5864
      %v7305 = vpack.c.b16 %v7274, %v7273
      %v7306 = vpack.c.b16 %v7276, %v7275
      %v7307 = vpack.c.b16 %v7278, %v7277
      %v7308 = vpack.c.b16 %v7280, %v7279
      %v7309 = vpack.c.b16 %v7282, %v7281
      %v7310 = vpack.c.b16 %v7284, %v7283
      %v7311 = vpack.c.b16 %v7286, %v7285
      %v7312 = vpack.c.b16 %v7288, %v7287
      %v7313 = vpack.c.b16 %v7290, %v7289
      %v7314 = vpack.c.b16 %v7292, %v7291
      %v7315 = vpack.c.b16 %v7294, %v7293
      %v7316 = vpack.c.b16 %v7296, %v7295
      %v7317 = vpack.c.b16 %v7298, %v7297
      %v7318 = vpack.c.b16 %v7300, %v7299
      %v7319 = vpack.c.b16 %v7302, %v7301
      %v7320 = vpack.c.b16 %v7304, %v7303
      %v7337 = vunpack.c.l.b16 %v5894
      %v7338 = vunpack.c.l.b16 %v5904
      %v7339 = vunpack.c.l.b16 %v5918
      %v7340 = vunpack.c.l.b16 %v5928
      %v7341 = vunpack.c.l.b16 %v5942
      %v7342 = vunpack.c.l.b16 %v5952
      %v7343 = vunpack.c.l.b16 %v5966
      %v7344 = vunpack.c.l.b16 %v5976
      %v7345 = vunpack.c.l.b16 %v5990
      %v7346 = vunpack.c.l.b16 %v6000
      %v7347 = vunpack.c.l.b16 %v6014
      %v7348 = vunpack.c.l.b16 %v6024
      %v7349 = vunpack.c.l.b16 %v6038
      %v7350 = vunpack.c.l.b16 %v6048
      %v7351 = vunpack.c.l.b16 %v6062
      %v7352 = vunpack.c.l.b16 %v6072
      %v7353 = vunpack.c.l.b16 %v6086
      %v7354 = vunpack.c.l.b16 %v6096
      %v7355 = vunpack.c.l.b16 %v6110
      %v7356 = vunpack.c.l.b16 %v6120
      %v7357 = vunpack.c.l.b16 %v6134
      %v7358 = vunpack.c.l.b16 %v6144
      %v7359 = vunpack.c.l.b16 %v6158
      %v7360 = vunpack.c.l.b16 %v6168
      %v7361 = vunpack.c.l.b16 %v6182
      %v7362 = vunpack.c.l.b16 %v6192
      %v7363 = vunpack.c.l.b16 %v6206
      %v7364 = vunpack.c.l.b16 %v6216
      %v7365 = vunpack.c.l.b16 %v6230
      %v7366 = vunpack.c.l.b16 %v6240
      %v7367 = vunpack.c.l.b16 %v6254
      %v7368 = vunpack.c.l.b16 %v6264
      %v7369 = vpack.c.b16 %v7338, %v7337
      %v7370 = vpack.c.b16 %v7340, %v7339
      %v7371 = vpack.c.b16 %v7342, %v7341
      %v7372 = vpack.c.b16 %v7344, %v7343
      %v7373 = vpack.c.b16 %v7346, %v7345
      %v7374 = vpack.c.b16 %v7348, %v7347
      %v7375 = vpack.c.b16 %v7350, %v7349
      %v7376 = vpack.c.b16 %v7352, %v7351
      %v7377 = vpack.c.b16 %v7354, %v7353
      %v7378 = vpack.c.b16 %v7356, %v7355
      %v7379 = vpack.c.b16 %v7358, %v7357
      %v7380 = vpack.c.b16 %v7360, %v7359
      %v7381 = vpack.c.b16 %v7362, %v7361
      %v7382 = vpack.c.b16 %v7364, %v7363
      %v7383 = vpack.c.b16 %v7366, %v7365
      %v7384 = vpack.c.b16 %v7368, %v7367
      %v7401 = vunpack.c.l.b16 %v6332
      %v7402 = vunpack.c.l.b16 %v6335
      %v7403 = vunpack.c.l.b16 %v6339
      %v7404 = vunpack.c.l.b16 %v6342
      %v7405 = vunpack.c.l.b16 %v6346
      %v7406 = vunpack.c.l.b16 %v6349
      %v7407 = vunpack.c.l.b16 %v6353
      %v7408 = vunpack.c.l.b16 %v6356
      %v7409 = vunpack.c.l.b16 %v6360
      %v7410 = vunpack.c.l.b16 %v6363
      %v7411 = vunpack.c.l.b16 %v6367
      %v7412 = vunpack.c.l.b16 %v6370
      %v7413 = vunpack.c.l.b16 %v6374
      %v7414 = vunpack.c.l.b16 %v6377
      %v7415 = vunpack.c.l.b16 %v6381
      %v7416 = vunpack.c.l.b16 %v6384
      %v7417 = vunpack.c.l.b16 %v6388
      %v7418 = vunpack.c.l.b16 %v6391
      %v7419 = vunpack.c.l.b16 %v6395
      %v7420 = vunpack.c.l.b16 %v6398
      %v7421 = vunpack.c.l.b16 %v6402
      %v7422 = vunpack.c.l.b16 %v6405
      %v7423 = vunpack.c.l.b16 %v6409
      %v7424 = vunpack.c.l.b16 %v6412
      %v7425 = vunpack.c.l.b16 %v6416
      %v7426 = vunpack.c.l.b16 %v6419
      %v7427 = vunpack.c.l.b16 %v6423
      %v7428 = vunpack.c.l.b16 %v6426
      %v7429 = vunpack.c.l.b16 %v6430
      %v7430 = vunpack.c.l.b16 %v6433
      %v7431 = vunpack.c.l.b16 %v6437
      %v7432 = vunpack.c.l.b16 %v6440
      %v7433 = vpack.c.b16 %v7402, %v7401
      %v7434 = vpack.c.b16 %v7404, %v7403
      %v7435 = vpack.c.b16 %v7406, %v7405
      %v7436 = vpack.c.b16 %v7408, %v7407
      %v7437 = vpack.c.b16 %v7410, %v7409
      %v7438 = vpack.c.b16 %v7412, %v7411
      %v7439 = vpack.c.b16 %v7414, %v7413
      %v7440 = vpack.c.b16 %v7416, %v7415
      %v7441 = vpack.c.b16 %v7418, %v7417
      %v7442 = vpack.c.b16 %v7420, %v7419
      %v7443 = vpack.c.b16 %v7422, %v7421
      %v7444 = vpack.c.b16 %v7424, %v7423
      %v7445 = vpack.c.b16 %v7426, %v7425
      %v7446 = vpack.c.b16 %v7428, %v7427
      %v7447 = vpack.c.b16 %v7430, %v7429
      %v7448 = vpack.c.b16 %v7432, %v7431
      %v7481 = vunpack.c.l.b16 %v6441
      %v7482 = vunpack.c.l.b16 %v6442
      %v7483 = vunpack.c.l.b16 %v6443
      %v7484 = vunpack.c.l.b16 %v6444
      %v7485 = vunpack.c.l.b16 %v6445
      %v7486 = vunpack.c.l.b16 %v6446
      %v7487 = vunpack.c.l.b16 %v6447
      %v7488 = vunpack.c.l.b16 %v6448
      %v7489 = vunpack.c.l.b16 %v6449
      %v7490 = vunpack.c.l.b16 %v6450
      %v7491 = vunpack.c.l.b16 %v6451
      %v7492 = vunpack.c.l.b16 %v6452
      %v7493 = vunpack.c.l.b16 %v6453
      %v7494 = vunpack.c.l.b16 %v6454
      %v7495 = vunpack.c.l.b16 %v6455
      %v7496 = vunpack.c.l.b16 %v6456
      %v7497 = vunpack.c.l.b16 %v6457
      %v7498 = vunpack.c.l.b16 %v6458
      %v7499 = vunpack.c.l.b16 %v6459
      %v7500 = vunpack.c.l.b16 %v6460
      %v7501 = vunpack.c.l.b16 %v6461
      %v7502 = vunpack.c.l.b16 %v6462
      %v7503 = vunpack.c.l.b16 %v6463
      %v7504 = vunpack.c.l.b16 %v6464
      %v7505 = vunpack.c.l.b16 %v6465
      %v7506 = vunpack.c.l.b16 %v6466
      %v7507 = vunpack.c.l.b16 %v6467
      %v7508 = vunpack.c.l.b16 %v6468
      %v7509 = vunpack.c.l.b16 %v6469
      %v7510 = vunpack.c.l.b16 %v6470
      %v7511 = vunpack.c.l.b16 %v6471
      %v7512 = vunpack.c.l.b16 %v6472
      %v7513 = vpack.c.b16 %v7482, %v7481
      %v7514 = vpack.c.b16 %v7484, %v7483
      %v7515 = vpack.c.b16 %v7486, %v7485
      %v7516 = vpack.c.b16 %v7488, %v7487
      %v7517 = vpack.c.b16 %v7490, %v7489
      %v7518 = vpack.c.b16 %v7492, %v7491
      %v7519 = vpack.c.b16 %v7494, %v7493
      %v7520 = vpack.c.b16 %v7496, %v7495
      %v7521 = vpack.c.b16 %v7498, %v7497
      %v7522 = vpack.c.b16 %v7500, %v7499
      %v7523 = vpack.c.b16 %v7502, %v7501
      %v7524 = vpack.c.b16 %v7504, %v7503
      %v7525 = vpack.c.b16 %v7506, %v7505
      %v7526 = vpack.c.b16 %v7508, %v7507
      %v7527 = vpack.c.b16 %v7510, %v7509
      %v7528 = vpack.c.b16 %v7512, %v7511
      %v7545 = vunpack.c.l.b16 %v6502
      %v7546 = vunpack.c.l.b16 %v6512
      %v7547 = vunpack.c.l.b16 %v6526
      %v7548 = vunpack.c.l.b16 %v6536
      %v7549 = vunpack.c.l.b16 %v6550
      %v7550 = vunpack.c.l.b16 %v6560
      %v7551 = vunpack.c.l.b16 %v6574
      %v7552 = vunpack.c.l.b16 %v6584
      %v7553 = vunpack.c.l.b16 %v6598
      %v7554 = vunpack.c.l.b16 %v6608
      %v7555 = vunpack.c.l.b16 %v6622
      %v7556 = vunpack.c.l.b16 %v6632
      %v7557 = vunpack.c.l.b16 %v6646
      %v7558 = vunpack.c.l.b16 %v6656
      %v7559 = vunpack.c.l.b16 %v6670
      %v7560 = vunpack.c.l.b16 %v6680
      %v7561 = vunpack.c.l.b16 %v6694
      %v7562 = vunpack.c.l.b16 %v6704
      %v7563 = vunpack.c.l.b16 %v6718
      %v7564 = vunpack.c.l.b16 %v6728
      %v7565 = vunpack.c.l.b16 %v6742
      %v7566 = vunpack.c.l.b16 %v6752
      %v7567 = vunpack.c.l.b16 %v6766
      %v7568 = vunpack.c.l.b16 %v6776
      %v7569 = vunpack.c.l.b16 %v6790
      %v7570 = vunpack.c.l.b16 %v6800
      %v7571 = vunpack.c.l.b16 %v6814
      %v7572 = vunpack.c.l.b16 %v6824
      %v7573 = vunpack.c.l.b16 %v6838
      %v7574 = vunpack.c.l.b16 %v6848
      %v7575 = vunpack.c.l.b16 %v6862
      %v7576 = vunpack.c.l.b16 %v6872
      %v7577 = vpack.c.b16 %v7546, %v7545
      %v7578 = vpack.c.b16 %v7548, %v7547
      %v7579 = vpack.c.b16 %v7550, %v7549
      %v7580 = vpack.c.b16 %v7552, %v7551
      %v7581 = vpack.c.b16 %v7554, %v7553
      %v7582 = vpack.c.b16 %v7556, %v7555
      %v7583 = vpack.c.b16 %v7558, %v7557
      %v7584 = vpack.c.b16 %v7560, %v7559
      %v7585 = vpack.c.b16 %v7562, %v7561
      %v7586 = vpack.c.b16 %v7564, %v7563
      %v7587 = vpack.c.b16 %v7566, %v7565
      %v7588 = vpack.c.b16 %v7568, %v7567
      %v7589 = vpack.c.b16 %v7570, %v7569
      %v7590 = vpack.c.b16 %v7572, %v7571
      %v7591 = vpack.c.b16 %v7574, %v7573
      %v7592 = vpack.c.b16 %v7576, %v7575
      %v7609 = vunpack.c.l.b16 %v6940
      %v7610 = vunpack.c.l.b16 %v6943
      %v7611 = vunpack.c.l.b16 %v6947
      %v7612 = vunpack.c.l.b16 %v6950
      %v7613 = vunpack.c.l.b16 %v6954
      %v7614 = vunpack.c.l.b16 %v6957
      %v7615 = vunpack.c.l.b16 %v6961
      %v7616 = vunpack.c.l.b16 %v6964
      %v7617 = vunpack.c.l.b16 %v6968
      %v7618 = vunpack.c.l.b16 %v6971
      %v7619 = vunpack.c.l.b16 %v6975
      %v7620 = vunpack.c.l.b16 %v6978
      %v7621 = vunpack.c.l.b16 %v6982
      %v7622 = vunpack.c.l.b16 %v6985
      %v7623 = vunpack.c.l.b16 %v6989
      %v7624 = vunpack.c.l.b16 %v6992
      %v7625 = vunpack.c.l.b16 %v6996
      %v7626 = vunpack.c.l.b16 %v6999
      %v7627 = vunpack.c.l.b16 %v7003
      %v7628 = vunpack.c.l.b16 %v7006
      %v7629 = vunpack.c.l.b16 %v7010
      %v7630 = vunpack.c.l.b16 %v7013
      %v7631 = vunpack.c.l.b16 %v7017
      %v7632 = vunpack.c.l.b16 %v7020
      %v7633 = vunpack.c.l.b16 %v7024
      %v7634 = vunpack.c.l.b16 %v7027
      %v7635 = vunpack.c.l.b16 %v7031
      %v7636 = vunpack.c.l.b16 %v7034
      %v7637 = vunpack.c.l.b16 %v7038
      %v7638 = vunpack.c.l.b16 %v7041
      %v7639 = vunpack.c.l.b16 %v7045
      %v7640 = vunpack.c.l.b16 %v7048
      %v7641 = vpack.c.b16 %v7610, %v7609
      %v7642 = vpack.c.b16 %v7612, %v7611
      %v7643 = vpack.c.b16 %v7614, %v7613
      %v7644 = vpack.c.b16 %v7616, %v7615
      %v7645 = vpack.c.b16 %v7618, %v7617
      %v7646 = vpack.c.b16 %v7620, %v7619
      %v7647 = vpack.c.b16 %v7622, %v7621
      %v7648 = vpack.c.b16 %v7624, %v7623
      %v7649 = vpack.c.b16 %v7626, %v7625
      %v7650 = vpack.c.b16 %v7628, %v7627
      %v7651 = vpack.c.b16 %v7630, %v7629
      %v7652 = vpack.c.b16 %v7632, %v7631
      %v7653 = vpack.c.b16 %v7634, %v7633
      %v7654 = vpack.c.b16 %v7636, %v7635
      %v7655 = vpack.c.b16 %v7638, %v7637
      %v7656 = vpack.c.b16 %v7640, %v7639
      %v7673 = vld [vmem:[%s2] sm:$0xf]
      %v7674 = vld [vmem:[%s2 + $0x4] sm:$0xf]
      %v7675 = vld [vmem:[%s2 + $0x8] sm:$0xf]
      %v7676 = vld [vmem:[%s2 + $0xc] sm:$0xf]
      %v7677 = vld [vmem:[%s2 + $0x10] sm:$0xf]
      %v7678 = vld [vmem:[%s2 + $0x14] sm:$0xf]
      %v7679 = vld [vmem:[%s2 + $0x18] sm:$0xf]
      %v7680 = vld [vmem:[%s2 + $0x1c] sm:$0xf]
      %v7681 = vld [vmem:[%s2 + $0x20] sm:$0xf]
      %v7682 = vld [vmem:[%s2 + $0x24] sm:$0xf]
      %v7683 = vld [vmem:[%s2 + $0x28] sm:$0xf]
      %v7684 = vld [vmem:[%s2 + $0x2c] sm:$0xf]
      %v7685 = vld [vmem:[%s2 + $0x30] sm:$0xf]
      %v7686 = vld [vmem:[%s2 + $0x34] sm:$0xf]
      %v7687 = vld [vmem:[%s2 + $0x38] sm:$0xf]
      %v7688 = vld [vmem:[%s2 + $0x3c] sm:$0xf]
      %v7689 = vld [vmem:[%s2 + $0x40] sm:$0xf]
      %v7690 = vld [vmem:[%s2 + $0x44] sm:$0xf]
      %v7691 = vld [vmem:[%s2 + $0x48] sm:$0xf]
      %v7692 = vld [vmem:[%s2 + $0x4c] sm:$0xf]
      %v7693 = vld [vmem:[%s2 + $0x50] sm:$0xf]
      %v7694 = vld [vmem:[%s2 + $0x54] sm:$0xf]
      %v7695 = vld [vmem:[%s2 + $0x58] sm:$0xf]
      %v7696 = vld [vmem:[%s2 + $0x5c] sm:$0xf]
      %v7697 = vld [vmem:[%s2 + $0x60] sm:$0xf]
      %v7698 = vld [vmem:[%s2 + $0x64] sm:$0xf]
      %v7699 = vld [vmem:[%s2 + $0x68] sm:$0xf]
      %v7700 = vld [vmem:[%s2 + $0x6c] sm:$0xf]
      %v7701 = vld [vmem:[%s2 + $0x70] sm:$0xf]
      %v7702 = vld [vmem:[%s2 + $0x74] sm:$0xf]
      %v7703 = vld [vmem:[%s2 + $0x78] sm:$0xf]
      %v7704 = vld [vmem:[%s2 + $0x7c] sm:$0xf]
      %v7705 = vld [vmem:[%s2 + $0x80] sm:$0xf]
      %v7706 = vld [vmem:[%s2 + $0x84] sm:$0xf]
      %v7707 = vld [vmem:[%s2 + $0x88] sm:$0xf]
      %v7708 = vld [vmem:[%s2 + $0x8c] sm:$0xf]
      %v7709 = vld [vmem:[%s2 + $0x90] sm:$0xf]
      %v7710 = vld [vmem:[%s2 + $0x94] sm:$0xf]
      %v7711 = vld [vmem:[%s2 + $0x98] sm:$0xf]
      %v7712 = vld [vmem:[%s2 + $0x9c] sm:$0xf]
      %v7713 = vld [vmem:[%s2 + $0xa0] sm:$0xf]
      %v7714 = vld [vmem:[%s2 + $0xa4] sm:$0xf]
      %v7715 = vld [vmem:[%s2 + $0xa8] sm:$0xf]
      %v7716 = vld [vmem:[%s2 + $0xac] sm:$0xf]
      %v7717 = vld [vmem:[%s2 + $0xb0] sm:$0xf]
      %v7718 = vld [vmem:[%s2 + $0xb4] sm:$0xf]
      %v7719 = vld [vmem:[%s2 + $0xb8] sm:$0xf]
      %v7720 = vld [vmem:[%s2 + $0xbc] sm:$0xf]
      %v7721 = vld [vmem:[%s2 + $0xc0] sm:$0xf]
      %v7722 = vld [vmem:[%s2 + $0xc4] sm:$0xf]
      %v7723 = vld [vmem:[%s2 + $0xc8] sm:$0xf]
      %v7724 = vld [vmem:[%s2 + $0xcc] sm:$0xf]
      %v7725 = vld [vmem:[%s2 + $0xd0] sm:$0xf]
      %v7726 = vld [vmem:[%s2 + $0xd4] sm:$0xf]
      %v7727 = vld [vmem:[%s2 + $0xd8] sm:$0xf]
      %v7728 = vld [vmem:[%s2 + $0xdc] sm:$0xf]
      %v7729 = vld [vmem:[%s2 + $0xe0] sm:$0xf]
      %v7730 = vld [vmem:[%s2 + $0xe4] sm:$0xf]
      %v7731 = vld [vmem:[%s2 + $0xe8] sm:$0xf]
      %v7732 = vld [vmem:[%s2 + $0xec] sm:$0xf]
      %v7733 = vld [vmem:[%s2 + $0xf0] sm:$0xf]
      %v7734 = vld [vmem:[%s2 + $0xf4] sm:$0xf]
      %v7735 = vld [vmem:[%s2 + $0xf8] sm:$0xf]
      %v7736 = vld [vmem:[%s2 + $0xfc] sm:$0xf]
      %v7737 = vld [vmem:[%s2 + $0x100] sm:$0xf]
      %v7738 = vld [vmem:[%s2 + $0x104] sm:$0xf]
      %v7739 = vld [vmem:[%s2 + $0x108] sm:$0xf]
      %v7740 = vld [vmem:[%s2 + $0x10c] sm:$0xf]
      %v7741 = vld [vmem:[%s2 + $0x110] sm:$0xf]
      %v7742 = vld [vmem:[%s2 + $0x114] sm:$0xf]
      %v7743 = vld [vmem:[%s2 + $0x118] sm:$0xf]
      %v7744 = vld [vmem:[%s2 + $0x11c] sm:$0xf]
      %v7745 = vld [vmem:[%s2 + $0x120] sm:$0xf]
      %v7746 = vld [vmem:[%s2 + $0x124] sm:$0xf]
      %v7747 = vld [vmem:[%s2 + $0x128] sm:$0xf]
      %v7748 = vld [vmem:[%s2 + $0x12c] sm:$0xf]
      %v7749 = vld [vmem:[%s2 + $0x130] sm:$0xf]
      %v7750 = vld [vmem:[%s2 + $0x134] sm:$0xf]
      %v7751 = vld [vmem:[%s2 + $0x138] sm:$0xf]
      %v7752 = vld [vmem:[%s2 + $0x13c] sm:$0xf]
      %v7753 = vld [vmem:[%s2 + $0x140] sm:$0xf]
      %v7754 = vld [vmem:[%s2 + $0x144] sm:$0xf]
      %v7755 = vld [vmem:[%s2 + $0x148] sm:$0xf]
      %v7756 = vld [vmem:[%s2 + $0x14c] sm:$0xf]
      %v7757 = vld [vmem:[%s2 + $0x150] sm:$0xf]
      %v7758 = vld [vmem:[%s2 + $0x154] sm:$0xf]
      %v7759 = vld [vmem:[%s2 + $0x158] sm:$0xf]
      %v7760 = vld [vmem:[%s2 + $0x15c] sm:$0xf]
      %v7761 = vld [vmem:[%s2 + $0x160] sm:$0xf]
      %v7762 = vld [vmem:[%s2 + $0x164] sm:$0xf]
      %v7763 = vld [vmem:[%s2 + $0x168] sm:$0xf]
      %v7764 = vld [vmem:[%s2 + $0x16c] sm:$0xf]
      %v7765 = vld [vmem:[%s2 + $0x170] sm:$0xf]
      %v7766 = vld [vmem:[%s2 + $0x174] sm:$0xf]
      %v7767 = vld [vmem:[%s2 + $0x178] sm:$0xf]
      %v7768 = vld [vmem:[%s2 + $0x17c] sm:$0xf]
      %v7769 = vld [vmem:[%s2 + $0x180] sm:$0xf]
      %v7770 = vld [vmem:[%s2 + $0x184] sm:$0xf]
      %v7771 = vld [vmem:[%s2 + $0x188] sm:$0xf]
      %v7772 = vld [vmem:[%s2 + $0x18c] sm:$0xf]
      %v7773 = vld [vmem:[%s2 + $0x190] sm:$0xf]
      %v7774 = vld [vmem:[%s2 + $0x194] sm:$0xf]
      %v7775 = vld [vmem:[%s2 + $0x198] sm:$0xf]
      %v7776 = vld [vmem:[%s2 + $0x19c] sm:$0xf]
      %v7777 = vld [vmem:[%s2 + $0x1a0] sm:$0xf]
      %v7778 = vld [vmem:[%s2 + $0x1a4] sm:$0xf]
      %v7779 = vld [vmem:[%s2 + $0x1a8] sm:$0xf]
      %v7780 = vld [vmem:[%s2 + $0x1ac] sm:$0xf]
      %v7781 = vld [vmem:[%s2 + $0x1b0] sm:$0xf]
      %v7782 = vld [vmem:[%s2 + $0x1b4] sm:$0xf]
      %v7783 = vld [vmem:[%s2 + $0x1b8] sm:$0xf]
      %v7784 = vld [vmem:[%s2 + $0x1bc] sm:$0xf]
      %v7785 = vld [vmem:[%s2 + $0x1c0] sm:$0xf]
      %v7786 = vld [vmem:[%s2 + $0x1c4] sm:$0xf]
      %v7787 = vld [vmem:[%s2 + $0x1c8] sm:$0xf]
      %v7788 = vld [vmem:[%s2 + $0x1cc] sm:$0xf]
      %v7789 = vld [vmem:[%s2 + $0x1d0] sm:$0xf]
      %v7790 = vld [vmem:[%s2 + $0x1d4] sm:$0xf]
      %v7791 = vld [vmem:[%s2 + $0x1d8] sm:$0xf]
      %v7792 = vld [vmem:[%s2 + $0x1dc] sm:$0xf]
      %v7793 = vld [vmem:[%s2 + $0x1e0] sm:$0xf]
      %v7794 = vld [vmem:[%s2 + $0x1e4] sm:$0xf]
      %v7795 = vld [vmem:[%s2 + $0x1e8] sm:$0xf]
      %v7796 = vld [vmem:[%s2 + $0x1ec] sm:$0xf]
      %v7797 = vld [vmem:[%s2 + $0x1f0] sm:$0xf]
      %v7798 = vld [vmem:[%s2 + $0x1f4] sm:$0xf]
      %v7799 = vld [vmem:[%s2 + $0x1f8] sm:$0xf]
      %v7800 = vld [vmem:[%s2 + $0x1fc] sm:$0xf]
      %v7801 = vld [vmem:[%s2 + $0x200] sm:$0xf]
      %v7802 = vld [vmem:[%s2 + $0x204] sm:$0xf]
      %v7803 = vld [vmem:[%s2 + $0x208] sm:$0xf]
      %v7804 = vld [vmem:[%s2 + $0x20c] sm:$0xf]
      %v7805 = vld [vmem:[%s2 + $0x210] sm:$0xf]
      %v7806 = vld [vmem:[%s2 + $0x214] sm:$0xf]
      %v7807 = vld [vmem:[%s2 + $0x218] sm:$0xf]
      %v7808 = vld [vmem:[%s2 + $0x21c] sm:$0xf]
      %v7809 = vld [vmem:[%s2 + $0x220] sm:$0xf]
      %v7810 = vld [vmem:[%s2 + $0x224] sm:$0xf]
      %v7811 = vld [vmem:[%s2 + $0x228] sm:$0xf]
      %v7812 = vld [vmem:[%s2 + $0x22c] sm:$0xf]
      %v7813 = vld [vmem:[%s2 + $0x230] sm:$0xf]
      %v7814 = vld [vmem:[%s2 + $0x234] sm:$0xf]
      %v7815 = vld [vmem:[%s2 + $0x238] sm:$0xf]
      %v7816 = vld [vmem:[%s2 + $0x23c] sm:$0xf]
      %v7961 = vunpack.c.l.b16 %v7673
      %v7962 = vunpack.c.l.b16 %v7674
      %v7963 = vunpack.c.l.b16 %v7675
      %v7964 = vunpack.c.l.b16 %v7676
      %v7965 = vunpack.c.l.b16 %v7677
      %v7966 = vunpack.c.l.b16 %v7678
      %v7967 = vunpack.c.l.b16 %v7679
      %v7968 = vunpack.c.l.b16 %v7680
      %v7969 = vunpack.c.l.b16 %v7681
      %v7970 = vunpack.c.l.b16 %v7682
      %v7971 = vunpack.c.l.b16 %v7683
      %v7972 = vunpack.c.l.b16 %v7684
      %v7973 = vunpack.c.l.b16 %v7685
      %v7974 = vunpack.c.l.b16 %v7686
      %v7975 = vunpack.c.l.b16 %v7687
      %v7976 = vunpack.c.l.b16 %v7688
      %v7977 = vunpack.c.l.b16 %v7689
      %v7978 = vunpack.c.l.b16 %v7690
      %v7979 = vunpack.c.l.b16 %v7691
      %v7980 = vunpack.c.l.b16 %v7692
      %v7981 = vunpack.c.l.b16 %v7693
      %v7982 = vunpack.c.l.b16 %v7694
      %v7983 = vunpack.c.l.b16 %v7695
      %v7984 = vunpack.c.l.b16 %v7696
      %v7985 = vunpack.c.l.b16 %v7697
      %v7986 = vunpack.c.l.b16 %v7698
      %v7987 = vunpack.c.l.b16 %v7699
      %v7988 = vunpack.c.l.b16 %v7700
      %v7989 = vunpack.c.l.b16 %v7701
      %v7990 = vunpack.c.l.b16 %v7702
      %v7991 = vunpack.c.l.b16 %v7703
      %v7992 = vunpack.c.l.b16 %v7704
      %v7993 = vunpack.c.l.b16 %v7705
      %v7994 = vunpack.c.l.b16 %v7706
      %v7995 = vunpack.c.l.b16 %v7707
      %v7996 = vunpack.c.l.b16 %v7708
      %v7997 = vunpack.c.l.b16 %v7709
      %v7998 = vunpack.c.l.b16 %v7710
      %v7999 = vunpack.c.l.b16 %v7711
      %v8000 = vunpack.c.l.b16 %v7712
      %v8001 = vunpack.c.l.b16 %v7713
      %v8002 = vunpack.c.l.b16 %v7714
      %v8003 = vunpack.c.l.b16 %v7715
      %v8004 = vunpack.c.l.b16 %v7716
      %v8005 = vunpack.c.l.b16 %v7717
      %v8006 = vunpack.c.l.b16 %v7718
      %v8007 = vunpack.c.l.b16 %v7719
      %v8008 = vunpack.c.l.b16 %v7720
      %v8009 = vunpack.c.l.b16 %v7721
      %v8010 = vunpack.c.l.b16 %v7722
      %v8011 = vunpack.c.l.b16 %v7723
      %v8012 = vunpack.c.l.b16 %v7724
      %v8013 = vunpack.c.l.b16 %v7725
      %v8014 = vunpack.c.l.b16 %v7726
      %v8015 = vunpack.c.l.b16 %v7727
      %v8016 = vunpack.c.l.b16 %v7728
      %v8017 = vunpack.c.l.b16 %v7729
      %v8018 = vunpack.c.l.b16 %v7730
      %v8019 = vunpack.c.l.b16 %v7731
      %v8020 = vunpack.c.l.b16 %v7732
      %v8021 = vunpack.c.l.b16 %v7733
      %v8022 = vunpack.c.l.b16 %v7734
      %v8023 = vunpack.c.l.b16 %v7735
      %v8024 = vunpack.c.l.b16 %v7736
      %v8025 = vunpack.c.l.b16 %v7737
      %v8026 = vunpack.c.l.b16 %v7738
      %v8027 = vunpack.c.l.b16 %v7739
      %v8028 = vunpack.c.l.b16 %v7740
      %v8029 = vunpack.c.l.b16 %v7741
      %v8030 = vunpack.c.l.b16 %v7742
      %v8031 = vunpack.c.l.b16 %v7743
      %v8032 = vunpack.c.l.b16 %v7744
      %v8033 = vunpack.c.l.b16 %v7745
      %v8034 = vunpack.c.l.b16 %v7746
      %v8035 = vunpack.c.l.b16 %v7747
      %v8036 = vunpack.c.l.b16 %v7748
      %v8037 = vunpack.c.l.b16 %v7749
      %v8038 = vunpack.c.l.b16 %v7750
      %v8039 = vunpack.c.l.b16 %v7751
      %v8040 = vunpack.c.l.b16 %v7752
      %v8041 = vunpack.c.l.b16 %v7753
      %v8042 = vunpack.c.l.b16 %v7754
      %v8043 = vunpack.c.l.b16 %v7755
      %v8044 = vunpack.c.l.b16 %v7756
      %v8045 = vunpack.c.l.b16 %v7757
      %v8046 = vunpack.c.l.b16 %v7758
      %v8047 = vunpack.c.l.b16 %v7759
      %v8048 = vunpack.c.l.b16 %v7760
      %v8049 = vunpack.c.l.b16 %v7761
      %v8050 = vunpack.c.l.b16 %v7762
      %v8051 = vunpack.c.l.b16 %v7763
      %v8052 = vunpack.c.l.b16 %v7764
      %v8053 = vunpack.c.l.b16 %v7765
      %v8054 = vunpack.c.l.b16 %v7766
      %v8055 = vunpack.c.l.b16 %v7767
      %v8056 = vunpack.c.l.b16 %v7768
      %v8057 = vunpack.c.l.b16 %v7769
      %v8058 = vunpack.c.l.b16 %v7770
      %v8059 = vunpack.c.l.b16 %v7771
      %v8060 = vunpack.c.l.b16 %v7772
      %v8061 = vunpack.c.l.b16 %v7773
      %v8062 = vunpack.c.l.b16 %v7774
      %v8063 = vunpack.c.l.b16 %v7775
      %v8064 = vunpack.c.l.b16 %v7776
      %v8065 = vunpack.c.l.b16 %v7777
      %v8066 = vunpack.c.l.b16 %v7778
      %v8067 = vunpack.c.l.b16 %v7779
      %v8068 = vunpack.c.l.b16 %v7780
      %v8069 = vunpack.c.l.b16 %v7781
      %v8070 = vunpack.c.l.b16 %v7782
      %v8071 = vunpack.c.l.b16 %v7783
      %v8072 = vunpack.c.l.b16 %v7784
      %v8073 = vunpack.c.l.b16 %v7785
      %v8074 = vunpack.c.l.b16 %v7786
      %v8075 = vunpack.c.l.b16 %v7787
      %v8076 = vunpack.c.l.b16 %v7788
      %v8077 = vunpack.c.l.b16 %v7789
      %v8078 = vunpack.c.l.b16 %v7790
      %v8079 = vunpack.c.l.b16 %v7791
      %v8080 = vunpack.c.l.b16 %v7792
      %v8081 = vunpack.c.l.b16 %v7793
      %v8082 = vunpack.c.l.b16 %v7794
      %v8083 = vunpack.c.l.b16 %v7795
      %v8084 = vunpack.c.l.b16 %v7796
      %v8085 = vunpack.c.l.b16 %v7797
      %v8086 = vunpack.c.l.b16 %v7798
      %v8087 = vunpack.c.l.b16 %v7799
      %v8088 = vunpack.c.l.b16 %v7800
      %v8089 = vunpack.c.l.b16 %v7801
      %v8090 = vunpack.c.l.b16 %v7802
      %v8091 = vunpack.c.l.b16 %v7803
      %v8092 = vunpack.c.l.b16 %v7804
      %v8093 = vunpack.c.l.b16 %v7805
      %v8094 = vunpack.c.l.b16 %v7806
      %v8095 = vunpack.c.l.b16 %v7807
      %v8096 = vunpack.c.l.b16 %v7808
      %v8097 = vunpack.c.l.b16 %v7809
      %v8098 = vunpack.c.l.b16 %v7810
      %v8099 = vunpack.c.l.b16 %v7811
      %v8100 = vunpack.c.l.b16 %v7812
      %v8101 = vunpack.c.l.b16 %v7813
      %v8102 = vunpack.c.l.b16 %v7814
      %v8103 = vunpack.c.l.b16 %v7815
      %v8104 = vunpack.c.l.b16 %v7816
      %v8105 = vpack.c.b16 %v7962, %v7961
      %v8106 = vpack.c.b16 %v7964, %v7963
      %v8107 = vpack.c.b16 %v7966, %v7965
      %v8108 = vpack.c.b16 %v7968, %v7967
      %v8109 = vpack.c.b16 %v7970, %v7969
      %v8110 = vpack.c.b16 %v7972, %v7971
      %v8111 = vpack.c.b16 %v7974, %v7973
      %v8112 = vpack.c.b16 %v7976, %v7975
      %v8113 = vpack.c.b16 %v7978, %v7977
      %v8114 = vpack.c.b16 %v7980, %v7979
      %v8115 = vpack.c.b16 %v7982, %v7981
      %v8116 = vpack.c.b16 %v7984, %v7983
      %v8117 = vpack.c.b16 %v7986, %v7985
      %v8118 = vpack.c.b16 %v7988, %v7987
      %v8119 = vpack.c.b16 %v7990, %v7989
      %v8120 = vpack.c.b16 %v7992, %v7991
      %v8121 = vpack.c.b16 %v7994, %v7993
      %v8122 = vpack.c.b16 %v7996, %v7995
      %v8123 = vpack.c.b16 %v7998, %v7997
      %v8124 = vpack.c.b16 %v8000, %v7999
      %v8125 = vpack.c.b16 %v8002, %v8001
      %v8126 = vpack.c.b16 %v8004, %v8003
      %v8127 = vpack.c.b16 %v8006, %v8005
      %v8128 = vpack.c.b16 %v8008, %v8007
      %v8129 = vpack.c.b16 %v8010, %v8009
      %v8130 = vpack.c.b16 %v8012, %v8011
      %v8131 = vpack.c.b16 %v8014, %v8013
      %v8132 = vpack.c.b16 %v8016, %v8015
      %v8133 = vpack.c.b16 %v8018, %v8017
      %v8134 = vpack.c.b16 %v8020, %v8019
      %v8135 = vpack.c.b16 %v8022, %v8021
      %v8136 = vpack.c.b16 %v8024, %v8023
      %v8137 = vpack.c.b16 %v8026, %v8025
      %v8138 = vpack.c.b16 %v8028, %v8027
      %v8139 = vpack.c.b16 %v8030, %v8029
      %v8140 = vpack.c.b16 %v8032, %v8031
      %v8141 = vpack.c.b16 %v8034, %v8033
      %v8142 = vpack.c.b16 %v8036, %v8035
      %v8143 = vpack.c.b16 %v8038, %v8037
      %v8144 = vpack.c.b16 %v8040, %v8039
      %v8145 = vpack.c.b16 %v8042, %v8041
      %v8146 = vpack.c.b16 %v8044, %v8043
      %v8147 = vpack.c.b16 %v8046, %v8045
      %v8148 = vpack.c.b16 %v8048, %v8047
      %v8149 = vpack.c.b16 %v8050, %v8049
      %v8150 = vpack.c.b16 %v8052, %v8051
      %v8151 = vpack.c.b16 %v8054, %v8053
      %v8152 = vpack.c.b16 %v8056, %v8055
      %v8153 = vpack.c.b16 %v8058, %v8057
      %v8154 = vpack.c.b16 %v8060, %v8059
      %v8155 = vpack.c.b16 %v8062, %v8061
      %v8156 = vpack.c.b16 %v8064, %v8063
      %v8157 = vpack.c.b16 %v8066, %v8065
      %v8158 = vpack.c.b16 %v8068, %v8067
      %v8159 = vpack.c.b16 %v8070, %v8069
      %v8160 = vpack.c.b16 %v8072, %v8071
      %v8161 = vpack.c.b16 %v8074, %v8073
      %v8162 = vpack.c.b16 %v8076, %v8075
      %v8163 = vpack.c.b16 %v8078, %v8077
      %v8164 = vpack.c.b16 %v8080, %v8079
      %v8165 = vpack.c.b16 %v8082, %v8081
      %v8166 = vpack.c.b16 %v8084, %v8083
      %v8167 = vpack.c.b16 %v8086, %v8085
      %v8168 = vpack.c.b16 %v8088, %v8087
      %v8169 = vpack.c.b16 %v8090, %v8089
      %v8170 = vpack.c.b16 %v8092, %v8091
      %v8171 = vpack.c.b16 %v8094, %v8093
      %v8172 = vpack.c.b16 %v8096, %v8095
      %v8173 = vpack.c.b16 %v8098, %v8097
      %v8174 = vpack.c.b16 %v8100, %v8099
      %v8175 = vpack.c.b16 %v8102, %v8101
      %v8176 = vpack.c.b16 %v8104, %v8103
      %8249 = vmatprep.subr.bf16.mxu0 0
      %8250 = vmatpush1.bf16.msra.mxu0 %v8105
      %8251 = vmatprep.subr.bf16.mxu0 0
      %8252 = vmatpush1.bf16.msra.mxu0 %v8106
      %8253 = vmatprep.subr.bf16.mxu0 0
      %8254 = vmatpush1.bf16.msra.mxu0 %v8107
      %8255 = vmatprep.subr.bf16.mxu0 0
      %8256 = vmatpush1.bf16.msra.mxu0 %v8108
      %8257 = vmatprep.subr.bf16.mxu0 0
      %8258 = vmatpush1.bf16.msra.mxu0 %v8109
      %8259 = vmatprep.subr.bf16.mxu0 0
      %8260 = vmatpush1.bf16.msra.mxu0 %v8110
      %8261 = vmatprep.subr.bf16.mxu0 0
      %8262 = vmatpush1.bf16.msra.mxu0 %v8111
      %8263 = vmatprep.subr.bf16.mxu0 0
      %8264 = vmatpush1.bf16.msra.mxu0 %v8112
      %8265 = vmatprep.subr.bf16.mxu0 0
      %8266 = vmatpush1.bf16.msra.mxu0 %v8113
      %8267 = vmatprep.subr.bf16.mxu0 0
      %8268 = vmatpush1.bf16.msra.mxu0 %v8114
      %8269 = vmatprep.subr.bf16.mxu0 0
      %8270 = vmatpush1.bf16.msra.mxu0 %v8115
      %8271 = vmatprep.subr.bf16.mxu0 0
      %8272 = vmatpush1.bf16.msra.mxu0 %v8116
      %8273 = vmatprep.subr.bf16.mxu0 0
      %8274 = vmatpush1.bf16.msra.mxu0 %v8117
      %8275 = vmatprep.subr.bf16.mxu0 0
      %8276 = vmatpush1.bf16.msra.mxu0 %v8118
      %8277 = vmatprep.subr.bf16.mxu0 0
      %8278 = vmatpush1.bf16.msra.mxu0 %v8119
      %8279 = vmatprep.subr.bf16.mxu0 0
      %8280 = vmatpush1.bf16.msra.mxu0 %v8120
      %8281 = vmatprep.mubr.bf16.mxu0 %v7161
      %8282 = vmatmul.mubr.bf16.gmra.mrb[0].mxu0 %v7097
      %v8283 = vpop.f32.mrb[0].mxu0
      %v8284 = vadd.f32 0.0, %v8283
      %v8285 = vpop.f32.mrb[0].mxu0
      %v8286 = vpop.f32.mrb[0].mxu0
      %v8287 = vadd.f32 0.0, %v8286
      %v8288 = vpop.f32.mrb[0].mxu0
      %8289 = vmatprep.mubr.bf16.mxu0 %v7162
      %8290 = vmatmul.mubr.bf16.gmra.mrb[0].mxu0 %v7098
      %v8291 = vpop.f32.mrb[0].mxu0
      %v8292 = vadd.f32 0.0, %v8291
      %v8293 = vpop.f32.mrb[0].mxu0
      %v8294 = vpop.f32.mrb[0].mxu0
      %v8295 = vadd.f32 0.0, %v8294
      %v8296 = vpop.f32.mrb[0].mxu0
      %8297 = vmatprep.mubr.bf16.mxu0 %v7163
      %8298 = vmatmul.mubr.bf16.gmra.mrb[0].mxu0 %v7099
      %v8299 = vpop.f32.mrb[0].mxu0
      %v8300 = vadd.f32 0.0, %v8299
      %v8301 = vpop.f32.mrb[0].mxu0
      %v8302 = vpop.f32.mrb[0].mxu0
      %v8303 = vadd.f32 0.0, %v8302
      %v8304 = vpop.f32.mrb[0].mxu0
      %8305 = vmatprep.mubr.bf16.mxu0 %v7164
      %8306 = vmatmul.mubr.bf16.gmra.mrb[0].mxu0 %v7100
      %v8307 = vpop.f32.mrb[0].mxu0
      %v8308 = vadd.f32 0.0, %v8307
      %v8309 = vpop.f32.mrb[0].mxu0
      %v8310 = vpop.f32.mrb[0].mxu0
      %v8311 = vadd.f32 0.0, %v8310
      %v8312 = vpop.f32.mrb[0].mxu0
      %8313 = vmatprep.mubr.bf16.mxu0 %v7165
      %8314 = vmatmul.mubr.bf16.gmra.mrb[0].mxu0 %v7101
      %v8315 = vpop.f32.mrb[0].mxu0
      %v8316 = vadd.f32 0.0, %v8315
      %v8317 = vpop.f32.mrb[0].mxu0
      %v8318 = vpop.f32.mrb[0].mxu0
      %v8319 = vadd.f32 0.0, %v8318
      %v8320 = vpop.f32.mrb[0].mxu0
      %8321 = vmatprep.mubr.bf16.mxu0 %v7166
      %8322 = vmatmul.mubr.bf16.gmra.mrb[0].mxu0 %v7102
      %v8323 = vpop.f32.mrb[0].mxu0
      %v8324 = vadd.f32 0.0, %v8323
      %v8325 = vpop.f32.mrb[0].mxu0
      %v8326 = vpop.f32.mrb[0].mxu0
      %v8327 = vadd.f32 0.0, %v8326
      %v8328 = vpop.f32.mrb[0].mxu0
      %8329 = vmatprep.mubr.bf16.mxu0 %v7167
      %8330 = vmatmul.mubr.bf16.gmra.mrb[0].mxu0 %v7103
      %v8331 = vpop.f32.mrb[0].mxu0
      %v8332 = vadd.f32 0.0, %v8331
      %v8333 = vpop.f32.mrb[0].mxu0
      %v8334 = vpop.f32.mrb[0].mxu0
      %v8335 = vadd.f32 0.0, %v8334
      %v8336 = vpop.f32.mrb[0].mxu0
      %8337 = vmatprep.mubr.bf16.mxu0 %v7168
      %8338 = vmatmul.mubr.bf16.gmra.mrb[0].mxu0 %v7104
      %v8339 = vpop.f32.mrb[0].mxu0
      %v8340 = vadd.f32 0.0, %v8339
      %v8341 = vpop.f32.mrb[0].mxu0
      %v8342 = vpop.f32.mrb[0].mxu0
      %v8343 = vadd.f32 0.0, %v8342
      %v8344 = vpop.f32.mrb[0].mxu0
      %8345 = vmatprep.mubr.bf16.mxu0 %v7169
      %8346 = vmatmul.mubr.bf16.gmra.mrb[0].mxu0 %v7105
      %v8347 = vpop.f32.mrb[0].mxu0
      %v8348 = vadd.f32 0.0, %v8347
      %v8349 = vpop.f32.mrb[0].mxu0
      %v8350 = vpop.f32.mrb[0].mxu0
      %v8351 = vadd.f32 0.0, %v8350
      %v8352 = vpop.f32.mrb[0].mxu0
      %8353 = vmatprep.mubr.bf16.mxu0 %v7170
      %8354 = vmatmul.mubr.bf16.gmra.mrb[0].mxu0 %v7106
      %v8355 = vpop.f32.mrb[0].mxu0
      %v8356 = vadd.f32 0.0, %v8355
      %v8357 = vpop.f32.mrb[0].mxu0
      %v8358 = vpop.f32.mrb[0].mxu0
      %v8359 = vadd.f32 0.0, %v8358
      %v8360 = vpop.f32.mrb[0].mxu0
      %8361 = vmatprep.mubr.bf16.mxu0 %v7171
      %8362 = vmatmul.mubr.bf16.gmra.mrb[0].mxu0 %v7107
      %v8363 = vpop.f32.mrb[0].mxu0
      %v8364 = vadd.f32 0.0, %v8363
      %v8365 = vpop.f32.mrb[0].mxu0
      %v8366 = vpop.f32.mrb[0].mxu0
      %v8367 = vadd.f32 0.0, %v8366
      %v8368 = vpop.f32.mrb[0].mxu0
      %8369 = vmatprep.mubr.bf16.mxu0 %v7172
      %8370 = vmatmul.mubr.bf16.gmra.mrb[0].mxu0 %v7108
      %v8371 = vpop.f32.mrb[0].mxu0
      %v8372 = vadd.f32 0.0, %v8371
      %v8373 = vpop.f32.mrb[0].mxu0
      %v8374 = vpop.f32.mrb[0].mxu0
      %v8375 = vadd.f32 0.0, %v8374
      %v8376 = vpop.f32.mrb[0].mxu0
      %8377 = vmatprep.mubr.bf16.mxu0 %v7173
      %8378 = vmatmul.mubr.bf16.gmra.mrb[0].mxu0 %v7109
      %v8379 = vpop.f32.mrb[0].mxu0
      %v8380 = vadd.f32 0.0, %v8379
      %v8381 = vpop.f32.mrb[0].mxu0
      %v8382 = vpop.f32.mrb[0].mxu0
      %v8383 = vadd.f32 0.0, %v8382
      %v8384 = vpop.f32.mrb[0].mxu0
      %8385 = vmatprep.mubr.bf16.mxu0 %v7174
      %8386 = vmatmul.mubr.bf16.gmra.mrb[0].mxu0 %v7110
      %v8387 = vpop.f32.mrb[0].mxu0
      %v8388 = vadd.f32 0.0, %v8387
      %v8389 = vpop.f32.mrb[0].mxu0
      %v8390 = vpop.f32.mrb[0].mxu0
      %v8391 = vadd.f32 0.0, %v8390
      %v8392 = vpop.f32.mrb[0].mxu0
      %8393 = vmatprep.mubr.bf16.mxu0 %v7175
      %8394 = vmatmul.mubr.bf16.gmra.mrb[0].mxu0 %v7111
      %v8395 = vpop.f32.mrb[0].mxu0
      %v8396 = vadd.f32 0.0, %v8395
      %v8397 = vpop.f32.mrb[0].mxu0
      %v8398 = vpop.f32.mrb[0].mxu0
      %v8399 = vadd.f32 0.0, %v8398
      %v8400 = vpop.f32.mrb[0].mxu0
      %8401 = vmatprep.mubr.bf16.mxu0 %v7176
      %8402 = vmatmul.mubr.bf16.gmra.mrb[0].mxu0 %v7112
      %v8403 = vpop.f32.mrb[0].mxu0
      %v8404 = vadd.f32 0.0, %v8403
      %v8405 = vpop.f32.mrb[0].mxu0
      %v8406 = vpop.f32.mrb[0].mxu0
      %v8407 = vadd.f32 0.0, %v8406
      %v8408 = vpop.f32.mrb[0].mxu0
      %8409 = vdwg.mxu0
      %8410 = vmatprep.subr.bf16.mxu0 0
      %8411 = vmatpush1.bf16.msra.mxu0 %v8121
      %8412 = vmatprep.subr.bf16.mxu0 0
      %8413 = vmatpush1.bf16.msra.mxu0 %v8122
      %8414 = vmatprep.subr.bf16.mxu0 0
      %8415 = vmatpush1.bf16.msra.mxu0 %v8123
      %8416 = vmatprep.subr.bf16.mxu0 0
      %8417 = vmatpush1.bf16.msra.mxu0 %v8124
      %8418 = vmatprep.subr.bf16.mxu0 0
      %8419 = vmatpush1.bf16.msra.mxu0 %v8125
      %8420 = vmatprep.subr.bf16.mxu0 0
      %8421 = vmatpush1.bf16.msra.mxu0 %v8126
      %8422 = vmatprep.subr.bf16.mxu0 0
      %8423 = vmatpush1.bf16.msra.mxu0 %v8127
      %8424 = vmatprep.subr.bf16.mxu0 0
      %8425 = vmatpush1.bf16.msra.mxu0 %v8128
      %8426 = vmatprep.subr.bf16.mxu0 0
      %8427 = vmatpush1.bf16.msra.mxu0 %v8129
      %8428 = vmatprep.subr.bf16.mxu0 0
      %8429 = vmatpush1.bf16.msra.mxu0 %v8130
      %8430 = vmatprep.subr.bf16.mxu0 0
      %8431 = vmatpush1.bf16.msra.mxu0 %v8131
      %8432 = vmatprep.subr.bf16.mxu0 0
      %8433 = vmatpush1.bf16.msra.mxu0 %v8132
      %8434 = vmatprep.subr.bf16.mxu0 0
      %8435 = vmatpush1.bf16.msra.mxu0 %v8133
      %8436 = vmatprep.subr.bf16.mxu0 0
      %8437 = vmatpush1.bf16.msra.mxu0 %v8134
      %8438 = vmatprep.subr.bf16.mxu0 0
      %8439 = vmatpush1.bf16.msra.mxu0 %v8135
      %8440 = vmatprep.subr.bf16.mxu0 0
      %8441 = vmatpush1.bf16.msra.mxu0 %v8136
      %8442 = vmatprep.mubr.bf16.mxu0 %v7305
      %8443 = vmatmul.mubr.bf16.gmra.mrb[0].mxu0 %v7225
      %v8444 = vpop.f32.mrb[0].mxu0
      %v8445 = vadd.f32 %v8284, %v8444
      %v8446 = vpop.f32.mrb[0].mxu0
      %v8447 = vpop.f32.mrb[0].mxu0
      %v8448 = vadd.f32 %v8287, %v8447
      %v8449 = vpop.f32.mrb[0].mxu0
      %8450 = vmatprep.mubr.bf16.mxu0 %v7306
      %8451 = vmatmul.mubr.bf16.gmra.mrb[0].mxu0 %v7226
      %v8452 = vpop.f32.mrb[0].mxu0
      %v8453 = vadd.f32 %v8292, %v8452
      %v8454 = vpop.f32.mrb[0].mxu0
      %v8455 = vpop.f32.mrb[0].mxu0
      %v8456 = vadd.f32 %v8295, %v8455
      %v8457 = vpop.f32.mrb[0].mxu0
      %8458 = vmatprep.mubr.bf16.mxu0 %v7307
      %8459 = vmatmul.mubr.bf16.gmra.mrb[0].mxu0 %v7227
      %v8460 = vpop.f32.mrb[0].mxu0
      %v8461 = vadd.f32 %v8300, %v8460
      %v8462 = vpop.f32.mrb[0].mxu0
      %v8463 = vpop.f32.mrb[0].mxu0
      %v8464 = vadd.f32 %v8303, %v8463
      %v8465 = vpop.f32.mrb[0].mxu0
      %8466 = vmatprep.mubr.bf16.mxu0 %v7308
      %8467 = vmatmul.mubr.bf16.gmra.mrb[0].mxu0 %v7228
      %v8468 = vpop.f32.mrb[0].mxu0
      %v8469 = vadd.f32 %v8308, %v8468
      %v8470 = vpop.f32.mrb[0].mxu0
      %v8471 = vpop.f32.mrb[0].mxu0
      %v8472 = vadd.f32 %v8311, %v8471
      %v8473 = vpop.f32.mrb[0].mxu0
      %8474 = vmatprep.mubr.bf16.mxu0 %v7309
      %8475 = vmatmul.mubr.bf16.gmra.mrb[0].mxu0 %v7229
      %v8476 = vpop.f32.mrb[0].mxu0
      %v8477 = vadd.f32 %v8316, %v8476
      %v8478 = vpop.f32.mrb[0].mxu0
      %v8479 = vpop.f32.mrb[0].mxu0
      %v8480 = vadd.f32 %v8319, %v8479
      %v8481 = vpop.f32.mrb[0].mxu0
      %8482 = vmatprep.mubr.bf16.mxu0 %v7310
      %8483 = vmatmul.mubr.bf16.gmra.mrb[0].mxu0 %v7230
      %v8484 = vpop.f32.mrb[0].mxu0
      %v8485 = vadd.f32 %v8324, %v8484
      %v8486 = vpop.f32.mrb[0].mxu0
      %v8487 = vpop.f32.mrb[0].mxu0
      %v8488 = vadd.f32 %v8327, %v8487
      %v8489 = vpop.f32.mrb[0].mxu0
      %8490 = vmatprep.mubr.bf16.mxu0 %v7311
      %8491 = vmatmul.mubr.bf16.gmra.mrb[0].mxu0 %v7231
      %v8492 = vpop.f32.mrb[0].mxu0
      %v8493 = vadd.f32 %v8332, %v8492
      %v8494 = vpop.f32.mrb[0].mxu0
      %v8495 = vpop.f32.mrb[0].mxu0
      %v8496 = vadd.f32 %v8335, %v8495
      %v8497 = vpop.f32.mrb[0].mxu0
      %8498 = vmatprep.mubr.bf16.mxu0 %v7312
      %8499 = vmatmul.mubr.bf16.gmra.mrb[0].mxu0 %v7232
      %v8500 = vpop.f32.mrb[0].mxu0
      %v8501 = vadd.f32 %v8340, %v8500
      %v8502 = vpop.f32.mrb[0].mxu0
      %v8503 = vpop.f32.mrb[0].mxu0
      %v8504 = vadd.f32 %v8343, %v8503
      %v8505 = vpop.f32.mrb[0].mxu0
      %8506 = vmatprep.mubr.bf16.mxu0 %v7313
      %8507 = vmatmul.mubr.bf16.gmra.mrb[0].mxu0 %v7233
      %v8508 = vpop.f32.mrb[0].mxu0
      %v8509 = vadd.f32 %v8348, %v8508
      %v8510 = vpop.f32.mrb[0].mxu0
      %v8511 = vpop.f32.mrb[0].mxu0
      %v8512 = vadd.f32 %v8351, %v8511
      %v8513 = vpop.f32.mrb[0].mxu0
      %8514 = vmatprep.mubr.bf16.mxu0 %v7314
      %8515 = vmatmul.mubr.bf16.gmra.mrb[0].mxu0 %v7234
      %v8516 = vpop.f32.mrb[0].mxu0
      %v8517 = vadd.f32 %v8356, %v8516
      %v8518 = vpop.f32.mrb[0].mxu0
      %v8519 = vpop.f32.mrb[0].mxu0
      %v8520 = vadd.f32 %v8359, %v8519
      %v8521 = vpop.f32.mrb[0].mxu0
      %8522 = vmatprep.mubr.bf16.mxu0 %v7315
      %8523 = vmatmul.mubr.bf16.gmra.mrb[0].mxu0 %v7235
      %v8524 = vpop.f32.mrb[0].mxu0
      %v8525 = vadd.f32 %v8364, %v8524
      %v8526 = vpop.f32.mrb[0].mxu0
      %v8527 = vpop.f32.mrb[0].mxu0
      %v8528 = vadd.f32 %v8367, %v8527
      %v8529 = vpop.f32.mrb[0].mxu0
      %8530 = vmatprep.mubr.bf16.mxu0 %v7316
      %8531 = vmatmul.mubr.bf16.gmra.mrb[0].mxu0 %v7236
      %v8532 = vpop.f32.mrb[0].mxu0
      %v8533 = vadd.f32 %v8372, %v8532
      %v8534 = vpop.f32.mrb[0].mxu0
      %v8535 = vpop.f32.mrb[0].mxu0
      %v8536 = vadd.f32 %v8375, %v8535
      %v8537 = vpop.f32.mrb[0].mxu0
      %8538 = vmatprep.mubr.bf16.mxu0 %v7317
      %8539 = vmatmul.mubr.bf16.gmra.mrb[0].mxu0 %v7237
      %v8540 = vpop.f32.mrb[0].mxu0
      %v8541 = vadd.f32 %v8380, %v8540
      %v8542 = vpop.f32.mrb[0].mxu0
      %v8543 = vpop.f32.mrb[0].mxu0
      %v8544 = vadd.f32 %v8383, %v8543
      %v8545 = vpop.f32.mrb[0].mxu0
      %8546 = vmatprep.mubr.bf16.mxu0 %v7318
      %8547 = vmatmul.mubr.bf16.gmra.mrb[0].mxu0 %v7238
      %v8548 = vpop.f32.mrb[0].mxu0
      %v8549 = vadd.f32 %v8388, %v8548
      %v8550 = vpop.f32.mrb[0].mxu0
      %v8551 = vpop.f32.mrb[0].mxu0
      %v8552 = vadd.f32 %v8391, %v8551
      %v8553 = vpop.f32.mrb[0].mxu0
      %8554 = vmatprep.mubr.bf16.mxu0 %v7319
      %8555 = vmatmul.mubr.bf16.gmra.mrb[0].mxu0 %v7239
      %v8556 = vpop.f32.mrb[0].mxu0
      %v8557 = vadd.f32 %v8396, %v8556
      %v8558 = vpop.f32.mrb[0].mxu0
      %v8559 = vpop.f32.mrb[0].mxu0
      %v8560 = vadd.f32 %v8399, %v8559
      %v8561 = vpop.f32.mrb[0].mxu0
      %8562 = vmatprep.mubr.bf16.mxu0 %v7320
      %8563 = vmatmul.mubr.bf16.gmra.mrb[0].mxu0 %v7240
      %v8564 = vpop.f32.mrb[0].mxu0
      %v8565 = vadd.f32 %v8404, %v8564
      %v8566 = vpop.f32.mrb[0].mxu0
      %v8567 = vpop.f32.mrb[0].mxu0
      %v8568 = vadd.f32 %v8407, %v8567
      %v8569 = vpop.f32.mrb[0].mxu0
      %8570 = vdwg.mxu0
      %8571 = vmatprep.subr.bf16.mxu0 0
      %8572 = vmatpush1.bf16.msra.mxu0 %v8137
      %8573 = vmatprep.subr.bf16.mxu0 0
      %8574 = vmatpush1.bf16.msra.mxu0 %v8138
      %8575 = vmatprep.subr.bf16.mxu0 0
      %8576 = vmatpush1.bf16.msra.mxu0 %v8139
      %8577 = vmatprep.subr.bf16.mxu0 0
      %8578 = vmatpush1.bf16.msra.mxu0 %v8140
      %8579 = vmatprep.subr.bf16.mxu0 0
      %8580 = vmatpush1.bf16.msra.mxu0 %v8141
      %8581 = vmatprep.subr.bf16.mxu0 0
      %8582 = vmatpush1.bf16.msra.mxu0 %v8142
      %8583 = vmatprep.subr.bf16.mxu0 0
      %8584 = vmatpush1.bf16.msra.mxu0 %v8143
      %8585 = vmatprep.subr.bf16.mxu0 0
      %8586 = vmatpush1.bf16.msra.mxu0 %v8144
      %8587 = vmatprep.subr.bf16.mxu0 0
      %8588 = vmatpush1.bf16.msra.mxu0 %v8145
      %8589 = vmatprep.subr.bf16.mxu0 0
      %8590 = vmatpush1.bf16.msra.mxu0 %v8146
      %8591 = vmatprep.subr.bf16.mxu0 0
      %8592 = vmatpush1.bf16.msra.mxu0 %v8147
      %8593 = vmatprep.subr.bf16.mxu0 0
      %8594 = vmatpush1.bf16.msra.mxu0 %v8148
      %8595 = vmatprep.subr.bf16.mxu0 0
      %8596 = vmatpush1.bf16.msra.mxu0 %v8149
      %8597 = vmatprep.subr.bf16.mxu0 0
      %8598 = vmatpush1.bf16.msra.mxu0 %v8150
      %8599 = vmatprep.subr.bf16.mxu0 0
      %8600 = vmatpush1.bf16.msra.mxu0 %v8151
      %8601 = vmatprep.subr.bf16.mxu0 0
      %8602 = vmatpush1.bf16.msra.mxu0 %v8152
      %8603 = vmatprep.mubr.bf16.mxu0 %v7433
      %8604 = vmatmul.mubr.bf16.gmra.mrb[0].mxu0 %v7369
      %v8605 = vpop.f32.mrb[0].mxu0
      %v8606 = vadd.f32 %v8445, %v8605
      %v8607 = vpop.f32.mrb[0].mxu0
      %v8608 = vpop.f32.mrb[0].mxu0
      %v8609 = vadd.f32 %v8448, %v8608
      %v8610 = vpop.f32.mrb[0].mxu0
      %8611 = vmatprep.mubr.bf16.mxu0 %v7434
      %8612 = vmatmul.mubr.bf16.gmra.mrb[0].mxu0 %v7370
      %v8613 = vpop.f32.mrb[0].mxu0
      %v8614 = vadd.f32 %v8453, %v8613
      %v8615 = vpop.f32.mrb[0].mxu0
      %v8616 = vpop.f32.mrb[0].mxu0
      %v8617 = vadd.f32 %v8456, %v8616
      %v8618 = vpop.f32.mrb[0].mxu0
      %8619 = vmatprep.mubr.bf16.mxu0 %v7435
      %8620 = vmatmul.mubr.bf16.gmra.mrb[0].mxu0 %v7371
      %v8621 = vpop.f32.mrb[0].mxu0
      %v8622 = vadd.f32 %v8461, %v8621
      %v8623 = vpop.f32.mrb[0].mxu0
      %v8624 = vpop.f32.mrb[0].mxu0
      %v8625 = vadd.f32 %v8464, %v8624
      %v8626 = vpop.f32.mrb[0].mxu0
      %8627 = vmatprep.mubr.bf16.mxu0 %v7436
      %8628 = vmatmul.mubr.bf16.gmra.mrb[0].mxu0 %v7372
      %v8629 = vpop.f32.mrb[0].mxu0
      %v8630 = vadd.f32 %v8469, %v8629
      %v8631 = vpop.f32.mrb[0].mxu0
      %v8632 = vpop.f32.mrb[0].mxu0
      %v8633 = vadd.f32 %v8472, %v8632
      %v8634 = vpop.f32.mrb[0].mxu0
      %8635 = vmatprep.mubr.bf16.mxu0 %v7437
      %8636 = vmatmul.mubr.bf16.gmra.mrb[0].mxu0 %v7373
      %v8637 = vpop.f32.mrb[0].mxu0
      %v8638 = vadd.f32 %v8477, %v8637
      %v8639 = vpop.f32.mrb[0].mxu0
      %v8640 = vpop.f32.mrb[0].mxu0
      %v8641 = vadd.f32 %v8480, %v8640
      %v8642 = vpop.f32.mrb[0].mxu0
      %8643 = vmatprep.mubr.bf16.mxu0 %v7438
      %8644 = vmatmul.mubr.bf16.gmra.mrb[0].mxu0 %v7374
      %v8645 = vpop.f32.mrb[0].mxu0
      %v8646 = vadd.f32 %v8485, %v8645
      %v8647 = vpop.f32.mrb[0].mxu0
      %v8648 = vpop.f32.mrb[0].mxu0
      %v8649 = vadd.f32 %v8488, %v8648
      %v8650 = vpop.f32.mrb[0].mxu0
      %8651 = vmatprep.mubr.bf16.mxu0 %v7439
      %8652 = vmatmul.mubr.bf16.gmra.mrb[0].mxu0 %v7375
      %v8653 = vpop.f32.mrb[0].mxu0
      %v8654 = vadd.f32 %v8493, %v8653
      %v8655 = vpop.f32.mrb[0].mxu0
      %v8656 = vpop.f32.mrb[0].mxu0
      %v8657 = vadd.f32 %v8496, %v8656
      %v8658 = vpop.f32.mrb[0].mxu0
      %8659 = vmatprep.mubr.bf16.mxu0 %v7440
      %8660 = vmatmul.mubr.bf16.gmra.mrb[0].mxu0 %v7376
      %v8661 = vpop.f32.mrb[0].mxu0
      %v8662 = vadd.f32 %v8501, %v8661
      %v8663 = vpop.f32.mrb[0].mxu0
      %v8664 = vpop.f32.mrb[0].mxu0
      %v8665 = vadd.f32 %v8504, %v8664
      %v8666 = vpop.f32.mrb[0].mxu0
      %8667 = vmatprep.mubr.bf16.mxu0 %v7441
      %8668 = vmatmul.mubr.bf16.gmra.mrb[0].mxu0 %v7377
      %v8669 = vpop.f32.mrb[0].mxu0
      %v8670 = vadd.f32 %v8509, %v8669
      %v8671 = vpop.f32.mrb[0].mxu0
      %v8672 = vpop.f32.mrb[0].mxu0
      %v8673 = vadd.f32 %v8512, %v8672
      %v8674 = vpop.f32.mrb[0].mxu0
      %8675 = vmatprep.mubr.bf16.mxu0 %v7442
      %8676 = vmatmul.mubr.bf16.gmra.mrb[0].mxu0 %v7378
      %v8677 = vpop.f32.mrb[0].mxu0
      %v8678 = vadd.f32 %v8517, %v8677
      %v8679 = vpop.f32.mrb[0].mxu0
      %v8680 = vpop.f32.mrb[0].mxu0
      %v8681 = vadd.f32 %v8520, %v8680
      %v8682 = vpop.f32.mrb[0].mxu0
      %8683 = vmatprep.mubr.bf16.mxu0 %v7443
      %8684 = vmatmul.mubr.bf16.gmra.mrb[0].mxu0 %v7379
      %v8685 = vpop.f32.mrb[0].mxu0
      %v8686 = vadd.f32 %v8525, %v8685
      %v8687 = vpop.f32.mrb[0].mxu0
      %v8688 = vpop.f32.mrb[0].mxu0
      %v8689 = vadd.f32 %v8528, %v8688
      %v8690 = vpop.f32.mrb[0].mxu0
      %8691 = vmatprep.mubr.bf16.mxu0 %v7444
      %8692 = vmatmul.mubr.bf16.gmra.mrb[0].mxu0 %v7380
      %v8693 = vpop.f32.mrb[0].mxu0
      %v8694 = vadd.f32 %v8533, %v8693
      %v8695 = vpop.f32.mrb[0].mxu0
      %v8696 = vpop.f32.mrb[0].mxu0
      %v8697 = vadd.f32 %v8536, %v8696
      %v8698 = vpop.f32.mrb[0].mxu0
      %8699 = vmatprep.mubr.bf16.mxu0 %v7445
      %8700 = vmatmul.mubr.bf16.gmra.mrb[0].mxu0 %v7381
      %v8701 = vpop.f32.mrb[0].mxu0
      %v8702 = vadd.f32 %v8541, %v8701
      %v8703 = vpop.f32.mrb[0].mxu0
      %v8704 = vpop.f32.mrb[0].mxu0
      %v8705 = vadd.f32 %v8544, %v8704
      %v8706 = vpop.f32.mrb[0].mxu0
      %8707 = vmatprep.mubr.bf16.mxu0 %v7446
      %8708 = vmatmul.mubr.bf16.gmra.mrb[0].mxu0 %v7382
      %v8709 = vpop.f32.mrb[0].mxu0
      %v8710 = vadd.f32 %v8549, %v8709
      %v8711 = vpop.f32.mrb[0].mxu0
      %v8712 = vpop.f32.mrb[0].mxu0
      %v8713 = vadd.f32 %v8552, %v8712
      %v8714 = vpop.f32.mrb[0].mxu0
      %8715 = vmatprep.mubr.bf16.mxu0 %v7447
      %8716 = vmatmul.mubr.bf16.gmra.mrb[0].mxu0 %v7383
      %v8717 = vpop.f32.mrb[0].mxu0
      %v8718 = vadd.f32 %v8557, %v8717
      %v8719 = vpop.f32.mrb[0].mxu0
      %v8720 = vpop.f32.mrb[0].mxu0
      %v8721 = vadd.f32 %v8560, %v8720
      %v8722 = vpop.f32.mrb[0].mxu0
      %8723 = vmatprep.mubr.bf16.mxu0 %v7448
      %8724 = vmatmul.mubr.bf16.gmra.mrb[0].mxu0 %v7384
      %v8725 = vpop.f32.mrb[0].mxu0
      %v8726 = vadd.f32 %v8565, %v8725
      %v8727 = vpop.f32.mrb[0].mxu0
      %v8728 = vpop.f32.mrb[0].mxu0
      %v8729 = vadd.f32 %v8568, %v8728
      %v8730 = vpop.f32.mrb[0].mxu0
      %8731 = vdwg.mxu0
      %8732 = vmatprep.subr.bf16.mxu0 0
      %8733 = vmatpush1.bf16.msra.mxu0 %v8153
      %8734 = vmatprep.subr.bf16.mxu0 0
      %8735 = vmatpush1.bf16.msra.mxu0 %v8154
      %8736 = vmatprep.subr.bf16.mxu0 0
      %8737 = vmatpush1.bf16.msra.mxu0 %v8155
      %8738 = vmatprep.subr.bf16.mxu0 0
      %8739 = vmatpush1.bf16.msra.mxu0 %v8156
      %8740 = vmatprep.subr.bf16.mxu0 0
      %8741 = vmatpush1.bf16.msra.mxu0 %v8157
      %8742 = vmatprep.subr.bf16.mxu0 0
      %8743 = vmatpush1.bf16.msra.mxu0 %v8158
      %8744 = vmatprep.subr.bf16.mxu0 0
      %8745 = vmatpush1.bf16.msra.mxu0 %v8159
      %8746 = vmatprep.subr.bf16.mxu0 0
      %8747 = vmatpush1.bf16.msra.mxu0 %v8160
      %8748 = vmatprep.subr.bf16.mxu0 0
      %8749 = vmatpush1.bf16.msra.mxu0 %v8161
      %8750 = vmatprep.subr.bf16.mxu0 0
      %8751 = vmatpush1.bf16.msra.mxu0 %v8162
      %8752 = vmatprep.subr.bf16.mxu0 0
      %8753 = vmatpush1.bf16.msra.mxu0 %v8163
      %8754 = vmatprep.subr.bf16.mxu0 0
      %8755 = vmatpush1.bf16.msra.mxu0 %v8164
      %8756 = vmatprep.subr.bf16.mxu0 0
      %8757 = vmatpush1.bf16.msra.mxu0 %v8165
      %8758 = vmatprep.subr.bf16.mxu0 0
      %8759 = vmatpush1.bf16.msra.mxu0 %v8166
      %8760 = vmatprep.subr.bf16.mxu0 0
      %8761 = vmatpush1.bf16.msra.mxu0 %v8167
      %8762 = vmatprep.subr.bf16.mxu0 0
      %8763 = vmatpush1.bf16.msra.mxu0 %v8168
      %8764 = vmatprep.mubr.bf16.mxu0 %v7577
      %8765 = vmatmul.mubr.bf16.gmra.mrb[0].mxu0 %v7513
      %v8766 = vpop.f32.mrb[0].mxu0
      %v8767 = vadd.f32 %v8606, %v8766
      %v8768 = vpop.f32.mrb[0].mxu0
      %v8769 = vpop.f32.mrb[0].mxu0
      %v8770 = vadd.f32 %v8609, %v8769
      %v8771 = vpop.f32.mrb[0].mxu0
      %8772 = vmatprep.mubr.bf16.mxu0 %v7578
      %8773 = vmatmul.mubr.bf16.gmra.mrb[0].mxu0 %v7514
      %v8774 = vpop.f32.mrb[0].mxu0
      %v8775 = vadd.f32 %v8614, %v8774
      %v8776 = vpop.f32.mrb[0].mxu0
      %v8777 = vpop.f32.mrb[0].mxu0
      %v8778 = vadd.f32 %v8617, %v8777
      %v8779 = vpop.f32.mrb[0].mxu0
      %8780 = vmatprep.mubr.bf16.mxu0 %v7579
      %8781 = vmatmul.mubr.bf16.gmra.mrb[0].mxu0 %v7515
      %v8782 = vpop.f32.mrb[0].mxu0
      %v8783 = vadd.f32 %v8622, %v8782
      %v8784 = vpop.f32.mrb[0].mxu0
      %v8785 = vpop.f32.mrb[0].mxu0
      %v8786 = vadd.f32 %v8625, %v8785
      %v8787 = vpop.f32.mrb[0].mxu0
      %8788 = vmatprep.mubr.bf16.mxu0 %v7580
      %8789 = vmatmul.mubr.bf16.gmra.mrb[0].mxu0 %v7516
      %v8790 = vpop.f32.mrb[0].mxu0
      %v8791 = vadd.f32 %v8630, %v8790
      %v8792 = vpop.f32.mrb[0].mxu0
      %v8793 = vpop.f32.mrb[0].mxu0
      %v8794 = vadd.f32 %v8633, %v8793
      %v8795 = vpop.f32.mrb[0].mxu0
      %8796 = vmatprep.mubr.bf16.mxu0 %v7581
      %8797 = vmatmul.mubr.bf16.gmra.mrb[0].mxu0 %v7517
      %v8798 = vpop.f32.mrb[0].mxu0
      %v8799 = vadd.f32 %v8638, %v8798
      %v8800 = vpop.f32.mrb[0].mxu0
      %v8801 = vpop.f32.mrb[0].mxu0
      %v8802 = vadd.f32 %v8641, %v8801
      %v8803 = vpop.f32.mrb[0].mxu0
      %8804 = vmatprep.mubr.bf16.mxu0 %v7582
      %8805 = vmatmul.mubr.bf16.gmra.mrb[0].mxu0 %v7518
      %v8806 = vpop.f32.mrb[0].mxu0
      %v8807 = vadd.f32 %v8646, %v8806
      %v8808 = vpop.f32.mrb[0].mxu0
      %v8809 = vpop.f32.mrb[0].mxu0
      %v8810 = vadd.f32 %v8649, %v8809
      %v8811 = vpop.f32.mrb[0].mxu0
      %8812 = vmatprep.mubr.bf16.mxu0 %v7583
      %8813 = vmatmul.mubr.bf16.gmra.mrb[0].mxu0 %v7519
      %v8814 = vpop.f32.mrb[0].mxu0
      %v8815 = vadd.f32 %v8654, %v8814
      %v8816 = vpop.f32.mrb[0].mxu0
      %v8817 = vpop.f32.mrb[0].mxu0
      %v8818 = vadd.f32 %v8657, %v8817
      %v8819 = vpop.f32.mrb[0].mxu0
      %8820 = vmatprep.mubr.bf16.mxu0 %v7584
      %8821 = vmatmul.mubr.bf16.gmra.mrb[0].mxu0 %v7520
      %v8822 = vpop.f32.mrb[0].mxu0
      %v8823 = vadd.f32 %v8662, %v8822
      %v8824 = vpop.f32.mrb[0].mxu0
      %v8825 = vpop.f32.mrb[0].mxu0
      %v8826 = vadd.f32 %v8665, %v8825
      %v8827 = vpop.f32.mrb[0].mxu0
      %8828 = vmatprep.mubr.bf16.mxu0 %v7585
      %8829 = vmatmul.mubr.bf16.gmra.mrb[0].mxu0 %v7521
      %v8830 = vpop.f32.mrb[0].mxu0
      %v8831 = vadd.f32 %v8670, %v8830
      %v8832 = vpop.f32.mrb[0].mxu0
      %v8833 = vpop.f32.mrb[0].mxu0
      %v8834 = vadd.f32 %v8673, %v8833
      %v8835 = vpop.f32.mrb[0].mxu0
      %8836 = vmatprep.mubr.bf16.mxu0 %v7586
      %8837 = vmatmul.mubr.bf16.gmra.mrb[0].mxu0 %v7522
      %v8838 = vpop.f32.mrb[0].mxu0
      %v8839 = vadd.f32 %v8678, %v8838
      %v8840 = vpop.f32.mrb[0].mxu0
      %v8841 = vpop.f32.mrb[0].mxu0
      %v8842 = vadd.f32 %v8681, %v8841
      %v8843 = vpop.f32.mrb[0].mxu0
      %8844 = vmatprep.mubr.bf16.mxu0 %v7587
      %8845 = vmatmul.mubr.bf16.gmra.mrb[0].mxu0 %v7523
      %v8846 = vpop.f32.mrb[0].mxu0
      %v8847 = vadd.f32 %v8686, %v8846
      %v8848 = vpop.f32.mrb[0].mxu0
      %v8849 = vpop.f32.mrb[0].mxu0
      %v8850 = vadd.f32 %v8689, %v8849
      %v8851 = vpop.f32.mrb[0].mxu0
      %8852 = vmatprep.mubr.bf16.mxu0 %v7588
      %8853 = vmatmul.mubr.bf16.gmra.mrb[0].mxu0 %v7524
      %v8854 = vpop.f32.mrb[0].mxu0
      %v8855 = vadd.f32 %v8694, %v8854
      %v8856 = vpop.f32.mrb[0].mxu0
      %v8857 = vpop.f32.mrb[0].mxu0
      %v8858 = vadd.f32 %v8697, %v8857
      %v8859 = vpop.f32.mrb[0].mxu0
      %8860 = vmatprep.mubr.bf16.mxu0 %v7589
      %8861 = vmatmul.mubr.bf16.gmra.mrb[0].mxu0 %v7525
      %v8862 = vpop.f32.mrb[0].mxu0
      %v8863 = vadd.f32 %v8702, %v8862
      %v8864 = vpop.f32.mrb[0].mxu0
      %v8865 = vpop.f32.mrb[0].mxu0
      %v8866 = vadd.f32 %v8705, %v8865
      %v8867 = vpop.f32.mrb[0].mxu0
      %8868 = vmatprep.mubr.bf16.mxu0 %v7590
      %8869 = vmatmul.mubr.bf16.gmra.mrb[0].mxu0 %v7526
      %v8870 = vpop.f32.mrb[0].mxu0
      %v8871 = vadd.f32 %v8710, %v8870
      %v8872 = vpop.f32.mrb[0].mxu0
      %v8873 = vpop.f32.mrb[0].mxu0
      %v8874 = vadd.f32 %v8713, %v8873
      %v8875 = vpop.f32.mrb[0].mxu0
      %8876 = vmatprep.mubr.bf16.mxu0 %v7591
      %8877 = vmatmul.mubr.bf16.gmra.mrb[0].mxu0 %v7527
      %v8878 = vpop.f32.mrb[0].mxu0
      %v8879 = vadd.f32 %v8718, %v8878
      %v8880 = vpop.f32.mrb[0].mxu0
      %v8881 = vpop.f32.mrb[0].mxu0
      %v8882 = vadd.f32 %v8721, %v8881
      %v8883 = vpop.f32.mrb[0].mxu0
      %8884 = vmatprep.mubr.bf16.mxu0 %v7592
      %8885 = vmatmul.mubr.bf16.gmra.mrb[0].mxu0 %v7528
      %v8886 = vpop.f32.mrb[0].mxu0
      %v8887 = vadd.f32 %v8726, %v8886
      %v8888 = vpop.f32.mrb[0].mxu0
      %v8889 = vpop.f32.mrb[0].mxu0
      %v8890 = vadd.f32 %v8729, %v8889
      %v8891 = vpop.f32.mrb[0].mxu0
      %8892 = vdwg.mxu0
      %8893 = vmatprep.subr.bf16.mxu0 0
      %8894 = vmatpush1.bf16.msra.mxu0 %v8169
      %8895 = vmatprep.subr.bf16.mxu0 0
      %8896 = vmatpush1.bf16.msra.mxu0 %v8170
      %8897 = vmatprep.subr.bf16.mxu0 0
      %8898 = vmatpush1.bf16.msra.mxu0 %v8171
      %8899 = vmatprep.subr.bf16.mxu0 0
      %8900 = vmatpush1.bf16.msra.mxu0 %v8172
      %8901 = vmatprep.subr.bf16.mxu0 0
      %8902 = vmatpush1.bf16.msra.mxu0 %v8173
      %8903 = vmatprep.subr.bf16.mxu0 0
      %8904 = vmatpush1.bf16.msra.mxu0 %v8174
      %8905 = vmatprep.subr.bf16.mxu0 0
      %8906 = vmatpush1.bf16.msra.mxu0 %v8175
      %8907 = vmatprep.subr.bf16.mxu0 0
      %8908 = vmatpush1.bf16.msra.mxu0 %v8176
      %8909 = vmatprep.subr.bf16.mxu0 0
      %8910 = vmatpush1.bf16.msra.mxu0 0
      %8911 = vmatprep.subr.bf16.mxu0 0
      %8912 = vmatpush1.bf16.msra.mxu0 0
      %8913 = vmatprep.subr.bf16.mxu0 0
      %8914 = vmatpush1.bf16.msra.mxu0 0
      %8915 = vmatprep.subr.bf16.mxu0 0
      %8916 = vmatpush1.bf16.msra.mxu0 0
      %8917 = vmatprep.subr.bf16.mxu0 0
      %8918 = vmatpush1.bf16.msra.mxu0 0
      %8919 = vmatprep.subr.bf16.mxu0 0
      %8920 = vmatpush1.bf16.msra.mxu0 0
      %8921 = vmatprep.subr.bf16.mxu0 0
      %8922 = vmatpush1.bf16.msra.mxu0 0
      %8923 = vmatprep.subr.bf16.mxu0 0
      %8924 = vmatpush1.bf16.msra.mxu0 0
      %8925 = vmatprep.mubr.bf16.mxu0 0
      %8926 = vmatmul.mubr.bf16.gmra.mrb[0].mxu0 %v7641
      %v8927 = vpop.f32.mrb[0].mxu0
      %v8928 = vadd.f32 %v8767, %v8927
      %v8929 = vpop.f32.mrb[0].mxu0
      %v8930 = vpop.f32.mrb[0].mxu0
      %v8931 = vadd.f32 %v8770, %v8930
      %v8932 = vpop.f32.mrb[0].mxu0
      %8933 = vmatprep.mubr.bf16.mxu0 0
      %8934 = vmatmul.mubr.bf16.gmra.mrb[0].mxu0 %v7642
      %v8935 = vpop.f32.mrb[0].mxu0
      %v8936 = vadd.f32 %v8775, %v8935
      %v8937 = vpop.f32.mrb[0].mxu0
      %v8938 = vpop.f32.mrb[0].mxu0
      %v8939 = vadd.f32 %v8778, %v8938
      %v8940 = vpop.f32.mrb[0].mxu0
      %8941 = vmatprep.mubr.bf16.mxu0 0
      %8942 = vmatmul.mubr.bf16.gmra.mrb[0].mxu0 %v7643
      %v8943 = vpop.f32.mrb[0].mxu0
      %v8944 = vadd.f32 %v8783, %v8943
      %v8945 = vpop.f32.mrb[0].mxu0
      %v8946 = vpop.f32.mrb[0].mxu0
      %v8947 = vadd.f32 %v8786, %v8946
      %v8948 = vpop.f32.mrb[0].mxu0
      %8949 = vmatprep.mubr.bf16.mxu0 0
      %8950 = vmatmul.mubr.bf16.gmra.mrb[0].mxu0 %v7644
      %v8951 = vpop.f32.mrb[0].mxu0
      %v8952 = vadd.f32 %v8791, %v8951
      %v8953 = vpop.f32.mrb[0].mxu0
      %v8954 = vpop.f32.mrb[0].mxu0
      %v8955 = vadd.f32 %v8794, %v8954
      %v8956 = vpop.f32.mrb[0].mxu0
      %8957 = vmatprep.mubr.bf16.mxu0 0
      %8958 = vmatmul.mubr.bf16.gmra.mrb[0].mxu0 %v7645
      %v8959 = vpop.f32.mrb[0].mxu0
      %v8960 = vadd.f32 %v8799, %v8959
      %v8961 = vpop.f32.mrb[0].mxu0
      %v8962 = vpop.f32.mrb[0].mxu0
      %v8963 = vadd.f32 %v8802, %v8962
      %v8964 = vpop.f32.mrb[0].mxu0
      %8965 = vmatprep.mubr.bf16.mxu0 0
      %8966 = vmatmul.mubr.bf16.gmra.mrb[0].mxu0 %v7646
      %v8967 = vpop.f32.mrb[0].mxu0
      %v8968 = vadd.f32 %v8807, %v8967
      %v8969 = vpop.f32.mrb[0].mxu0
      %v8970 = vpop.f32.mrb[0].mxu0
      %v8971 = vadd.f32 %v8810, %v8970
      %v8972 = vpop.f32.mrb[0].mxu0
      %8973 = vmatprep.mubr.bf16.mxu0 0
      %8974 = vmatmul.mubr.bf16.gmra.mrb[0].mxu0 %v7647
      %v8975 = vpop.f32.mrb[0].mxu0
      %v8976 = vadd.f32 %v8815, %v8975
      %v8977 = vpop.f32.mrb[0].mxu0
      %v8978 = vpop.f32.mrb[0].mxu0
      %v8979 = vadd.f32 %v8818, %v8978
      %v8980 = vpop.f32.mrb[0].mxu0
      %8981 = vmatprep.mubr.bf16.mxu0 0
      %8982 = vmatmul.mubr.bf16.gmra.mrb[0].mxu0 %v7648
      %v8983 = vpop.f32.mrb[0].mxu0
      %v8984 = vadd.f32 %v8823, %v8983
      %v8985 = vpop.f32.mrb[0].mxu0
      %v8986 = vpop.f32.mrb[0].mxu0
      %v8987 = vadd.f32 %v8826, %v8986
      %v8988 = vpop.f32.mrb[0].mxu0
      %8989 = vmatprep.mubr.bf16.mxu0 0
      %8990 = vmatmul.mubr.bf16.gmra.mrb[0].mxu0 %v7649
      %v8991 = vpop.f32.mrb[0].mxu0
      %v8992 = vadd.f32 %v8831, %v8991
      %v8993 = vpop.f32.mrb[0].mxu0
      %v8994 = vpop.f32.mrb[0].mxu0
      %v8995 = vadd.f32 %v8834, %v8994
      %v8996 = vpop.f32.mrb[0].mxu0
      %8997 = vmatprep.mubr.bf16.mxu0 0
      %8998 = vmatmul.mubr.bf16.gmra.mrb[0].mxu0 %v7650
      %v8999 = vpop.f32.mrb[0].mxu0
      %v9000 = vadd.f32 %v8839, %v8999
      %v9001 = vpop.f32.mrb[0].mxu0
      %v9002 = vpop.f32.mrb[0].mxu0
      %v9003 = vadd.f32 %v8842, %v9002
      %v9004 = vpop.f32.mrb[0].mxu0
      %9005 = vmatprep.mubr.bf16.mxu0 0
      %9006 = vmatmul.mubr.bf16.gmra.mrb[0].mxu0 %v7651
      %v9007 = vpop.f32.mrb[0].mxu0
      %v9008 = vadd.f32 %v8847, %v9007
      %v9009 = vpop.f32.mrb[0].mxu0
      %v9010 = vpop.f32.mrb[0].mxu0
      %v9011 = vadd.f32 %v8850, %v9010
      %v9012 = vpop.f32.mrb[0].mxu0
      %9013 = vmatprep.mubr.bf16.mxu0 0
      %9014 = vmatmul.mubr.bf16.gmra.mrb[0].mxu0 %v7652
      %v9015 = vpop.f32.mrb[0].mxu0
      %v9016 = vadd.f32 %v8855, %v9015
      %v9017 = vpop.f32.mrb[0].mxu0
      %v9018 = vpop.f32.mrb[0].mxu0
      %v9019 = vadd.f32 %v8858, %v9018
      %v9020 = vpop.f32.mrb[0].mxu0
      %9021 = vmatprep.mubr.bf16.mxu0 0
      %9022 = vmatmul.mubr.bf16.gmra.mrb[0].mxu0 %v7653
      %v9023 = vpop.f32.mrb[0].mxu0
      %v9024 = vadd.f32 %v8863, %v9023
      %v9025 = vpop.f32.mrb[0].mxu0
      %v9026 = vpop.f32.mrb[0].mxu0
      %v9027 = vadd.f32 %v8866, %v9026
      %v9028 = vpop.f32.mrb[0].mxu0
      %9029 = vmatprep.mubr.bf16.mxu0 0
      %9030 = vmatmul.mubr.bf16.gmra.mrb[0].mxu0 %v7654
      %v9031 = vpop.f32.mrb[0].mxu0
      %v9032 = vadd.f32 %v8871, %v9031
      %v9033 = vpop.f32.mrb[0].mxu0
      %v9034 = vpop.f32.mrb[0].mxu0
      %v9035 = vadd.f32 %v8874, %v9034
      %v9036 = vpop.f32.mrb[0].mxu0
      %9037 = vmatprep.mubr.bf16.mxu0 0
      %9038 = vmatmul.mubr.bf16.gmra.mrb[0].mxu0 %v7655
      %v9039 = vpop.f32.mrb[0].mxu0
      %v9040 = vadd.f32 %v8879, %v9039
      %v9041 = vpop.f32.mrb[0].mxu0
      %v9042 = vpop.f32.mrb[0].mxu0
      %v9043 = vadd.f32 %v8882, %v9042
      %v9044 = vpop.f32.mrb[0].mxu0
      %9045 = vmatprep.mubr.bf16.mxu0 0
      %9046 = vmatmul.mubr.bf16.gmra.mrb[0].mxu0 %v7656
      %v9047 = vpop.f32.mrb[0].mxu0
      %v9048 = vadd.f32 %v8887, %v9047
      %v9049 = vpop.f32.mrb[0].mxu0
      %v9050 = vpop.f32.mrb[0].mxu0
      %v9051 = vadd.f32 %v8890, %v9050
      %v9052 = vpop.f32.mrb[0].mxu0
      %9053 = vdwg.mxu0
      %v9054 = vadd.f32 %v8928, %v8931
      %v9055 = vadd.f32 %v9054, %v8936
      %v9056 = vadd.f32 %v9055, %v8939
      %v9057 = vadd.f32 %v9056, %v8944
      %v9058 = vadd.f32 %v9057, %v8947
      %v9059 = vadd.f32 %v9058, %v8952
      %v9060 = vadd.f32 %v9059, %v8955
      %v9061 = vadd.f32 %v9060, %v8960
      %v9062 = vadd.f32 %v9061, %v8963
      %v9063 = vadd.f32 %v9062, %v8968
      %v9064 = vadd.f32 %v9063, %v8971
      %v9065 = vadd.f32 %v9064, %v8976
      %v9066 = vadd.f32 %v9065, %v8979
      %v9067 = vadd.f32 %v9066, %v8984
      %v9068 = vadd.f32 %v9067, %v8987
      %v9069 = vadd.f32 %v9068, %v8992
      %v9070 = vadd.f32 %v9069, %v8995
      %v9071 = vadd.f32 %v9070, %v9000
      %v9072 = vadd.f32 %v9071, %v9003
      %v9073 = vadd.f32 %v9072, %v9008
      %v9074 = vadd.f32 %v9073, %v9011
      %v9075 = vadd.f32 %v9074, %v9016
      %v9076 = vadd.f32 %v9075, %v9019
      %v9077 = vadd.f32 %v9076, %v9024
      %v9078 = vadd.f32 %v9077, %v9027
      %v9079 = vadd.f32 %v9078, %v9032
      %v9080 = vadd.f32 %v9079, %v9035
      %v9081 = vadd.f32 %v9080, %v9040
      %v9082 = vadd.f32 %v9081, %v9043
      %v9083 = vadd.f32 %v9082, %v9048
      %v9084 = vadd.f32 %v9083, %v9051
      %v9085 = vrot.slane %v9084, 4
      %v9086 = vadd.f32 %v9084, %v9085
      %v9087 = vrot.slane %v9086, 2
      %v9088 = vadd.f32 %v9086, %v9087
      %v9089 = vrot.slane %v9088, 1
      %v9090 = vadd.f32 %v9088, %v9089
      %v9091 = vmul.f32 %v9090, 0.00390625
      %v9092 = vmul.f32 %v8928, %v8928
      %v9093 = vmul.f32 %v8931, %v8931
      %v9094 = vmul.f32 %v8936, %v8936
      %v9095 = vmul.f32 %v8939, %v8939
      %v9096 = vmul.f32 %v8944, %v8944
      %v9097 = vmul.f32 %v8947, %v8947
      %v9098 = vmul.f32 %v8952, %v8952
      %v9099 = vmul.f32 %v8955, %v8955
      %v9100 = vmul.f32 %v8960, %v8960
      %v9101 = vmul.f32 %v8963, %v8963
      %v9102 = vmul.f32 %v8968, %v8968
      %v9103 = vmul.f32 %v8971, %v8971
      %v9104 = vmul.f32 %v8976, %v8976
      %v9105 = vmul.f32 %v8979, %v8979
      %v9106 = vmul.f32 %v8984, %v8984
      %v9107 = vmul.f32 %v8987, %v8987
      %v9108 = vmul.f32 %v8992, %v8992
      %v9109 = vmul.f32 %v8995, %v8995
      %v9110 = vmul.f32 %v9000, %v9000
      %v9111 = vmul.f32 %v9003, %v9003
      %v9112 = vmul.f32 %v9008, %v9008
      %v9113 = vmul.f32 %v9011, %v9011
      %v9114 = vmul.f32 %v9016, %v9016
      %v9115 = vmul.f32 %v9019, %v9019
      %v9116 = vmul.f32 %v9024, %v9024
      %v9117 = vmul.f32 %v9027, %v9027
      %v9118 = vmul.f32 %v9032, %v9032
      %v9119 = vmul.f32 %v9035, %v9035
      %v9120 = vmul.f32 %v9040, %v9040
      %v9121 = vmul.f32 %v9043, %v9043
      %v9122 = vmul.f32 %v9048, %v9048
      %v9123 = vmul.f32 %v9051, %v9051
      %v9124 = vadd.f32 %v9092, %v9093
      %v9125 = vadd.f32 %v9124, %v9094
      %v9126 = vadd.f32 %v9125, %v9095
      %v9127 = vadd.f32 %v9126, %v9096
      %v9128 = vadd.f32 %v9127, %v9097
      %v9129 = vadd.f32 %v9128, %v9098
      %v9130 = vadd.f32 %v9129, %v9099
      %v9131 = vadd.f32 %v9130, %v9100
      %v9132 = vadd.f32 %v9131, %v9101
      %v9133 = vadd.f32 %v9132, %v9102
      %v9134 = vadd.f32 %v9133, %v9103
      %v9135 = vadd.f32 %v9134, %v9104
      %v9136 = vadd.f32 %v9135, %v9105
      %v9137 = vadd.f32 %v9136, %v9106
      %v9138 = vadd.f32 %v9137, %v9107
      %v9139 = vadd.f32 %v9138, %v9108
      %v9140 = vadd.f32 %v9139, %v9109
      %v9141 = vadd.f32 %v9140, %v9110
      %v9142 = vadd.f32 %v9141, %v9111
      %v9143 = vadd.f32 %v9142, %v9112
      %v9144 = vadd.f32 %v9143, %v9113
      %v9145 = vadd.f32 %v9144, %v9114
      %v9146 = vadd.f32 %v9145, %v9115
      %v9147 = vadd.f32 %v9146, %v9116
      %v9148 = vadd.f32 %v9147, %v9117
      %v9149 = vadd.f32 %v9148, %v9118
      %v9150 = vadd.f32 %v9149, %v9119
      %v9151 = vadd.f32 %v9150, %v9120
      %v9152 = vadd.f32 %v9151, %v9121
      %v9153 = vadd.f32 %v9152, %v9122
      %v9154 = vadd.f32 %v9153, %v9123
      %v9155 = vrot.slane %v9154, 4
      %v9156 = vadd.f32 %v9154, %v9155
      %v9157 = vrot.slane %v9156, 2
      %v9158 = vadd.f32 %v9156, %v9157
      %v9159 = vrot.slane %v9158, 1
      %v9160 = vadd.f32 %v9158, %v9159
      %v9161 = vmul.f32 %v9160, 0.00390625
      %v9162 = vmul.f32 %v9091, %v9091
      %v9163 = vsub.f32 %v9161, %v9162
      %v9164 = vmax.f32 %v9163, 0.0
      %v9165 = vadd.f32 %v9164, 1e-05
      %v9166 = vrsqrt.pop %v9165
      %v9167 = vmul.f32 %v8928, %v9166
      %v9168 = vmul.f32 %v8931, %v9166
      %v9169 = vmul.f32 %v8936, %v9166
      %v9170 = vmul.f32 %v8939, %v9166
      %v9171 = vmul.f32 %v8944, %v9166
      %v9172 = vmul.f32 %v8947, %v9166
      %v9173 = vmul.f32 %v8952, %v9166
      %v9174 = vmul.f32 %v8955, %v9166
      %v9175 = vmul.f32 %v8960, %v9166
      %v9176 = vmul.f32 %v8963, %v9166
      %v9177 = vmul.f32 %v8968, %v9166
      %v9178 = vmul.f32 %v8971, %v9166
      %v9179 = vmul.f32 %v8976, %v9166
      %v9180 = vmul.f32 %v8979, %v9166
      %v9181 = vmul.f32 %v8984, %v9166
      %v9182 = vmul.f32 %v8987, %v9166
      %v9183 = vmul.f32 %v8992, %v9166
      %v9184 = vmul.f32 %v8995, %v9166
      %v9185 = vmul.f32 %v9000, %v9166
      %v9186 = vmul.f32 %v9003, %v9166
      %v9187 = vmul.f32 %v9008, %v9166
      %v9188 = vmul.f32 %v9011, %v9166
      %v9189 = vmul.f32 %v9016, %v9166
      %v9190 = vmul.f32 %v9019, %v9166
      %v9191 = vmul.f32 %v9024, %v9166
      %v9192 = vmul.f32 %v9027, %v9166
      %v9193 = vmul.f32 %v9032, %v9166
      %v9194 = vmul.f32 %v9035, %v9166
      %v9195 = vmul.f32 %v9040, %v9166
      %v9196 = vmul.f32 %v9043, %v9166
      %v9197 = vmul.f32 %v9048, %v9166
      %v9198 = vmul.f32 %v9051, %v9166
      %v9199 = vsub.f32 0.0, %v9091
      %v9200 = vmul.f32 %v9199, %v9166
      %v9201 = vadd.f32 %v9167, %v9200
      %v9202 = vadd.f32 %v9168, %v9200
      %v9203 = vadd.f32 %v9169, %v9200
      %v9204 = vadd.f32 %v9170, %v9200
      %v9205 = vadd.f32 %v9171, %v9200
      %v9206 = vadd.f32 %v9172, %v9200
      %v9207 = vadd.f32 %v9173, %v9200
      %v9208 = vadd.f32 %v9174, %v9200
      %v9209 = vadd.f32 %v9175, %v9200
      %v9210 = vadd.f32 %v9176, %v9200
      %v9211 = vadd.f32 %v9177, %v9200
      %v9212 = vadd.f32 %v9178, %v9200
      %v9213 = vadd.f32 %v9179, %v9200
      %v9214 = vadd.f32 %v9180, %v9200
      %v9215 = vadd.f32 %v9181, %v9200
      %v9216 = vadd.f32 %v9182, %v9200
      %v9217 = vadd.f32 %v9183, %v9200
      %v9218 = vadd.f32 %v9184, %v9200
      %v9219 = vadd.f32 %v9185, %v9200
      %v9220 = vadd.f32 %v9186, %v9200
      %v9221 = vadd.f32 %v9187, %v9200
      %v9222 = vadd.f32 %v9188, %v9200
      %v9223 = vadd.f32 %v9189, %v9200
      %v9224 = vadd.f32 %v9190, %v9200
      %v9225 = vadd.f32 %v9191, %v9200
      %v9226 = vadd.f32 %v9192, %v9200
      %v9227 = vadd.f32 %v9193, %v9200
      %v9228 = vadd.f32 %v9194, %v9200
      %v9229 = vadd.f32 %v9195, %v9200
      %v9230 = vadd.f32 %v9196, %v9200
      %v9231 = vadd.f32 %v9197, %v9200
      %v9232 = vadd.f32 %v9198, %v9200
      %v9233 = vadd.f32 %v172, %v9201
      %v9234 = vadd.f32 %v173, %v9202
      %v9235 = vadd.f32 %v174, %v9203
      %v9236 = vadd.f32 %v175, %v9204
      %v9237 = vadd.f32 %v176, %v9205
      %v9238 = vadd.f32 %v177, %v9206
      %v9239 = vadd.f32 %v178, %v9207
      %v9240 = vadd.f32 %v179, %v9208
      %v9241 = vadd.f32 %v180, %v9209
      %v9242 = vadd.f32 %v181, %v9210
      %v9243 = vadd.f32 %v182, %v9211
      %v9244 = vadd.f32 %v183, %v9212
      %v9245 = vadd.f32 %v184, %v9213
      %v9246 = vadd.f32 %v185, %v9214
      %v9247 = vadd.f32 %v186, %v9215
      %v9248 = vadd.f32 %v187, %v9216
      %v9249 = vadd.f32 %v188, %v9217
      %v9250 = vadd.f32 %v189, %v9218
      %v9251 = vadd.f32 %v190, %v9219
      %v9252 = vadd.f32 %v191, %v9220
      %v9253 = vadd.f32 %v192, %v9221
      %v9254 = vadd.f32 %v193, %v9222
      %v9255 = vadd.f32 %v194, %v9223
      %v9256 = vadd.f32 %v195, %v9224
      %v9257 = vadd.f32 %v196, %v9225
      %v9258 = vadd.f32 %v197, %v9226
      %v9259 = vadd.f32 %v198, %v9227
      %v9260 = vadd.f32 %v199, %v9228
      %v9261 = vadd.f32 %v200, %v9229
      %v9262 = vadd.f32 %v201, %v9230
      %v9263 = vadd.f32 %v202, %v9231
      %v9264 = vadd.f32 %v203, %v9232
      %9265 = vst [vmem:[%s170] sm:$0xff] %v9233
      %9266 = vst [vmem:[%s170 + $0x8] sm:$0xff] %v9234
      %9267 = vst [vmem:[%s170 + $0x10] sm:$0xff] %v9235
      %9268 = vst [vmem:[%s170 + $0x18] sm:$0xff] %v9236
      %9269 = vst [vmem:[%s170 + $0x20] sm:$0xff] %v9237
      %9270 = vst [vmem:[%s170 + $0x28] sm:$0xff] %v9238
      %9271 = vst [vmem:[%s170 + $0x30] sm:$0xff] %v9239
      %9272 = vst [vmem:[%s170 + $0x38] sm:$0xff] %v9240
      %9273 = vst [vmem:[%s170 + $0x40] sm:$0xff] %v9241
      %9274 = vst [vmem:[%s170 + $0x48] sm:$0xff] %v9242
      %9275 = vst [vmem:[%s170 + $0x50] sm:$0xff] %v9243
      %9276 = vst [vmem:[%s170 + $0x58] sm:$0xff] %v9244
      %9277 = vst [vmem:[%s170 + $0x60] sm:$0xff] %v9245
      %9278 = vst [vmem:[%s170 + $0x68] sm:$0xff] %v9246
      %9279 = vst [vmem:[%s170 + $0x70] sm:$0xff] %v9247
      %9280 = vst [vmem:[%s170 + $0x78] sm:$0xff] %v9248
      %9281 = vst [vmem:[%s170 + $0x80] sm:$0xff] %v9249
      %9282 = vst [vmem:[%s170 + $0x88] sm:$0xff] %v9250
      %9283 = vst [vmem:[%s170 + $0x90] sm:$0xff] %v9251
      %9284 = vst [vmem:[%s170 + $0x98] sm:$0xff] %v9252
      %9285 = vst [vmem:[%s170 + $0xa0] sm:$0xff] %v9253
      %9286 = vst [vmem:[%s170 + $0xa8] sm:$0xff] %v9254
      %9287 = vst [vmem:[%s170 + $0xb0] sm:$0xff] %v9255
      %9288 = vst [vmem:[%s170 + $0xb8] sm:$0xff] %v9256
      %9289 = vst [vmem:[%s170 + $0xc0] sm:$0xff] %v9257
      %9290 = vst [vmem:[%s170 + $0xc8] sm:$0xff] %v9258
      %9291 = vst [vmem:[%s170 + $0xd0] sm:$0xff] %v9259
      %9292 = vst [vmem:[%s170 + $0xd8] sm:$0xff] %v9260
      %9293 = vst [vmem:[%s170 + $0xe0] sm:$0xff] %v9261
      %9294 = vst [vmem:[%s170 + $0xe8] sm:$0xff] %v9262
      %9295 = vst [vmem:[%s170 + $0xf0] sm:$0xff] %v9263
      %9296 = vst [vmem:[%s170 + $0xf8] sm:$0xff] %v9264
      %p9297 = scmp.lt.s32.totalorder %s14, 1
      %s9298 = scalar_select %p9297, %s14, 1
      %s9299 = smul.addr %s9298, 32
      %s9300 = smul.addr %s9299, 8
      %s9301 = scalar_lea.vmem %s3, %s9300
      // Predicated region
      $region33: #{residual_block.1} parent=31 // pred_check
        %p9302 = pneg %p100
      $region34: #{residual_block.1} parent=31 // pred_check_branch
        %9304 = sbr.rel (%p9302) target = $region36
      $region35: #{residual_block.1} parent=31 // pred_region
        _
      $region36: #{residual_block.1} parent=31 // pred_fallthru
        _
    $region32: #{residual_block.1} parent=5 // pred_fallthru
      _
    %p9305 = scmp.le.s32.totalorder 2, %s9
    // Predicated region
    $region37: #{residual_block.1} parent=5 // pred_check
      %p9306 = pneg %p9305
    $region38: #{residual_block.1} parent=5 // pred_check_branch
      %9308 = sbr.rel (%p9306) target = $region40
    $region39: #{residual_block.1} parent=5 // pred_region
      %s9309 = ssub.s32 %s9, 2
      // Predicated region
      $region41: #{residual_block.1} parent=39 // pred_check
        %p9310 = pneg %p106
      $region42: #{residual_block.1} parent=39 // pred_check_branch
        %9312 = sbr.rel (%p9310) target = $region44
      $region43: #{residual_block.1} parent=39 // pred_region
        %p9313 = scmp.lt.s32.totalorder %s15, 1
        %s9314 = scalar_select %p9313, %s15, 1
        %s9315 = smul.addr %s9314, 32
        %s9316 = smul.addr %s9315, 8
        %s9317 = scalar_lea.vmem %s3, %s9316
      $region44: #{residual_block.1} parent=39 // pred_fallthru
        _
    $region40: #{residual_block.1} parent=5 // pred_fallthru
      _
  $region6: #{residual_block.1} parent=0 // loop_footer
    %s13 = sadd.s32 1, %s9
  $region7: #{residual_block.1} parent=0 // loop_footer_branch
    %8 = sbr.rel target = $region3
  $region8: #{residual_block.1} parent=0 // loop_exit
    _

</llo_original>
